<compile_context>
chip_gen: v6e
topology: v6e:2x2x1
jax: 0.10.0
libtpu: 0.0.40
codegen_flags: <defaults>
</compile_context>

<pallas_src>
import math
import jax
import jax.numpy as jnp
from jax import lax
from jax.experimental import pallas as pl
from jax.experimental.pallas import tpu as pltpu

# ---------------- configuration (small shapes consistent with the module) ----------------
B = 2            # batch
S = 16           # seq_len
D = 32           # d_model
N_HEADS = 4
DH = D // N_HEADS
D_FF = 64
WINDOW = 4       # local_window_size (> 0 -> windowed self-attention)
L = 8            # num_latents
H_GRU = 32       # gru_hidden == d_model -> GRU out_proj is Identity
GATE_H = 16      # gate_hidden
N_GATES = 3
EPS = 1e-5       # nn.LayerNorm default eps
SCALE = 1.0 / math.sqrt(DH)
NEG_INF = -1e30

N_TOK = B * S    # tokens per kernel invocation (time-major flatten: row = t*B + b)
N_LAT = B * L    # latent rows per invocation (batch-blocked:      row = b*L + l)
LANES = 128      # slab lane width (one full vreg lane span)

assert B & (B - 1) == 0 and L & (L - 1) == 0 and DH & (DH - 1) == 0
LOG2_B = int(math.log2(B))
LOG2_L = int(math.log2(L))
LOG2_DH = int(math.log2(DH))

# ---------------- packed-parameter layout (sublane-stacked, lane offset 0) ----------------
W_LAYOUT = [  # (name, rows, cols); row offsets stay multiples of 8 -> clean tile-aligned loads
    ("loc_wq", D, D), ("loc_wk", D, D), ("loc_wvo", D, N_HEADS * D),
    ("t2l_wq", D, D), ("t2l_wk", D, D), ("t2l_wvo", D, N_HEADS * D),
    ("l2t_wq", D, D), ("l2t_wk", D, D), ("l2t_wvo", D, N_HEADS * D),
    ("gru_w_ih", D, 3 * H_GRU), ("gru_w_hh", H_GRU, 3 * H_GRU),
    ("gate_w1", D, GATE_H), ("gate_w2", GATE_H, N_GATES),
    ("ffn_w1", D, D_FF), ("ffn_w2", D_FF, D),
]
V_LAYOUT = [  # (name, cols); one vector per 8-row tile
    ("ni_g", D), ("ni_b", D),
    ("loc_bq", D), ("loc_bk", D), ("loc_bo", D),
    ("t2l_bq", D), ("t2l_bk", D), ("t2l_bo", D),
    ("nl_g", D), ("nl_b", D),
    ("l2t_bq", D), ("l2t_bk", D), ("l2t_bo", D),
    ("gru_b_ih", 3 * H_GRU), ("gru_b_hn", H_GRU),
    ("gate_b1", GATE_H), ("gate_b2", N_GATES),
    ("nf_g", D), ("nf_b", D),
    ("ffn_b1", D_FF), ("ffn_b2", D),
]


def _w_offsets(layout):
    off, table = 0, {}
    for name, rows, cols in layout:
        table[name] = (off, rows, cols)
        off += rows
    return table, off


W_OFF, W_ROWS = _w_offsets(W_LAYOUT)
V_OFF = {name: (i, cols) for i, (name, cols) in enumerate(V_LAYOUT)}
V_ROWS = 8 * len(V_LAYOUT)


# ---------------- in-kernel math helpers (pure jnp, traced inside the kernel) ----------------
def _layer_norm(v, g, b):
    mu = jnp.mean(v, axis=-1, keepdims=True)
    var = jnp.mean(jnp.square(v - mu), axis=-1, keepdims=True)
    return (v - mu) * lax.rsqrt(var + EPS) * g + b


def _gelu(v):
    # TODO(synk): PyTorch nn.GELU() defaults to the exact erf form; the tanh approximation
    # is used because lax.erf has no guaranteed Mosaic lowering (small systematic mismatch).
    return jax.nn.gelu(v, approximate=True)


def _attention(q_in, kv_in, wq, bq, wk, bk, wvo, bo, bias, head_masks):
    """Multi-head attention with the output projection pre-folded into V.

    q_in: (Nq, D), kv_in: (Nk, D).  wvo: (D, N_HEADS*D) lane-dense folded V
    projection (per-head W_v_h @ W_out_h concatenated on lanes); bo is the
    folded output bias.  Per-head Q separation uses constant lane masks and a
    full-width contraction, so there are no 8-lane extracts and no head concat.
    """
    q = jnp.dot(q_in, wq, preferred_element_type=jnp.float32) + bq
    k = jnp.dot(kv_in, wk, preferred_element_type=jnp.float32) + bk
    v4 = jnp.dot(kv_in, wvo, preferred_element_type=jnp.float32)      # (Nk, H*D), lane-dense
    acc = None
    for h in range(N_HEADS):
        s = lax.dot_general(q * head_masks[h], k, (((1,), (1,)), ((), ())),
                            preferred_element_type=jnp.float32) * SCALE + bias
        p = jax.nn.softmax(s, axis=-1)
        pv = jnp.dot(p, v4[:, h * D:(h + 1) * D],
                     preferred_element_type=jnp.float32)
        acc = pv if acc is None else acc + pv                          # v7x MRB can absorb the adds
    return acc + bo


# ---------------- the fused MGALayer kernel (single grid step, whole batch) ----------------
def mga_kernel(x_ref, w_ref, v_ref, lat_ref, o_ref):
    def W(name):                        # tile-aligned static slice of the weight slab
        off, rows, cols = W_OFF[name]
        return w_ref[off:off + rows, 0:cols]

    def V(name):                        # tile-aligned static slice of the vector slab
        idx, cols = V_OFF[name]
        return v_ref[8 * idx:8 * idx + 1, 0:cols]

    x = x_ref[...]                                            # (N_TOK, D), row = t*B + b
    x_norm = _layer_norm(x, V("ni_g"), V("ni_b"))             # norm_input (Pre-LN), shared

    # constant per-head lane masks, built once
    lane = lax.broadcasted_iota(jnp.int32, (1, D), 1)
    head_id = jnp.right_shift(lane, LOG2_DH)
    head_masks = [(head_id == h).astype(jnp.float32) for h in range(N_HEADS)]

    # ----- local (windowed) self-attention: window mask + cross-batch block mask -----
    ti = lax.broadcasted_iota(jnp.int32, (N_TOK, N_TOK), 0)
    tj = lax.broadcasted_iota(jnp.int32, (N_TOK, N_TOK), 1)
    same_b = jnp.bitwise_and(ti, B - 1) == jnp.bitwise_and(tj, B - 1)
    dt = jnp.right_shift(ti, LOG2_B) - jnp.right_shift(tj, LOG2_B)
    in_win = (dt >= -WINDOW) & (dt <= WINDOW)                 # symmetric (non-causal) window
    loc_bias = jnp.where(same_b & in_win, 0.0, NEG_INF)
    local_out = _attention(x_norm, x_norm,
                           W("loc_wq"), V("loc_bq"), W("loc_wk"), V("loc_bk"),
                           W("loc_wvo"), V("loc_bo"), loc_bias, head_masks)

    # ----- global latent bottleneck attention -----
    lat = lat_ref[...]                                        # (N_LAT, D), row = b*L + l
    li = lax.broadcasted_iota(jnp.int32, (N_LAT, N_TOK), 0)
    lj = lax.broadcasted_iota(jnp.int32, (N_LAT, N_TOK), 1)
    t2l_bias = jnp.where(jnp.right_shift(li, LOG2_L) == jnp.bitwise_and(lj, B - 1),
                         0.0, NEG_INF)                        # latent batch == token batch
    lat_prime = _attention(lat, x_norm,
                           W("t2l_wq"), V("t2l_bq"), W("t2l_wk"), V("t2l_bk"),
                           W("t2l_wvo"), V("t2l_bo"), t2l_bias, head_masks)
    lat_upd = _layer_norm(lat + lat_prime, V("nl_g"), V("nl_b"))

    gi = lax.broadcasted_iota(jnp.int32, (N_TOK, N_LAT), 0)
    gj = lax.broadcasted_iota(jnp.int32, (N_TOK, N_LAT), 1)
    l2t_bias = jnp.where(jnp.bitwise_and(gi, B - 1) == jnp.right_shift(gj, LOG2_L),
                         0.0, NEG_INF)                        # token batch == latent batch
    global_out = _attention(x_norm, lat_upd,
                            W("l2t_wq"), V("l2t_bq"), W("l2t_wk"), V("l2t_bk"),
                            W("l2t_wvo"), V("l2t_bo"), l2t_bias, head_masks)

    # ----- GRU state path (time-major: step t reads contiguous rows t*B .. t*B+B-1) -----
    w_hh = W("gru_w_hh")                                      # (H, 3H), loop-invariant
    b_hn = V("gru_b_hn")                                      # (1, H); b_hr/b_hz folded into b_ih at pack time
    xg = (jnp.dot(x_norm, W("gru_w_ih"), preferred_element_type=jnp.float32)
          + V("gru_b_ih"))                                    # (N_TOK, 3H), gate order [r, z, n]
    xg_r = xg[:, 0:H_GRU]                                     # gate pre-split once, outside the loop
    xg_z = xg[:, H_GRU:2 * H_GRU]
    xg_n = xg[:, 2 * H_GRU:]
    # TODO(synk): could hold w_hh resident in the MXU via pltpu.matmul_push_rhs /
    # matmul_acc_lhs; kept as a statically unrolled jnp loop for robust lowering.
    h = jnp.zeros((B, H_GRU), jnp.float32)                    # h0 = 0 (PyTorch default)
    hs = []
    for t in range(S):                                        # static unroll, (B,H) carry in registers
        r0 = t * B
        hg = jnp.dot(h, w_hh, preferred_element_type=jnp.float32)      # (B, 3H)
        r = jax.nn.sigmoid(xg_r[r0:r0 + B, :] + hg[:, 0:H_GRU])
        z = jax.nn.sigmoid(xg_z[r0:r0 + B, :] + hg[:, H_GRU:2 * H_GRU])
        n = jnp.tanh(xg_n[r0:r0 + B, :] + r * (hg[:, 2 * H_GRU:] + b_hn))
        h = (1.0 - z) * n + z * h
        hs.append(h)
    state_out = jnp.concatenate(hs, axis=0)                   # (N_TOK, H) time-major; out_proj = Identity

    # ----- gating network + fusion -----
    g_hid = _gelu(jnp.dot(x_norm, W("gate_w1"), preferred_element_type=jnp.float32)
                  + V("gate_b1"))
    logits = (jnp.dot(g_hid, W("gate_w2"), preferred_element_type=jnp.float32)
              + V("gate_b2"))
    gate = jax.nn.softmax(logits, axis=-1)                    # (N_TOK, 3)
    fused = (gate[:, 0:1] * local_out
             + gate[:, 1:2] * global_out
             + gate[:, 2:3] * state_out)
    x_mid = x + fused                                         # residual (dropout_fusion = identity)

    # ----- FFN block -----
    x_ffn = _layer_norm(x_mid, V("nf_g"), V("nf_b"))
    ff = _gelu(jnp.dot(x_ffn, W("ffn_w1"), preferred_element_type=jnp.float32)
               + V("ffn_b1"))
    ff = jnp.dot(ff, W("ffn_w2"), preferred_element_type=jnp.float32) + V("ffn_b2")
    o_ref[...] = (x_mid + ff).astype(o_ref.dtype)             # residual (dropout_ffn = identity)


# ---------------- wrapper: single-step pallas_call on time-major flattened tokens ----------------
def mga_layer_forward(x, w_slab, v_slab, lat_rep):
    Bx, Sx, Dx = x.shape
    assert (Bx, Sx, Dx) == (B, S, D)
    n_tok = Bx * Sx
    # Layout plumbing outside the kernel: time-major flatten so GRU steps read
    # contiguous row pairs and all token-wise math runs once on (B*S, D).
    x_tm = jnp.transpose(x, (1, 0, 2)).reshape(n_tok, Dx)
    # TODO(synk): on v7x (2 TensorCores) a grid over the batch with
    # dimension_semantics=("parallel",) would use both cores; the merged single
    # step below is the better choice on single-TC v5e/v6e and is what we ship.
    out_tm = pl.pallas_call(
        mga_kernel,
        out_shape=jax.ShapeDtypeStruct((n_tok, Dx), jnp.float32),
        grid=(1,),
        in_specs=[
            pl.BlockSpec((n_tok, Dx), lambda i: (0, 0)),      # time-major tokens
            pl.BlockSpec(w_slab.shape, lambda i: (0, 0)),     # packed, 128-lane-aligned weights
            pl.BlockSpec(v_slab.shape, lambda i: (0, 0)),     # packed bias / LayerNorm vectors
            pl.BlockSpec(lat_rep.shape, lambda i: (0, 0)),    # latents replicated per batch
        ],
        out_specs=pl.BlockSpec((n_tok, Dx), lambda i: (0, 0)),
        compiler_params=pltpu.CompilerParams(
            dimension_semantics=("arbitrary",)),
    )(x_tm, w_slab, v_slab, lat_rep)
    return jnp.transpose(out_tm.reshape(Sx, Bx, Dx), (1, 0, 2))


mga_layer = jax.jit(mga_layer_forward)


# ---------------- deterministic synthetic parameters (PyTorch-layout) ----------------
def make_params(key):
    keys = iter(jax.random.split(key, 64))

    def rnd(shape, scale=0.05):
        return jax.random.normal(next(keys), shape, jnp.float32) * scale

    def ln_g():
        return 1.0 + rnd((1, D), 0.01)

    def ln_b():
        return rnd((1, D), 0.01)

    return {
        "ni_g": ln_g(), "ni_b": ln_b(),
        "loc_w_in": rnd((D, 3 * D)), "loc_b_in": rnd((1, 3 * D)),
        "loc_w_out": rnd((D, D)), "loc_b_out": rnd((1, D)),
        "latents": rnd((L, D), 0.2),
        "t2l_w_in": rnd((D, 3 * D)), "t2l_b_in": rnd((1, 3 * D)),
        "t2l_w_out": rnd((D, D)), "t2l_b_out": rnd((1, D)),
        "nl_g": ln_g(), "nl_b": ln_b(),
        "l2t_w_in": rnd((D, 3 * D)), "l2t_b_in": rnd((1, 3 * D)),
        "l2t_w_out": rnd((D, D)), "l2t_b_out": rnd((1, D)),
        "gru_w_ih": rnd((D, 3 * H_GRU)), "gru_w_hh": rnd((H_GRU, 3 * H_GRU)),
        "gru_b_ih": rnd((1, 3 * H_GRU)), "gru_b_hh": rnd((1, 3 * H_GRU)),
        "gate_w1": rnd((D, GATE_H)), "gate_b1": rnd((1, GATE_H)),
        "gate_w2": rnd((GATE_H, N_GATES)), "gate_b2": rnd((1, N_GATES)),
        "nf_g": ln_g(), "nf_b": ln_b(),
        "ffn_w1": rnd((D, D_FF)), "ffn_b1": rnd((1, D_FF)),
        "ffn_w2": rnd((D_FF, D)), "ffn_b2": rnd((1, D)),
    }


def pack_params(p):
    """One-time host-side packing: W_out fold, GRU bias fold, 128-lane-aligned slabs."""
    src = {
        "ni_g": p["ni_g"], "ni_b": p["ni_b"],
        "nl_g": p["nl_g"], "nl_b": p["nl_b"],
        "nf_g": p["nf_g"], "nf_b": p["nf_b"],
        "gru_w_ih": p["gru_w_ih"], "gru_w_hh": p["gru_w_hh"],
        "gate_w1": p["gate_w1"], "gate_b1": p["gate_b1"],
        "gate_w2": p["gate_w2"], "gate_b2": p["gate_b2"],
        "ffn_w1": p["ffn_w1"], "ffn_b1": p["ffn_b1"],
        "ffn_w2": p["ffn_w2"], "ffn_b2": p["ffn_b2"],
    }
    # Fold each attention's out-projection into its V projection (bias folded too:
    # softmax rows sum to 1, so b_v contributes b_v @ W_out uniformly).
    for pre in ("loc", "t2l", "l2t"):
        w_in, b_in = p[f"{pre}_w_in"], p[f"{pre}_b_in"]
        w_out, b_out = p[f"{pre}_w_out"], p[f"{pre}_b_out"]
        wv, bv = w_in[:, 2 * D:], b_in[:, 2 * D:]
        src[f"{pre}_wq"], src[f"{pre}_bq"] = w_in[:, 0:D], b_in[:, 0:D]
        src[f"{pre}_wk"], src[f"{pre}_bk"] = w_in[:, D:2 * D], b_in[:, D:2 * D]
        src[f"{pre}_wvo"] = jnp.concatenate(
            [wv[:, h * DH:(h + 1) * DH] @ w_out[h * DH:(h + 1) * DH, :]
             for h in range(N_HEADS)], axis=1)                         # (D, H*D) lane-dense
        src[f"{pre}_bo"] = b_out + bv @ w_out
    # GRU: hoist the r/z part of b_hh into b_ih (b_hn must stay inside the n-gate,
    # since PyTorch applies r to (W_hn h + b_hn)).
    b_hh = p["gru_b_hh"]
    src["gru_b_ih"] = p["gru_b_ih"] + jnp.concatenate(
        [b_hh[:, 0:2 * H_GRU], jnp.zeros((1, H_GRU), jnp.float32)], axis=1)
    src["gru_b_hn"] = b_hh[:, 2 * H_GRU:]

    w_parts = []
    for name, rows, cols in W_LAYOUT:
        a = src[name]
        assert a.shape == (rows, cols), (name, a.shape)
        w_parts.append(jnp.pad(a, ((0, 0), (0, LANES - cols))))
    w_slab = jnp.concatenate(w_parts, axis=0)                          # (W_ROWS, 128)
    assert w_slab.shape == (W_ROWS, LANES)

    v_parts = []
    for name, cols in V_LAYOUT:
        a = src[name]
        assert a.shape == (1, cols), (name, a.shape)
        v_parts.append(jnp.pad(a, ((0, 7), (0, LANES - cols))))        # one 8-row tile per vector
    v_slab = jnp.concatenate(v_parts, axis=0)                          # (V_ROWS, 128)
    assert v_slab.shape == (V_ROWS, LANES)

    lat_rep = jnp.concatenate([p["latents"]] * B, axis=0)              # (B*L, D) batch-blocked
    return w_slab, v_slab, lat_rep


if __name__ == "__main__":
    key = jax.random.PRNGKey(0)
    kx, kp = jax.random.split(key)
    x = jax.random.normal(kx, (B, S, D), jnp.float32)
    params = make_params(kp)
    w_slab, v_slab, lat_rep = pack_params(params)

    out = mga_layer(x, w_slab, v_slab, lat_rep)
    out = jax.block_until_ready(out)

    assert out.shape == (B, S, D), out.shape
    assert bool(jnp.all(jnp.isfinite(out))), "non-finite values in output"
    print("KERNEL_OK")
</pallas_src>

<mosaic_0001>
module attributes {stable_mosaic.version = 11 : i64} {
  func.func @mga_kernel(%arg0: i32, %arg1: memref<32x32xf32, #tpu.memory_space<vmem>>, %arg2: memref<496x128xf32, #tpu.memory_space<vmem>>, %arg3: memref<168x128xf32, #tpu.memory_space<vmem>>, %arg4: memref<16x32xf32, #tpu.memory_space<vmem>>, %arg5: memref<32x32xf32, #tpu.memory_space<vmem>>) attributes {dimension_semantics = [#tpu.dimension_semantics<arbitrary>], iteration_bounds = array<i64: 1>, scalar_prefetch = 0 : i64, scratch_operands = 0 : i64, tpu.core_type = #tpu.core_type<tc>, window_params = [{pipeline_mode = #tpu.pipeline_mode<synchronous>, transform_indices = @transform_0, window_bounds = array<i64: 32, 32>}, {pipeline_mode = #tpu.pipeline_mode<synchronous>, transform_indices = @transform_1, window_bounds = array<i64: 496, 128>}, {pipeline_mode = #tpu.pipeline_mode<synchronous>, transform_indices = @transform_2, window_bounds = array<i64: 168, 128>}, {pipeline_mode = #tpu.pipeline_mode<synchronous>, transform_indices = @transform_3, window_bounds = array<i64: 16, 32>}, {pipeline_mode = #tpu.pipeline_mode<synchronous>, transform_indices = @transform_4, window_bounds = array<i64: 32, 32>}]} {
    %c0 = arith.constant 0 : index
    %c0_0 = arith.constant 0 : index
    %0 = vector.load %arg1[%c0, %c0_0] : memref<32x32xf32, #tpu.memory_space<vmem>>, vector<32x32xf32>
    %c0_1 = arith.constant 0 : index
    %c0_2 = arith.constant 0 : index
    %1 = vector.load %arg3[%c0_1, %c0_2] : memref<168x128xf32, #tpu.memory_space<vmem>>, vector<1x32xf32>
    %c8 = arith.constant 8 : index
    %c0_3 = arith.constant 0 : index
    %2 = vector.load %arg3[%c8, %c0_3] : memref<168x128xf32, #tpu.memory_space<vmem>>, vector<1x32xf32>
    %cst = arith.constant dense<0.000000e+00> : vector<32xf32>
    %3 = vector.multi_reduction <add>, %0, %cst [1] : vector<32x32xf32> to vector<32xf32>
    %4 = vector.shape_cast %3 : vector<32xf32> to vector<32x1xf32>
    %cst_4 = arith.constant 3.200000e+01 : f32
    %5 = vector.broadcast %cst_4 : f32 to vector<32x1xf32>
    %6 = arith.divf %4, %5 : vector<32x1xf32>
    %7 = vector.broadcast %6 : vector<32x1xf32> to vector<32x32xf32>
    %8 = arith.subf %0, %7 : vector<32x32xf32>
    %9 = arith.mulf %8, %8 : vector<32x32xf32>
    %cst_5 = arith.constant dense<0.000000e+00> : vector<32xf32>
    %10 = vector.multi_reduction <add>, %9, %cst_5 [1] : vector<32x32xf32> to vector<32xf32>
    %11 = vector.shape_cast %10 : vector<32xf32> to vector<32x1xf32>
    %cst_6 = arith.constant 3.200000e+01 : f32
    %12 = vector.broadcast %cst_6 : f32 to vector<32x1xf32>
    %13 = arith.divf %11, %12 : vector<32x1xf32>
    %14 = vector.broadcast %6 : vector<32x1xf32> to vector<32x32xf32>
    %15 = arith.subf %0, %14 : vector<32x32xf32>
    %cst_7 = arith.constant 9.99999974E-6 : f32
    %16 = vector.broadcast %cst_7 : f32 to vector<32x1xf32>
    %17 = arith.addf %13, %16 : vector<32x1xf32>
    %18 = math.rsqrt %17 : vector<32x1xf32>
    %19 = vector.broadcast %18 : vector<32x1xf32> to vector<32x32xf32>
    %20 = arith.mulf %15, %19 : vector<32x32xf32>
    %21 = vector.broadcast %1 : vector<1x32xf32> to vector<32x32xf32>
    %22 = arith.mulf %20, %21 : vector<32x32xf32>
    %23 = vector.broadcast %2 : vector<1x32xf32> to vector<32x32xf32>
    %24 = arith.addf %22, %23 : vector<32x32xf32>
    %25 = tpu.iota {dimensions = array<i32: 1>} : vector<1x32xi32>
    %c3_i32 = arith.constant 3 : i32
    %26 = vector.broadcast %c3_i32 : i32 to vector<1x32xi32>
    %27 = arith.shrsi %25, %26 : vector<1x32xi32>
    %c0_i32 = arith.constant 0 : i32
    %28 = vector.broadcast %c0_i32 : i32 to vector<1x32xi32>
    %29 = arith.cmpi eq, %27, %28 : vector<1x32xi32>
    %30 = arith.extui %29 : vector<1x32xi1> to vector<1x32xi32>
    %31 = arith.sitofp %30 : vector<1x32xi32> to vector<1x32xf32>
    %c1_i32 = arith.constant 1 : i32
    %32 = vector.broadcast %c1_i32 : i32 to vector<1x32xi32>
    %33 = arith.cmpi eq, %27, %32 : vector<1x32xi32>
    %34 = arith.extui %33 : vector<1x32xi1> to vector<1x32xi32>
    %35 = arith.sitofp %34 : vector<1x32xi32> to vector<1x32xf32>
    %c2_i32 = arith.constant 2 : i32
    %36 = vector.broadcast %c2_i32 : i32 to vector<1x32xi32>
    %37 = arith.cmpi eq, %27, %36 : vector<1x32xi32>
    %38 = arith.extui %37 : vector<1x32xi1> to vector<1x32xi32>
    %39 = arith.sitofp %38 : vector<1x32xi32> to vector<1x32xf32>
    %c3_i32_8 = arith.constant 3 : i32
    %40 = vector.broadcast %c3_i32_8 : i32 to vector<1x32xi32>
    %41 = arith.cmpi eq, %27, %40 : vector<1x32xi32>
    %42 = arith.extui %41 : vector<1x32xi1> to vector<1x32xi32>
    %43 = arith.sitofp %42 : vector<1x32xi32> to vector<1x32xf32>
    %44 = tpu.iota {dimensions = array<i32: 0>} : vector<32x32xi32>
    %45 = tpu.iota {dimensions = array<i32: 1>} : vector<32x32xi32>
    %c1_i32_9 = arith.constant 1 : i32
    %46 = vector.broadcast %c1_i32_9 : i32 to vector<32x32xi32>
    %47 = arith.andi %44, %46 : vector<32x32xi32>
    %c1_i32_10 = arith.constant 1 : i32
    %48 = vector.broadcast %c1_i32_10 : i32 to vector<32x32xi32>
    %49 = arith.andi %45, %48 : vector<32x32xi32>
    %50 = arith.cmpi eq, %47, %49 : vector<32x32xi32>
    %c1_i32_11 = arith.constant 1 : i32
    %51 = vector.broadcast %c1_i32_11 : i32 to vector<32x32xi32>
    %52 = arith.shrsi %44, %51 : vector<32x32xi32>
    %c1_i32_12 = arith.constant 1 : i32
    %53 = vector.broadcast %c1_i32_12 : i32 to vector<32x32xi32>
    %54 = arith.shrsi %45, %53 : vector<32x32xi32>
    %55 = arith.subi %52, %54 : vector<32x32xi32>
    %c-4_i32 = arith.constant -4 : i32
    %56 = vector.broadcast %c-4_i32 : i32 to vector<32x32xi32>
    %57 = arith.cmpi sge, %55, %56 : vector<32x32xi32>
    %c4_i32 = arith.constant 4 : i32
    %58 = vector.broadcast %c4_i32 : i32 to vector<32x32xi32>
    %59 = arith.cmpi sle, %55, %58 : vector<32x32xi32>
    %60 = arith.andi %57, %59 : vector<32x32xi1>
    %61 = arith.andi %50, %60 : vector<32x32xi1>
    %cst_13 = arith.constant 0.000000e+00 : f32
    %cst_14 = arith.constant -1.000000e+30 : f32
    %62 = vector.broadcast %cst_13 : f32 to vector<32x32xf32>
    %63 = vector.broadcast %cst_14 : f32 to vector<32x32xf32>
    %64 = arith.select %61, %62, %63 : vector<32x32xi1>, vector<32x32xf32>
    %c0_15 = arith.constant 0 : index
    %c0_16 = arith.constant 0 : index
    %65 = vector.load %arg2[%c0_15, %c0_16] : memref<496x128xf32, #tpu.memory_space<vmem>>, vector<32x32xf32>
    %c16 = arith.constant 16 : index
    %c0_17 = arith.constant 0 : index
    %66 = vector.load %arg3[%c16, %c0_17] : memref<168x128xf32, #tpu.memory_space<vmem>>, vector<1x32xf32>
    %c32 = arith.constant 32 : index
    %c0_18 = arith.constant 0 : index
    %67 = vector.load %arg2[%c32, %c0_18] : memref<496x128xf32, #tpu.memory_space<vmem>>, vector<32x32xf32>
    %c24 = arith.constant 24 : index
    %c0_19 = arith.constant 0 : index
    %68 = vector.load %arg3[%c24, %c0_19] : memref<168x128xf32, #tpu.memory_space<vmem>>, vector<1x32xf32>
    %c64 = arith.constant 64 : index
    %c0_20 = arith.constant 0 : index
    %69 = vector.load %arg2[%c64, %c0_20] : memref<496x128xf32, #tpu.memory_space<vmem>>, vector<32x128xf32>
    %c32_21 = arith.constant 32 : index
    %c0_22 = arith.constant 0 : index
    %70 = vector.load %arg3[%c32_21, %c0_22] : memref<168x128xf32, #tpu.memory_space<vmem>>, vector<1x32xf32>
    %cst_23 = arith.constant dense<0.000000e+00> : vector<32x32xf32>
    %71 = tpu.matmul %24, %65, %cst_23 {dimension_numbers = #tpu.dot_dimension_numbers<[1], [0], [0], [1], [0, 0, 1, 1], [], []>} : vector<32x32xf32>, vector<32x32xf32>, vector<32x32xf32> -> vector<32x32xf32>
    %72 = vector.broadcast %66 : vector<1x32xf32> to vector<32x32xf32>
    %73 = arith.addf %71, %72 : vector<32x32xf32>
    %cst_24 = arith.constant dense<0.000000e+00> : vector<32x32xf32>
    %74 = tpu.matmul %24, %67, %cst_24 {dimension_numbers = #tpu.dot_dimension_numbers<[1], [0], [0], [1], [0, 0, 1, 1], [], []>} : vector<32x32xf32>, vector<32x32xf32>, vector<32x32xf32> -> vector<32x32xf32>
    %75 = vector.broadcast %68 : vector<1x32xf32> to vector<32x32xf32>
    %76 = arith.addf %74, %75 : vector<32x32xf32>
    %cst_25 = arith.constant dense<0.000000e+00> : vector<32x128xf32>
    %77 = tpu.matmul %24, %69, %cst_25 {dimension_numbers = #tpu.dot_dimension_numbers<[1], [0], [0], [1], [0, 0, 1, 1], [], []>} : vector<32x32xf32>, vector<32x128xf32>, vector<32x128xf32> -> vector<32x128xf32>
    %78 = vector.broadcast %31 : vector<1x32xf32> to vector<32x32xf32>
    %79 = arith.mulf %73, %78 : vector<32x32xf32>
    %cst_26 = arith.constant dense<0.000000e+00> : vector<32x32xf32>
    %80 = tpu.matmul %79, %76, %cst_26 {dimension_numbers = #tpu.dot_dimension_numbers<[1], [1], [0], [0], [0, 0, 1, 0], [], []>} : vector<32x32xf32>, vector<32x32xf32>, vector<32x32xf32> -> vector<32x32xf32>
    %cst_27 = arith.constant 0.353553385 : f32
    %81 = vector.broadcast %cst_27 : f32 to vector<32x32xf32>
    %82 = arith.mulf %80, %81 : vector<32x32xf32>
    %83 = arith.addf %82, %64 : vector<32x32xf32>
    %cst_28 = arith.constant dense<0xFF800000> : vector<32xf32>
    %84 = vector.multi_reduction <maximumf>, %83, %cst_28 [1] : vector<32x32xf32> to vector<32xf32>
    %cst_29 = arith.constant 0xFF800000 : f32
    %85 = vector.broadcast %cst_29 : f32 to vector<32xf32>
    %86 = arith.maximumf %85, %84 : vector<32xf32>
    %87 = vector.shape_cast %86 : vector<32xf32> to vector<32x1xf32>
    %88 = vector.broadcast %87 : vector<32x1xf32> to vector<32x32xf32>
    %89 = arith.subf %83, %88 : vector<32x32xf32>
    %90 = math.exp %89 : vector<32x32xf32>
    %cst_30 = arith.constant dense<0.000000e+00> : vector<32xf32>
    %91 = vector.multi_reduction <add>, %90, %cst_30 [1] : vector<32x32xf32> to vector<32xf32>
    %92 = vector.shape_cast %91 : vector<32xf32> to vector<32x1xf32>
    %93 = vector.broadcast %92 : vector<32x1xf32> to vector<32x32xf32>
    %94 = arith.divf %90, %93 : vector<32x32xf32>
    %95 = vector.extract_strided_slice %77 {offsets = [0, 0], sizes = [32, 32], strides = [1, 1]} : vector<32x128xf32> to vector<32x32xf32>
    %cst_31 = arith.constant dense<0.000000e+00> : vector<32x32xf32>
    %96 = tpu.matmul %94, %95, %cst_31 {dimension_numbers = #tpu.dot_dimension_numbers<[1], [0], [0], [1], [0, 0, 1, 1], [], []>} : vector<32x32xf32>, vector<32x32xf32>, vector<32x32xf32> -> vector<32x32xf32>
    %97 = vector.broadcast %35 : vector<1x32xf32> to vector<32x32xf32>
    %98 = arith.mulf %73, %97 : vector<32x32xf32>
    %cst_32 = arith.constant dense<0.000000e+00> : vector<32x32xf32>
    %99 = tpu.matmul %98, %76, %cst_32 {dimension_numbers = #tpu.dot_dimension_numbers<[1], [1], [0], [0], [0, 0, 1, 0], [], []>} : vector<32x32xf32>, vector<32x32xf32>, vector<32x32xf32> -> vector<32x32xf32>
    %cst_33 = arith.constant 0.353553385 : f32
    %100 = vector.broadcast %cst_33 : f32 to vector<32x32xf32>
    %101 = arith.mulf %99, %100 : vector<32x32xf32>
    %102 = arith.addf %101, %64 : vector<32x32xf32>
    %cst_34 = arith.constant dense<0xFF800000> : vector<32xf32>
    %103 = vector.multi_reduction <maximumf>, %102, %cst_34 [1] : vector<32x32xf32> to vector<32xf32>
    %cst_35 = arith.constant 0xFF800000 : f32
    %104 = vector.broadcast %cst_35 : f32 to vector<32xf32>
    %105 = arith.maximumf %104, %103 : vector<32xf32>
    %106 = vector.shape_cast %105 : vector<32xf32> to vector<32x1xf32>
    %107 = vector.broadcast %106 : vector<32x1xf32> to vector<32x32xf32>
    %108 = arith.subf %102, %107 : vector<32x32xf32>
    %109 = math.exp %108 : vector<32x32xf32>
    %cst_36 = arith.constant dense<0.000000e+00> : vector<32xf32>
    %110 = vector.multi_reduction <add>, %109, %cst_36 [1] : vector<32x32xf32> to vector<32xf32>
    %111 = vector.shape_cast %110 : vector<32xf32> to vector<32x1xf32>
    %112 = vector.broadcast %111 : vector<32x1xf32> to vector<32x32xf32>
    %113 = arith.divf %109, %112 : vector<32x32xf32>
    %114 = vector.extract_strided_slice %77 {offsets = [0, 32], sizes = [32, 32], strides = [1, 1]} : vector<32x128xf32> to vector<32x32xf32>
    %cst_37 = arith.constant dense<0.000000e+00> : vector<32x32xf32>
    %115 = tpu.matmul %113, %114, %cst_37 {dimension_numbers = #tpu.dot_dimension_numbers<[1], [0], [0], [1], [0, 0, 1, 1], [], []>} : vector<32x32xf32>, vector<32x32xf32>, vector<32x32xf32> -> vector<32x32xf32>
    %116 = arith.addf %96, %115 : vector<32x32xf32>
    %117 = vector.broadcast %39 : vector<1x32xf32> to vector<32x32xf32>
    %118 = arith.mulf %73, %117 : vector<32x32xf32>
    %cst_38 = arith.constant dense<0.000000e+00> : vector<32x32xf32>
    %119 = tpu.matmul %118, %76, %cst_38 {dimension_numbers = #tpu.dot_dimension_numbers<[1], [1], [0], [0], [0, 0, 1, 0], [], []>} : vector<32x32xf32>, vector<32x32xf32>, vector<32x32xf32> -> vector<32x32xf32>
    %cst_39 = arith.constant 0.353553385 : f32
    %120 = vector.broadcast %cst_39 : f32 to vector<32x32xf32>
    %121 = arith.mulf %119, %120 : vector<32x32xf32>
    %122 = arith.addf %121, %64 : vector<32x32xf32>
    %cst_40 = arith.constant dense<0xFF800000> : vector<32xf32>
    %123 = vector.multi_reduction <maximumf>, %122, %cst_40 [1] : vector<32x32xf32> to vector<32xf32>
    %cst_41 = arith.constant 0xFF800000 : f32
    %124 = vector.broadcast %cst_41 : f32 to vector<32xf32>
    %125 = arith.maximumf %124, %123 : vector<32xf32>
    %126 = vector.shape_cast %125 : vector<32xf32> to vector<32x1xf32>
    %127 = vector.broadcast %126 : vector<32x1xf32> to vector<32x32xf32>
    %128 = arith.subf %122, %127 : vector<32x32xf32>
    %129 = math.exp %128 : vector<32x32xf32>
    %cst_42 = arith.constant dense<0.000000e+00> : vector<32xf32>
    %130 = vector.multi_reduction <add>, %129, %cst_42 [1] : vector<32x32xf32> to vector<32xf32>
    %131 = vector.shape_cast %130 : vector<32xf32> to vector<32x1xf32>
    %132 = vector.broadcast %131 : vector<32x1xf32> to vector<32x32xf32>
    %133 = arith.divf %129, %132 : vector<32x32xf32>
    %134 = vector.extract_strided_slice %77 {offsets = [0, 64], sizes = [32, 32], strides = [1, 1]} : vector<32x128xf32> to vector<32x32xf32>
    %cst_43 = arith.constant dense<0.000000e+00> : vector<32x32xf32>
    %135 = tpu.matmul %133, %134, %cst_43 {dimension_numbers = #tpu.dot_dimension_numbers<[1], [0], [0], [1], [0, 0, 1, 1], [], []>} : vector<32x32xf32>, vector<32x32xf32>, vector<32x32xf32> -> vector<32x32xf32>
    %136 = arith.addf %116, %135 : vector<32x32xf32>
    %137 = vector.broadcast %43 : vector<1x32xf32> to vector<32x32xf32>
    %138 = arith.mulf %73, %137 : vector<32x32xf32>
    %cst_44 = arith.constant dense<0.000000e+00> : vector<32x32xf32>
    %139 = tpu.matmul %138, %76, %cst_44 {dimension_numbers = #tpu.dot_dimension_numbers<[1], [1], [0], [0], [0, 0, 1, 0], [], []>} : vector<32x32xf32>, vector<32x32xf32>, vector<32x32xf32> -> vector<32x32xf32>
    %cst_45 = arith.constant 0.353553385 : f32
    %140 = vector.broadcast %cst_45 : f32 to vector<32x32xf32>
    %141 = arith.mulf %139, %140 : vector<32x32xf32>
    %142 = arith.addf %141, %64 : vector<32x32xf32>
    %cst_46 = arith.constant dense<0xFF800000> : vector<32xf32>
    %143 = vector.multi_reduction <maximumf>, %142, %cst_46 [1] : vector<32x32xf32> to vector<32xf32>
    %cst_47 = arith.constant 0xFF800000 : f32
    %144 = vector.broadcast %cst_47 : f32 to vector<32xf32>
    %145 = arith.maximumf %144, %143 : vector<32xf32>
    %146 = vector.shape_cast %145 : vector<32xf32> to vector<32x1xf32>
    %147 = vector.broadcast %146 : vector<32x1xf32> to vector<32x32xf32>
    %148 = arith.subf %142, %147 : vector<32x32xf32>
    %149 = math.exp %148 : vector<32x32xf32>
    %cst_48 = arith.constant dense<0.000000e+00> : vector<32xf32>
    %150 = vector.multi_reduction <add>, %149, %cst_48 [1] : vector<32x32xf32> to vector<32xf32>
    %151 = vector.shape_cast %150 : vector<32xf32> to vector<32x1xf32>
    %152 = vector.broadcast %151 : vector<32x1xf32> to vector<32x32xf32>
    %153 = arith.divf %149, %152 : vector<32x32xf32>
    %154 = vector.extract_strided_slice %77 {offsets = [0, 96], sizes = [32, 32], strides = [1, 1]} : vector<32x128xf32> to vector<32x32xf32>
    %cst_49 = arith.constant dense<0.000000e+00> : vector<32x32xf32>
    %155 = tpu.matmul %153, %154, %cst_49 {dimension_numbers = #tpu.dot_dimension_numbers<[1], [0], [0], [1], [0, 0, 1, 1], [], []>} : vector<32x32xf32>, vector<32x32xf32>, vector<32x32xf32> -> vector<32x32xf32>
    %156 = arith.addf %136, %155 : vector<32x32xf32>
    %157 = vector.broadcast %70 : vector<1x32xf32> to vector<32x32xf32>
    %158 = arith.addf %156, %157 : vector<32x32xf32>
    %c0_50 = arith.constant 0 : index
    %c0_51 = arith.constant 0 : index
    %159 = vector.load %arg4[%c0_50, %c0_51] : memref<16x32xf32, #tpu.memory_space<vmem>>, vector<16x32xf32>
    %160 = tpu.iota {dimensions = array<i32: 0>} : vector<16x32xi32>
    %161 = tpu.iota {dimensions = array<i32: 1>} : vector<16x32xi32>
    %c3_i32_52 = arith.constant 3 : i32
    %162 = vector.broadcast %c3_i32_52 : i32 to vector<16x32xi32>
    %163 = arith.shrsi %160, %162 : vector<16x32xi32>
    %c1_i32_53 = arith.constant 1 : i32
    %164 = vector.broadcast %c1_i32_53 : i32 to vector<16x32xi32>
    %165 = arith.andi %161, %164 : vector<16x32xi32>
    %166 = arith.cmpi eq, %163, %165 : vector<16x32xi32>
    %cst_54 = arith.constant 0.000000e+00 : f32
    %cst_55 = arith.constant -1.000000e+30 : f32
    %167 = vector.broadcast %cst_54 : f32 to vector<16x32xf32>
    %168 = vector.broadcast %cst_55 : f32 to vector<16x32xf32>
    %169 = arith.select %166, %167, %168 : vector<16x32xi1>, vector<16x32xf32>
    %c96 = arith.constant 96 : index
    %c0_56 = arith.constant 0 : index
    %170 = vector.load %arg2[%c96, %c0_56] : memref<496x128xf32, #tpu.memory_space<vmem>>, vector<32x32xf32>
    %c40 = arith.constant 40 : index
    %c0_57 = arith.constant 0 : index
    %171 = vector.load %arg3[%c40, %c0_57] : memref<168x128xf32, #tpu.memory_space<vmem>>, vector<1x32xf32>
    %c128 = arith.constant 128 : index
    %c0_58 = arith.constant 0 : index
    %172 = vector.load %arg2[%c128, %c0_58] : memref<496x128xf32, #tpu.memory_space<vmem>>, vector<32x32xf32>
    %c48 = arith.constant 48 : index
    %c0_59 = arith.constant 0 : index
    %173 = vector.load %arg3[%c48, %c0_59] : memref<168x128xf32, #tpu.memory_space<vmem>>, vector<1x32xf32>
    %c160 = arith.constant 160 : index
    %c0_60 = arith.constant 0 : index
    %174 = vector.load %arg2[%c160, %c0_60] : memref<496x128xf32, #tpu.memory_space<vmem>>, vector<32x128xf32>
    %c56 = arith.constant 56 : index
    %c0_61 = arith.constant 0 : index
    %175 = vector.load %arg3[%c56, %c0_61] : memref<168x128xf32, #tpu.memory_space<vmem>>, vector<1x32xf32>
    %cst_62 = arith.constant dense<0.000000e+00> : vector<16x32xf32>
    %176 = tpu.matmul %159, %170, %cst_62 {dimension_numbers = #tpu.dot_dimension_numbers<[1], [0], [0], [1], [0, 0, 1, 1], [], []>} : vector<16x32xf32>, vector<32x32xf32>, vector<16x32xf32> -> vector<16x32xf32>
    %177 = vector.broadcast %171 : vector<1x32xf32> to vector<16x32xf32>
    %178 = arith.addf %176, %177 : vector<16x32xf32>
    %cst_63 = arith.constant dense<0.000000e+00> : vector<32x32xf32>
    %179 = tpu.matmul %24, %172, %cst_63 {dimension_numbers = #tpu.dot_dimension_numbers<[1], [0], [0], [1], [0, 0, 1, 1], [], []>} : vector<32x32xf32>, vector<32x32xf32>, vector<32x32xf32> -> vector<32x32xf32>
    %180 = vector.broadcast %173 : vector<1x32xf32> to vector<32x32xf32>
    %181 = arith.addf %179, %180 : vector<32x32xf32>
    %cst_64 = arith.constant dense<0.000000e+00> : vector<32x128xf32>
    %182 = tpu.matmul %24, %174, %cst_64 {dimension_numbers = #tpu.dot_dimension_numbers<[1], [0], [0], [1], [0, 0, 1, 1], [], []>} : vector<32x32xf32>, vector<32x128xf32>, vector<32x128xf32> -> vector<32x128xf32>
    %183 = vector.broadcast %31 : vector<1x32xf32> to vector<16x32xf32>
    %184 = arith.mulf %178, %183 : vector<16x32xf32>
    %cst_65 = arith.constant dense<0.000000e+00> : vector<16x32xf32>
    %185 = tpu.matmul %184, %181, %cst_65 {dimension_numbers = #tpu.dot_dimension_numbers<[1], [1], [0], [0], [0, 0, 1, 0], [], []>} : vector<16x32xf32>, vector<32x32xf32>, vector<16x32xf32> -> vector<16x32xf32>
    %cst_66 = arith.constant 0.353553385 : f32
    %186 = vector.broadcast %cst_66 : f32 to vector<16x32xf32>
    %187 = arith.mulf %185, %186 : vector<16x32xf32>
    %188 = arith.addf %187, %169 : vector<16x32xf32>
    %cst_67 = arith.constant dense<0xFF800000> : vector<16xf32>
    %189 = vector.multi_reduction <maximumf>, %188, %cst_67 [1] : vector<16x32xf32> to vector<16xf32>
    %cst_68 = arith.constant 0xFF800000 : f32
    %190 = vector.broadcast %cst_68 : f32 to vector<16xf32>
    %191 = arith.maximumf %190, %189 : vector<16xf32>
    %192 = vector.shape_cast %191 : vector<16xf32> to vector<16x1xf32>
    %193 = vector.broadcast %192 : vector<16x1xf32> to vector<16x32xf32>
    %194 = arith.subf %188, %193 : vector<16x32xf32>
    %195 = math.exp %194 : vector<16x32xf32>
    %cst_69 = arith.constant dense<0.000000e+00> : vector<16xf32>
    %196 = vector.multi_reduction <add>, %195, %cst_69 [1] : vector<16x32xf32> to vector<16xf32>
    %197 = vector.shape_cast %196 : vector<16xf32> to vector<16x1xf32>
    %198 = vector.broadcast %197 : vector<16x1xf32> to vector<16x32xf32>
    %199 = arith.divf %195, %198 : vector<16x32xf32>
    %200 = vector.extract_strided_slice %182 {offsets = [0, 0], sizes = [32, 32], strides = [1, 1]} : vector<32x128xf32> to vector<32x32xf32>
    %cst_70 = arith.constant dense<0.000000e+00> : vector<16x32xf32>
    %201 = tpu.matmul %199, %200, %cst_70 {dimension_numbers = #tpu.dot_dimension_numbers<[1], [0], [0], [1], [0, 0, 1, 1], [], []>} : vector<16x32xf32>, vector<32x32xf32>, vector<16x32xf32> -> vector<16x32xf32>
    %202 = vector.broadcast %35 : vector<1x32xf32> to vector<16x32xf32>
    %203 = arith.mulf %178, %202 : vector<16x32xf32>
    %cst_71 = arith.constant dense<0.000000e+00> : vector<16x32xf32>
    %204 = tpu.matmul %203, %181, %cst_71 {dimension_numbers = #tpu.dot_dimension_numbers<[1], [1], [0], [0], [0, 0, 1, 0], [], []>} : vector<16x32xf32>, vector<32x32xf32>, vector<16x32xf32> -> vector<16x32xf32>
    %cst_72 = arith.constant 0.353553385 : f32
    %205 = vector.broadcast %cst_72 : f32 to vector<16x32xf32>
    %206 = arith.mulf %204, %205 : vector<16x32xf32>
    %207 = arith.addf %206, %169 : vector<16x32xf32>
    %cst_73 = arith.constant dense<0xFF800000> : vector<16xf32>
    %208 = vector.multi_reduction <maximumf>, %207, %cst_73 [1] : vector<16x32xf32> to vector<16xf32>
    %cst_74 = arith.constant 0xFF800000 : f32
    %209 = vector.broadcast %cst_74 : f32 to vector<16xf32>
    %210 = arith.maximumf %209, %208 : vector<16xf32>
    %211 = vector.shape_cast %210 : vector<16xf32> to vector<16x1xf32>
    %212 = vector.broadcast %211 : vector<16x1xf32> to vector<16x32xf32>
    %213 = arith.subf %207, %212 : vector<16x32xf32>
    %214 = math.exp %213 : vector<16x32xf32>
    %cst_75 = arith.constant dense<0.000000e+00> : vector<16xf32>
    %215 = vector.multi_reduction <add>, %214, %cst_75 [1] : vector<16x32xf32> to vector<16xf32>
    %216 = vector.shape_cast %215 : vector<16xf32> to vector<16x1xf32>
    %217 = vector.broadcast %216 : vector<16x1xf32> to vector<16x32xf32>
    %218 = arith.divf %214, %217 : vector<16x32xf32>
    %219 = vector.extract_strided_slice %182 {offsets = [0, 32], sizes = [32, 32], strides = [1, 1]} : vector<32x128xf32> to vector<32x32xf32>
    %cst_76 = arith.constant dense<0.000000e+00> : vector<16x32xf32>
    %220 = tpu.matmul %218, %219, %cst_76 {dimension_numbers = #tpu.dot_dimension_numbers<[1], [0], [0], [1], [0, 0, 1, 1], [], []>} : vector<16x32xf32>, vector<32x32xf32>, vector<16x32xf32> -> vector<16x32xf32>
    %221 = arith.addf %201, %220 : vector<16x32xf32>
    %222 = vector.broadcast %39 : vector<1x32xf32> to vector<16x32xf32>
    %223 = arith.mulf %178, %222 : vector<16x32xf32>
    %cst_77 = arith.constant dense<0.000000e+00> : vector<16x32xf32>
    %224 = tpu.matmul %223, %181, %cst_77 {dimension_numbers = #tpu.dot_dimension_numbers<[1], [1], [0], [0], [0, 0, 1, 0], [], []>} : vector<16x32xf32>, vector<32x32xf32>, vector<16x32xf32> -> vector<16x32xf32>
    %cst_78 = arith.constant 0.353553385 : f32
    %225 = vector.broadcast %cst_78 : f32 to vector<16x32xf32>
    %226 = arith.mulf %224, %225 : vector<16x32xf32>
    %227 = arith.addf %226, %169 : vector<16x32xf32>
    %cst_79 = arith.constant dense<0xFF800000> : vector<16xf32>
    %228 = vector.multi_reduction <maximumf>, %227, %cst_79 [1] : vector<16x32xf32> to vector<16xf32>
    %cst_80 = arith.constant 0xFF800000 : f32
    %229 = vector.broadcast %cst_80 : f32 to vector<16xf32>
    %230 = arith.maximumf %229, %228 : vector<16xf32>
    %231 = vector.shape_cast %230 : vector<16xf32> to vector<16x1xf32>
    %232 = vector.broadcast %231 : vector<16x1xf32> to vector<16x32xf32>
    %233 = arith.subf %227, %232 : vector<16x32xf32>
    %234 = math.exp %233 : vector<16x32xf32>
    %cst_81 = arith.constant dense<0.000000e+00> : vector<16xf32>
    %235 = vector.multi_reduction <add>, %234, %cst_81 [1] : vector<16x32xf32> to vector<16xf32>
    %236 = vector.shape_cast %235 : vector<16xf32> to vector<16x1xf32>
    %237 = vector.broadcast %236 : vector<16x1xf32> to vector<16x32xf32>
    %238 = arith.divf %234, %237 : vector<16x32xf32>
    %239 = vector.extract_strided_slice %182 {offsets = [0, 64], sizes = [32, 32], strides = [1, 1]} : vector<32x128xf32> to vector<32x32xf32>
    %cst_82 = arith.constant dense<0.000000e+00> : vector<16x32xf32>
    %240 = tpu.matmul %238, %239, %cst_82 {dimension_numbers = #tpu.dot_dimension_numbers<[1], [0], [0], [1], [0, 0, 1, 1], [], []>} : vector<16x32xf32>, vector<32x32xf32>, vector<16x32xf32> -> vector<16x32xf32>
    %241 = arith.addf %221, %240 : vector<16x32xf32>
    %242 = vector.broadcast %43 : vector<1x32xf32> to vector<16x32xf32>
    %243 = arith.mulf %178, %242 : vector<16x32xf32>
    %cst_83 = arith.constant dense<0.000000e+00> : vector<16x32xf32>
    %244 = tpu.matmul %243, %181, %cst_83 {dimension_numbers = #tpu.dot_dimension_numbers<[1], [1], [0], [0], [0, 0, 1, 0], [], []>} : vector<16x32xf32>, vector<32x32xf32>, vector<16x32xf32> -> vector<16x32xf32>
    %cst_84 = arith.constant 0.353553385 : f32
    %245 = vector.broadcast %cst_84 : f32 to vector<16x32xf32>
    %246 = arith.mulf %244, %245 : vector<16x32xf32>
    %247 = arith.addf %246, %169 : vector<16x32xf32>
    %cst_85 = arith.constant dense<0xFF800000> : vector<16xf32>
    %248 = vector.multi_reduction <maximumf>, %247, %cst_85 [1] : vector<16x32xf32> to vector<16xf32>
    %cst_86 = arith.constant 0xFF800000 : f32
    %249 = vector.broadcast %cst_86 : f32 to vector<16xf32>
    %250 = arith.maximumf %249, %248 : vector<16xf32>
    %251 = vector.shape_cast %250 : vector<16xf32> to vector<16x1xf32>
    %252 = vector.broadcast %251 : vector<16x1xf32> to vector<16x32xf32>
    %253 = arith.subf %247, %252 : vector<16x32xf32>
    %254 = math.exp %253 : vector<16x32xf32>
    %cst_87 = arith.constant dense<0.000000e+00> : vector<16xf32>
    %255 = vector.multi_reduction <add>, %254, %cst_87 [1] : vector<16x32xf32> to vector<16xf32>
    %256 = vector.shape_cast %255 : vector<16xf32> to vector<16x1xf32>
    %257 = vector.broadcast %256 : vector<16x1xf32> to vector<16x32xf32>
    %258 = arith.divf %254, %257 : vector<16x32xf32>
    %259 = vector.extract_strided_slice %182 {offsets = [0, 96], sizes = [32, 32], strides = [1, 1]} : vector<32x128xf32> to vector<32x32xf32>
    %cst_88 = arith.constant dense<0.000000e+00> : vector<16x32xf32>
    %260 = tpu.matmul %258, %259, %cst_88 {dimension_numbers = #tpu.dot_dimension_numbers<[1], [0], [0], [1], [0, 0, 1, 1], [], []>} : vector<16x32xf32>, vector<32x32xf32>, vector<16x32xf32> -> vector<16x32xf32>
    %261 = arith.addf %241, %260 : vector<16x32xf32>
    %262 = vector.broadcast %175 : vector<1x32xf32> to vector<16x32xf32>
    %263 = arith.addf %261, %262 : vector<16x32xf32>
    %264 = arith.addf %159, %263 : vector<16x32xf32>
    %c64_89 = arith.constant 64 : index
    %c0_90 = arith.constant 0 : index
    %265 = vector.load %arg3[%c64_89, %c0_90] : memref<168x128xf32, #tpu.memory_space<vmem>>, vector<1x32xf32>
    %c72 = arith.constant 72 : index
    %c0_91 = arith.constant 0 : index
    %266 = vector.load %arg3[%c72, %c0_91] : memref<168x128xf32, #tpu.memory_space<vmem>>, vector<1x32xf32>
    %cst_92 = arith.constant dense<0.000000e+00> : vector<16xf32>
    %267 = vector.multi_reduction <add>, %264, %cst_92 [1] : vector<16x32xf32> to vector<16xf32>
    %268 = vector.shape_cast %267 : vector<16xf32> to vector<16x1xf32>
    %cst_93 = arith.constant 3.200000e+01 : f32
    %269 = vector.broadcast %cst_93 : f32 to vector<16x1xf32>
    %270 = arith.divf %268, %269 : vector<16x1xf32>
    %271 = vector.broadcast %270 : vector<16x1xf32> to vector<16x32xf32>
    %272 = arith.subf %264, %271 : vector<16x32xf32>
    %273 = arith.mulf %272, %272 : vector<16x32xf32>
    %cst_94 = arith.constant dense<0.000000e+00> : vector<16xf32>
    %274 = vector.multi_reduction <add>, %273, %cst_94 [1] : vector<16x32xf32> to vector<16xf32>
    %275 = vector.shape_cast %274 : vector<16xf32> to vector<16x1xf32>
    %cst_95 = arith.constant 3.200000e+01 : f32
    %276 = vector.broadcast %cst_95 : f32 to vector<16x1xf32>
    %277 = arith.divf %275, %276 : vector<16x1xf32>
    %278 = vector.broadcast %270 : vector<16x1xf32> to vector<16x32xf32>
    %279 = arith.subf %264, %278 : vector<16x32xf32>
    %cst_96 = arith.constant 9.99999974E-6 : f32
    %280 = vector.broadcast %cst_96 : f32 to vector<16x1xf32>
    %281 = arith.addf %277, %280 : vector<16x1xf32>
    %282 = math.rsqrt %281 : vector<16x1xf32>
    %283 = vector.broadcast %282 : vector<16x1xf32> to vector<16x32xf32>
    %284 = arith.mulf %279, %283 : vector<16x32xf32>
    %285 = vector.broadcast %265 : vector<1x32xf32> to vector<16x32xf32>
    %286 = arith.mulf %284, %285 : vector<16x32xf32>
    %287 = vector.broadcast %266 : vector<1x32xf32> to vector<16x32xf32>
    %288 = arith.addf %286, %287 : vector<16x32xf32>
    %289 = tpu.iota {dimensions = array<i32: 0>} : vector<32x16xi32>
    %290 = tpu.iota {dimensions = array<i32: 1>} : vector<32x16xi32>
    %c1_i32_97 = arith.constant 1 : i32
    %291 = vector.broadcast %c1_i32_97 : i32 to vector<32x16xi32>
    %292 = arith.andi %289, %291 : vector<32x16xi32>
    %c3_i32_98 = arith.constant 3 : i32
    %293 = vector.broadcast %c3_i32_98 : i32 to vector<32x16xi32>
    %294 = arith.shrsi %290, %293 : vector<32x16xi32>
    %295 = arith.cmpi eq, %292, %294 : vector<32x16xi32>
    %cst_99 = arith.constant 0.000000e+00 : f32
    %cst_100 = arith.constant -1.000000e+30 : f32
    %296 = vector.broadcast %cst_99 : f32 to vector<32x16xf32>
    %297 = vector.broadcast %cst_100 : f32 to vector<32x16xf32>
    %298 = arith.select %295, %296, %297 : vector<32x16xi1>, vector<32x16xf32>
    %c192 = arith.constant 192 : index
    %c0_101 = arith.constant 0 : index
    %299 = vector.load %arg2[%c192, %c0_101] : memref<496x128xf32, #tpu.memory_space<vmem>>, vector<32x32xf32>
    %c80 = arith.constant 80 : index
    %c0_102 = arith.constant 0 : index
    %300 = vector.load %arg3[%c80, %c0_102] : memref<168x128xf32, #tpu.memory_space<vmem>>, vector<1x32xf32>
    %c224 = arith.constant 224 : index
    %c0_103 = arith.constant 0 : index
    %301 = vector.load %arg2[%c224, %c0_103] : memref<496x128xf32, #tpu.memory_space<vmem>>, vector<32x32xf32>
    %c88 = arith.constant 88 : index
    %c0_104 = arith.constant 0 : index
    %302 = vector.load %arg3[%c88, %c0_104] : memref<168x128xf32, #tpu.memory_space<vmem>>, vector<1x32xf32>
    %c256 = arith.constant 256 : index
    %c0_105 = arith.constant 0 : index
    %303 = vector.load %arg2[%c256, %c0_105] : memref<496x128xf32, #tpu.memory_space<vmem>>, vector<32x128xf32>
    %c96_106 = arith.constant 96 : index
    %c0_107 = arith.constant 0 : index
    %304 = vector.load %arg3[%c96_106, %c0_107] : memref<168x128xf32, #tpu.memory_space<vmem>>, vector<1x32xf32>
    %cst_108 = arith.constant dense<0.000000e+00> : vector<32x32xf32>
    %305 = tpu.matmul %24, %299, %cst_108 {dimension_numbers = #tpu.dot_dimension_numbers<[1], [0], [0], [1], [0, 0, 1, 1], [], []>} : vector<32x32xf32>, vector<32x32xf32>, vector<32x32xf32> -> vector<32x32xf32>
    %306 = vector.broadcast %300 : vector<1x32xf32> to vector<32x32xf32>
    %307 = arith.addf %305, %306 : vector<32x32xf32>
    %cst_109 = arith.constant dense<0.000000e+00> : vector<16x32xf32>
    %308 = tpu.matmul %288, %301, %cst_109 {dimension_numbers = #tpu.dot_dimension_numbers<[1], [0], [0], [1], [0, 0, 1, 1], [], []>} : vector<16x32xf32>, vector<32x32xf32>, vector<16x32xf32> -> vector<16x32xf32>
    %309 = vector.broadcast %302 : vector<1x32xf32> to vector<16x32xf32>
    %310 = arith.addf %308, %309 : vector<16x32xf32>
    %cst_110 = arith.constant dense<0.000000e+00> : vector<16x128xf32>
    %311 = tpu.matmul %288, %303, %cst_110 {dimension_numbers = #tpu.dot_dimension_numbers<[1], [0], [0], [1], [0, 0, 1, 1], [], []>} : vector<16x32xf32>, vector<32x128xf32>, vector<16x128xf32> -> vector<16x128xf32>
    %312 = vector.broadcast %31 : vector<1x32xf32> to vector<32x32xf32>
    %313 = arith.mulf %307, %312 : vector<32x32xf32>
    %cst_111 = arith.constant dense<0.000000e+00> : vector<32x16xf32>
    %314 = tpu.matmul %313, %310, %cst_111 {dimension_numbers = #tpu.dot_dimension_numbers<[1], [1], [0], [0], [0, 0, 1, 0], [], []>} : vector<32x32xf32>, vector<16x32xf32>, vector<32x16xf32> -> vector<32x16xf32>
    %cst_112 = arith.constant 0.353553385 : f32
    %315 = vector.broadcast %cst_112 : f32 to vector<32x16xf32>
    %316 = arith.mulf %314, %315 : vector<32x16xf32>
    %317 = arith.addf %316, %298 : vector<32x16xf32>
    %cst_113 = arith.constant dense<0xFF800000> : vector<32xf32>
    %318 = vector.multi_reduction <maximumf>, %317, %cst_113 [1] : vector<32x16xf32> to vector<32xf32>
    %cst_114 = arith.constant 0xFF800000 : f32
    %319 = vector.broadcast %cst_114 : f32 to vector<32xf32>
    %320 = arith.maximumf %319, %318 : vector<32xf32>
    %321 = vector.shape_cast %320 : vector<32xf32> to vector<32x1xf32>
    %322 = vector.broadcast %321 : vector<32x1xf32> to vector<32x16xf32>
    %323 = arith.subf %317, %322 : vector<32x16xf32>
    %324 = math.exp %323 : vector<32x16xf32>
    %cst_115 = arith.constant dense<0.000000e+00> : vector<32xf32>
    %325 = vector.multi_reduction <add>, %324, %cst_115 [1] : vector<32x16xf32> to vector<32xf32>
    %326 = vector.shape_cast %325 : vector<32xf32> to vector<32x1xf32>
    %327 = vector.broadcast %326 : vector<32x1xf32> to vector<32x16xf32>
    %328 = arith.divf %324, %327 : vector<32x16xf32>
    %329 = vector.extract_strided_slice %311 {offsets = [0, 0], sizes = [16, 32], strides = [1, 1]} : vector<16x128xf32> to vector<16x32xf32>
    %cst_116 = arith.constant dense<0.000000e+00> : vector<32x32xf32>
    %330 = tpu.matmul %328, %329, %cst_116 {dimension_numbers = #tpu.dot_dimension_numbers<[1], [0], [0], [1], [0, 0, 1, 1], [], []>} : vector<32x16xf32>, vector<16x32xf32>, vector<32x32xf32> -> vector<32x32xf32>
    %331 = vector.broadcast %35 : vector<1x32xf32> to vector<32x32xf32>
    %332 = arith.mulf %307, %331 : vector<32x32xf32>
    %cst_117 = arith.constant dense<0.000000e+00> : vector<32x16xf32>
    %333 = tpu.matmul %332, %310, %cst_117 {dimension_numbers = #tpu.dot_dimension_numbers<[1], [1], [0], [0], [0, 0, 1, 0], [], []>} : vector<32x32xf32>, vector<16x32xf32>, vector<32x16xf32> -> vector<32x16xf32>
    %cst_118 = arith.constant 0.353553385 : f32
    %334 = vector.broadcast %cst_118 : f32 to vector<32x16xf32>
    %335 = arith.mulf %333, %334 : vector<32x16xf32>
    %336 = arith.addf %335, %298 : vector<32x16xf32>
    %cst_119 = arith.constant dense<0xFF800000> : vector<32xf32>
    %337 = vector.multi_reduction <maximumf>, %336, %cst_119 [1] : vector<32x16xf32> to vector<32xf32>
    %cst_120 = arith.constant 0xFF800000 : f32
    %338 = vector.broadcast %cst_120 : f32 to vector<32xf32>
    %339 = arith.maximumf %338, %337 : vector<32xf32>
    %340 = vector.shape_cast %339 : vector<32xf32> to vector<32x1xf32>
    %341 = vector.broadcast %340 : vector<32x1xf32> to vector<32x16xf32>
    %342 = arith.subf %336, %341 : vector<32x16xf32>
    %343 = math.exp %342 : vector<32x16xf32>
    %cst_121 = arith.constant dense<0.000000e+00> : vector<32xf32>
    %344 = vector.multi_reduction <add>, %343, %cst_121 [1] : vector<32x16xf32> to vector<32xf32>
    %345 = vector.shape_cast %344 : vector<32xf32> to vector<32x1xf32>
    %346 = vector.broadcast %345 : vector<32x1xf32> to vector<32x16xf32>
    %347 = arith.divf %343, %346 : vector<32x16xf32>
    %348 = vector.extract_strided_slice %311 {offsets = [0, 32], sizes = [16, 32], strides = [1, 1]} : vector<16x128xf32> to vector<16x32xf32>
    %cst_122 = arith.constant dense<0.000000e+00> : vector<32x32xf32>
    %349 = tpu.matmul %347, %348, %cst_122 {dimension_numbers = #tpu.dot_dimension_numbers<[1], [0], [0], [1], [0, 0, 1, 1], [], []>} : vector<32x16xf32>, vector<16x32xf32>, vector<32x32xf32> -> vector<32x32xf32>
    %350 = arith.addf %330, %349 : vector<32x32xf32>
    %351 = vector.broadcast %39 : vector<1x32xf32> to vector<32x32xf32>
    %352 = arith.mulf %307, %351 : vector<32x32xf32>
    %cst_123 = arith.constant dense<0.000000e+00> : vector<32x16xf32>
    %353 = tpu.matmul %352, %310, %cst_123 {dimension_numbers = #tpu.dot_dimension_numbers<[1], [1], [0], [0], [0, 0, 1, 0], [], []>} : vector<32x32xf32>, vector<16x32xf32>, vector<32x16xf32> -> vector<32x16xf32>
    %cst_124 = arith.constant 0.353553385 : f32
    %354 = vector.broadcast %cst_124 : f32 to vector<32x16xf32>
    %355 = arith.mulf %353, %354 : vector<32x16xf32>
    %356 = arith.addf %355, %298 : vector<32x16xf32>
    %cst_125 = arith.constant dense<0xFF800000> : vector<32xf32>
    %357 = vector.multi_reduction <maximumf>, %356, %cst_125 [1] : vector<32x16xf32> to vector<32xf32>
    %cst_126 = arith.constant 0xFF800000 : f32
    %358 = vector.broadcast %cst_126 : f32 to vector<32xf32>
    %359 = arith.maximumf %358, %357 : vector<32xf32>
    %360 = vector.shape_cast %359 : vector<32xf32> to vector<32x1xf32>
    %361 = vector.broadcast %360 : vector<32x1xf32> to vector<32x16xf32>
    %362 = arith.subf %356, %361 : vector<32x16xf32>
    %363 = math.exp %362 : vector<32x16xf32>
    %cst_127 = arith.constant dense<0.000000e+00> : vector<32xf32>
    %364 = vector.multi_reduction <add>, %363, %cst_127 [1] : vector<32x16xf32> to vector<32xf32>
    %365 = vector.shape_cast %364 : vector<32xf32> to vector<32x1xf32>
    %366 = vector.broadcast %365 : vector<32x1xf32> to vector<32x16xf32>
    %367 = arith.divf %363, %366 : vector<32x16xf32>
    %368 = vector.extract_strided_slice %311 {offsets = [0, 64], sizes = [16, 32], strides = [1, 1]} : vector<16x128xf32> to vector<16x32xf32>
    %cst_128 = arith.constant dense<0.000000e+00> : vector<32x32xf32>
    %369 = tpu.matmul %367, %368, %cst_128 {dimension_numbers = #tpu.dot_dimension_numbers<[1], [0], [0], [1], [0, 0, 1, 1], [], []>} : vector<32x16xf32>, vector<16x32xf32>, vector<32x32xf32> -> vector<32x32xf32>
    %370 = arith.addf %350, %369 : vector<32x32xf32>
    %371 = vector.broadcast %43 : vector<1x32xf32> to vector<32x32xf32>
    %372 = arith.mulf %307, %371 : vector<32x32xf32>
    %cst_129 = arith.constant dense<0.000000e+00> : vector<32x16xf32>
    %373 = tpu.matmul %372, %310, %cst_129 {dimension_numbers = #tpu.dot_dimension_numbers<[1], [1], [0], [0], [0, 0, 1, 0], [], []>} : vector<32x32xf32>, vector<16x32xf32>, vector<32x16xf32> -> vector<32x16xf32>
    %cst_130 = arith.constant 0.353553385 : f32
    %374 = vector.broadcast %cst_130 : f32 to vector<32x16xf32>
    %375 = arith.mulf %373, %374 : vector<32x16xf32>
    %376 = arith.addf %375, %298 : vector<32x16xf32>
    %cst_131 = arith.constant dense<0xFF800000> : vector<32xf32>
    %377 = vector.multi_reduction <maximumf>, %376, %cst_131 [1] : vector<32x16xf32> to vector<32xf32>
    %cst_132 = arith.constant 0xFF800000 : f32
    %378 = vector.broadcast %cst_132 : f32 to vector<32xf32>
    %379 = arith.maximumf %378, %377 : vector<32xf32>
    %380 = vector.shape_cast %379 : vector<32xf32> to vector<32x1xf32>
    %381 = vector.broadcast %380 : vector<32x1xf32> to vector<32x16xf32>
    %382 = arith.subf %376, %381 : vector<32x16xf32>
    %383 = math.exp %382 : vector<32x16xf32>
    %cst_133 = arith.constant dense<0.000000e+00> : vector<32xf32>
    %384 = vector.multi_reduction <add>, %383, %cst_133 [1] : vector<32x16xf32> to vector<32xf32>
    %385 = vector.shape_cast %384 : vector<32xf32> to vector<32x1xf32>
    %386 = vector.broadcast %385 : vector<32x1xf32> to vector<32x16xf32>
    %387 = arith.divf %383, %386 : vector<32x16xf32>
    %388 = vector.extract_strided_slice %311 {offsets = [0, 96], sizes = [16, 32], strides = [1, 1]} : vector<16x128xf32> to vector<16x32xf32>
    %cst_134 = arith.constant dense<0.000000e+00> : vector<32x32xf32>
    %389 = tpu.matmul %387, %388, %cst_134 {dimension_numbers = #tpu.dot_dimension_numbers<[1], [0], [0], [1], [0, 0, 1, 1], [], []>} : vector<32x16xf32>, vector<16x32xf32>, vector<32x32xf32> -> vector<32x32xf32>
    %390 = arith.addf %370, %389 : vector<32x32xf32>
    %391 = vector.broadcast %304 : vector<1x32xf32> to vector<32x32xf32>
    %392 = arith.addf %390, %391 : vector<32x32xf32>
    %c320 = arith.constant 320 : index
    %c0_135 = arith.constant 0 : index
    %393 = vector.load %arg2[%c320, %c0_135] : memref<496x128xf32, #tpu.memory_space<vmem>>, vector<32x96xf32>
    %c112 = arith.constant 112 : index
    %c0_136 = arith.constant 0 : index
    %394 = vector.load %arg3[%c112, %c0_136] : memref<168x128xf32, #tpu.memory_space<vmem>>, vector<1x32xf32>
    %c288 = arith.constant 288 : index
    %c0_137 = arith.constant 0 : index
    %395 = vector.load %arg2[%c288, %c0_137] : memref<496x128xf32, #tpu.memory_space<vmem>>, vector<32x96xf32>
    %cst_138 = arith.constant dense<0.000000e+00> : vector<32x96xf32>
    %396 = tpu.matmul %24, %395, %cst_138 {dimension_numbers = #tpu.dot_dimension_numbers<[1], [0], [0], [1], [0, 0, 1, 1], [], []>} : vector<32x32xf32>, vector<32x96xf32>, vector<32x96xf32> -> vector<32x96xf32>
    %c104 = arith.constant 104 : index
    %c0_139 = arith.constant 0 : index
    %397 = vector.load %arg3[%c104, %c0_139] : memref<168x128xf32, #tpu.memory_space<vmem>>, vector<1x96xf32>
    %398 = vector.broadcast %397 : vector<1x96xf32> to vector<32x96xf32>
    %399 = arith.addf %396, %398 : vector<32x96xf32>
    %400 = vector.extract_strided_slice %399 {offsets = [0, 0], sizes = [32, 32], strides = [1, 1]} : vector<32x96xf32> to vector<32x32xf32>
    %401 = vector.extract_strided_slice %399 {offsets = [0, 32], sizes = [32, 32], strides = [1, 1]} : vector<32x96xf32> to vector<32x32xf32>
    %402 = vector.extract_strided_slice %399 {offsets = [0, 64], sizes = [32, 32], strides = [1, 1]} : vector<32x96xf32> to vector<32x32xf32>
    %cst_140 = arith.constant 0.000000e+00 : f32
    %403 = vector.broadcast %cst_140 : f32 to vector<2x32xf32>
    %cst_141 = arith.constant dense<0.000000e+00> : vector<2x96xf32>
    %404 = tpu.matmul %403, %393, %cst_141 {dimension_numbers = #tpu.dot_dimension_numbers<[1], [0], [0], [1], [0, 0, 1, 1], [], []>} : vector<2x32xf32>, vector<32x96xf32>, vector<2x96xf32> -> vector<2x96xf32>
    %405 = vector.extract_strided_slice %400 {offsets = [0, 0], sizes = [2, 32], strides = [1, 1]} : vector<32x32xf32> to vector<2x32xf32>
    %406 = vector.extract_strided_slice %404 {offsets = [0, 0], sizes = [2, 32], strides = [1, 1]} : vector<2x96xf32> to vector<2x32xf32>
    %407 = arith.addf %405, %406 : vector<2x32xf32>
    %408 = arith.negf %407 : vector<2x32xf32>
    %409 = math.exp %408 : vector<2x32xf32>
    %cst_142 = arith.constant 1.000000e+00 : f32
    %410 = vector.broadcast %cst_142 : f32 to vector<2x32xf32>
    %411 = arith.addf %410, %409 : vector<2x32xf32>
    %412 = arith.divf %410, %411 : vector<2x32xf32>
    %413 = vector.extract_strided_slice %401 {offsets = [0, 0], sizes = [2, 32], strides = [1, 1]} : vector<32x32xf32> to vector<2x32xf32>
    %414 = vector.extract_strided_slice %404 {offsets = [0, 32], sizes = [2, 32], strides = [1, 1]} : vector<2x96xf32> to vector<2x32xf32>
    %415 = arith.addf %413, %414 : vector<2x32xf32>
    %416 = arith.negf %415 : vector<2x32xf32>
    %417 = math.exp %416 : vector<2x32xf32>
    %cst_143 = arith.constant 1.000000e+00 : f32
    %418 = vector.broadcast %cst_143 : f32 to vector<2x32xf32>
    %419 = arith.addf %418, %417 : vector<2x32xf32>
    %420 = arith.divf %418, %419 : vector<2x32xf32>
    %421 = vector.extract_strided_slice %402 {offsets = [0, 0], sizes = [2, 32], strides = [1, 1]} : vector<32x32xf32> to vector<2x32xf32>
    %422 = vector.extract_strided_slice %404 {offsets = [0, 64], sizes = [2, 32], strides = [1, 1]} : vector<2x96xf32> to vector<2x32xf32>
    %423 = vector.broadcast %394 : vector<1x32xf32> to vector<2x32xf32>
    %424 = arith.addf %422, %423 : vector<2x32xf32>
    %425 = arith.mulf %412, %424 : vector<2x32xf32>
    %426 = arith.addf %421, %425 : vector<2x32xf32>
    %427 = math.tanh %426 : vector<2x32xf32>
    %cst_144 = arith.constant 1.000000e+00 : f32
    %428 = vector.broadcast %cst_144 : f32 to vector<2x32xf32>
    %429 = arith.subf %428, %420 : vector<2x32xf32>
    %430 = arith.mulf %429, %427 : vector<2x32xf32>
    %431 = arith.mulf %420, %403 : vector<2x32xf32>
    %432 = arith.addf %430, %431 : vector<2x32xf32>
    %cst_145 = arith.constant dense<0.000000e+00> : vector<2x96xf32>
    %433 = tpu.matmul %432, %393, %cst_145 {dimension_numbers = #tpu.dot_dimension_numbers<[1], [0], [0], [1], [0, 0, 1, 1], [], []>} : vector<2x32xf32>, vector<32x96xf32>, vector<2x96xf32> -> vector<2x96xf32>
    %434 = vector.extract_strided_slice %400 {offsets = [2, 0], sizes = [2, 32], strides = [1, 1]} : vector<32x32xf32> to vector<2x32xf32>
    %435 = vector.extract_strided_slice %433 {offsets = [0, 0], sizes = [2, 32], strides = [1, 1]} : vector<2x96xf32> to vector<2x32xf32>
    %436 = arith.addf %434, %435 : vector<2x32xf32>
    %437 = arith.negf %436 : vector<2x32xf32>
    %438 = math.exp %437 : vector<2x32xf32>
    %cst_146 = arith.constant 1.000000e+00 : f32
    %439 = vector.broadcast %cst_146 : f32 to vector<2x32xf32>
    %440 = arith.addf %439, %438 : vector<2x32xf32>
    %441 = arith.divf %439, %440 : vector<2x32xf32>
    %442 = vector.extract_strided_slice %401 {offsets = [2, 0], sizes = [2, 32], strides = [1, 1]} : vector<32x32xf32> to vector<2x32xf32>
    %443 = vector.extract_strided_slice %433 {offsets = [0, 32], sizes = [2, 32], strides = [1, 1]} : vector<2x96xf32> to vector<2x32xf32>
    %444 = arith.addf %442, %443 : vector<2x32xf32>
    %445 = arith.negf %444 : vector<2x32xf32>
    %446 = math.exp %445 : vector<2x32xf32>
    %cst_147 = arith.constant 1.000000e+00 : f32
    %447 = vector.broadcast %cst_147 : f32 to vector<2x32xf32>
    %448 = arith.addf %447, %446 : vector<2x32xf32>
    %449 = arith.divf %447, %448 : vector<2x32xf32>
    %450 = vector.extract_strided_slice %402 {offsets = [2, 0], sizes = [2, 32], strides = [1, 1]} : vector<32x32xf32> to vector<2x32xf32>
    %451 = vector.extract_strided_slice %433 {offsets = [0, 64], sizes = [2, 32], strides = [1, 1]} : vector<2x96xf32> to vector<2x32xf32>
    %452 = vector.broadcast %394 : vector<1x32xf32> to vector<2x32xf32>
    %453 = arith.addf %451, %452 : vector<2x32xf32>
    %454 = arith.mulf %441, %453 : vector<2x32xf32>
    %455 = arith.addf %450, %454 : vector<2x32xf32>
    %456 = math.tanh %455 : vector<2x32xf32>
    %cst_148 = arith.constant 1.000000e+00 : f32
    %457 = vector.broadcast %cst_148 : f32 to vector<2x32xf32>
    %458 = arith.subf %457, %449 : vector<2x32xf32>
    %459 = arith.mulf %458, %456 : vector<2x32xf32>
    %460 = arith.mulf %449, %432 : vector<2x32xf32>
    %461 = arith.addf %459, %460 : vector<2x32xf32>
    %cst_149 = arith.constant dense<0.000000e+00> : vector<2x96xf32>
    %462 = tpu.matmul %461, %393, %cst_149 {dimension_numbers = #tpu.dot_dimension_numbers<[1], [0], [0], [1], [0, 0, 1, 1], [], []>} : vector<2x32xf32>, vector<32x96xf32>, vector<2x96xf32> -> vector<2x96xf32>
    %463 = vector.extract_strided_slice %400 {offsets = [4, 0], sizes = [2, 32], strides = [1, 1]} : vector<32x32xf32> to vector<2x32xf32>
    %464 = vector.extract_strided_slice %462 {offsets = [0, 0], sizes = [2, 32], strides = [1, 1]} : vector<2x96xf32> to vector<2x32xf32>
    %465 = arith.addf %463, %464 : vector<2x32xf32>
    %466 = arith.negf %465 : vector<2x32xf32>
    %467 = math.exp %466 : vector<2x32xf32>
    %cst_150 = arith.constant 1.000000e+00 : f32
    %468 = vector.broadcast %cst_150 : f32 to vector<2x32xf32>
    %469 = arith.addf %468, %467 : vector<2x32xf32>
    %470 = arith.divf %468, %469 : vector<2x32xf32>
    %471 = vector.extract_strided_slice %401 {offsets = [4, 0], sizes = [2, 32], strides = [1, 1]} : vector<32x32xf32> to vector<2x32xf32>
    %472 = vector.extract_strided_slice %462 {offsets = [0, 32], sizes = [2, 32], strides = [1, 1]} : vector<2x96xf32> to vector<2x32xf32>
    %473 = arith.addf %471, %472 : vector<2x32xf32>
    %474 = arith.negf %473 : vector<2x32xf32>
    %475 = math.exp %474 : vector<2x32xf32>
    %cst_151 = arith.constant 1.000000e+00 : f32
    %476 = vector.broadcast %cst_151 : f32 to vector<2x32xf32>
    %477 = arith.addf %476, %475 : vector<2x32xf32>
    %478 = arith.divf %476, %477 : vector<2x32xf32>
    %479 = vector.extract_strided_slice %402 {offsets = [4, 0], sizes = [2, 32], strides = [1, 1]} : vector<32x32xf32> to vector<2x32xf32>
    %480 = vector.extract_strided_slice %462 {offsets = [0, 64], sizes = [2, 32], strides = [1, 1]} : vector<2x96xf32> to vector<2x32xf32>
    %481 = vector.broadcast %394 : vector<1x32xf32> to vector<2x32xf32>
    %482 = arith.addf %480, %481 : vector<2x32xf32>
    %483 = arith.mulf %470, %482 : vector<2x32xf32>
    %484 = arith.addf %479, %483 : vector<2x32xf32>
    %485 = math.tanh %484 : vector<2x32xf32>
    %cst_152 = arith.constant 1.000000e+00 : f32
    %486 = vector.broadcast %cst_152 : f32 to vector<2x32xf32>
    %487 = arith.subf %486, %478 : vector<2x32xf32>
    %488 = arith.mulf %487, %485 : vector<2x32xf32>
    %489 = arith.mulf %478, %461 : vector<2x32xf32>
    %490 = arith.addf %488, %489 : vector<2x32xf32>
    %cst_153 = arith.constant dense<0.000000e+00> : vector<2x96xf32>
    %491 = tpu.matmul %490, %393, %cst_153 {dimension_numbers = #tpu.dot_dimension_numbers<[1], [0], [0], [1], [0, 0, 1, 1], [], []>} : vector<2x32xf32>, vector<32x96xf32>, vector<2x96xf32> -> vector<2x96xf32>
    %492 = vector.extract_strided_slice %400 {offsets = [6, 0], sizes = [2, 32], strides = [1, 1]} : vector<32x32xf32> to vector<2x32xf32>
    %493 = vector.extract_strided_slice %491 {offsets = [0, 0], sizes = [2, 32], strides = [1, 1]} : vector<2x96xf32> to vector<2x32xf32>
    %494 = arith.addf %492, %493 : vector<2x32xf32>
    %495 = arith.negf %494 : vector<2x32xf32>
    %496 = math.exp %495 : vector<2x32xf32>
    %cst_154 = arith.constant 1.000000e+00 : f32
    %497 = vector.broadcast %cst_154 : f32 to vector<2x32xf32>
    %498 = arith.addf %497, %496 : vector<2x32xf32>
    %499 = arith.divf %497, %498 : vector<2x32xf32>
    %500 = vector.extract_strided_slice %401 {offsets = [6, 0], sizes = [2, 32], strides = [1, 1]} : vector<32x32xf32> to vector<2x32xf32>
    %501 = vector.extract_strided_slice %491 {offsets = [0, 32], sizes = [2, 32], strides = [1, 1]} : vector<2x96xf32> to vector<2x32xf32>
    %502 = arith.addf %500, %501 : vector<2x32xf32>
    %503 = arith.negf %502 : vector<2x32xf32>
    %504 = math.exp %503 : vector<2x32xf32>
    %cst_155 = arith.constant 1.000000e+00 : f32
    %505 = vector.broadcast %cst_155 : f32 to vector<2x32xf32>
    %506 = arith.addf %505, %504 : vector<2x32xf32>
    %507 = arith.divf %505, %506 : vector<2x32xf32>
    %508 = vector.extract_strided_slice %402 {offsets = [6, 0], sizes = [2, 32], strides = [1, 1]} : vector<32x32xf32> to vector<2x32xf32>
    %509 = vector.extract_strided_slice %491 {offsets = [0, 64], sizes = [2, 32], strides = [1, 1]} : vector<2x96xf32> to vector<2x32xf32>
    %510 = vector.broadcast %394 : vector<1x32xf32> to vector<2x32xf32>
    %511 = arith.addf %509, %510 : vector<2x32xf32>
    %512 = arith.mulf %499, %511 : vector<2x32xf32>
    %513 = arith.addf %508, %512 : vector<2x32xf32>
    %514 = math.tanh %513 : vector<2x32xf32>
    %cst_156 = arith.constant 1.000000e+00 : f32
    %515 = vector.broadcast %cst_156 : f32 to vector<2x32xf32>
    %516 = arith.subf %515, %507 : vector<2x32xf32>
    %517 = arith.mulf %516, %514 : vector<2x32xf32>
    %518 = arith.mulf %507, %490 : vector<2x32xf32>
    %519 = arith.addf %517, %518 : vector<2x32xf32>
    %cst_157 = arith.constant dense<0.000000e+00> : vector<2x96xf32>
    %520 = tpu.matmul %519, %393, %cst_157 {dimension_numbers = #tpu.dot_dimension_numbers<[1], [0], [0], [1], [0, 0, 1, 1], [], []>} : vector<2x32xf32>, vector<32x96xf32>, vector<2x96xf32> -> vector<2x96xf32>
    %521 = vector.extract_strided_slice %400 {offsets = [8, 0], sizes = [2, 32], strides = [1, 1]} : vector<32x32xf32> to vector<2x32xf32>
    %522 = vector.extract_strided_slice %520 {offsets = [0, 0], sizes = [2, 32], strides = [1, 1]} : vector<2x96xf32> to vector<2x32xf32>
    %523 = arith.addf %521, %522 : vector<2x32xf32>
    %524 = arith.negf %523 : vector<2x32xf32>
    %525 = math.exp %524 : vector<2x32xf32>
    %cst_158 = arith.constant 1.000000e+00 : f32
    %526 = vector.broadcast %cst_158 : f32 to vector<2x32xf32>
    %527 = arith.addf %526, %525 : vector<2x32xf32>
    %528 = arith.divf %526, %527 : vector<2x32xf32>
    %529 = vector.extract_strided_slice %401 {offsets = [8, 0], sizes = [2, 32], strides = [1, 1]} : vector<32x32xf32> to vector<2x32xf32>
    %530 = vector.extract_strided_slice %520 {offsets = [0, 32], sizes = [2, 32], strides = [1, 1]} : vector<2x96xf32> to vector<2x32xf32>
    %531 = arith.addf %529, %530 : vector<2x32xf32>
    %532 = arith.negf %531 : vector<2x32xf32>
    %533 = math.exp %532 : vector<2x32xf32>
    %cst_159 = arith.constant 1.000000e+00 : f32
    %534 = vector.broadcast %cst_159 : f32 to vector<2x32xf32>
    %535 = arith.addf %534, %533 : vector<2x32xf32>
    %536 = arith.divf %534, %535 : vector<2x32xf32>
    %537 = vector.extract_strided_slice %402 {offsets = [8, 0], sizes = [2, 32], strides = [1, 1]} : vector<32x32xf32> to vector<2x32xf32>
    %538 = vector.extract_strided_slice %520 {offsets = [0, 64], sizes = [2, 32], strides = [1, 1]} : vector<2x96xf32> to vector<2x32xf32>
    %539 = vector.broadcast %394 : vector<1x32xf32> to vector<2x32xf32>
    %540 = arith.addf %538, %539 : vector<2x32xf32>
    %541 = arith.mulf %528, %540 : vector<2x32xf32>
    %542 = arith.addf %537, %541 : vector<2x32xf32>
    %543 = math.tanh %542 : vector<2x32xf32>
    %cst_160 = arith.constant 1.000000e+00 : f32
    %544 = vector.broadcast %cst_160 : f32 to vector<2x32xf32>
    %545 = arith.subf %544, %536 : vector<2x32xf32>
    %546 = arith.mulf %545, %543 : vector<2x32xf32>
    %547 = arith.mulf %536, %519 : vector<2x32xf32>
    %548 = arith.addf %546, %547 : vector<2x32xf32>
    %cst_161 = arith.constant dense<0.000000e+00> : vector<2x96xf32>
    %549 = tpu.matmul %548, %393, %cst_161 {dimension_numbers = #tpu.dot_dimension_numbers<[1], [0], [0], [1], [0, 0, 1, 1], [], []>} : vector<2x32xf32>, vector<32x96xf32>, vector<2x96xf32> -> vector<2x96xf32>
    %550 = vector.extract_strided_slice %400 {offsets = [10, 0], sizes = [2, 32], strides = [1, 1]} : vector<32x32xf32> to vector<2x32xf32>
    %551 = vector.extract_strided_slice %549 {offsets = [0, 0], sizes = [2, 32], strides = [1, 1]} : vector<2x96xf32> to vector<2x32xf32>
    %552 = arith.addf %550, %551 : vector<2x32xf32>
    %553 = arith.negf %552 : vector<2x32xf32>
    %554 = math.exp %553 : vector<2x32xf32>
    %cst_162 = arith.constant 1.000000e+00 : f32
    %555 = vector.broadcast %cst_162 : f32 to vector<2x32xf32>
    %556 = arith.addf %555, %554 : vector<2x32xf32>
    %557 = arith.divf %555, %556 : vector<2x32xf32>
    %558 = vector.extract_strided_slice %401 {offsets = [10, 0], sizes = [2, 32], strides = [1, 1]} : vector<32x32xf32> to vector<2x32xf32>
    %559 = vector.extract_strided_slice %549 {offsets = [0, 32], sizes = [2, 32], strides = [1, 1]} : vector<2x96xf32> to vector<2x32xf32>
    %560 = arith.addf %558, %559 : vector<2x32xf32>
    %561 = arith.negf %560 : vector<2x32xf32>
    %562 = math.exp %561 : vector<2x32xf32>
    %cst_163 = arith.constant 1.000000e+00 : f32
    %563 = vector.broadcast %cst_163 : f32 to vector<2x32xf32>
    %564 = arith.addf %563, %562 : vector<2x32xf32>
    %565 = arith.divf %563, %564 : vector<2x32xf32>
    %566 = vector.extract_strided_slice %402 {offsets = [10, 0], sizes = [2, 32], strides = [1, 1]} : vector<32x32xf32> to vector<2x32xf32>
    %567 = vector.extract_strided_slice %549 {offsets = [0, 64], sizes = [2, 32], strides = [1, 1]} : vector<2x96xf32> to vector<2x32xf32>
    %568 = vector.broadcast %394 : vector<1x32xf32> to vector<2x32xf32>
    %569 = arith.addf %567, %568 : vector<2x32xf32>
    %570 = arith.mulf %557, %569 : vector<2x32xf32>
    %571 = arith.addf %566, %570 : vector<2x32xf32>
    %572 = math.tanh %571 : vector<2x32xf32>
    %cst_164 = arith.constant 1.000000e+00 : f32
    %573 = vector.broadcast %cst_164 : f32 to vector<2x32xf32>
    %574 = arith.subf %573, %565 : vector<2x32xf32>
    %575 = arith.mulf %574, %572 : vector<2x32xf32>
    %576 = arith.mulf %565, %548 : vector<2x32xf32>
    %577 = arith.addf %575, %576 : vector<2x32xf32>
    %cst_165 = arith.constant dense<0.000000e+00> : vector<2x96xf32>
    %578 = tpu.matmul %577, %393, %cst_165 {dimension_numbers = #tpu.dot_dimension_numbers<[1], [0], [0], [1], [0, 0, 1, 1], [], []>} : vector<2x32xf32>, vector<32x96xf32>, vector<2x96xf32> -> vector<2x96xf32>
    %579 = vector.extract_strided_slice %400 {offsets = [12, 0], sizes = [2, 32], strides = [1, 1]} : vector<32x32xf32> to vector<2x32xf32>
    %580 = vector.extract_strided_slice %578 {offsets = [0, 0], sizes = [2, 32], strides = [1, 1]} : vector<2x96xf32> to vector<2x32xf32>
    %581 = arith.addf %579, %580 : vector<2x32xf32>
    %582 = arith.negf %581 : vector<2x32xf32>
    %583 = math.exp %582 : vector<2x32xf32>
    %cst_166 = arith.constant 1.000000e+00 : f32
    %584 = vector.broadcast %cst_166 : f32 to vector<2x32xf32>
    %585 = arith.addf %584, %583 : vector<2x32xf32>
    %586 = arith.divf %584, %585 : vector<2x32xf32>
    %587 = vector.extract_strided_slice %401 {offsets = [12, 0], sizes = [2, 32], strides = [1, 1]} : vector<32x32xf32> to vector<2x32xf32>
    %588 = vector.extract_strided_slice %578 {offsets = [0, 32], sizes = [2, 32], strides = [1, 1]} : vector<2x96xf32> to vector<2x32xf32>
    %589 = arith.addf %587, %588 : vector<2x32xf32>
    %590 = arith.negf %589 : vector<2x32xf32>
    %591 = math.exp %590 : vector<2x32xf32>
    %cst_167 = arith.constant 1.000000e+00 : f32
    %592 = vector.broadcast %cst_167 : f32 to vector<2x32xf32>
    %593 = arith.addf %592, %591 : vector<2x32xf32>
    %594 = arith.divf %592, %593 : vector<2x32xf32>
    %595 = vector.extract_strided_slice %402 {offsets = [12, 0], sizes = [2, 32], strides = [1, 1]} : vector<32x32xf32> to vector<2x32xf32>
    %596 = vector.extract_strided_slice %578 {offsets = [0, 64], sizes = [2, 32], strides = [1, 1]} : vector<2x96xf32> to vector<2x32xf32>
    %597 = vector.broadcast %394 : vector<1x32xf32> to vector<2x32xf32>
    %598 = arith.addf %596, %597 : vector<2x32xf32>
    %599 = arith.mulf %586, %598 : vector<2x32xf32>
    %600 = arith.addf %595, %599 : vector<2x32xf32>
    %601 = math.tanh %600 : vector<2x32xf32>
    %cst_168 = arith.constant 1.000000e+00 : f32
    %602 = vector.broadcast %cst_168 : f32 to vector<2x32xf32>
    %603 = arith.subf %602, %594 : vector<2x32xf32>
    %604 = arith.mulf %603, %601 : vector<2x32xf32>
    %605 = arith.mulf %594, %577 : vector<2x32xf32>
    %606 = arith.addf %604, %605 : vector<2x32xf32>
    %cst_169 = arith.constant dense<0.000000e+00> : vector<2x96xf32>
    %607 = tpu.matmul %606, %393, %cst_169 {dimension_numbers = #tpu.dot_dimension_numbers<[1], [0], [0], [1], [0, 0, 1, 1], [], []>} : vector<2x32xf32>, vector<32x96xf32>, vector<2x96xf32> -> vector<2x96xf32>
    %608 = vector.extract_strided_slice %400 {offsets = [14, 0], sizes = [2, 32], strides = [1, 1]} : vector<32x32xf32> to vector<2x32xf32>
    %609 = vector.extract_strided_slice %607 {offsets = [0, 0], sizes = [2, 32], strides = [1, 1]} : vector<2x96xf32> to vector<2x32xf32>
    %610 = arith.addf %608, %609 : vector<2x32xf32>
    %611 = arith.negf %610 : vector<2x32xf32>
    %612 = math.exp %611 : vector<2x32xf32>
    %cst_170 = arith.constant 1.000000e+00 : f32
    %613 = vector.broadcast %cst_170 : f32 to vector<2x32xf32>
    %614 = arith.addf %613, %612 : vector<2x32xf32>
    %615 = arith.divf %613, %614 : vector<2x32xf32>
    %616 = vector.extract_strided_slice %401 {offsets = [14, 0], sizes = [2, 32], strides = [1, 1]} : vector<32x32xf32> to vector<2x32xf32>
    %617 = vector.extract_strided_slice %607 {offsets = [0, 32], sizes = [2, 32], strides = [1, 1]} : vector<2x96xf32> to vector<2x32xf32>
    %618 = arith.addf %616, %617 : vector<2x32xf32>
    %619 = arith.negf %618 : vector<2x32xf32>
    %620 = math.exp %619 : vector<2x32xf32>
    %cst_171 = arith.constant 1.000000e+00 : f32
    %621 = vector.broadcast %cst_171 : f32 to vector<2x32xf32>
    %622 = arith.addf %621, %620 : vector<2x32xf32>
    %623 = arith.divf %621, %622 : vector<2x32xf32>
    %624 = vector.extract_strided_slice %402 {offsets = [14, 0], sizes = [2, 32], strides = [1, 1]} : vector<32x32xf32> to vector<2x32xf32>
    %625 = vector.extract_strided_slice %607 {offsets = [0, 64], sizes = [2, 32], strides = [1, 1]} : vector<2x96xf32> to vector<2x32xf32>
    %626 = vector.broadcast %394 : vector<1x32xf32> to vector<2x32xf32>
    %627 = arith.addf %625, %626 : vector<2x32xf32>
    %628 = arith.mulf %615, %627 : vector<2x32xf32>
    %629 = arith.addf %624, %628 : vector<2x32xf32>
    %630 = math.tanh %629 : vector<2x32xf32>
    %cst_172 = arith.constant 1.000000e+00 : f32
    %631 = vector.broadcast %cst_172 : f32 to vector<2x32xf32>
    %632 = arith.subf %631, %623 : vector<2x32xf32>
    %633 = arith.mulf %632, %630 : vector<2x32xf32>
    %634 = arith.mulf %623, %606 : vector<2x32xf32>
    %635 = arith.addf %633, %634 : vector<2x32xf32>
    %cst_173 = arith.constant dense<0.000000e+00> : vector<2x96xf32>
    %636 = tpu.matmul %635, %393, %cst_173 {dimension_numbers = #tpu.dot_dimension_numbers<[1], [0], [0], [1], [0, 0, 1, 1], [], []>} : vector<2x32xf32>, vector<32x96xf32>, vector<2x96xf32> -> vector<2x96xf32>
    %637 = vector.extract_strided_slice %400 {offsets = [16, 0], sizes = [2, 32], strides = [1, 1]} : vector<32x32xf32> to vector<2x32xf32>
    %638 = vector.extract_strided_slice %636 {offsets = [0, 0], sizes = [2, 32], strides = [1, 1]} : vector<2x96xf32> to vector<2x32xf32>
    %639 = arith.addf %637, %638 : vector<2x32xf32>
    %640 = arith.negf %639 : vector<2x32xf32>
    %641 = math.exp %640 : vector<2x32xf32>
    %cst_174 = arith.constant 1.000000e+00 : f32
    %642 = vector.broadcast %cst_174 : f32 to vector<2x32xf32>
    %643 = arith.addf %642, %641 : vector<2x32xf32>
    %644 = arith.divf %642, %643 : vector<2x32xf32>
    %645 = vector.extract_strided_slice %401 {offsets = [16, 0], sizes = [2, 32], strides = [1, 1]} : vector<32x32xf32> to vector<2x32xf32>
    %646 = vector.extract_strided_slice %636 {offsets = [0, 32], sizes = [2, 32], strides = [1, 1]} : vector<2x96xf32> to vector<2x32xf32>
    %647 = arith.addf %645, %646 : vector<2x32xf32>
    %648 = arith.negf %647 : vector<2x32xf32>
    %649 = math.exp %648 : vector<2x32xf32>
    %cst_175 = arith.constant 1.000000e+00 : f32
    %650 = vector.broadcast %cst_175 : f32 to vector<2x32xf32>
    %651 = arith.addf %650, %649 : vector<2x32xf32>
    %652 = arith.divf %650, %651 : vector<2x32xf32>
    %653 = vector.extract_strided_slice %402 {offsets = [16, 0], sizes = [2, 32], strides = [1, 1]} : vector<32x32xf32> to vector<2x32xf32>
    %654 = vector.extract_strided_slice %636 {offsets = [0, 64], sizes = [2, 32], strides = [1, 1]} : vector<2x96xf32> to vector<2x32xf32>
    %655 = vector.broadcast %394 : vector<1x32xf32> to vector<2x32xf32>
    %656 = arith.addf %654, %655 : vector<2x32xf32>
    %657 = arith.mulf %644, %656 : vector<2x32xf32>
    %658 = arith.addf %653, %657 : vector<2x32xf32>
    %659 = math.tanh %658 : vector<2x32xf32>
    %cst_176 = arith.constant 1.000000e+00 : f32
    %660 = vector.broadcast %cst_176 : f32 to vector<2x32xf32>
    %661 = arith.subf %660, %652 : vector<2x32xf32>
    %662 = arith.mulf %661, %659 : vector<2x32xf32>
    %663 = arith.mulf %652, %635 : vector<2x32xf32>
    %664 = arith.addf %662, %663 : vector<2x32xf32>
    %cst_177 = arith.constant dense<0.000000e+00> : vector<2x96xf32>
    %665 = tpu.matmul %664, %393, %cst_177 {dimension_numbers = #tpu.dot_dimension_numbers<[1], [0], [0], [1], [0, 0, 1, 1], [], []>} : vector<2x32xf32>, vector<32x96xf32>, vector<2x96xf32> -> vector<2x96xf32>
    %666 = vector.extract_strided_slice %400 {offsets = [18, 0], sizes = [2, 32], strides = [1, 1]} : vector<32x32xf32> to vector<2x32xf32>
    %667 = vector.extract_strided_slice %665 {offsets = [0, 0], sizes = [2, 32], strides = [1, 1]} : vector<2x96xf32> to vector<2x32xf32>
    %668 = arith.addf %666, %667 : vector<2x32xf32>
    %669 = arith.negf %668 : vector<2x32xf32>
    %670 = math.exp %669 : vector<2x32xf32>
    %cst_178 = arith.constant 1.000000e+00 : f32
    %671 = vector.broadcast %cst_178 : f32 to vector<2x32xf32>
    %672 = arith.addf %671, %670 : vector<2x32xf32>
    %673 = arith.divf %671, %672 : vector<2x32xf32>
    %674 = vector.extract_strided_slice %401 {offsets = [18, 0], sizes = [2, 32], strides = [1, 1]} : vector<32x32xf32> to vector<2x32xf32>
    %675 = vector.extract_strided_slice %665 {offsets = [0, 32], sizes = [2, 32], strides = [1, 1]} : vector<2x96xf32> to vector<2x32xf32>
    %676 = arith.addf %674, %675 : vector<2x32xf32>
    %677 = arith.negf %676 : vector<2x32xf32>
    %678 = math.exp %677 : vector<2x32xf32>
    %cst_179 = arith.constant 1.000000e+00 : f32
    %679 = vector.broadcast %cst_179 : f32 to vector<2x32xf32>
    %680 = arith.addf %679, %678 : vector<2x32xf32>
    %681 = arith.divf %679, %680 : vector<2x32xf32>
    %682 = vector.extract_strided_slice %402 {offsets = [18, 0], sizes = [2, 32], strides = [1, 1]} : vector<32x32xf32> to vector<2x32xf32>
    %683 = vector.extract_strided_slice %665 {offsets = [0, 64], sizes = [2, 32], strides = [1, 1]} : vector<2x96xf32> to vector<2x32xf32>
    %684 = vector.broadcast %394 : vector<1x32xf32> to vector<2x32xf32>
    %685 = arith.addf %683, %684 : vector<2x32xf32>
    %686 = arith.mulf %673, %685 : vector<2x32xf32>
    %687 = arith.addf %682, %686 : vector<2x32xf32>
    %688 = math.tanh %687 : vector<2x32xf32>
    %cst_180 = arith.constant 1.000000e+00 : f32
    %689 = vector.broadcast %cst_180 : f32 to vector<2x32xf32>
    %690 = arith.subf %689, %681 : vector<2x32xf32>
    %691 = arith.mulf %690, %688 : vector<2x32xf32>
    %692 = arith.mulf %681, %664 : vector<2x32xf32>
    %693 = arith.addf %691, %692 : vector<2x32xf32>
    %cst_181 = arith.constant dense<0.000000e+00> : vector<2x96xf32>
    %694 = tpu.matmul %693, %393, %cst_181 {dimension_numbers = #tpu.dot_dimension_numbers<[1], [0], [0], [1], [0, 0, 1, 1], [], []>} : vector<2x32xf32>, vector<32x96xf32>, vector<2x96xf32> -> vector<2x96xf32>
    %695 = vector.extract_strided_slice %400 {offsets = [20, 0], sizes = [2, 32], strides = [1, 1]} : vector<32x32xf32> to vector<2x32xf32>
    %696 = vector.extract_strided_slice %694 {offsets = [0, 0], sizes = [2, 32], strides = [1, 1]} : vector<2x96xf32> to vector<2x32xf32>
    %697 = arith.addf %695, %696 : vector<2x32xf32>
    %698 = arith.negf %697 : vector<2x32xf32>
    %699 = math.exp %698 : vector<2x32xf32>
    %cst_182 = arith.constant 1.000000e+00 : f32
    %700 = vector.broadcast %cst_182 : f32 to vector<2x32xf32>
    %701 = arith.addf %700, %699 : vector<2x32xf32>
    %702 = arith.divf %700, %701 : vector<2x32xf32>
    %703 = vector.extract_strided_slice %401 {offsets = [20, 0], sizes = [2, 32], strides = [1, 1]} : vector<32x32xf32> to vector<2x32xf32>
    %704 = vector.extract_strided_slice %694 {offsets = [0, 32], sizes = [2, 32], strides = [1, 1]} : vector<2x96xf32> to vector<2x32xf32>
    %705 = arith.addf %703, %704 : vector<2x32xf32>
    %706 = arith.negf %705 : vector<2x32xf32>
    %707 = math.exp %706 : vector<2x32xf32>
    %cst_183 = arith.constant 1.000000e+00 : f32
    %708 = vector.broadcast %cst_183 : f32 to vector<2x32xf32>
    %709 = arith.addf %708, %707 : vector<2x32xf32>
    %710 = arith.divf %708, %709 : vector<2x32xf32>
    %711 = vector.extract_strided_slice %402 {offsets = [20, 0], sizes = [2, 32], strides = [1, 1]} : vector<32x32xf32> to vector<2x32xf32>
    %712 = vector.extract_strided_slice %694 {offsets = [0, 64], sizes = [2, 32], strides = [1, 1]} : vector<2x96xf32> to vector<2x32xf32>
    %713 = vector.broadcast %394 : vector<1x32xf32> to vector<2x32xf32>
    %714 = arith.addf %712, %713 : vector<2x32xf32>
    %715 = arith.mulf %702, %714 : vector<2x32xf32>
    %716 = arith.addf %711, %715 : vector<2x32xf32>
    %717 = math.tanh %716 : vector<2x32xf32>
    %cst_184 = arith.constant 1.000000e+00 : f32
    %718 = vector.broadcast %cst_184 : f32 to vector<2x32xf32>
    %719 = arith.subf %718, %710 : vector<2x32xf32>
    %720 = arith.mulf %719, %717 : vector<2x32xf32>
    %721 = arith.mulf %710, %693 : vector<2x32xf32>
    %722 = arith.addf %720, %721 : vector<2x32xf32>
    %cst_185 = arith.constant dense<0.000000e+00> : vector<2x96xf32>
    %723 = tpu.matmul %722, %393, %cst_185 {dimension_numbers = #tpu.dot_dimension_numbers<[1], [0], [0], [1], [0, 0, 1, 1], [], []>} : vector<2x32xf32>, vector<32x96xf32>, vector<2x96xf32> -> vector<2x96xf32>
    %724 = vector.extract_strided_slice %400 {offsets = [22, 0], sizes = [2, 32], strides = [1, 1]} : vector<32x32xf32> to vector<2x32xf32>
    %725 = vector.extract_strided_slice %723 {offsets = [0, 0], sizes = [2, 32], strides = [1, 1]} : vector<2x96xf32> to vector<2x32xf32>
    %726 = arith.addf %724, %725 : vector<2x32xf32>
    %727 = arith.negf %726 : vector<2x32xf32>
    %728 = math.exp %727 : vector<2x32xf32>
    %cst_186 = arith.constant 1.000000e+00 : f32
    %729 = vector.broadcast %cst_186 : f32 to vector<2x32xf32>
    %730 = arith.addf %729, %728 : vector<2x32xf32>
    %731 = arith.divf %729, %730 : vector<2x32xf32>
    %732 = vector.extract_strided_slice %401 {offsets = [22, 0], sizes = [2, 32], strides = [1, 1]} : vector<32x32xf32> to vector<2x32xf32>
    %733 = vector.extract_strided_slice %723 {offsets = [0, 32], sizes = [2, 32], strides = [1, 1]} : vector<2x96xf32> to vector<2x32xf32>
    %734 = arith.addf %732, %733 : vector<2x32xf32>
    %735 = arith.negf %734 : vector<2x32xf32>
    %736 = math.exp %735 : vector<2x32xf32>
    %cst_187 = arith.constant 1.000000e+00 : f32
    %737 = vector.broadcast %cst_187 : f32 to vector<2x32xf32>
    %738 = arith.addf %737, %736 : vector<2x32xf32>
    %739 = arith.divf %737, %738 : vector<2x32xf32>
    %740 = vector.extract_strided_slice %402 {offsets = [22, 0], sizes = [2, 32], strides = [1, 1]} : vector<32x32xf32> to vector<2x32xf32>
    %741 = vector.extract_strided_slice %723 {offsets = [0, 64], sizes = [2, 32], strides = [1, 1]} : vector<2x96xf32> to vector<2x32xf32>
    %742 = vector.broadcast %394 : vector<1x32xf32> to vector<2x32xf32>
    %743 = arith.addf %741, %742 : vector<2x32xf32>
    %744 = arith.mulf %731, %743 : vector<2x32xf32>
    %745 = arith.addf %740, %744 : vector<2x32xf32>
    %746 = math.tanh %745 : vector<2x32xf32>
    %cst_188 = arith.constant 1.000000e+00 : f32
    %747 = vector.broadcast %cst_188 : f32 to vector<2x32xf32>
    %748 = arith.subf %747, %739 : vector<2x32xf32>
    %749 = arith.mulf %748, %746 : vector<2x32xf32>
    %750 = arith.mulf %739, %722 : vector<2x32xf32>
    %751 = arith.addf %749, %750 : vector<2x32xf32>
    %cst_189 = arith.constant dense<0.000000e+00> : vector<2x96xf32>
    %752 = tpu.matmul %751, %393, %cst_189 {dimension_numbers = #tpu.dot_dimension_numbers<[1], [0], [0], [1], [0, 0, 1, 1], [], []>} : vector<2x32xf32>, vector<32x96xf32>, vector<2x96xf32> -> vector<2x96xf32>
    %753 = vector.extract_strided_slice %400 {offsets = [24, 0], sizes = [2, 32], strides = [1, 1]} : vector<32x32xf32> to vector<2x32xf32>
    %754 = vector.extract_strided_slice %752 {offsets = [0, 0], sizes = [2, 32], strides = [1, 1]} : vector<2x96xf32> to vector<2x32xf32>
    %755 = arith.addf %753, %754 : vector<2x32xf32>
    %756 = arith.negf %755 : vector<2x32xf32>
    %757 = math.exp %756 : vector<2x32xf32>
    %cst_190 = arith.constant 1.000000e+00 : f32
    %758 = vector.broadcast %cst_190 : f32 to vector<2x32xf32>
    %759 = arith.addf %758, %757 : vector<2x32xf32>
    %760 = arith.divf %758, %759 : vector<2x32xf32>
    %761 = vector.extract_strided_slice %401 {offsets = [24, 0], sizes = [2, 32], strides = [1, 1]} : vector<32x32xf32> to vector<2x32xf32>
    %762 = vector.extract_strided_slice %752 {offsets = [0, 32], sizes = [2, 32], strides = [1, 1]} : vector<2x96xf32> to vector<2x32xf32>
    %763 = arith.addf %761, %762 : vector<2x32xf32>
    %764 = arith.negf %763 : vector<2x32xf32>
    %765 = math.exp %764 : vector<2x32xf32>
    %cst_191 = arith.constant 1.000000e+00 : f32
    %766 = vector.broadcast %cst_191 : f32 to vector<2x32xf32>
    %767 = arith.addf %766, %765 : vector<2x32xf32>
    %768 = arith.divf %766, %767 : vector<2x32xf32>
    %769 = vector.extract_strided_slice %402 {offsets = [24, 0], sizes = [2, 32], strides = [1, 1]} : vector<32x32xf32> to vector<2x32xf32>
    %770 = vector.extract_strided_slice %752 {offsets = [0, 64], sizes = [2, 32], strides = [1, 1]} : vector<2x96xf32> to vector<2x32xf32>
    %771 = vector.broadcast %394 : vector<1x32xf32> to vector<2x32xf32>
    %772 = arith.addf %770, %771 : vector<2x32xf32>
    %773 = arith.mulf %760, %772 : vector<2x32xf32>
    %774 = arith.addf %769, %773 : vector<2x32xf32>
    %775 = math.tanh %774 : vector<2x32xf32>
    %cst_192 = arith.constant 1.000000e+00 : f32
    %776 = vector.broadcast %cst_192 : f32 to vector<2x32xf32>
    %777 = arith.subf %776, %768 : vector<2x32xf32>
    %778 = arith.mulf %777, %775 : vector<2x32xf32>
    %779 = arith.mulf %768, %751 : vector<2x32xf32>
    %780 = arith.addf %778, %779 : vector<2x32xf32>
    %cst_193 = arith.constant dense<0.000000e+00> : vector<2x96xf32>
    %781 = tpu.matmul %780, %393, %cst_193 {dimension_numbers = #tpu.dot_dimension_numbers<[1], [0], [0], [1], [0, 0, 1, 1], [], []>} : vector<2x32xf32>, vector<32x96xf32>, vector<2x96xf32> -> vector<2x96xf32>
    %782 = vector.extract_strided_slice %400 {offsets = [26, 0], sizes = [2, 32], strides = [1, 1]} : vector<32x32xf32> to vector<2x32xf32>
    %783 = vector.extract_strided_slice %781 {offsets = [0, 0], sizes = [2, 32], strides = [1, 1]} : vector<2x96xf32> to vector<2x32xf32>
    %784 = arith.addf %782, %783 : vector<2x32xf32>
    %785 = arith.negf %784 : vector<2x32xf32>
    %786 = math.exp %785 : vector<2x32xf32>
    %cst_194 = arith.constant 1.000000e+00 : f32
    %787 = vector.broadcast %cst_194 : f32 to vector<2x32xf32>
    %788 = arith.addf %787, %786 : vector<2x32xf32>
    %789 = arith.divf %787, %788 : vector<2x32xf32>
    %790 = vector.extract_strided_slice %401 {offsets = [26, 0], sizes = [2, 32], strides = [1, 1]} : vector<32x32xf32> to vector<2x32xf32>
    %791 = vector.extract_strided_slice %781 {offsets = [0, 32], sizes = [2, 32], strides = [1, 1]} : vector<2x96xf32> to vector<2x32xf32>
    %792 = arith.addf %790, %791 : vector<2x32xf32>
    %793 = arith.negf %792 : vector<2x32xf32>
    %794 = math.exp %793 : vector<2x32xf32>
    %cst_195 = arith.constant 1.000000e+00 : f32
    %795 = vector.broadcast %cst_195 : f32 to vector<2x32xf32>
    %796 = arith.addf %795, %794 : vector<2x32xf32>
    %797 = arith.divf %795, %796 : vector<2x32xf32>
    %798 = vector.extract_strided_slice %402 {offsets = [26, 0], sizes = [2, 32], strides = [1, 1]} : vector<32x32xf32> to vector<2x32xf32>
    %799 = vector.extract_strided_slice %781 {offsets = [0, 64], sizes = [2, 32], strides = [1, 1]} : vector<2x96xf32> to vector<2x32xf32>
    %800 = vector.broadcast %394 : vector<1x32xf32> to vector<2x32xf32>
    %801 = arith.addf %799, %800 : vector<2x32xf32>
    %802 = arith.mulf %789, %801 : vector<2x32xf32>
    %803 = arith.addf %798, %802 : vector<2x32xf32>
    %804 = math.tanh %803 : vector<2x32xf32>
    %cst_196 = arith.constant 1.000000e+00 : f32
    %805 = vector.broadcast %cst_196 : f32 to vector<2x32xf32>
    %806 = arith.subf %805, %797 : vector<2x32xf32>
    %807 = arith.mulf %806, %804 : vector<2x32xf32>
    %808 = arith.mulf %797, %780 : vector<2x32xf32>
    %809 = arith.addf %807, %808 : vector<2x32xf32>
    %cst_197 = arith.constant dense<0.000000e+00> : vector<2x96xf32>
    %810 = tpu.matmul %809, %393, %cst_197 {dimension_numbers = #tpu.dot_dimension_numbers<[1], [0], [0], [1], [0, 0, 1, 1], [], []>} : vector<2x32xf32>, vector<32x96xf32>, vector<2x96xf32> -> vector<2x96xf32>
    %811 = vector.extract_strided_slice %400 {offsets = [28, 0], sizes = [2, 32], strides = [1, 1]} : vector<32x32xf32> to vector<2x32xf32>
    %812 = vector.extract_strided_slice %810 {offsets = [0, 0], sizes = [2, 32], strides = [1, 1]} : vector<2x96xf32> to vector<2x32xf32>
    %813 = arith.addf %811, %812 : vector<2x32xf32>
    %814 = arith.negf %813 : vector<2x32xf32>
    %815 = math.exp %814 : vector<2x32xf32>
    %cst_198 = arith.constant 1.000000e+00 : f32
    %816 = vector.broadcast %cst_198 : f32 to vector<2x32xf32>
    %817 = arith.addf %816, %815 : vector<2x32xf32>
    %818 = arith.divf %816, %817 : vector<2x32xf32>
    %819 = vector.extract_strided_slice %401 {offsets = [28, 0], sizes = [2, 32], strides = [1, 1]} : vector<32x32xf32> to vector<2x32xf32>
    %820 = vector.extract_strided_slice %810 {offsets = [0, 32], sizes = [2, 32], strides = [1, 1]} : vector<2x96xf32> to vector<2x32xf32>
    %821 = arith.addf %819, %820 : vector<2x32xf32>
    %822 = arith.negf %821 : vector<2x32xf32>
    %823 = math.exp %822 : vector<2x32xf32>
    %cst_199 = arith.constant 1.000000e+00 : f32
    %824 = vector.broadcast %cst_199 : f32 to vector<2x32xf32>
    %825 = arith.addf %824, %823 : vector<2x32xf32>
    %826 = arith.divf %824, %825 : vector<2x32xf32>
    %827 = vector.extract_strided_slice %402 {offsets = [28, 0], sizes = [2, 32], strides = [1, 1]} : vector<32x32xf32> to vector<2x32xf32>
    %828 = vector.extract_strided_slice %810 {offsets = [0, 64], sizes = [2, 32], strides = [1, 1]} : vector<2x96xf32> to vector<2x32xf32>
    %829 = vector.broadcast %394 : vector<1x32xf32> to vector<2x32xf32>
    %830 = arith.addf %828, %829 : vector<2x32xf32>
    %831 = arith.mulf %818, %830 : vector<2x32xf32>
    %832 = arith.addf %827, %831 : vector<2x32xf32>
    %833 = math.tanh %832 : vector<2x32xf32>
    %cst_200 = arith.constant 1.000000e+00 : f32
    %834 = vector.broadcast %cst_200 : f32 to vector<2x32xf32>
    %835 = arith.subf %834, %826 : vector<2x32xf32>
    %836 = arith.mulf %835, %833 : vector<2x32xf32>
    %837 = arith.mulf %826, %809 : vector<2x32xf32>
    %838 = arith.addf %836, %837 : vector<2x32xf32>
    %cst_201 = arith.constant dense<0.000000e+00> : vector<2x96xf32>
    %839 = tpu.matmul %838, %393, %cst_201 {dimension_numbers = #tpu.dot_dimension_numbers<[1], [0], [0], [1], [0, 0, 1, 1], [], []>} : vector<2x32xf32>, vector<32x96xf32>, vector<2x96xf32> -> vector<2x96xf32>
    %840 = vector.extract_strided_slice %400 {offsets = [30, 0], sizes = [2, 32], strides = [1, 1]} : vector<32x32xf32> to vector<2x32xf32>
    %841 = vector.extract_strided_slice %839 {offsets = [0, 0], sizes = [2, 32], strides = [1, 1]} : vector<2x96xf32> to vector<2x32xf32>
    %842 = arith.addf %840, %841 : vector<2x32xf32>
    %843 = arith.negf %842 : vector<2x32xf32>
    %844 = math.exp %843 : vector<2x32xf32>
    %cst_202 = arith.constant 1.000000e+00 : f32
    %845 = vector.broadcast %cst_202 : f32 to vector<2x32xf32>
    %846 = arith.addf %845, %844 : vector<2x32xf32>
    %847 = arith.divf %845, %846 : vector<2x32xf32>
    %848 = vector.extract_strided_slice %401 {offsets = [30, 0], sizes = [2, 32], strides = [1, 1]} : vector<32x32xf32> to vector<2x32xf32>
    %849 = vector.extract_strided_slice %839 {offsets = [0, 32], sizes = [2, 32], strides = [1, 1]} : vector<2x96xf32> to vector<2x32xf32>
    %850 = arith.addf %848, %849 : vector<2x32xf32>
    %851 = arith.negf %850 : vector<2x32xf32>
    %852 = math.exp %851 : vector<2x32xf32>
    %cst_203 = arith.constant 1.000000e+00 : f32
    %853 = vector.broadcast %cst_203 : f32 to vector<2x32xf32>
    %854 = arith.addf %853, %852 : vector<2x32xf32>
    %855 = arith.divf %853, %854 : vector<2x32xf32>
    %856 = vector.extract_strided_slice %402 {offsets = [30, 0], sizes = [2, 32], strides = [1, 1]} : vector<32x32xf32> to vector<2x32xf32>
    %857 = vector.extract_strided_slice %839 {offsets = [0, 64], sizes = [2, 32], strides = [1, 1]} : vector<2x96xf32> to vector<2x32xf32>
    %858 = vector.broadcast %394 : vector<1x32xf32> to vector<2x32xf32>
    %859 = arith.addf %857, %858 : vector<2x32xf32>
    %860 = arith.mulf %847, %859 : vector<2x32xf32>
    %861 = arith.addf %856, %860 : vector<2x32xf32>
    %862 = math.tanh %861 : vector<2x32xf32>
    %cst_204 = arith.constant 1.000000e+00 : f32
    %863 = vector.broadcast %cst_204 : f32 to vector<2x32xf32>
    %864 = arith.subf %863, %855 : vector<2x32xf32>
    %865 = arith.mulf %864, %862 : vector<2x32xf32>
    %866 = arith.mulf %855, %838 : vector<2x32xf32>
    %867 = arith.addf %865, %866 : vector<2x32xf32>
    %868 = tpu.concatenate %432, %461, %490, %519, %548, %577, %606, %635, %664, %693, %722, %751, %780, %809, %838, %867 in 0 : vector<2x32xf32>, vector<2x32xf32>, vector<2x32xf32>, vector<2x32xf32>, vector<2x32xf32>, vector<2x32xf32>, vector<2x32xf32>, vector<2x32xf32>, vector<2x32xf32>, vector<2x32xf32>, vector<2x32xf32>, vector<2x32xf32>, vector<2x32xf32>, vector<2x32xf32>, vector<2x32xf32>, vector<2x32xf32> -> vector<32x32xf32>
    %c352 = arith.constant 352 : index
    %c0_205 = arith.constant 0 : index
    %869 = vector.load %arg2[%c352, %c0_205] : memref<496x128xf32, #tpu.memory_space<vmem>>, vector<32x16xf32>
    %cst_206 = arith.constant dense<0.000000e+00> : vector<32x16xf32>
    %870 = tpu.matmul %24, %869, %cst_206 {dimension_numbers = #tpu.dot_dimension_numbers<[1], [0], [0], [1], [0, 0, 1, 1], [], []>} : vector<32x32xf32>, vector<32x16xf32>, vector<32x16xf32> -> vector<32x16xf32>
    %c120 = arith.constant 120 : index
    %c0_207 = arith.constant 0 : index
    %871 = vector.load %arg3[%c120, %c0_207] : memref<168x128xf32, #tpu.memory_space<vmem>>, vector<1x16xf32>
    %872 = vector.broadcast %871 : vector<1x16xf32> to vector<32x16xf32>
    %873 = arith.addf %870, %872 : vector<32x16xf32>
    %874 = arith.mulf %873, %873 : vector<32x16xf32>
    %875 = arith.mulf %873, %874 : vector<32x16xf32>
    %cst_208 = arith.constant 4.471500e-02 : f32
    %876 = vector.broadcast %cst_208 : f32 to vector<32x16xf32>
    %877 = arith.mulf %876, %875 : vector<32x16xf32>
    %878 = arith.addf %873, %877 : vector<32x16xf32>
    %cst_209 = arith.constant 0.797884583 : f32
    %879 = vector.broadcast %cst_209 : f32 to vector<32x16xf32>
    %880 = arith.mulf %879, %878 : vector<32x16xf32>
    %881 = math.tanh %880 : vector<32x16xf32>
    %cst_210 = arith.constant 1.000000e+00 : f32
    %882 = vector.broadcast %cst_210 : f32 to vector<32x16xf32>
    %883 = arith.addf %882, %881 : vector<32x16xf32>
    %cst_211 = arith.constant 5.000000e-01 : f32
    %884 = vector.broadcast %cst_211 : f32 to vector<32x16xf32>
    %885 = arith.mulf %884, %883 : vector<32x16xf32>
    %886 = arith.mulf %873, %885 : vector<32x16xf32>
    %c384 = arith.constant 384 : index
    %c0_212 = arith.constant 0 : index
    %887 = vector.load %arg2[%c384, %c0_212] : memref<496x128xf32, #tpu.memory_space<vmem>>, vector<16x3xf32>
    %cst_213 = arith.constant dense<0.000000e+00> : vector<32x3xf32>
    %888 = tpu.matmul %886, %887, %cst_213 {dimension_numbers = #tpu.dot_dimension_numbers<[1], [0], [0], [1], [0, 0, 1, 1], [], []>} : vector<32x16xf32>, vector<16x3xf32>, vector<32x3xf32> -> vector<32x3xf32>
    %c128_214 = arith.constant 128 : index
    %c0_215 = arith.constant 0 : index
    %889 = vector.load %arg3[%c128_214, %c0_215] : memref<168x128xf32, #tpu.memory_space<vmem>>, vector<1x3xf32>
    %890 = vector.broadcast %889 : vector<1x3xf32> to vector<32x3xf32>
    %891 = arith.addf %888, %890 : vector<32x3xf32>
    %cst_216 = arith.constant dense<0xFF800000> : vector<32xf32>
    %892 = vector.multi_reduction <maximumf>, %891, %cst_216 [1] : vector<32x3xf32> to vector<32xf32>
    %cst_217 = arith.constant 0xFF800000 : f32
    %893 = vector.broadcast %cst_217 : f32 to vector<32xf32>
    %894 = arith.maximumf %893, %892 : vector<32xf32>
    %895 = vector.shape_cast %894 : vector<32xf32> to vector<32x1xf32>
    %896 = vector.broadcast %895 : vector<32x1xf32> to vector<32x3xf32>
    %897 = arith.subf %891, %896 : vector<32x3xf32>
    %898 = math.exp %897 : vector<32x3xf32>
    %cst_218 = arith.constant dense<0.000000e+00> : vector<32xf32>
    %899 = vector.multi_reduction <add>, %898, %cst_218 [1] : vector<32x3xf32> to vector<32xf32>
    %900 = vector.shape_cast %899 : vector<32xf32> to vector<32x1xf32>
    %901 = vector.broadcast %900 : vector<32x1xf32> to vector<32x3xf32>
    %902 = arith.divf %898, %901 : vector<32x3xf32>
    %903 = vector.extract_strided_slice %902 {offsets = [0, 0], sizes = [32, 1], strides = [1, 1]} : vector<32x3xf32> to vector<32x1xf32>
    %904 = vector.broadcast %903 : vector<32x1xf32> to vector<32x32xf32>
    %905 = arith.mulf %904, %158 : vector<32x32xf32>
    %906 = vector.extract_strided_slice %902 {offsets = [0, 1], sizes = [32, 1], strides = [1, 1]} : vector<32x3xf32> to vector<32x1xf32>
    %907 = vector.broadcast %906 : vector<32x1xf32> to vector<32x32xf32>
    %908 = arith.mulf %907, %392 : vector<32x32xf32>
    %909 = arith.addf %905, %908 : vector<32x32xf32>
    %910 = vector.extract_strided_slice %902 {offsets = [0, 2], sizes = [32, 1], strides = [1, 1]} : vector<32x3xf32> to vector<32x1xf32>
    %911 = vector.broadcast %910 : vector<32x1xf32> to vector<32x32xf32>
    %912 = arith.mulf %911, %868 : vector<32x32xf32>
    %913 = arith.addf %909, %912 : vector<32x32xf32>
    %914 = arith.addf %0, %913 : vector<32x32xf32>
    %c136 = arith.constant 136 : index
    %c0_219 = arith.constant 0 : index
    %915 = vector.load %arg3[%c136, %c0_219] : memref<168x128xf32, #tpu.memory_space<vmem>>, vector<1x32xf32>
    %c144 = arith.constant 144 : index
    %c0_220 = arith.constant 0 : index
    %916 = vector.load %arg3[%c144, %c0_220] : memref<168x128xf32, #tpu.memory_space<vmem>>, vector<1x32xf32>
    %cst_221 = arith.constant dense<0.000000e+00> : vector<32xf32>
    %917 = vector.multi_reduction <add>, %914, %cst_221 [1] : vector<32x32xf32> to vector<32xf32>
    %918 = vector.shape_cast %917 : vector<32xf32> to vector<32x1xf32>
    %cst_222 = arith.constant 3.200000e+01 : f32
    %919 = vector.broadcast %cst_222 : f32 to vector<32x1xf32>
    %920 = arith.divf %918, %919 : vector<32x1xf32>
    %921 = vector.broadcast %920 : vector<32x1xf32> to vector<32x32xf32>
    %922 = arith.subf %914, %921 : vector<32x32xf32>
    %923 = arith.mulf %922, %922 : vector<32x32xf32>
    %cst_223 = arith.constant dense<0.000000e+00> : vector<32xf32>
    %924 = vector.multi_reduction <add>, %923, %cst_223 [1] : vector<32x32xf32> to vector<32xf32>
    %925 = vector.shape_cast %924 : vector<32xf32> to vector<32x1xf32>
    %cst_224 = arith.constant 3.200000e+01 : f32
    %926 = vector.broadcast %cst_224 : f32 to vector<32x1xf32>
    %927 = arith.divf %925, %926 : vector<32x1xf32>
    %928 = vector.broadcast %920 : vector<32x1xf32> to vector<32x32xf32>
    %929 = arith.subf %914, %928 : vector<32x32xf32>
    %cst_225 = arith.constant 9.99999974E-6 : f32
    %930 = vector.broadcast %cst_225 : f32 to vector<32x1xf32>
    %931 = arith.addf %927, %930 : vector<32x1xf32>
    %932 = math.rsqrt %931 : vector<32x1xf32>
    %933 = vector.broadcast %932 : vector<32x1xf32> to vector<32x32xf32>
    %934 = arith.mulf %929, %933 : vector<32x32xf32>
    %935 = vector.broadcast %915 : vector<1x32xf32> to vector<32x32xf32>
    %936 = arith.mulf %934, %935 : vector<32x32xf32>
    %937 = vector.broadcast %916 : vector<1x32xf32> to vector<32x32xf32>
    %938 = arith.addf %936, %937 : vector<32x32xf32>
    %c400 = arith.constant 400 : index
    %c0_226 = arith.constant 0 : index
    %939 = vector.load %arg2[%c400, %c0_226] : memref<496x128xf32, #tpu.memory_space<vmem>>, vector<32x64xf32>
    %cst_227 = arith.constant dense<0.000000e+00> : vector<32x64xf32>
    %940 = tpu.matmul %938, %939, %cst_227 {dimension_numbers = #tpu.dot_dimension_numbers<[1], [0], [0], [1], [0, 0, 1, 1], [], []>} : vector<32x32xf32>, vector<32x64xf32>, vector<32x64xf32> -> vector<32x64xf32>
    %c152 = arith.constant 152 : index
    %c0_228 = arith.constant 0 : index
    %941 = vector.load %arg3[%c152, %c0_228] : memref<168x128xf32, #tpu.memory_space<vmem>>, vector<1x64xf32>
    %942 = vector.broadcast %941 : vector<1x64xf32> to vector<32x64xf32>
    %943 = arith.addf %940, %942 : vector<32x64xf32>
    %944 = arith.mulf %943, %943 : vector<32x64xf32>
    %945 = arith.mulf %943, %944 : vector<32x64xf32>
    %cst_229 = arith.constant 4.471500e-02 : f32
    %946 = vector.broadcast %cst_229 : f32 to vector<32x64xf32>
    %947 = arith.mulf %946, %945 : vector<32x64xf32>
    %948 = arith.addf %943, %947 : vector<32x64xf32>
    %cst_230 = arith.constant 0.797884583 : f32
    %949 = vector.broadcast %cst_230 : f32 to vector<32x64xf32>
    %950 = arith.mulf %949, %948 : vector<32x64xf32>
    %951 = math.tanh %950 : vector<32x64xf32>
    %cst_231 = arith.constant 1.000000e+00 : f32
    %952 = vector.broadcast %cst_231 : f32 to vector<32x64xf32>
    %953 = arith.addf %952, %951 : vector<32x64xf32>
    %cst_232 = arith.constant 5.000000e-01 : f32
    %954 = vector.broadcast %cst_232 : f32 to vector<32x64xf32>
    %955 = arith.mulf %954, %953 : vector<32x64xf32>
    %956 = arith.mulf %943, %955 : vector<32x64xf32>
    %c432 = arith.constant 432 : index
    %c0_233 = arith.constant 0 : index
    %957 = vector.load %arg2[%c432, %c0_233] : memref<496x128xf32, #tpu.memory_space<vmem>>, vector<64x32xf32>
    %cst_234 = arith.constant dense<0.000000e+00> : vector<32x32xf32>
    %958 = tpu.matmul %956, %957, %cst_234 {dimension_numbers = #tpu.dot_dimension_numbers<[1], [0], [0], [1], [0, 0, 1, 1], [], []>} : vector<32x64xf32>, vector<64x32xf32>, vector<32x32xf32> -> vector<32x32xf32>
    %c160_235 = arith.constant 160 : index
    %c0_236 = arith.constant 0 : index
    %959 = vector.load %arg3[%c160_235, %c0_236] : memref<168x128xf32, #tpu.memory_space<vmem>>, vector<1x32xf32>
    %960 = vector.broadcast %959 : vector<1x32xf32> to vector<32x32xf32>
    %961 = arith.addf %958, %960 : vector<32x32xf32>
    %962 = arith.addf %914, %961 : vector<32x32xf32>
    %c0_237 = arith.constant 0 : index
    %c0_238 = arith.constant 0 : index
    %963 = vector.load %arg5[%c0_237, %c0_238] : memref<32x32xf32, #tpu.memory_space<vmem>>, vector<32x32xf32>
    tpu.vector_store %arg5[%c0_237, %c0_238], %962 {strides = array<i32>} : memref<32x32xf32, #tpu.memory_space<vmem>>, vector<32x32xf32>,
    return
  }
  func.func @transform_0(%arg0: i32) -> (i32, i32) {
    %c0_i32 = arith.constant 0 : i32
    %c0_i32_0 = arith.constant 0 : i32
    %c0_i32_1 = arith.constant 0 : i32
    return %c0_i32, %c0_i32_0 : i32, i32
  }
  func.func @transform_1(%arg0: i32) -> (i32, i32) {
    %c0_i32 = arith.constant 0 : i32
    %c0_i32_0 = arith.constant 0 : i32
    %c0_i32_1 = arith.constant 0 : i32
    return %c0_i32, %c0_i32_0 : i32, i32
  }
  func.func @transform_2(%arg0: i32) -> (i32, i32) {
    %c0_i32 = arith.constant 0 : i32
    %c0_i32_0 = arith.constant 0 : i32
    %c0_i32_1 = arith.constant 0 : i32
    return %c0_i32, %c0_i32_0 : i32, i32
  }
  func.func @transform_3(%arg0: i32) -> (i32, i32) {
    %c0_i32 = arith.constant 0 : i32
    %c0_i32_0 = arith.constant 0 : i32
    %c0_i32_1 = arith.constant 0 : i32
    return %c0_i32, %c0_i32_0 : i32, i32
  }
  func.func @transform_4(%arg0: i32) -> (i32, i32) {
    %c0_i32 = arith.constant 0 : i32
    %c0_i32_0 = arith.constant 0 : i32
    %c0_i32_1 = arith.constant 0 : i32
    return %c0_i32, %c0_i32_0 : i32, i32
  }
}

</mosaic_0001>

<llo_original>
// kernel: mga_layer_forward.1
$region0: #{mga_layer_forward.1}
  #allocation0 [shape = 'u32[]', space=smem, size = 0x4, offset = 0x4, fixed_abs, tag = 'smem constant byte address 0x4 - core index']
  #allocation1 [shape = 'u32[144,128]{1,0:T(1,128)}', space=vmem, size = 0x12000, scoped, tag = 'internal scratch']
  %s0 = inlined_call_operand.vmem [shape: f32[32,32], index: 0, kind: input, shape index: {}]
  %s1 = inlined_call_operand.hbm [shape: f32[496,128], index: 1, kind: input, shape index: {}]
  %s2 = inlined_call_operand.hbm [shape: f32[168,128], index: 2, kind: input, shape index: {}]
  %s3 = inlined_call_operand.vmem [shape: f32[16,32], index: 3, kind: input, shape index: {}]
  %s4 = inlined_call_operand.vmem [shape: f32[32,32], index: 4, kind: output, shape index: {}]
  %s5 = sld [smem:[#allocation0]]
  $region34: #{mga_layer_forward.1} parent=0
    _
  %s7 = ssub.s32 1, %s5
  %s8 = scalar_select 0, %s7, %s5
  $region1: #{mga_layer_forward.1} parent=0
    #allocation2 [shape = 'u8[253952]{0}', space=vmem, size = 0x3e000, scoped, tag = 'input window, operand 1, single buffered']
    #allocation3 [shape = 's32[1]{0}', space=sflag, size = 0x4, scoped, tag = 'scoped memory for mga_layer_forward.1']
    #allocation4 [shape = 'u8[86016]{0}', space=vmem, size = 0x15000, scoped, tag = 'input window, operand 2, single buffered']
    #allocation5 [shape = 's32[1]{0}', space=sflag, size = 0x4, scoped, tag = 'scoped memory for mga_layer_forward.1']
    %9 = vsyncpa [#allocation3], 0
    %10 = vsyncpa [#allocation5], 0
    // Predicated region
    $region2: #{mga_layer_forward.1} parent=1 // pred_check
      _
    $region3: #{mga_layer_forward.1} parent=1 // pred_check_branch
      %12 = sbr.rel (0) target = $region5
    $region4: #{mga_layer_forward.1} parent=1 // pred_region
      _
    $region5: #{mga_layer_forward.1} parent=1 // pred_fallthru
      _
    // Predicated region
    $region6: #{mga_layer_forward.1} parent=1 // pred_check
      _
    $region7: #{mga_layer_forward.1} parent=1 // pred_check_branch
      %14 = sbr.rel (0) target = $region9
    $region8: #{mga_layer_forward.1} parent=1 // pred_region
      %s16 = ssub.s32 7936, 7936
      %17 = vsyncadd [#allocation3], %s16
      %s18 = sshll.u32 [#allocation2], 4
      %s19 = int_to_ptr.vmem [resolvable:$true] %s18
      %24 = dma.hbm_to_vmem [thread:$0]  %s1, 7936, %s19, [#allocation3], 128, 128, 8
    $region9: #{mga_layer_forward.1} parent=1 // pred_fallthru
      _
    // Predicated region
    $region10: #{mga_layer_forward.1} parent=1 // pred_check
      _
    $region11: #{mga_layer_forward.1} parent=1 // pred_check_branch
      %26 = sbr.rel (0) target = $region13
    $region12: #{mga_layer_forward.1} parent=1 // pred_region
      %s28 = ssub.s32 2688, 2688
      %29 = vsyncadd [#allocation5], %s28
      %s30 = sshll.u32 [#allocation4], 4
      %s31 = int_to_ptr.vmem [resolvable:$true] %s30
      %36 = dma.hbm_to_vmem [thread:$0]  %s2, 2688, %s31, [#allocation5], 128, 128, 8
    $region13: #{mga_layer_forward.1} parent=1 // pred_fallthru
      _
    // Predicated region
    $region14: #{mga_layer_forward.1} parent=1 // pred_check
      _
    $region15: #{mga_layer_forward.1} parent=1 // pred_check_branch
      %38 = sbr.rel (0) target = $region17
    $region16: #{mga_layer_forward.1} parent=1 // pred_region
      _
    $region17: #{mga_layer_forward.1} parent=1 // pred_fallthru
      _
    // Predicated region
    $region18: #{mga_layer_forward.1} parent=1 // pred_check
      _
    $region19: #{mga_layer_forward.1} parent=1 // pred_check_branch
      %40 = sbr.rel (0) target = $region21
    $region20: #{mga_layer_forward.1} parent=1 // pred_region
      %41 = dma.done [#allocation3], 7936
    $region21: #{mga_layer_forward.1} parent=1 // pred_fallthru
      _
    // Predicated region
    $region22: #{mga_layer_forward.1} parent=1 // pred_check
      _
    $region23: #{mga_layer_forward.1} parent=1 // pred_check_branch
      %43 = sbr.rel (0) target = $region25
    $region24: #{mga_layer_forward.1} parent=1 // pred_region
      %44 = dma.done [#allocation5], 2688
    $region25: #{mga_layer_forward.1} parent=1 // pred_fallthru
      _
    %v45 = vld [vmem:[%s0] sm:$0xff]
    %v46 = vld [vmem:[%s0 + $0x8] sm:$0xff]
    %v47 = vld [vmem:[%s0 + $0x10] sm:$0xff]
    %v48 = vld [vmem:[%s0 + $0x18] sm:$0xff]
    %v49 = vld [vmem:[#allocation4] sm:$0x1]
    %v50 = vld [vmem:[#allocation4 + $0x8] sm:$0x1]
    %vm51 = vcmask 261120
    %v52 = vsel %vm51, %v45, 0.0
    %53 = vadd.xlane.f32.xlu0 %v52
    %v54 = vpop.xlane.xlu0 %53
    %v55 = vsel %vm51, %v46, 0.0
    %56 = vadd.xlane.f32.xlu0 %v55
    %v57 = vpop.xlane.xlu0 %56
    %v58 = vsel %vm51, %v47, 0.0
    %59 = vadd.xlane.f32.xlu0 %v58
    %v60 = vpop.xlane.xlu0 %59
    %v61 = vsel %vm51, %v48, 0.0
    %62 = vadd.xlane.f32.xlu0 %v61
    %v63 = vpop.xlane.xlu0 %62
    %v64 = vrcp.pop 32.0
    %v65 = vmul.f32 %v54, %v64
    %v66 = vmul.f32 %v57, %v64
    %v67 = vmul.f32 %v60, %v64
    %v68 = vmul.f32 %v63, %v64
    %v69 = vsub.f32 %v45, %v65
    %v70 = vsub.f32 %v46, %v66
    %v71 = vsub.f32 %v47, %v67
    %v72 = vsub.f32 %v48, %v68
    %v73 = vmul.f32 %v69, %v69
    %v74 = vmul.f32 %v70, %v70
    %v75 = vmul.f32 %v71, %v71
    %v76 = vmul.f32 %v72, %v72
    %v77 = vsel %vm51, %v73, 0.0
    %78 = vadd.xlane.f32.xlu0 %v77
    %v79 = vpop.xlane.xlu0 %78
    %v80 = vsel %vm51, %v74, 0.0
    %81 = vadd.xlane.f32.xlu0 %v80
    %v82 = vpop.xlane.xlu0 %81
    %v83 = vsel %vm51, %v75, 0.0
    %84 = vadd.xlane.f32.xlu0 %v83
    %v85 = vpop.xlane.xlu0 %84
    %v86 = vsel %vm51, %v76, 0.0
    %87 = vadd.xlane.f32.xlu0 %v86
    %v88 = vpop.xlane.xlu0 %87
    %v89 = vmul.f32 %v79, %v64
    %v90 = vmul.f32 %v82, %v64
    %v91 = vmul.f32 %v85, %v64
    %v92 = vmul.f32 %v88, %v64
    %v93 = vadd.f32 %v89, 1e-05
    %v94 = vadd.f32 %v90, 1e-05
    %v95 = vadd.f32 %v91, 1e-05
    %v96 = vadd.f32 %v92, 1e-05
    %v97 = vrsqrt.pop %v93
    %v98 = vrsqrt.pop %v94
    %v99 = vrsqrt.pop %v95
    %v100 = vrsqrt.pop %v96
    %v101 = vmul.f32 %v69, %v97
    %v102 = vmul.f32 %v70, %v98
    %v103 = vmul.f32 %v71, %v99
    %v104 = vmul.f32 %v72, %v100
    %v105 = vlaneseq
    %v106 = vshrl.u32 %v105, 7
    %v107 = vsub.s32 0, %v106
    %v108 = vrot.slane %v49, %v107
    %v109 = vmul.f32 %v101, %v108
    %v110 = vmul.f32 %v102, %v108
    %v111 = vmul.f32 %v103, %v108
    %v112 = vmul.f32 %v104, %v108
    %v113 = vlaneseq
    %v114 = vshrl.u32 %v113, 7
    %v115 = vsub.s32 0, %v114
    %v116 = vrot.slane %v50, %v115
    %v117 = vadd.f32 %v109, %v116
    %v118 = vadd.f32 %v110, %v116
    %v119 = vadd.f32 %v111, %v116
    %v120 = vadd.f32 %v112, %v116
    %v121 = vlaneseq
    %v122 = vand.u32 %v121, 127
    %v123 = vshra.s32 %v122, 3
    %vm124 = vcmp.eq.s32.totalorder %v123, 0
    %v125 = vsel %vm124, 1, 0
    %v126 = vcvt.s32.f32 %v125
    %vm127 = vcmp.eq.s32.totalorder %v123, 1
    %v128 = vsel %vm127, 1, 0
    %v129 = vcvt.s32.f32 %v128
    %vm130 = vcmp.eq.s32.totalorder %v123, 2
    %v131 = vsel %vm130, 1, 0
    %v132 = vcvt.s32.f32 %v131
    %vm133 = vcmp.eq.s32.totalorder %v123, 3
    %v134 = vsel %vm133, 1, 0
    %v135 = vcvt.s32.f32 %v134
    %v136 = vlaneseq
    %v137 = vshrl.u32 %v136, 7
    %v138 = vadd.s32 %v137, 8
    %v139 = vadd.s32 %v137, 16
    %v140 = vadd.s32 %v137, 24
    %v141 = vand.u32 %v137, 1
    %v142 = vand.u32 %v138, 1
    %v143 = vand.u32 %v139, 1
    %v144 = vand.u32 %v140, 1
    %v145 = vand.u32 %v122, 1
    %vm146 = vcmp.eq.s32.totalorder %v141, %v145
    %vm147 = vcmp.eq.s32.totalorder %v142, %v145
    %vm148 = vcmp.eq.s32.totalorder %v143, %v145
    %vm149 = vcmp.eq.s32.totalorder %v144, %v145
    %v150 = vshra.s32 %v137, 1
    %v151 = vshra.s32 %v138, 1
    %v152 = vshra.s32 %v139, 1
    %v153 = vshra.s32 %v140, 1
    %v154 = vshra.s32 %v122, 1
    %v155 = vsub.s32 %v150, %v154
    %v156 = vsub.s32 %v151, %v154
    %v157 = vsub.s32 %v152, %v154
    %v158 = vsub.s32 %v153, %v154
    %vm159 = vcmp.ge.s32.totalorder %v155, 4294967292
    %vm160 = vcmp.ge.s32.totalorder %v156, 4294967292
    %vm161 = vcmp.ge.s32.totalorder %v157, 4294967292
    %vm162 = vcmp.ge.s32.totalorder %v158, 4294967292
    %vm163 = vcmp.le.s32.totalorder %v155, 4
    %vm164 = vcmp.le.s32.totalorder %v156, 4
    %vm165 = vcmp.le.s32.totalorder %v157, 4
    %vm166 = vcmp.le.s32.totalorder %v158, 4
    %vm167 = vmand %vm159, %vm163
    %vm168 = vmand %vm160, %vm164
    %vm169 = vmand %vm161, %vm165
    %vm170 = vmand %vm162, %vm166
    %vm171 = vmand %vm146, %vm167
    %vm172 = vmand %vm147, %vm168
    %vm173 = vmand %vm148, %vm169
    %vm174 = vmand %vm149, %vm170
    %v175 = vsel %vm171, 0.0, -1e+30
    %v176 = vsel %vm172, 0.0, -1e+30
    %v177 = vsel %vm173, 0.0, -1e+30
    %v178 = vsel %vm174, 0.0, -1e+30
    %v179 = vld [vmem:[#allocation2] sm:$0xff]
    %v180 = vld [vmem:[#allocation2 + $0x8] sm:$0xff]
    %v181 = vld [vmem:[#allocation2 + $0x10] sm:$0xff]
    %v182 = vld [vmem:[#allocation2 + $0x18] sm:$0xff]
    %v183 = vld [vmem:[#allocation4 + $0x10] sm:$0x1]
    %v184 = vld [vmem:[#allocation2 + $0x20] sm:$0xff]
    %v185 = vld [vmem:[#allocation2 + $0x28] sm:$0xff]
    %v186 = vld [vmem:[#allocation2 + $0x30] sm:$0xff]
    %v187 = vld [vmem:[#allocation2 + $0x38] sm:$0xff]
    %v188 = vld [vmem:[#allocation4 + $0x18] sm:$0x1]
    %v189 = vld [vmem:[#allocation2 + $0x40] sm:$0xff]
    %v190 = vld [vmem:[#allocation2 + $0x48] sm:$0xff]
    %v191 = vld [vmem:[#allocation2 + $0x50] sm:$0xff]
    %v192 = vld [vmem:[#allocation2 + $0x58] sm:$0xff]
    %v193 = vld [vmem:[#allocation4 + $0x20] sm:$0x1]
    %v194 = vlaneseq
    %v195 = vshrl.u32 %v194, 7
    %v196 = vsub.s32 0, %v195
    %v197 = vrot.slane %v183, %v196
    %v199 = vsel %vm51, %v117, 0
    %v202 = vsel %vm51, %v118, 0
    %v205 = vsel %vm51, %v119, 0
    %v208 = vsel %vm51, %v120, 0
    %210 = vmatprep.subr.mxu0 0.0
    %211 = vmatpush1.msra.mxu0 0.0
    %212 = vmatprep.subr.mxu0 0.0
    %213 = vmatpush1.msra.mxu0 0.0
    %214 = vmatprep.subr.mxu0 0.0
    %215 = vmatpush1.msra.mxu0 0.0
    %216 = vmatprep.subr.mxu0 0.0
    %217 = vmatpush1.msra.mxu0 0.0
    %218 = vmatprep.subr.mxu0 0.0
    %219 = vmatpush1.msra.mxu0 0.0
    %220 = vmatprep.subr.mxu0 0.0
    %221 = vmatpush1.msra.mxu0 0.0
    %222 = vmatprep.subr.mxu0 0.0
    %223 = vmatpush1.msra.mxu0 0.0
    %224 = vmatprep.subr.mxu0 0.0
    %225 = vmatpush1.msra.mxu0 0.0
    %226 = vmatprep.subr.mxu0 0.0
    %227 = vmatpush1.msra.mxu0 0.0
    %228 = vmatprep.subr.mxu0 0.0
    %229 = vmatpush1.msra.mxu0 0.0
    %230 = vmatprep.subr.mxu0 0.0
    %231 = vmatpush1.msra.mxu0 0.0
    %232 = vmatprep.subr.mxu0 0.0
    %233 = vmatpush1.msra.mxu0 0.0
    %234 = vmatprep.subr.mxu0 0.0
    %235 = vmatpush1.msra.mxu0 %v182
    %236 = vmatprep.subr.mxu0 0.0
    %237 = vmatpush1.msra.mxu0 %v181
    %238 = vmatprep.subr.mxu0 0.0
    %239 = vmatpush1.msra.mxu0 %v180
    %240 = vmatprep.subr.mxu0 0.0
    %241 = vmatpush1.msra.mxu0 %v179
    %242 = vmatprep.subr.mxu0 0.0
    %243 = vmatpush2.msra.mxu0 0.0
    %244 = vmatprep.subr.mxu0 0.0
    %245 = vmatpush2.msra.mxu0 0.0
    %246 = vmatprep.subr.mxu0 0.0
    %247 = vmatpush2.msra.mxu0 0.0
    %248 = vmatprep.subr.mxu0 0.0
    %249 = vmatpush2.msra.mxu0 0.0
    %250 = vmatprep.subr.mxu0 0.0
    %251 = vmatpush2.msra.mxu0 0.0
    %252 = vmatprep.subr.mxu0 0.0
    %253 = vmatpush2.msra.mxu0 0.0
    %254 = vmatprep.subr.mxu0 0.0
    %255 = vmatpush2.msra.mxu0 0.0
    %256 = vmatprep.subr.mxu0 0.0
    %257 = vmatpush2.msra.mxu0 0.0
    %258 = vmatprep.subr.mxu0 0.0
    %259 = vmatpush2.msra.mxu0 0.0
    %260 = vmatprep.subr.mxu0 0.0
    %261 = vmatpush2.msra.mxu0 0.0
    %262 = vmatprep.subr.mxu0 0.0
    %263 = vmatpush2.msra.mxu0 0.0
    %264 = vmatprep.subr.mxu0 0.0
    %265 = vmatpush2.msra.mxu0 0.0
    %266 = vmatprep.subr.mxu0 0.0
    %267 = vmatpush2.msra.mxu0 0.0
    %268 = vmatprep.subr.mxu0 0.0
    %269 = vmatpush2.msra.mxu0 0.0
    %270 = vmatprep.subr.mxu0 0.0
    %271 = vmatpush2.msra.mxu0 0.0
    %272 = vmatprep.subr.mxu0 0.0
    %273 = vmatpush2.msra.mxu0 0.0
    %274 = vmatprep.mubr.f32.mxu0 0.0
    %275 = vmatmul.mubr.f32.gmra.mxu0 %v199
    %v276 = vpop.f32.mrf.mxu0
    %v277 = vadd.f32 %v197, %v276
    %v278 = vpop.f32.mrf.mxu0
    %279 = vmatprep.mubr.f32.mxu0 0.0
    %280 = vmatmul.mubr.f32.gmra.mxu0 %v202
    %v281 = vpop.f32.mrf.mxu0
    %v282 = vadd.f32 %v197, %v281
    %v283 = vpop.f32.mrf.mxu0
    %284 = vmatprep.mubr.f32.mxu0 0.0
    %285 = vmatmul.mubr.f32.gmra.mxu0 %v205
    %v286 = vpop.f32.mrf.mxu0
    %v287 = vadd.f32 %v197, %v286
    %v288 = vpop.f32.mrf.mxu0
    %289 = vmatprep.mubr.f32.mxu0 0.0
    %290 = vmatmul.mubr.f32.gmra.mxu0 %v208
    %v291 = vpop.f32.mrf.mxu0
    %v292 = vadd.f32 %v197, %v291
    %v293 = vpop.f32.mrf.mxu0
    %294 = vdwg.mxu0
    %v295 = vlaneseq
    %v296 = vshrl.u32 %v295, 7
    %v297 = vsub.s32 0, %v296
    %v298 = vrot.slane %v188, %v297
    %299 = vmatprep.subr.mxu0 0.0
    %300 = vmatpush1.msra.mxu0 0.0
    %301 = vmatprep.subr.mxu0 0.0
    %302 = vmatpush1.msra.mxu0 0.0
    %303 = vmatprep.subr.mxu0 0.0
    %304 = vmatpush1.msra.mxu0 0.0
    %305 = vmatprep.subr.mxu0 0.0
    %306 = vmatpush1.msra.mxu0 0.0
    %307 = vmatprep.subr.mxu0 0.0
    %308 = vmatpush1.msra.mxu0 0.0
    %309 = vmatprep.subr.mxu0 0.0
    %310 = vmatpush1.msra.mxu0 0.0
    %311 = vmatprep.subr.mxu0 0.0
    %312 = vmatpush1.msra.mxu0 0.0
    %313 = vmatprep.subr.mxu0 0.0
    %314 = vmatpush1.msra.mxu0 0.0
    %315 = vmatprep.subr.mxu0 0.0
    %316 = vmatpush1.msra.mxu0 0.0
    %317 = vmatprep.subr.mxu0 0.0
    %318 = vmatpush1.msra.mxu0 0.0
    %319 = vmatprep.subr.mxu0 0.0
    %320 = vmatpush1.msra.mxu0 0.0
    %321 = vmatprep.subr.mxu0 0.0
    %322 = vmatpush1.msra.mxu0 0.0
    %323 = vmatprep.subr.mxu0 0.0
    %324 = vmatpush1.msra.mxu0 %v187
    %325 = vmatprep.subr.mxu0 0.0
    %326 = vmatpush1.msra.mxu0 %v186
    %327 = vmatprep.subr.mxu0 0.0
    %328 = vmatpush1.msra.mxu0 %v185
    %329 = vmatprep.subr.mxu0 0.0
    %330 = vmatpush1.msra.mxu0 %v184
    %331 = vmatprep.subr.mxu0 0.0
    %332 = vmatpush2.msra.mxu0 0.0
    %333 = vmatprep.subr.mxu0 0.0
    %334 = vmatpush2.msra.mxu0 0.0
    %335 = vmatprep.subr.mxu0 0.0
    %336 = vmatpush2.msra.mxu0 0.0
    %337 = vmatprep.subr.mxu0 0.0
    %338 = vmatpush2.msra.mxu0 0.0
    %339 = vmatprep.subr.mxu0 0.0
    %340 = vmatpush2.msra.mxu0 0.0
    %341 = vmatprep.subr.mxu0 0.0
    %342 = vmatpush2.msra.mxu0 0.0
    %343 = vmatprep.subr.mxu0 0.0
    %344 = vmatpush2.msra.mxu0 0.0
    %345 = vmatprep.subr.mxu0 0.0
    %346 = vmatpush2.msra.mxu0 0.0
    %347 = vmatprep.subr.mxu0 0.0
    %348 = vmatpush2.msra.mxu0 0.0
    %349 = vmatprep.subr.mxu0 0.0
    %350 = vmatpush2.msra.mxu0 0.0
    %351 = vmatprep.subr.mxu0 0.0
    %352 = vmatpush2.msra.mxu0 0.0
    %353 = vmatprep.subr.mxu0 0.0
    %354 = vmatpush2.msra.mxu0 0.0
    %355 = vmatprep.subr.mxu0 0.0
    %356 = vmatpush2.msra.mxu0 0.0
    %357 = vmatprep.subr.mxu0 0.0
    %358 = vmatpush2.msra.mxu0 0.0
    %359 = vmatprep.subr.mxu0 0.0
    %360 = vmatpush2.msra.mxu0 0.0
    %361 = vmatprep.subr.mxu0 0.0
    %362 = vmatpush2.msra.mxu0 0.0
    %363 = vmatprep.mubr.f32.mxu0 0.0
    %364 = vmatmul.mubr.f32.gmra.mxu0 %v199
    %v365 = vpop.f32.mrf.mxu0
    %v366 = vadd.f32 %v298, %v365
    %v367 = vpop.f32.mrf.mxu0
    %368 = vmatprep.mubr.f32.mxu0 0.0
    %369 = vmatmul.mubr.f32.gmra.mxu0 %v202
    %v370 = vpop.f32.mrf.mxu0
    %v371 = vadd.f32 %v298, %v370
    %v372 = vpop.f32.mrf.mxu0
    %373 = vmatprep.mubr.f32.mxu0 0.0
    %374 = vmatmul.mubr.f32.gmra.mxu0 %v205
    %v375 = vpop.f32.mrf.mxu0
    %v376 = vadd.f32 %v298, %v375
    %v377 = vpop.f32.mrf.mxu0
    %378 = vmatprep.mubr.f32.mxu0 0.0
    %379 = vmatmul.mubr.f32.gmra.mxu0 %v208
    %v380 = vpop.f32.mrf.mxu0
    %v381 = vadd.f32 %v298, %v380
    %v382 = vpop.f32.mrf.mxu0
    %383 = vdwg.mxu0
    %384 = vmatprep.subr.mxu0 0.0
    %385 = vmatpush1.msra.mxu0 0.0
    %386 = vmatprep.subr.mxu0 0.0
    %387 = vmatpush1.msra.mxu0 0.0
    %388 = vmatprep.subr.mxu0 0.0
    %389 = vmatpush1.msra.mxu0 0.0
    %390 = vmatprep.subr.mxu0 0.0
    %391 = vmatpush1.msra.mxu0 0.0
    %392 = vmatprep.subr.mxu0 0.0
    %393 = vmatpush1.msra.mxu0 0.0
    %394 = vmatprep.subr.mxu0 0.0
    %395 = vmatpush1.msra.mxu0 0.0
    %396 = vmatprep.subr.mxu0 0.0
    %397 = vmatpush1.msra.mxu0 0.0
    %398 = vmatprep.subr.mxu0 0.0
    %399 = vmatpush1.msra.mxu0 0.0
    %400 = vmatprep.subr.mxu0 0.0
    %401 = vmatpush1.msra.mxu0 0.0
    %402 = vmatprep.subr.mxu0 0.0
    %403 = vmatpush1.msra.mxu0 0.0
    %404 = vmatprep.subr.mxu0 0.0
    %405 = vmatpush1.msra.mxu0 0.0
    %406 = vmatprep.subr.mxu0 0.0
    %407 = vmatpush1.msra.mxu0 0.0
    %408 = vmatprep.subr.mxu0 0.0
    %409 = vmatpush1.msra.mxu0 %v192
    %410 = vmatprep.subr.mxu0 0.0
    %411 = vmatpush1.msra.mxu0 %v191
    %412 = vmatprep.subr.mxu0 0.0
    %413 = vmatpush1.msra.mxu0 %v190
    %414 = vmatprep.subr.mxu0 0.0
    %415 = vmatpush1.msra.mxu0 %v189
    %416 = vmatprep.subr.mxu0 0.0
    %417 = vmatpush2.msra.mxu0 0.0
    %418 = vmatprep.subr.mxu0 0.0
    %419 = vmatpush2.msra.mxu0 0.0
    %420 = vmatprep.subr.mxu0 0.0
    %421 = vmatpush2.msra.mxu0 0.0
    %422 = vmatprep.subr.mxu0 0.0
    %423 = vmatpush2.msra.mxu0 0.0
    %424 = vmatprep.subr.mxu0 0.0
    %425 = vmatpush2.msra.mxu0 0.0
    %426 = vmatprep.subr.mxu0 0.0
    %427 = vmatpush2.msra.mxu0 0.0
    %428 = vmatprep.subr.mxu0 0.0
    %429 = vmatpush2.msra.mxu0 0.0
    %430 = vmatprep.subr.mxu0 0.0
    %431 = vmatpush2.msra.mxu0 0.0
    %432 = vmatprep.subr.mxu0 0.0
    %433 = vmatpush2.msra.mxu0 0.0
    %434 = vmatprep.subr.mxu0 0.0
    %435 = vmatpush2.msra.mxu0 0.0
    %436 = vmatprep.subr.mxu0 0.0
    %437 = vmatpush2.msra.mxu0 0.0
    %438 = vmatprep.subr.mxu0 0.0
    %439 = vmatpush2.msra.mxu0 0.0
    %440 = vmatprep.subr.mxu0 0.0
    %441 = vmatpush2.msra.mxu0 0.0
    %442 = vmatprep.subr.mxu0 0.0
    %443 = vmatpush2.msra.mxu0 0.0
    %444 = vmatprep.subr.mxu0 0.0
    %445 = vmatpush2.msra.mxu0 0.0
    %446 = vmatprep.subr.mxu0 0.0
    %447 = vmatpush2.msra.mxu0 0.0
    %448 = vmatprep.mubr.f32.mxu0 0.0
    %449 = vmatmul.mubr.f32.gmra.mxu0 %v199
    %v450 = vpop.f32.mrf.mxu0
    %v451 = vadd.f32 0.0, %v450
    %v452 = vpop.f32.mrf.mxu0
    %453 = vmatprep.mubr.f32.mxu0 0.0
    %454 = vmatmul.mubr.f32.gmra.mxu0 %v202
    %v455 = vpop.f32.mrf.mxu0
    %v456 = vadd.f32 0.0, %v455
    %v457 = vpop.f32.mrf.mxu0
    %458 = vmatprep.mubr.f32.mxu0 0.0
    %459 = vmatmul.mubr.f32.gmra.mxu0 %v205
    %v460 = vpop.f32.mrf.mxu0
    %v461 = vadd.f32 0.0, %v460
    %v462 = vpop.f32.mrf.mxu0
    %463 = vmatprep.mubr.f32.mxu0 0.0
    %464 = vmatmul.mubr.f32.gmra.mxu0 %v208
    %v465 = vpop.f32.mrf.mxu0
    %v466 = vadd.f32 0.0, %v465
    %v467 = vpop.f32.mrf.mxu0
    %468 = vdwg.mxu0
    %v469 = vmul.f32 %v277, %v126
    %v470 = vmul.f32 %v282, %v126
    %v471 = vmul.f32 %v287, %v126
    %v472 = vmul.f32 %v292, %v126
    %v474 = vsel %vm51, %v469, 0
    %v477 = vsel %vm51, %v470, 0
    %v480 = vsel %vm51, %v471, 0
    %v483 = vsel %vm51, %v472, 0
    %v486 = vsel %vm51, %v366, 0
    %v489 = vsel %vm51, %v371, 0
    %v492 = vsel %vm51, %v376, 0
    %v495 = vsel %vm51, %v381, 0
    %497 = vmatprep.subr.mxu0 0.0
    %498 = vmatpush1.xpose.msra.mxu0 0.0
    %499 = vmatprep.subr.mxu0 0.0
    %500 = vmatpush1.xpose.msra.mxu0 0.0
    %501 = vmatprep.subr.mxu0 0.0
    %502 = vmatpush1.xpose.msra.mxu0 0.0
    %503 = vmatprep.subr.mxu0 0.0
    %504 = vmatpush1.xpose.msra.mxu0 0.0
    %505 = vmatprep.subr.mxu0 0.0
    %506 = vmatpush1.xpose.msra.mxu0 0.0
    %507 = vmatprep.subr.mxu0 0.0
    %508 = vmatpush1.xpose.msra.mxu0 0.0
    %509 = vmatprep.subr.mxu0 0.0
    %510 = vmatpush1.xpose.msra.mxu0 0.0
    %511 = vmatprep.subr.mxu0 0.0
    %512 = vmatpush1.xpose.msra.mxu0 0.0
    %513 = vmatprep.subr.mxu0 0.0
    %514 = vmatpush1.xpose.msra.mxu0 0.0
    %515 = vmatprep.subr.mxu0 0.0
    %516 = vmatpush1.xpose.msra.mxu0 0.0
    %517 = vmatprep.subr.mxu0 0.0
    %518 = vmatpush1.xpose.msra.mxu0 0.0
    %519 = vmatprep.subr.mxu0 0.0
    %520 = vmatpush1.xpose.msra.mxu0 0.0
    %521 = vmatprep.subr.mxu0 0.0
    %522 = vmatpush1.xpose.msra.mxu0 %v495
    %523 = vmatprep.subr.mxu0 0.0
    %524 = vmatpush1.xpose.msra.mxu0 %v492
    %525 = vmatprep.subr.mxu0 0.0
    %526 = vmatpush1.xpose.msra.mxu0 %v489
    %527 = vmatprep.subr.mxu0 0.0
    %528 = vmatpush1.xpose.msra.mxu0 %v486
    %529 = vmatprep.subr.mxu0 0.0
    %530 = vmatpush2.xpose.msra.mxu0 0.0
    %531 = vmatprep.subr.mxu0 0.0
    %532 = vmatpush2.xpose.msra.mxu0 0.0
    %533 = vmatprep.subr.mxu0 0.0
    %534 = vmatpush2.xpose.msra.mxu0 0.0
    %535 = vmatprep.subr.mxu0 0.0
    %536 = vmatpush2.xpose.msra.mxu0 0.0
    %537 = vmatprep.subr.mxu0 0.0
    %538 = vmatpush2.xpose.msra.mxu0 0.0
    %539 = vmatprep.subr.mxu0 0.0
    %540 = vmatpush2.xpose.msra.mxu0 0.0
    %541 = vmatprep.subr.mxu0 0.0
    %542 = vmatpush2.xpose.msra.mxu0 0.0
    %543 = vmatprep.subr.mxu0 0.0
    %544 = vmatpush2.xpose.msra.mxu0 0.0
    %545 = vmatprep.subr.mxu0 0.0
    %546 = vmatpush2.xpose.msra.mxu0 0.0
    %547 = vmatprep.subr.mxu0 0.0
    %548 = vmatpush2.xpose.msra.mxu0 0.0
    %549 = vmatprep.subr.mxu0 0.0
    %550 = vmatpush2.xpose.msra.mxu0 0.0
    %551 = vmatprep.subr.mxu0 0.0
    %552 = vmatpush2.xpose.msra.mxu0 0.0
    %553 = vmatprep.subr.mxu0 0.0
    %554 = vmatpush2.xpose.msra.mxu0 0.0
    %555 = vmatprep.subr.mxu0 0.0
    %556 = vmatpush2.xpose.msra.mxu0 0.0
    %557 = vmatprep.subr.mxu0 0.0
    %558 = vmatpush2.xpose.msra.mxu0 0.0
    %559 = vmatprep.subr.mxu0 0.0
    %560 = vmatpush2.xpose.msra.mxu0 0.0
    %561 = vmatprep.mubr.f32.mxu0 0.0
    %562 = vmatmul.mubr.f32.gmra.mxu0 %v474
    %v563 = vpop.f32.mrf.mxu0
    %v564 = vadd.f32 0.0, %v563
    %v565 = vpop.f32.mrf.mxu0
    %566 = vmatprep.mubr.f32.mxu0 0.0
    %567 = vmatmul.mubr.f32.gmra.mxu0 %v477
    %v568 = vpop.f32.mrf.mxu0
    %v569 = vadd.f32 0.0, %v568
    %v570 = vpop.f32.mrf.mxu0
    %571 = vmatprep.mubr.f32.mxu0 0.0
    %572 = vmatmul.mubr.f32.gmra.mxu0 %v480
    %v573 = vpop.f32.mrf.mxu0
    %v574 = vadd.f32 0.0, %v573
    %v575 = vpop.f32.mrf.mxu0
    %576 = vmatprep.mubr.f32.mxu0 0.0
    %577 = vmatmul.mubr.f32.gmra.mxu0 %v483
    %v578 = vpop.f32.mrf.mxu0
    %v579 = vadd.f32 0.0, %v578
    %v580 = vpop.f32.mrf.mxu0
    %581 = vdwg.mxu0
    %v582 = vmul.f32 %v564, 0.35355338
    %v583 = vmul.f32 %v569, 0.35355338
    %v584 = vmul.f32 %v574, 0.35355338
    %v585 = vmul.f32 %v579, 0.35355338
    %v586 = vadd.f32 %v582, %v175
    %v587 = vadd.f32 %v583, %v176
    %v588 = vadd.f32 %v584, %v177
    %v589 = vadd.f32 %v585, %v178
    %v590 = vsel %vm51, %v586, -inf
    %591 = vmax.xlane.f32.xlu0 %v590
    %v592 = vpop.xlane.xlu0 %591
    %v593 = vsel %vm51, %v587, -inf
    %594 = vmax.xlane.f32.xlu0 %v593
    %v595 = vpop.xlane.xlu0 %594
    %v596 = vsel %vm51, %v588, -inf
    %597 = vmax.xlane.f32.xlu0 %v596
    %v598 = vpop.xlane.xlu0 %597
    %v599 = vsel %vm51, %v589, -inf
    %600 = vmax.xlane.f32.xlu0 %v599
    %v601 = vpop.xlane.xlu0 %600
    %v602 = vsub.f32 %v586, %v592
    %v603 = vsub.f32 %v587, %v595
    %v604 = vsub.f32 %v588, %v598
    %v605 = vsub.f32 %v589, %v601
    %v606 = vmul.f32 %v602, 1.442695
    %v607 = vpow.pop %v606
    %v608 = vmul.f32 %v603, 1.442695
    %v609 = vpow.pop %v608
    %v610 = vmul.f32 %v604, 1.442695
    %v611 = vpow.pop %v610
    %v612 = vmul.f32 %v605, 1.442695
    %v613 = vpow.pop %v612
    %v614 = vsel %vm51, %v607, 0.0
    %615 = vadd.xlane.f32.xlu0 %v614
    %v616 = vpop.xlane.xlu0 %615
    %v617 = vsel %vm51, %v609, 0.0
    %618 = vadd.xlane.f32.xlu0 %v617
    %v619 = vpop.xlane.xlu0 %618
    %v620 = vsel %vm51, %v611, 0.0
    %621 = vadd.xlane.f32.xlu0 %v620
    %v622 = vpop.xlane.xlu0 %621
    %v623 = vsel %vm51, %v613, 0.0
    %624 = vadd.xlane.f32.xlu0 %v623
    %v625 = vpop.xlane.xlu0 %624
    %v626 = vrcp.pop %v616
    %v627 = vmul.f32 %v607, %v626
    %v628 = vrcp.pop %v619
    %v629 = vmul.f32 %v609, %v628
    %v630 = vrcp.pop %v622
    %v631 = vmul.f32 %v611, %v630
    %v632 = vrcp.pop %v625
    %v633 = vmul.f32 %v613, %v632
    %v634 = vmul.f32 %v277, %v129
    %v635 = vmul.f32 %v282, %v129
    %v636 = vmul.f32 %v287, %v129
    %v637 = vmul.f32 %v292, %v129
    %v639 = vsel %vm51, %v634, 0
    %v642 = vsel %vm51, %v635, 0
    %v645 = vsel %vm51, %v636, 0
    %v648 = vsel %vm51, %v637, 0
    %650 = vmatprep.subr.mxu0 0.0
    %651 = vmatpush1.xpose.msra.mxu0 0.0
    %652 = vmatprep.subr.mxu0 0.0
    %653 = vmatpush1.xpose.msra.mxu0 0.0
    %654 = vmatprep.subr.mxu0 0.0
    %655 = vmatpush1.xpose.msra.mxu0 0.0
    %656 = vmatprep.subr.mxu0 0.0
    %657 = vmatpush1.xpose.msra.mxu0 0.0
    %658 = vmatprep.subr.mxu0 0.0
    %659 = vmatpush1.xpose.msra.mxu0 0.0
    %660 = vmatprep.subr.mxu0 0.0
    %661 = vmatpush1.xpose.msra.mxu0 0.0
    %662 = vmatprep.subr.mxu0 0.0
    %663 = vmatpush1.xpose.msra.mxu0 0.0
    %664 = vmatprep.subr.mxu0 0.0
    %665 = vmatpush1.xpose.msra.mxu0 0.0
    %666 = vmatprep.subr.mxu0 0.0
    %667 = vmatpush1.xpose.msra.mxu0 0.0
    %668 = vmatprep.subr.mxu0 0.0
    %669 = vmatpush1.xpose.msra.mxu0 0.0
    %670 = vmatprep.subr.mxu0 0.0
    %671 = vmatpush1.xpose.msra.mxu0 0.0
    %672 = vmatprep.subr.mxu0 0.0
    %673 = vmatpush1.xpose.msra.mxu0 0.0
    %674 = vmatprep.subr.mxu0 0.0
    %675 = vmatpush1.xpose.msra.mxu0 %v495
    %676 = vmatprep.subr.mxu0 0.0
    %677 = vmatpush1.xpose.msra.mxu0 %v492
    %678 = vmatprep.subr.mxu0 0.0
    %679 = vmatpush1.xpose.msra.mxu0 %v489
    %680 = vmatprep.subr.mxu0 0.0
    %681 = vmatpush1.xpose.msra.mxu0 %v486
    %682 = vmatprep.subr.mxu0 0.0
    %683 = vmatpush2.xpose.msra.mxu0 0.0
    %684 = vmatprep.subr.mxu0 0.0
    %685 = vmatpush2.xpose.msra.mxu0 0.0
    %686 = vmatprep.subr.mxu0 0.0
    %687 = vmatpush2.xpose.msra.mxu0 0.0
    %688 = vmatprep.subr.mxu0 0.0
    %689 = vmatpush2.xpose.msra.mxu0 0.0
    %690 = vmatprep.subr.mxu0 0.0
    %691 = vmatpush2.xpose.msra.mxu0 0.0
    %692 = vmatprep.subr.mxu0 0.0
    %693 = vmatpush2.xpose.msra.mxu0 0.0
    %694 = vmatprep.subr.mxu0 0.0
    %695 = vmatpush2.xpose.msra.mxu0 0.0
    %696 = vmatprep.subr.mxu0 0.0
    %697 = vmatpush2.xpose.msra.mxu0 0.0
    %698 = vmatprep.subr.mxu0 0.0
    %699 = vmatpush2.xpose.msra.mxu0 0.0
    %700 = vmatprep.subr.mxu0 0.0
    %701 = vmatpush2.xpose.msra.mxu0 0.0
    %702 = vmatprep.subr.mxu0 0.0
    %703 = vmatpush2.xpose.msra.mxu0 0.0
    %704 = vmatprep.subr.mxu0 0.0
    %705 = vmatpush2.xpose.msra.mxu0 0.0
    %706 = vmatprep.subr.mxu0 0.0
    %707 = vmatpush2.xpose.msra.mxu0 0.0
    %708 = vmatprep.subr.mxu0 0.0
    %709 = vmatpush2.xpose.msra.mxu0 0.0
    %710 = vmatprep.subr.mxu0 0.0
    %711 = vmatpush2.xpose.msra.mxu0 0.0
    %712 = vmatprep.subr.mxu0 0.0
    %713 = vmatpush2.xpose.msra.mxu0 0.0
    %714 = vmatprep.mubr.f32.mxu0 0.0
    %715 = vmatmul.mubr.f32.gmra.mxu0 %v639
    %v716 = vpop.f32.mrf.mxu0
    %v717 = vadd.f32 0.0, %v716
    %v718 = vpop.f32.mrf.mxu0
    %719 = vmatprep.mubr.f32.mxu0 0.0
    %720 = vmatmul.mubr.f32.gmra.mxu0 %v642
    %v721 = vpop.f32.mrf.mxu0
    %v722 = vadd.f32 0.0, %v721
    %v723 = vpop.f32.mrf.mxu0
    %724 = vmatprep.mubr.f32.mxu0 0.0
    %725 = vmatmul.mubr.f32.gmra.mxu0 %v645
    %v726 = vpop.f32.mrf.mxu0
    %v727 = vadd.f32 0.0, %v726
    %v728 = vpop.f32.mrf.mxu0
    %729 = vmatprep.mubr.f32.mxu0 0.0
    %730 = vmatmul.mubr.f32.gmra.mxu0 %v648
    %v731 = vpop.f32.mrf.mxu0
    %v732 = vadd.f32 0.0, %v731
    %v733 = vpop.f32.mrf.mxu0
    %734 = vdwg.mxu0
    %v735 = vmul.f32 %v717, 0.35355338
    %v736 = vmul.f32 %v722, 0.35355338
    %v737 = vmul.f32 %v727, 0.35355338
    %v738 = vmul.f32 %v732, 0.35355338
    %v739 = vadd.f32 %v735, %v175
    %v740 = vadd.f32 %v736, %v176
    %v741 = vadd.f32 %v737, %v177
    %v742 = vadd.f32 %v738, %v178
    %v743 = vsel %vm51, %v739, -inf
    %744 = vmax.xlane.f32.xlu0 %v743
    %v745 = vpop.xlane.xlu0 %744
    %v746 = vsel %vm51, %v740, -inf
    %747 = vmax.xlane.f32.xlu0 %v746
    %v748 = vpop.xlane.xlu0 %747
    %v749 = vsel %vm51, %v741, -inf
    %750 = vmax.xlane.f32.xlu0 %v749
    %v751 = vpop.xlane.xlu0 %750
    %v752 = vsel %vm51, %v742, -inf
    %753 = vmax.xlane.f32.xlu0 %v752
    %v754 = vpop.xlane.xlu0 %753
    %v755 = vsub.f32 %v739, %v745
    %v756 = vsub.f32 %v740, %v748
    %v757 = vsub.f32 %v741, %v751
    %v758 = vsub.f32 %v742, %v754
    %v759 = vmul.f32 %v755, 1.442695
    %v760 = vpow.pop %v759
    %v761 = vmul.f32 %v756, 1.442695
    %v762 = vpow.pop %v761
    %v763 = vmul.f32 %v757, 1.442695
    %v764 = vpow.pop %v763
    %v765 = vmul.f32 %v758, 1.442695
    %v766 = vpow.pop %v765
    %v767 = vsel %vm51, %v760, 0.0
    %768 = vadd.xlane.f32.xlu0 %v767
    %v769 = vpop.xlane.xlu0 %768
    %v770 = vsel %vm51, %v762, 0.0
    %771 = vadd.xlane.f32.xlu0 %v770
    %v772 = vpop.xlane.xlu0 %771
    %v773 = vsel %vm51, %v764, 0.0
    %774 = vadd.xlane.f32.xlu0 %v773
    %v775 = vpop.xlane.xlu0 %774
    %v776 = vsel %vm51, %v766, 0.0
    %777 = vadd.xlane.f32.xlu0 %v776
    %v778 = vpop.xlane.xlu0 %777
    %v779 = vrcp.pop %v769
    %v780 = vmul.f32 %v760, %v779
    %v781 = vrcp.pop %v772
    %v782 = vmul.f32 %v762, %v781
    %v783 = vrcp.pop %v775
    %v784 = vmul.f32 %v764, %v783
    %v785 = vrcp.pop %v778
    %v786 = vmul.f32 %v766, %v785
    %791 = vrot.lane.b32.xlu0 %v451, 96
    %v792 = vpop.permute.xlu0 %791
    %793 = vrot.lane.b32.xlu0 %v456, 96
    %v794 = vpop.permute.xlu0 %793
    %795 = vrot.lane.b32.xlu0 %v461, 96
    %v796 = vpop.permute.xlu0 %795
    %797 = vrot.lane.b32.xlu0 %v466, 96
    %v798 = vpop.permute.xlu0 %797
    %v804 = vsel %vm51, %v780, 0
    %v807 = vsel %vm51, %v782, 0
    %v810 = vsel %vm51, %v784, 0
    %v813 = vsel %vm51, %v786, 0
    %815 = vmatprep.subr.mxu0 0.0
    %816 = vmatpush1.msra.mxu0 0.0
    %817 = vmatprep.subr.mxu0 0.0
    %818 = vmatpush1.msra.mxu0 0.0
    %819 = vmatprep.subr.mxu0 0.0
    %820 = vmatpush1.msra.mxu0 0.0
    %821 = vmatprep.subr.mxu0 0.0
    %822 = vmatpush1.msra.mxu0 0.0
    %823 = vmatprep.subr.mxu0 0.0
    %824 = vmatpush1.msra.mxu0 0.0
    %825 = vmatprep.subr.mxu0 0.0
    %826 = vmatpush1.msra.mxu0 0.0
    %827 = vmatprep.subr.mxu0 0.0
    %828 = vmatpush1.msra.mxu0 0.0
    %829 = vmatprep.subr.mxu0 0.0
    %830 = vmatpush1.msra.mxu0 0.0
    %831 = vmatprep.subr.mxu0 0.0
    %832 = vmatpush1.msra.mxu0 0.0
    %833 = vmatprep.subr.mxu0 0.0
    %834 = vmatpush1.msra.mxu0 0.0
    %835 = vmatprep.subr.mxu0 0.0
    %836 = vmatpush1.msra.mxu0 0.0
    %837 = vmatprep.subr.mxu0 0.0
    %838 = vmatpush1.msra.mxu0 0.0
    %839 = vmatprep.subr.mxu0 0.0
    %840 = vmatpush1.msra.mxu0 %v798
    %841 = vmatprep.subr.mxu0 0.0
    %842 = vmatpush1.msra.mxu0 %v796
    %843 = vmatprep.subr.mxu0 0.0
    %844 = vmatpush1.msra.mxu0 %v794
    %845 = vmatprep.subr.mxu0 0.0
    %846 = vmatpush1.msra.mxu0 %v792
    %847 = vmatprep.subr.mxu0 0.0
    %848 = vmatpush2.msra.mxu0 0.0
    %849 = vmatprep.subr.mxu0 0.0
    %850 = vmatpush2.msra.mxu0 0.0
    %851 = vmatprep.subr.mxu0 0.0
    %852 = vmatpush2.msra.mxu0 0.0
    %853 = vmatprep.subr.mxu0 0.0
    %854 = vmatpush2.msra.mxu0 0.0
    %855 = vmatprep.subr.mxu0 0.0
    %856 = vmatpush2.msra.mxu0 0.0
    %857 = vmatprep.subr.mxu0 0.0
    %858 = vmatpush2.msra.mxu0 0.0
    %859 = vmatprep.subr.mxu0 0.0
    %860 = vmatpush2.msra.mxu0 0.0
    %861 = vmatprep.subr.mxu0 0.0
    %862 = vmatpush2.msra.mxu0 0.0
    %863 = vmatprep.subr.mxu0 0.0
    %864 = vmatpush2.msra.mxu0 0.0
    %865 = vmatprep.subr.mxu0 0.0
    %866 = vmatpush2.msra.mxu0 0.0
    %867 = vmatprep.subr.mxu0 0.0
    %868 = vmatpush2.msra.mxu0 0.0
    %869 = vmatprep.subr.mxu0 0.0
    %870 = vmatpush2.msra.mxu0 0.0
    %871 = vmatprep.subr.mxu0 0.0
    %872 = vmatpush2.msra.mxu0 0.0
    %873 = vmatprep.subr.mxu0 0.0
    %874 = vmatpush2.msra.mxu0 0.0
    %875 = vmatprep.subr.mxu0 0.0
    %876 = vmatpush2.msra.mxu0 0.0
    %877 = vmatprep.subr.mxu0 0.0
    %878 = vmatpush2.msra.mxu0 0.0
    %879 = vmatprep.mubr.f32.mxu0 0.0
    %880 = vmatmul.mubr.f32.gmra.mxu0 %v804
    %v881 = vpop.f32.mrf.mxu0
    %v882 = vadd.f32 0.0, %v881
    %v883 = vpop.f32.mrf.mxu0
    %884 = vmatprep.mubr.f32.mxu0 0.0
    %885 = vmatmul.mubr.f32.gmra.mxu0 %v807
    %v886 = vpop.f32.mrf.mxu0
    %v887 = vadd.f32 0.0, %v886
    %v888 = vpop.f32.mrf.mxu0
    %889 = vmatprep.mubr.f32.mxu0 0.0
    %890 = vmatmul.mubr.f32.gmra.mxu0 %v810
    %v891 = vpop.f32.mrf.mxu0
    %v892 = vadd.f32 0.0, %v891
    %v893 = vpop.f32.mrf.mxu0
    %894 = vmatprep.mubr.f32.mxu0 0.0
    %895 = vmatmul.mubr.f32.gmra.mxu0 %v813
    %v896 = vpop.f32.mrf.mxu0
    %v897 = vadd.f32 0.0, %v896
    %v898 = vpop.f32.mrf.mxu0
    %899 = vdwg.mxu0
    %v901 = vsel %vm51, %v627, 0
    %v904 = vsel %vm51, %v629, 0
    %v907 = vsel %vm51, %v631, 0
    %v910 = vsel %vm51, %v633, 0
    %912 = vmatprep.subr.mxu0 0.0
    %913 = vmatpush1.msra.mxu0 0.0
    %914 = vmatprep.subr.mxu0 0.0
    %915 = vmatpush1.msra.mxu0 0.0
    %916 = vmatprep.subr.mxu0 0.0
    %917 = vmatpush1.msra.mxu0 0.0
    %918 = vmatprep.subr.mxu0 0.0
    %919 = vmatpush1.msra.mxu0 0.0
    %920 = vmatprep.subr.mxu0 0.0
    %921 = vmatpush1.msra.mxu0 0.0
    %922 = vmatprep.subr.mxu0 0.0
    %923 = vmatpush1.msra.mxu0 0.0
    %924 = vmatprep.subr.mxu0 0.0
    %925 = vmatpush1.msra.mxu0 0.0
    %926 = vmatprep.subr.mxu0 0.0
    %927 = vmatpush1.msra.mxu0 0.0
    %928 = vmatprep.subr.mxu0 0.0
    %929 = vmatpush1.msra.mxu0 0.0
    %930 = vmatprep.subr.mxu0 0.0
    %931 = vmatpush1.msra.mxu0 0.0
    %932 = vmatprep.subr.mxu0 0.0
    %933 = vmatpush1.msra.mxu0 0.0
    %934 = vmatprep.subr.mxu0 0.0
    %935 = vmatpush1.msra.mxu0 0.0
    %936 = vmatprep.subr.mxu0 0.0
    %937 = vmatpush1.msra.mxu0 %v466
    %938 = vmatprep.subr.mxu0 0.0
    %939 = vmatpush1.msra.mxu0 %v461
    %940 = vmatprep.subr.mxu0 0.0
    %941 = vmatpush1.msra.mxu0 %v456
    %942 = vmatprep.subr.mxu0 0.0
    %943 = vmatpush1.msra.mxu0 %v451
    %944 = vmatprep.subr.mxu0 0.0
    %945 = vmatpush2.msra.mxu0 0.0
    %946 = vmatprep.subr.mxu0 0.0
    %947 = vmatpush2.msra.mxu0 0.0
    %948 = vmatprep.subr.mxu0 0.0
    %949 = vmatpush2.msra.mxu0 0.0
    %950 = vmatprep.subr.mxu0 0.0
    %951 = vmatpush2.msra.mxu0 0.0
    %952 = vmatprep.subr.mxu0 0.0
    %953 = vmatpush2.msra.mxu0 0.0
    %954 = vmatprep.subr.mxu0 0.0
    %955 = vmatpush2.msra.mxu0 0.0
    %956 = vmatprep.subr.mxu0 0.0
    %957 = vmatpush2.msra.mxu0 0.0
    %958 = vmatprep.subr.mxu0 0.0
    %959 = vmatpush2.msra.mxu0 0.0
    %960 = vmatprep.subr.mxu0 0.0
    %961 = vmatpush2.msra.mxu0 0.0
    %962 = vmatprep.subr.mxu0 0.0
    %963 = vmatpush2.msra.mxu0 0.0
    %964 = vmatprep.subr.mxu0 0.0
    %965 = vmatpush2.msra.mxu0 0.0
    %966 = vmatprep.subr.mxu0 0.0
    %967 = vmatpush2.msra.mxu0 0.0
    %968 = vmatprep.subr.mxu0 0.0
    %969 = vmatpush2.msra.mxu0 0.0
    %970 = vmatprep.subr.mxu0 0.0
    %971 = vmatpush2.msra.mxu0 0.0
    %972 = vmatprep.subr.mxu0 0.0
    %973 = vmatpush2.msra.mxu0 0.0
    %974 = vmatprep.subr.mxu0 0.0
    %975 = vmatpush2.msra.mxu0 0.0
    %976 = vmatprep.mubr.f32.mxu0 0.0
    %977 = vmatmul.mubr.f32.gmra.mxu0 %v901
    %v978 = vpop.f32.mrf.mxu0
    %v979 = vadd.f32 %v882, %v978
    %v980 = vpop.f32.mrf.mxu0
    %981 = vmatprep.mubr.f32.mxu0 0.0
    %982 = vmatmul.mubr.f32.gmra.mxu0 %v904
    %v983 = vpop.f32.mrf.mxu0
    %v984 = vadd.f32 %v887, %v983
    %v985 = vpop.f32.mrf.mxu0
    %986 = vmatprep.mubr.f32.mxu0 0.0
    %987 = vmatmul.mubr.f32.gmra.mxu0 %v907
    %v988 = vpop.f32.mrf.mxu0
    %v989 = vadd.f32 %v892, %v988
    %v990 = vpop.f32.mrf.mxu0
    %991 = vmatprep.mubr.f32.mxu0 0.0
    %992 = vmatmul.mubr.f32.gmra.mxu0 %v910
    %v993 = vpop.f32.mrf.mxu0
    %v994 = vadd.f32 %v897, %v993
    %v995 = vpop.f32.mrf.mxu0
    %996 = vdwg.mxu0
    %v997 = vmul.f32 %v277, %v132
    %v998 = vmul.f32 %v282, %v132
    %v999 = vmul.f32 %v287, %v132
    %v1000 = vmul.f32 %v292, %v132
    %v1002 = vsel %vm51, %v997, 0
    %v1005 = vsel %vm51, %v998, 0
    %v1008 = vsel %vm51, %v999, 0
    %v1011 = vsel %vm51, %v1000, 0
    %1013 = vmatprep.subr.mxu0 0.0
    %1014 = vmatpush1.xpose.msra.mxu0 0.0
    %1015 = vmatprep.subr.mxu0 0.0
    %1016 = vmatpush1.xpose.msra.mxu0 0.0
    %1017 = vmatprep.subr.mxu0 0.0
    %1018 = vmatpush1.xpose.msra.mxu0 0.0
    %1019 = vmatprep.subr.mxu0 0.0
    %1020 = vmatpush1.xpose.msra.mxu0 0.0
    %1021 = vmatprep.subr.mxu0 0.0
    %1022 = vmatpush1.xpose.msra.mxu0 0.0
    %1023 = vmatprep.subr.mxu0 0.0
    %1024 = vmatpush1.xpose.msra.mxu0 0.0
    %1025 = vmatprep.subr.mxu0 0.0
    %1026 = vmatpush1.xpose.msra.mxu0 0.0
    %1027 = vmatprep.subr.mxu0 0.0
    %1028 = vmatpush1.xpose.msra.mxu0 0.0
    %1029 = vmatprep.subr.mxu0 0.0
    %1030 = vmatpush1.xpose.msra.mxu0 0.0
    %1031 = vmatprep.subr.mxu0 0.0
    %1032 = vmatpush1.xpose.msra.mxu0 0.0
    %1033 = vmatprep.subr.mxu0 0.0
    %1034 = vmatpush1.xpose.msra.mxu0 0.0
    %1035 = vmatprep.subr.mxu0 0.0
    %1036 = vmatpush1.xpose.msra.mxu0 0.0
    %1037 = vmatprep.subr.mxu0 0.0
    %1038 = vmatpush1.xpose.msra.mxu0 %v495
    %1039 = vmatprep.subr.mxu0 0.0
    %1040 = vmatpush1.xpose.msra.mxu0 %v492
    %1041 = vmatprep.subr.mxu0 0.0
    %1042 = vmatpush1.xpose.msra.mxu0 %v489
    %1043 = vmatprep.subr.mxu0 0.0
    %1044 = vmatpush1.xpose.msra.mxu0 %v486
    %1045 = vmatprep.subr.mxu0 0.0
    %1046 = vmatpush2.xpose.msra.mxu0 0.0
    %1047 = vmatprep.subr.mxu0 0.0
    %1048 = vmatpush2.xpose.msra.mxu0 0.0
    %1049 = vmatprep.subr.mxu0 0.0
    %1050 = vmatpush2.xpose.msra.mxu0 0.0
    %1051 = vmatprep.subr.mxu0 0.0
    %1052 = vmatpush2.xpose.msra.mxu0 0.0
    %1053 = vmatprep.subr.mxu0 0.0
    %1054 = vmatpush2.xpose.msra.mxu0 0.0
    %1055 = vmatprep.subr.mxu0 0.0
    %1056 = vmatpush2.xpose.msra.mxu0 0.0
    %1057 = vmatprep.subr.mxu0 0.0
    %1058 = vmatpush2.xpose.msra.mxu0 0.0
    %1059 = vmatprep.subr.mxu0 0.0
    %1060 = vmatpush2.xpose.msra.mxu0 0.0
    %1061 = vmatprep.subr.mxu0 0.0
    %1062 = vmatpush2.xpose.msra.mxu0 0.0
    %1063 = vmatprep.subr.mxu0 0.0
    %1064 = vmatpush2.xpose.msra.mxu0 0.0
    %1065 = vmatprep.subr.mxu0 0.0
    %1066 = vmatpush2.xpose.msra.mxu0 0.0
    %1067 = vmatprep.subr.mxu0 0.0
    %1068 = vmatpush2.xpose.msra.mxu0 0.0
    %1069 = vmatprep.subr.mxu0 0.0
    %1070 = vmatpush2.xpose.msra.mxu0 0.0
    %1071 = vmatprep.subr.mxu0 0.0
    %1072 = vmatpush2.xpose.msra.mxu0 0.0
    %1073 = vmatprep.subr.mxu0 0.0
    %1074 = vmatpush2.xpose.msra.mxu0 0.0
    %1075 = vmatprep.subr.mxu0 0.0
    %1076 = vmatpush2.xpose.msra.mxu0 0.0
    %1077 = vmatprep.mubr.f32.mxu0 0.0
    %1078 = vmatmul.mubr.f32.gmra.mxu0 %v1002
    %v1079 = vpop.f32.mrf.mxu0
    %v1080 = vadd.f32 0.0, %v1079
    %v1081 = vpop.f32.mrf.mxu0
    %1082 = vmatprep.mubr.f32.mxu0 0.0
    %1083 = vmatmul.mubr.f32.gmra.mxu0 %v1005
    %v1084 = vpop.f32.mrf.mxu0
    %v1085 = vadd.f32 0.0, %v1084
    %v1086 = vpop.f32.mrf.mxu0
    %1087 = vmatprep.mubr.f32.mxu0 0.0
    %1088 = vmatmul.mubr.f32.gmra.mxu0 %v1008
    %v1089 = vpop.f32.mrf.mxu0
    %v1090 = vadd.f32 0.0, %v1089
    %v1091 = vpop.f32.mrf.mxu0
    %1092 = vmatprep.mubr.f32.mxu0 0.0
    %1093 = vmatmul.mubr.f32.gmra.mxu0 %v1011
    %v1094 = vpop.f32.mrf.mxu0
    %v1095 = vadd.f32 0.0, %v1094
    %v1096 = vpop.f32.mrf.mxu0
    %1097 = vdwg.mxu0
    %v1098 = vmul.f32 %v1080, 0.35355338
    %v1099 = vmul.f32 %v1085, 0.35355338
    %v1100 = vmul.f32 %v1090, 0.35355338
    %v1101 = vmul.f32 %v1095, 0.35355338
    %v1102 = vadd.f32 %v1098, %v175
    %v1103 = vadd.f32 %v1099, %v176
    %v1104 = vadd.f32 %v1100, %v177
    %v1105 = vadd.f32 %v1101, %v178
    %v1106 = vsel %vm51, %v1102, -inf
    %1107 = vmax.xlane.f32.xlu0 %v1106
    %v1108 = vpop.xlane.xlu0 %1107
    %v1109 = vsel %vm51, %v1103, -inf
    %1110 = vmax.xlane.f32.xlu0 %v1109
    %v1111 = vpop.xlane.xlu0 %1110
    %v1112 = vsel %vm51, %v1104, -inf
    %1113 = vmax.xlane.f32.xlu0 %v1112
    %v1114 = vpop.xlane.xlu0 %1113
    %v1115 = vsel %vm51, %v1105, -inf
    %1116 = vmax.xlane.f32.xlu0 %v1115
    %v1117 = vpop.xlane.xlu0 %1116
    %v1118 = vsub.f32 %v1102, %v1108
    %v1119 = vsub.f32 %v1103, %v1111
    %v1120 = vsub.f32 %v1104, %v1114
    %v1121 = vsub.f32 %v1105, %v1117
    %v1122 = vmul.f32 %v1118, 1.442695
    %v1123 = vpow.pop %v1122
    %v1124 = vmul.f32 %v1119, 1.442695
    %v1125 = vpow.pop %v1124
    %v1126 = vmul.f32 %v1120, 1.442695
    %v1127 = vpow.pop %v1126
    %v1128 = vmul.f32 %v1121, 1.442695
    %v1129 = vpow.pop %v1128
    %v1130 = vsel %vm51, %v1123, 0.0
    %1131 = vadd.xlane.f32.xlu0 %v1130
    %v1132 = vpop.xlane.xlu0 %1131
    %v1133 = vsel %vm51, %v1125, 0.0
    %1134 = vadd.xlane.f32.xlu0 %v1133
    %v1135 = vpop.xlane.xlu0 %1134
    %v1136 = vsel %vm51, %v1127, 0.0
    %1137 = vadd.xlane.f32.xlu0 %v1136
    %v1138 = vpop.xlane.xlu0 %1137
    %v1139 = vsel %vm51, %v1129, 0.0
    %1140 = vadd.xlane.f32.xlu0 %v1139
    %v1141 = vpop.xlane.xlu0 %1140
    %v1142 = vrcp.pop %v1132
    %v1143 = vmul.f32 %v1123, %v1142
    %v1144 = vrcp.pop %v1135
    %v1145 = vmul.f32 %v1125, %v1144
    %v1146 = vrcp.pop %v1138
    %v1147 = vmul.f32 %v1127, %v1146
    %v1148 = vrcp.pop %v1141
    %v1149 = vmul.f32 %v1129, %v1148
    %1150 = vrot.lane.b32.xlu0 %v451, 64
    %v1151 = vpop.permute.xlu0 %1150
    %1152 = vrot.lane.b32.xlu0 %v456, 64
    %v1153 = vpop.permute.xlu0 %1152
    %1154 = vrot.lane.b32.xlu0 %v461, 64
    %v1155 = vpop.permute.xlu0 %1154
    %1156 = vrot.lane.b32.xlu0 %v466, 64
    %v1157 = vpop.permute.xlu0 %1156
    %v1163 = vsel %vm51, %v1143, 0
    %v1166 = vsel %vm51, %v1145, 0
    %v1169 = vsel %vm51, %v1147, 0
    %v1172 = vsel %vm51, %v1149, 0
    %1174 = vmatprep.subr.mxu0 0.0
    %1175 = vmatpush1.msra.mxu0 0.0
    %1176 = vmatprep.subr.mxu0 0.0
    %1177 = vmatpush1.msra.mxu0 0.0
    %1178 = vmatprep.subr.mxu0 0.0
    %1179 = vmatpush1.msra.mxu0 0.0
    %1180 = vmatprep.subr.mxu0 0.0
    %1181 = vmatpush1.msra.mxu0 0.0
    %1182 = vmatprep.subr.mxu0 0.0
    %1183 = vmatpush1.msra.mxu0 0.0
    %1184 = vmatprep.subr.mxu0 0.0
    %1185 = vmatpush1.msra.mxu0 0.0
    %1186 = vmatprep.subr.mxu0 0.0
    %1187 = vmatpush1.msra.mxu0 0.0
    %1188 = vmatprep.subr.mxu0 0.0
    %1189 = vmatpush1.msra.mxu0 0.0
    %1190 = vmatprep.subr.mxu0 0.0
    %1191 = vmatpush1.msra.mxu0 0.0
    %1192 = vmatprep.subr.mxu0 0.0
    %1193 = vmatpush1.msra.mxu0 0.0
    %1194 = vmatprep.subr.mxu0 0.0
    %1195 = vmatpush1.msra.mxu0 0.0
    %1196 = vmatprep.subr.mxu0 0.0
    %1197 = vmatpush1.msra.mxu0 0.0
    %1198 = vmatprep.subr.mxu0 0.0
    %1199 = vmatpush1.msra.mxu0 %v1157
    %1200 = vmatprep.subr.mxu0 0.0
    %1201 = vmatpush1.msra.mxu0 %v1155
    %1202 = vmatprep.subr.mxu0 0.0
    %1203 = vmatpush1.msra.mxu0 %v1153
    %1204 = vmatprep.subr.mxu0 0.0
    %1205 = vmatpush1.msra.mxu0 %v1151
    %1206 = vmatprep.subr.mxu0 0.0
    %1207 = vmatpush2.msra.mxu0 0.0
    %1208 = vmatprep.subr.mxu0 0.0
    %1209 = vmatpush2.msra.mxu0 0.0
    %1210 = vmatprep.subr.mxu0 0.0
    %1211 = vmatpush2.msra.mxu0 0.0
    %1212 = vmatprep.subr.mxu0 0.0
    %1213 = vmatpush2.msra.mxu0 0.0
    %1214 = vmatprep.subr.mxu0 0.0
    %1215 = vmatpush2.msra.mxu0 0.0
    %1216 = vmatprep.subr.mxu0 0.0
    %1217 = vmatpush2.msra.mxu0 0.0
    %1218 = vmatprep.subr.mxu0 0.0
    %1219 = vmatpush2.msra.mxu0 0.0
    %1220 = vmatprep.subr.mxu0 0.0
    %1221 = vmatpush2.msra.mxu0 0.0
    %1222 = vmatprep.subr.mxu0 0.0
    %1223 = vmatpush2.msra.mxu0 0.0
    %1224 = vmatprep.subr.mxu0 0.0
    %1225 = vmatpush2.msra.mxu0 0.0
    %1226 = vmatprep.subr.mxu0 0.0
    %1227 = vmatpush2.msra.mxu0 0.0
    %1228 = vmatprep.subr.mxu0 0.0
    %1229 = vmatpush2.msra.mxu0 0.0
    %1230 = vmatprep.subr.mxu0 0.0
    %1231 = vmatpush2.msra.mxu0 0.0
    %1232 = vmatprep.subr.mxu0 0.0
    %1233 = vmatpush2.msra.mxu0 0.0
    %1234 = vmatprep.subr.mxu0 0.0
    %1235 = vmatpush2.msra.mxu0 0.0
    %1236 = vmatprep.subr.mxu0 0.0
    %1237 = vmatpush2.msra.mxu0 0.0
    %1238 = vmatprep.mubr.f32.mxu0 0.0
    %1239 = vmatmul.mubr.f32.gmra.mxu0 %v1163
    %v1240 = vpop.f32.mrf.mxu0
    %v1241 = vadd.f32 0.0, %v1240
    %v1242 = vpop.f32.mrf.mxu0
    %1243 = vmatprep.mubr.f32.mxu0 0.0
    %1244 = vmatmul.mubr.f32.gmra.mxu0 %v1166
    %v1245 = vpop.f32.mrf.mxu0
    %v1246 = vadd.f32 0.0, %v1245
    %v1247 = vpop.f32.mrf.mxu0
    %1248 = vmatprep.mubr.f32.mxu0 0.0
    %1249 = vmatmul.mubr.f32.gmra.mxu0 %v1169
    %v1250 = vpop.f32.mrf.mxu0
    %v1251 = vadd.f32 0.0, %v1250
    %v1252 = vpop.f32.mrf.mxu0
    %1253 = vmatprep.mubr.f32.mxu0 0.0
    %1254 = vmatmul.mubr.f32.gmra.mxu0 %v1172
    %v1255 = vpop.f32.mrf.mxu0
    %v1256 = vadd.f32 0.0, %v1255
    %v1257 = vpop.f32.mrf.mxu0
    %1258 = vdwg.mxu0
    %v1259 = vadd.f32 %v979, %v1241
    %v1260 = vadd.f32 %v984, %v1246
    %v1261 = vadd.f32 %v989, %v1251
    %v1262 = vadd.f32 %v994, %v1256
    %v1263 = vmul.f32 %v277, %v135
    %v1264 = vmul.f32 %v282, %v135
    %v1265 = vmul.f32 %v287, %v135
    %v1266 = vmul.f32 %v292, %v135
    %v1268 = vsel %vm51, %v1263, 0
    %v1271 = vsel %vm51, %v1264, 0
    %v1274 = vsel %vm51, %v1265, 0
    %v1277 = vsel %vm51, %v1266, 0
    %1279 = vmatprep.subr.mxu0 0.0
    %1280 = vmatpush1.xpose.msra.mxu0 0.0
    %1281 = vmatprep.subr.mxu0 0.0
    %1282 = vmatpush1.xpose.msra.mxu0 0.0
    %1283 = vmatprep.subr.mxu0 0.0
    %1284 = vmatpush1.xpose.msra.mxu0 0.0
    %1285 = vmatprep.subr.mxu0 0.0
    %1286 = vmatpush1.xpose.msra.mxu0 0.0
    %1287 = vmatprep.subr.mxu0 0.0
    %1288 = vmatpush1.xpose.msra.mxu0 0.0
    %1289 = vmatprep.subr.mxu0 0.0
    %1290 = vmatpush1.xpose.msra.mxu0 0.0
    %1291 = vmatprep.subr.mxu0 0.0
    %1292 = vmatpush1.xpose.msra.mxu0 0.0
    %1293 = vmatprep.subr.mxu0 0.0
    %1294 = vmatpush1.xpose.msra.mxu0 0.0
    %1295 = vmatprep.subr.mxu0 0.0
    %1296 = vmatpush1.xpose.msra.mxu0 0.0
    %1297 = vmatprep.subr.mxu0 0.0
    %1298 = vmatpush1.xpose.msra.mxu0 0.0
    %1299 = vmatprep.subr.mxu0 0.0
    %1300 = vmatpush1.xpose.msra.mxu0 0.0
    %1301 = vmatprep.subr.mxu0 0.0
    %1302 = vmatpush1.xpose.msra.mxu0 0.0
    %1303 = vmatprep.subr.mxu0 0.0
    %1304 = vmatpush1.xpose.msra.mxu0 %v495
    %1305 = vmatprep.subr.mxu0 0.0
    %1306 = vmatpush1.xpose.msra.mxu0 %v492
    %1307 = vmatprep.subr.mxu0 0.0
    %1308 = vmatpush1.xpose.msra.mxu0 %v489
    %1309 = vmatprep.subr.mxu0 0.0
    %1310 = vmatpush1.xpose.msra.mxu0 %v486
    %1311 = vmatprep.subr.mxu0 0.0
    %1312 = vmatpush2.xpose.msra.mxu0 0.0
    %1313 = vmatprep.subr.mxu0 0.0
    %1314 = vmatpush2.xpose.msra.mxu0 0.0
    %1315 = vmatprep.subr.mxu0 0.0
    %1316 = vmatpush2.xpose.msra.mxu0 0.0
    %1317 = vmatprep.subr.mxu0 0.0
    %1318 = vmatpush2.xpose.msra.mxu0 0.0
    %1319 = vmatprep.subr.mxu0 0.0
    %1320 = vmatpush2.xpose.msra.mxu0 0.0
    %1321 = vmatprep.subr.mxu0 0.0
    %1322 = vmatpush2.xpose.msra.mxu0 0.0
    %1323 = vmatprep.subr.mxu0 0.0
    %1324 = vmatpush2.xpose.msra.mxu0 0.0
    %1325 = vmatprep.subr.mxu0 0.0
    %1326 = vmatpush2.xpose.msra.mxu0 0.0
    %1327 = vmatprep.subr.mxu0 0.0
    %1328 = vmatpush2.xpose.msra.mxu0 0.0
    %1329 = vmatprep.subr.mxu0 0.0
    %1330 = vmatpush2.xpose.msra.mxu0 0.0
    %1331 = vmatprep.subr.mxu0 0.0
    %1332 = vmatpush2.xpose.msra.mxu0 0.0
    %1333 = vmatprep.subr.mxu0 0.0
    %1334 = vmatpush2.xpose.msra.mxu0 0.0
    %1335 = vmatprep.subr.mxu0 0.0
    %1336 = vmatpush2.xpose.msra.mxu0 0.0
    %1337 = vmatprep.subr.mxu0 0.0
    %1338 = vmatpush2.xpose.msra.mxu0 0.0
    %1339 = vmatprep.subr.mxu0 0.0
    %1340 = vmatpush2.xpose.msra.mxu0 0.0
    %1341 = vmatprep.subr.mxu0 0.0
    %1342 = vmatpush2.xpose.msra.mxu0 0.0
    %1343 = vmatprep.mubr.f32.mxu0 0.0
    %1344 = vmatmul.mubr.f32.gmra.mxu0 %v1268
    %v1345 = vpop.f32.mrf.mxu0
    %v1346 = vadd.f32 0.0, %v1345
    %v1347 = vpop.f32.mrf.mxu0
    %1348 = vmatprep.mubr.f32.mxu0 0.0
    %1349 = vmatmul.mubr.f32.gmra.mxu0 %v1271
    %v1350 = vpop.f32.mrf.mxu0
    %v1351 = vadd.f32 0.0, %v1350
    %v1352 = vpop.f32.mrf.mxu0
    %1353 = vmatprep.mubr.f32.mxu0 0.0
    %1354 = vmatmul.mubr.f32.gmra.mxu0 %v1274
    %v1355 = vpop.f32.mrf.mxu0
    %v1356 = vadd.f32 0.0, %v1355
    %v1357 = vpop.f32.mrf.mxu0
    %1358 = vmatprep.mubr.f32.mxu0 0.0
    %1359 = vmatmul.mubr.f32.gmra.mxu0 %v1277
    %v1360 = vpop.f32.mrf.mxu0
    %v1361 = vadd.f32 0.0, %v1360
    %v1362 = vpop.f32.mrf.mxu0
    %1363 = vdwg.mxu0
    %v1364 = vmul.f32 %v1346, 0.35355338
    %v1365 = vmul.f32 %v1351, 0.35355338
    %v1366 = vmul.f32 %v1356, 0.35355338
    %v1367 = vmul.f32 %v1361, 0.35355338
    %v1368 = vadd.f32 %v1364, %v175
    %v1369 = vadd.f32 %v1365, %v176
    %v1370 = vadd.f32 %v1366, %v177
    %v1371 = vadd.f32 %v1367, %v178
    %v1372 = vsel %vm51, %v1368, -inf
    %1373 = vmax.xlane.f32.xlu0 %v1372
    %v1374 = vpop.xlane.xlu0 %1373
    %v1375 = vsel %vm51, %v1369, -inf
    %1376 = vmax.xlane.f32.xlu0 %v1375
    %v1377 = vpop.xlane.xlu0 %1376
    %v1378 = vsel %vm51, %v1370, -inf
    %1379 = vmax.xlane.f32.xlu0 %v1378
    %v1380 = vpop.xlane.xlu0 %1379
    %v1381 = vsel %vm51, %v1371, -inf
    %1382 = vmax.xlane.f32.xlu0 %v1381
    %v1383 = vpop.xlane.xlu0 %1382
    %v1384 = vsub.f32 %v1368, %v1374
    %v1385 = vsub.f32 %v1369, %v1377
    %v1386 = vsub.f32 %v1370, %v1380
    %v1387 = vsub.f32 %v1371, %v1383
    %v1388 = vmul.f32 %v1384, 1.442695
    %v1389 = vpow.pop %v1388
    %v1390 = vmul.f32 %v1385, 1.442695
    %v1391 = vpow.pop %v1390
    %v1392 = vmul.f32 %v1386, 1.442695
    %v1393 = vpow.pop %v1392
    %v1394 = vmul.f32 %v1387, 1.442695
    %v1395 = vpow.pop %v1394
    %v1396 = vsel %vm51, %v1389, 0.0
    %1397 = vadd.xlane.f32.xlu0 %v1396
    %v1398 = vpop.xlane.xlu0 %1397
    %v1399 = vsel %vm51, %v1391, 0.0
    %1400 = vadd.xlane.f32.xlu0 %v1399
    %v1401 = vpop.xlane.xlu0 %1400
    %v1402 = vsel %vm51, %v1393, 0.0
    %1403 = vadd.xlane.f32.xlu0 %v1402
    %v1404 = vpop.xlane.xlu0 %1403
    %v1405 = vsel %vm51, %v1395, 0.0
    %1406 = vadd.xlane.f32.xlu0 %v1405
    %v1407 = vpop.xlane.xlu0 %1406
    %v1408 = vrcp.pop %v1398
    %v1409 = vmul.f32 %v1389, %v1408
    %v1410 = vrcp.pop %v1401
    %v1411 = vmul.f32 %v1391, %v1410
    %v1412 = vrcp.pop %v1404
    %v1413 = vmul.f32 %v1393, %v1412
    %v1414 = vrcp.pop %v1407
    %v1415 = vmul.f32 %v1395, %v1414
    %1416 = vrot.lane.b32.xlu0 %v451, 32
    %v1417 = vpop.permute.xlu0 %1416
    %1418 = vrot.lane.b32.xlu0 %v456, 32
    %v1419 = vpop.permute.xlu0 %1418
    %1420 = vrot.lane.b32.xlu0 %v461, 32
    %v1421 = vpop.permute.xlu0 %1420
    %1422 = vrot.lane.b32.xlu0 %v466, 32
    %v1423 = vpop.permute.xlu0 %1422
    %v1429 = vsel %vm51, %v1409, 0
    %v1432 = vsel %vm51, %v1411, 0
    %v1435 = vsel %vm51, %v1413, 0
    %v1438 = vsel %vm51, %v1415, 0
    %1440 = vmatprep.subr.mxu0 0.0
    %1441 = vmatpush1.msra.mxu0 0.0
    %1442 = vmatprep.subr.mxu0 0.0
    %1443 = vmatpush1.msra.mxu0 0.0
    %1444 = vmatprep.subr.mxu0 0.0
    %1445 = vmatpush1.msra.mxu0 0.0
    %1446 = vmatprep.subr.mxu0 0.0
    %1447 = vmatpush1.msra.mxu0 0.0
    %1448 = vmatprep.subr.mxu0 0.0
    %1449 = vmatpush1.msra.mxu0 0.0
    %1450 = vmatprep.subr.mxu0 0.0
    %1451 = vmatpush1.msra.mxu0 0.0
    %1452 = vmatprep.subr.mxu0 0.0
    %1453 = vmatpush1.msra.mxu0 0.0
    %1454 = vmatprep.subr.mxu0 0.0
    %1455 = vmatpush1.msra.mxu0 0.0
    %1456 = vmatprep.subr.mxu0 0.0
    %1457 = vmatpush1.msra.mxu0 0.0
    %1458 = vmatprep.subr.mxu0 0.0
    %1459 = vmatpush1.msra.mxu0 0.0
    %1460 = vmatprep.subr.mxu0 0.0
    %1461 = vmatpush1.msra.mxu0 0.0
    %1462 = vmatprep.subr.mxu0 0.0
    %1463 = vmatpush1.msra.mxu0 0.0
    %1464 = vmatprep.subr.mxu0 0.0
    %1465 = vmatpush1.msra.mxu0 %v1423
    %1466 = vmatprep.subr.mxu0 0.0
    %1467 = vmatpush1.msra.mxu0 %v1421
    %1468 = vmatprep.subr.mxu0 0.0
    %1469 = vmatpush1.msra.mxu0 %v1419
    %1470 = vmatprep.subr.mxu0 0.0
    %1471 = vmatpush1.msra.mxu0 %v1417
    %1472 = vmatprep.subr.mxu0 0.0
    %1473 = vmatpush2.msra.mxu0 0.0
    %1474 = vmatprep.subr.mxu0 0.0
    %1475 = vmatpush2.msra.mxu0 0.0
    %1476 = vmatprep.subr.mxu0 0.0
    %1477 = vmatpush2.msra.mxu0 0.0
    %1478 = vmatprep.subr.mxu0 0.0
    %1479 = vmatpush2.msra.mxu0 0.0
    %1480 = vmatprep.subr.mxu0 0.0
    %1481 = vmatpush2.msra.mxu0 0.0
    %1482 = vmatprep.subr.mxu0 0.0
    %1483 = vmatpush2.msra.mxu0 0.0
    %1484 = vmatprep.subr.mxu0 0.0
    %1485 = vmatpush2.msra.mxu0 0.0
    %1486 = vmatprep.subr.mxu0 0.0
    %1487 = vmatpush2.msra.mxu0 0.0
    %1488 = vmatprep.subr.mxu0 0.0
    %1489 = vmatpush2.msra.mxu0 0.0
    %1490 = vmatprep.subr.mxu0 0.0
    %1491 = vmatpush2.msra.mxu0 0.0
    %1492 = vmatprep.subr.mxu0 0.0
    %1493 = vmatpush2.msra.mxu0 0.0
    %1494 = vmatprep.subr.mxu0 0.0
    %1495 = vmatpush2.msra.mxu0 0.0
    %1496 = vmatprep.subr.mxu0 0.0
    %1497 = vmatpush2.msra.mxu0 0.0
    %1498 = vmatprep.subr.mxu0 0.0
    %1499 = vmatpush2.msra.mxu0 0.0
    %1500 = vmatprep.subr.mxu0 0.0
    %1501 = vmatpush2.msra.mxu0 0.0
    %1502 = vmatprep.subr.mxu0 0.0
    %1503 = vmatpush2.msra.mxu0 0.0
    %1504 = vmatprep.mubr.f32.mxu0 0.0
    %1505 = vmatmul.mubr.f32.gmra.mxu0 %v1429
    %v1506 = vpop.f32.mrf.mxu0
    %v1507 = vadd.f32 0.0, %v1506
    %v1508 = vpop.f32.mrf.mxu0
    %1509 = vmatprep.mubr.f32.mxu0 0.0
    %1510 = vmatmul.mubr.f32.gmra.mxu0 %v1432
    %v1511 = vpop.f32.mrf.mxu0
    %v1512 = vadd.f32 0.0, %v1511
    %v1513 = vpop.f32.mrf.mxu0
    %1514 = vmatprep.mubr.f32.mxu0 0.0
    %1515 = vmatmul.mubr.f32.gmra.mxu0 %v1435
    %v1516 = vpop.f32.mrf.mxu0
    %v1517 = vadd.f32 0.0, %v1516
    %v1518 = vpop.f32.mrf.mxu0
    %1519 = vmatprep.mubr.f32.mxu0 0.0
    %1520 = vmatmul.mubr.f32.gmra.mxu0 %v1438
    %v1521 = vpop.f32.mrf.mxu0
    %v1522 = vadd.f32 0.0, %v1521
    %v1523 = vpop.f32.mrf.mxu0
    %1524 = vdwg.mxu0
    %v1525 = vadd.f32 %v1259, %v1507
    %v1526 = vadd.f32 %v1260, %v1512
    %v1527 = vadd.f32 %v1261, %v1517
    %v1528 = vadd.f32 %v1262, %v1522
    %v1529 = vlaneseq
    %v1530 = vshrl.u32 %v1529, 7
    %v1531 = vsub.s32 0, %v1530
    %v1532 = vrot.slane %v193, %v1531
    %v1533 = vadd.f32 %v1525, %v1532
    %v1534 = vadd.f32 %v1526, %v1532
    %v1535 = vadd.f32 %v1527, %v1532
    %v1536 = vadd.f32 %v1528, %v1532
    %v1537 = vld [vmem:[%s3] sm:$0xff]
    %v1538 = vld [vmem:[%s3 + $0x8] sm:$0xff]
    %v1539 = vshra.s32 %v137, 3
    %v1540 = vshra.s32 %v138, 3
    %vm1541 = vcmp.eq.s32.totalorder %v1539, %v145
    %vm1542 = vcmp.eq.s32.totalorder %v1540, %v145
    %v1543 = vsel %vm1541, 0.0, -1e+30
    %v1544 = vsel %vm1542, 0.0, -1e+30
    %v1545 = vld [vmem:[#allocation2 + $0x60] sm:$0xff]
    %v1546 = vld [vmem:[#allocation2 + $0x68] sm:$0xff]
    %v1547 = vld [vmem:[#allocation2 + $0x70] sm:$0xff]
    %v1548 = vld [vmem:[#allocation2 + $0x78] sm:$0xff]
    %v1549 = vld [vmem:[#allocation4 + $0x28] sm:$0x1]
    %v1550 = vld [vmem:[#allocation2 + $0x80] sm:$0xff]
    %v1551 = vld [vmem:[#allocation2 + $0x88] sm:$0xff]
    %v1552 = vld [vmem:[#allocation2 + $0x90] sm:$0xff]
    %v1553 = vld [vmem:[#allocation2 + $0x98] sm:$0xff]
    %v1554 = vld [vmem:[#allocation4 + $0x30] sm:$0x1]
    %v1555 = vld [vmem:[#allocation2 + $0xa0] sm:$0xff]
    %v1556 = vld [vmem:[#allocation2 + $0xa8] sm:$0xff]
    %v1557 = vld [vmem:[#allocation2 + $0xb0] sm:$0xff]
    %v1558 = vld [vmem:[#allocation2 + $0xb8] sm:$0xff]
    %v1559 = vld [vmem:[#allocation4 + $0x38] sm:$0x1]
    %v1560 = vlaneseq
    %v1561 = vshrl.u32 %v1560, 7
    %v1562 = vsub.s32 0, %v1561
    %v1563 = vrot.slane %v1549, %v1562
    %v1565 = vsel %vm51, %v1537, 0
    %v1568 = vsel %vm51, %v1538, 0
    %1570 = vmatprep.subr.mxu0 0.0
    %1571 = vmatpush1.msra.mxu0 0.0
    %1572 = vmatprep.subr.mxu0 0.0
    %1573 = vmatpush1.msra.mxu0 0.0
    %1574 = vmatprep.subr.mxu0 0.0
    %1575 = vmatpush1.msra.mxu0 0.0
    %1576 = vmatprep.subr.mxu0 0.0
    %1577 = vmatpush1.msra.mxu0 0.0
    %1578 = vmatprep.subr.mxu0 0.0
    %1579 = vmatpush1.msra.mxu0 0.0
    %1580 = vmatprep.subr.mxu0 0.0
    %1581 = vmatpush1.msra.mxu0 0.0
    %1582 = vmatprep.subr.mxu0 0.0
    %1583 = vmatpush1.msra.mxu0 0.0
    %1584 = vmatprep.subr.mxu0 0.0
    %1585 = vmatpush1.msra.mxu0 0.0
    %1586 = vmatprep.subr.mxu0 0.0
    %1587 = vmatpush1.msra.mxu0 0.0
    %1588 = vmatprep.subr.mxu0 0.0
    %1589 = vmatpush1.msra.mxu0 0.0
    %1590 = vmatprep.subr.mxu0 0.0
    %1591 = vmatpush1.msra.mxu0 0.0
    %1592 = vmatprep.subr.mxu0 0.0
    %1593 = vmatpush1.msra.mxu0 0.0
    %1594 = vmatprep.subr.mxu0 0.0
    %1595 = vmatpush1.msra.mxu0 %v1548
    %1596 = vmatprep.subr.mxu0 0.0
    %1597 = vmatpush1.msra.mxu0 %v1547
    %1598 = vmatprep.subr.mxu0 0.0
    %1599 = vmatpush1.msra.mxu0 %v1546
    %1600 = vmatprep.subr.mxu0 0.0
    %1601 = vmatpush1.msra.mxu0 %v1545
    %1602 = vmatprep.subr.mxu0 0.0
    %1603 = vmatpush2.msra.mxu0 0.0
    %1604 = vmatprep.subr.mxu0 0.0
    %1605 = vmatpush2.msra.mxu0 0.0
    %1606 = vmatprep.subr.mxu0 0.0
    %1607 = vmatpush2.msra.mxu0 0.0
    %1608 = vmatprep.subr.mxu0 0.0
    %1609 = vmatpush2.msra.mxu0 0.0
    %1610 = vmatprep.subr.mxu0 0.0
    %1611 = vmatpush2.msra.mxu0 0.0
    %1612 = vmatprep.subr.mxu0 0.0
    %1613 = vmatpush2.msra.mxu0 0.0
    %1614 = vmatprep.subr.mxu0 0.0
    %1615 = vmatpush2.msra.mxu0 0.0
    %1616 = vmatprep.subr.mxu0 0.0
    %1617 = vmatpush2.msra.mxu0 0.0
    %1618 = vmatprep.subr.mxu0 0.0
    %1619 = vmatpush2.msra.mxu0 0.0
    %1620 = vmatprep.subr.mxu0 0.0
    %1621 = vmatpush2.msra.mxu0 0.0
    %1622 = vmatprep.subr.mxu0 0.0
    %1623 = vmatpush2.msra.mxu0 0.0
    %1624 = vmatprep.subr.mxu0 0.0
    %1625 = vmatpush2.msra.mxu0 0.0
    %1626 = vmatprep.subr.mxu0 0.0
    %1627 = vmatpush2.msra.mxu0 0.0
    %1628 = vmatprep.subr.mxu0 0.0
    %1629 = vmatpush2.msra.mxu0 0.0
    %1630 = vmatprep.subr.mxu0 0.0
    %1631 = vmatpush2.msra.mxu0 0.0
    %1632 = vmatprep.subr.mxu0 0.0
    %1633 = vmatpush2.msra.mxu0 0.0
    %1634 = vmatprep.mubr.f32.mxu0 0.0
    %1635 = vmatmul.mubr.f32.gmra.mxu0 %v1565
    %v1636 = vpop.f32.mrf.mxu0
    %v1637 = vadd.f32 %v1563, %v1636
    %v1638 = vpop.f32.mrf.mxu0
    %1639 = vmatprep.mubr.f32.mxu0 0.0
    %1640 = vmatmul.mubr.f32.gmra.mxu0 %v1568
    %v1641 = vpop.f32.mrf.mxu0
    %v1642 = vadd.f32 %v1563, %v1641
    %v1643 = vpop.f32.mrf.mxu0
    %1644 = vdwg.mxu0
    %v1645 = vlaneseq
    %v1646 = vshrl.u32 %v1645, 7
    %v1647 = vsub.s32 0, %v1646
    %v1648 = vrot.slane %v1554, %v1647
    %1649 = vmatprep.subr.mxu0 0.0
    %1650 = vmatpush1.msra.mxu0 0.0
    %1651 = vmatprep.subr.mxu0 0.0
    %1652 = vmatpush1.msra.mxu0 0.0
    %1653 = vmatprep.subr.mxu0 0.0
    %1654 = vmatpush1.msra.mxu0 0.0
    %1655 = vmatprep.subr.mxu0 0.0
    %1656 = vmatpush1.msra.mxu0 0.0
    %1657 = vmatprep.subr.mxu0 0.0
    %1658 = vmatpush1.msra.mxu0 0.0
    %1659 = vmatprep.subr.mxu0 0.0
    %1660 = vmatpush1.msra.mxu0 0.0
    %1661 = vmatprep.subr.mxu0 0.0
    %1662 = vmatpush1.msra.mxu0 0.0
    %1663 = vmatprep.subr.mxu0 0.0
    %1664 = vmatpush1.msra.mxu0 0.0
    %1665 = vmatprep.subr.mxu0 0.0
    %1666 = vmatpush1.msra.mxu0 0.0
    %1667 = vmatprep.subr.mxu0 0.0
    %1668 = vmatpush1.msra.mxu0 0.0
    %1669 = vmatprep.subr.mxu0 0.0
    %1670 = vmatpush1.msra.mxu0 0.0
    %1671 = vmatprep.subr.mxu0 0.0
    %1672 = vmatpush1.msra.mxu0 0.0
    %1673 = vmatprep.subr.mxu0 0.0
    %1674 = vmatpush1.msra.mxu0 %v1553
    %1675 = vmatprep.subr.mxu0 0.0
    %1676 = vmatpush1.msra.mxu0 %v1552
    %1677 = vmatprep.subr.mxu0 0.0
    %1678 = vmatpush1.msra.mxu0 %v1551
    %1679 = vmatprep.subr.mxu0 0.0
    %1680 = vmatpush1.msra.mxu0 %v1550
    %1681 = vmatprep.subr.mxu0 0.0
    %1682 = vmatpush2.msra.mxu0 0.0
    %1683 = vmatprep.subr.mxu0 0.0
    %1684 = vmatpush2.msra.mxu0 0.0
    %1685 = vmatprep.subr.mxu0 0.0
    %1686 = vmatpush2.msra.mxu0 0.0
    %1687 = vmatprep.subr.mxu0 0.0
    %1688 = vmatpush2.msra.mxu0 0.0
    %1689 = vmatprep.subr.mxu0 0.0
    %1690 = vmatpush2.msra.mxu0 0.0
    %1691 = vmatprep.subr.mxu0 0.0
    %1692 = vmatpush2.msra.mxu0 0.0
    %1693 = vmatprep.subr.mxu0 0.0
    %1694 = vmatpush2.msra.mxu0 0.0
    %1695 = vmatprep.subr.mxu0 0.0
    %1696 = vmatpush2.msra.mxu0 0.0
    %1697 = vmatprep.subr.mxu0 0.0
    %1698 = vmatpush2.msra.mxu0 0.0
    %1699 = vmatprep.subr.mxu0 0.0
    %1700 = vmatpush2.msra.mxu0 0.0
    %1701 = vmatprep.subr.mxu0 0.0
    %1702 = vmatpush2.msra.mxu0 0.0
    %1703 = vmatprep.subr.mxu0 0.0
    %1704 = vmatpush2.msra.mxu0 0.0
    %1705 = vmatprep.subr.mxu0 0.0
    %1706 = vmatpush2.msra.mxu0 0.0
    %1707 = vmatprep.subr.mxu0 0.0
    %1708 = vmatpush2.msra.mxu0 0.0
    %1709 = vmatprep.subr.mxu0 0.0
    %1710 = vmatpush2.msra.mxu0 0.0
    %1711 = vmatprep.subr.mxu0 0.0
    %1712 = vmatpush2.msra.mxu0 0.0
    %1713 = vmatprep.mubr.f32.mxu0 0.0
    %1714 = vmatmul.mubr.f32.gmra.mxu0 %v199
    %v1715 = vpop.f32.mrf.mxu0
    %v1716 = vadd.f32 %v1648, %v1715
    %v1717 = vpop.f32.mrf.mxu0
    %1718 = vmatprep.mubr.f32.mxu0 0.0
    %1719 = vmatmul.mubr.f32.gmra.mxu0 %v202
    %v1720 = vpop.f32.mrf.mxu0
    %v1721 = vadd.f32 %v1648, %v1720
    %v1722 = vpop.f32.mrf.mxu0
    %1723 = vmatprep.mubr.f32.mxu0 0.0
    %1724 = vmatmul.mubr.f32.gmra.mxu0 %v205
    %v1725 = vpop.f32.mrf.mxu0
    %v1726 = vadd.f32 %v1648, %v1725
    %v1727 = vpop.f32.mrf.mxu0
    %1728 = vmatprep.mubr.f32.mxu0 0.0
    %1729 = vmatmul.mubr.f32.gmra.mxu0 %v208
    %v1730 = vpop.f32.mrf.mxu0
    %v1731 = vadd.f32 %v1648, %v1730
    %v1732 = vpop.f32.mrf.mxu0
    %1733 = vdwg.mxu0
    %1734 = vmatprep.subr.mxu0 0.0
    %1735 = vmatpush1.msra.mxu0 0.0
    %1736 = vmatprep.subr.mxu0 0.0
    %1737 = vmatpush1.msra.mxu0 0.0
    %1738 = vmatprep.subr.mxu0 0.0
    %1739 = vmatpush1.msra.mxu0 0.0
    %1740 = vmatprep.subr.mxu0 0.0
    %1741 = vmatpush1.msra.mxu0 0.0
    %1742 = vmatprep.subr.mxu0 0.0
    %1743 = vmatpush1.msra.mxu0 0.0
    %1744 = vmatprep.subr.mxu0 0.0
    %1745 = vmatpush1.msra.mxu0 0.0
    %1746 = vmatprep.subr.mxu0 0.0
    %1747 = vmatpush1.msra.mxu0 0.0
    %1748 = vmatprep.subr.mxu0 0.0
    %1749 = vmatpush1.msra.mxu0 0.0
    %1750 = vmatprep.subr.mxu0 0.0
    %1751 = vmatpush1.msra.mxu0 0.0
    %1752 = vmatprep.subr.mxu0 0.0
    %1753 = vmatpush1.msra.mxu0 0.0
    %1754 = vmatprep.subr.mxu0 0.0
    %1755 = vmatpush1.msra.mxu0 0.0
    %1756 = vmatprep.subr.mxu0 0.0
    %1757 = vmatpush1.msra.mxu0 0.0
    %1758 = vmatprep.subr.mxu0 0.0
    %1759 = vmatpush1.msra.mxu0 %v1558
    %1760 = vmatprep.subr.mxu0 0.0
    %1761 = vmatpush1.msra.mxu0 %v1557
    %1762 = vmatprep.subr.mxu0 0.0
    %1763 = vmatpush1.msra.mxu0 %v1556
    %1764 = vmatprep.subr.mxu0 0.0
    %1765 = vmatpush1.msra.mxu0 %v1555
    %1766 = vmatprep.subr.mxu0 0.0
    %1767 = vmatpush2.msra.mxu0 0.0
    %1768 = vmatprep.subr.mxu0 0.0
    %1769 = vmatpush2.msra.mxu0 0.0
    %1770 = vmatprep.subr.mxu0 0.0
    %1771 = vmatpush2.msra.mxu0 0.0
    %1772 = vmatprep.subr.mxu0 0.0
    %1773 = vmatpush2.msra.mxu0 0.0
    %1774 = vmatprep.subr.mxu0 0.0
    %1775 = vmatpush2.msra.mxu0 0.0
    %1776 = vmatprep.subr.mxu0 0.0
    %1777 = vmatpush2.msra.mxu0 0.0
    %1778 = vmatprep.subr.mxu0 0.0
    %1779 = vmatpush2.msra.mxu0 0.0
    %1780 = vmatprep.subr.mxu0 0.0
    %1781 = vmatpush2.msra.mxu0 0.0
    %1782 = vmatprep.subr.mxu0 0.0
    %1783 = vmatpush2.msra.mxu0 0.0
    %1784 = vmatprep.subr.mxu0 0.0
    %1785 = vmatpush2.msra.mxu0 0.0
    %1786 = vmatprep.subr.mxu0 0.0
    %1787 = vmatpush2.msra.mxu0 0.0
    %1788 = vmatprep.subr.mxu0 0.0
    %1789 = vmatpush2.msra.mxu0 0.0
    %1790 = vmatprep.subr.mxu0 0.0
    %1791 = vmatpush2.msra.mxu0 0.0
    %1792 = vmatprep.subr.mxu0 0.0
    %1793 = vmatpush2.msra.mxu0 0.0
    %1794 = vmatprep.subr.mxu0 0.0
    %1795 = vmatpush2.msra.mxu0 0.0
    %1796 = vmatprep.subr.mxu0 0.0
    %1797 = vmatpush2.msra.mxu0 0.0
    %1798 = vmatprep.mubr.f32.mxu0 0.0
    %1799 = vmatmul.mubr.f32.gmra.mxu0 %v199
    %v1800 = vpop.f32.mrf.mxu0
    %v1801 = vadd.f32 0.0, %v1800
    %v1802 = vpop.f32.mrf.mxu0
    %1803 = vmatprep.mubr.f32.mxu0 0.0
    %1804 = vmatmul.mubr.f32.gmra.mxu0 %v202
    %v1805 = vpop.f32.mrf.mxu0
    %v1806 = vadd.f32 0.0, %v1805
    %v1807 = vpop.f32.mrf.mxu0
    %1808 = vmatprep.mubr.f32.mxu0 0.0
    %1809 = vmatmul.mubr.f32.gmra.mxu0 %v205
    %v1810 = vpop.f32.mrf.mxu0
    %v1811 = vadd.f32 0.0, %v1810
    %v1812 = vpop.f32.mrf.mxu0
    %1813 = vmatprep.mubr.f32.mxu0 0.0
    %1814 = vmatmul.mubr.f32.gmra.mxu0 %v208
    %v1815 = vpop.f32.mrf.mxu0
    %v1816 = vadd.f32 0.0, %v1815
    %v1817 = vpop.f32.mrf.mxu0
    %1818 = vdwg.mxu0
    %v1819 = vmul.f32 %v1637, %v126
    %v1820 = vmul.f32 %v1642, %v126
    %v1822 = vsel %vm51, %v1819, 0
    %v1825 = vsel %vm51, %v1820, 0
    %v1828 = vsel %vm51, %v1716, 0
    %v1831 = vsel %vm51, %v1721, 0
    %v1834 = vsel %vm51, %v1726, 0
    %v1837 = vsel %vm51, %v1731, 0
    %1839 = vmatprep.subr.mxu0 0.0
    %1840 = vmatpush1.xpose.msra.mxu0 0.0
    %1841 = vmatprep.subr.mxu0 0.0
    %1842 = vmatpush1.xpose.msra.mxu0 0.0
    %1843 = vmatprep.subr.mxu0 0.0
    %1844 = vmatpush1.xpose.msra.mxu0 0.0
    %1845 = vmatprep.subr.mxu0 0.0
    %1846 = vmatpush1.xpose.msra.mxu0 0.0
    %1847 = vmatprep.subr.mxu0 0.0
    %1848 = vmatpush1.xpose.msra.mxu0 0.0
    %1849 = vmatprep.subr.mxu0 0.0
    %1850 = vmatpush1.xpose.msra.mxu0 0.0
    %1851 = vmatprep.subr.mxu0 0.0
    %1852 = vmatpush1.xpose.msra.mxu0 0.0
    %1853 = vmatprep.subr.mxu0 0.0
    %1854 = vmatpush1.xpose.msra.mxu0 0.0
    %1855 = vmatprep.subr.mxu0 0.0
    %1856 = vmatpush1.xpose.msra.mxu0 0.0
    %1857 = vmatprep.subr.mxu0 0.0
    %1858 = vmatpush1.xpose.msra.mxu0 0.0
    %1859 = vmatprep.subr.mxu0 0.0
    %1860 = vmatpush1.xpose.msra.mxu0 0.0
    %1861 = vmatprep.subr.mxu0 0.0
    %1862 = vmatpush1.xpose.msra.mxu0 0.0
    %1863 = vmatprep.subr.mxu0 0.0
    %1864 = vmatpush1.xpose.msra.mxu0 %v1837
    %1865 = vmatprep.subr.mxu0 0.0
    %1866 = vmatpush1.xpose.msra.mxu0 %v1834
    %1867 = vmatprep.subr.mxu0 0.0
    %1868 = vmatpush1.xpose.msra.mxu0 %v1831
    %1869 = vmatprep.subr.mxu0 0.0
    %1870 = vmatpush1.xpose.msra.mxu0 %v1828
    %1871 = vmatprep.subr.mxu0 0.0
    %1872 = vmatpush2.xpose.msra.mxu0 0.0
    %1873 = vmatprep.subr.mxu0 0.0
    %1874 = vmatpush2.xpose.msra.mxu0 0.0
    %1875 = vmatprep.subr.mxu0 0.0
    %1876 = vmatpush2.xpose.msra.mxu0 0.0
    %1877 = vmatprep.subr.mxu0 0.0
    %1878 = vmatpush2.xpose.msra.mxu0 0.0
    %1879 = vmatprep.subr.mxu0 0.0
    %1880 = vmatpush2.xpose.msra.mxu0 0.0
    %1881 = vmatprep.subr.mxu0 0.0
    %1882 = vmatpush2.xpose.msra.mxu0 0.0
    %1883 = vmatprep.subr.mxu0 0.0
    %1884 = vmatpush2.xpose.msra.mxu0 0.0
    %1885 = vmatprep.subr.mxu0 0.0
    %1886 = vmatpush2.xpose.msra.mxu0 0.0
    %1887 = vmatprep.subr.mxu0 0.0
    %1888 = vmatpush2.xpose.msra.mxu0 0.0
    %1889 = vmatprep.subr.mxu0 0.0
    %1890 = vmatpush2.xpose.msra.mxu0 0.0
    %1891 = vmatprep.subr.mxu0 0.0
    %1892 = vmatpush2.xpose.msra.mxu0 0.0
    %1893 = vmatprep.subr.mxu0 0.0
    %1894 = vmatpush2.xpose.msra.mxu0 0.0
    %1895 = vmatprep.subr.mxu0 0.0
    %1896 = vmatpush2.xpose.msra.mxu0 0.0
    %1897 = vmatprep.subr.mxu0 0.0
    %1898 = vmatpush2.xpose.msra.mxu0 0.0
    %1899 = vmatprep.subr.mxu0 0.0
    %1900 = vmatpush2.xpose.msra.mxu0 0.0
    %1901 = vmatprep.subr.mxu0 0.0
    %1902 = vmatpush2.xpose.msra.mxu0 0.0
    %1903 = vmatprep.mubr.f32.mxu0 0.0
    %1904 = vmatmul.mubr.f32.gmra.mxu0 %v1822
    %v1905 = vpop.f32.mrf.mxu0
    %v1906 = vadd.f32 0.0, %v1905
    %v1907 = vpop.f32.mrf.mxu0
    %1908 = vmatprep.mubr.f32.mxu0 0.0
    %1909 = vmatmul.mubr.f32.gmra.mxu0 %v1825
    %v1910 = vpop.f32.mrf.mxu0
    %v1911 = vadd.f32 0.0, %v1910
    %v1912 = vpop.f32.mrf.mxu0
    %1913 = vdwg.mxu0
    %v1914 = vmul.f32 %v1906, 0.35355338
    %v1915 = vmul.f32 %v1911, 0.35355338
    %v1916 = vadd.f32 %v1914, %v1543
    %v1917 = vadd.f32 %v1915, %v1544
    %v1918 = vsel %vm51, %v1916, -inf
    %1919 = vmax.xlane.f32.xlu0 %v1918
    %v1920 = vpop.xlane.xlu0 %1919
    %v1921 = vsel %vm51, %v1917, -inf
    %1922 = vmax.xlane.f32.xlu0 %v1921
    %v1923 = vpop.xlane.xlu0 %1922
    %v1924 = vsub.f32 %v1916, %v1920
    %v1925 = vsub.f32 %v1917, %v1923
    %v1926 = vmul.f32 %v1924, 1.442695
    %v1927 = vpow.pop %v1926
    %v1928 = vmul.f32 %v1925, 1.442695
    %v1929 = vpow.pop %v1928
    %v1930 = vsel %vm51, %v1927, 0.0
    %1931 = vadd.xlane.f32.xlu0 %v1930
    %v1932 = vpop.xlane.xlu0 %1931
    %v1933 = vsel %vm51, %v1929, 0.0
    %1934 = vadd.xlane.f32.xlu0 %v1933
    %v1935 = vpop.xlane.xlu0 %1934
    %v1936 = vrcp.pop %v1932
    %v1937 = vmul.f32 %v1927, %v1936
    %v1938 = vrcp.pop %v1935
    %v1939 = vmul.f32 %v1929, %v1938
    %v1940 = vmul.f32 %v1637, %v129
    %v1941 = vmul.f32 %v1642, %v129
    %v1943 = vsel %vm51, %v1940, 0
    %v1946 = vsel %vm51, %v1941, 0
    %1948 = vmatprep.subr.mxu0 0.0
    %1949 = vmatpush1.xpose.msra.mxu0 0.0
    %1950 = vmatprep.subr.mxu0 0.0
    %1951 = vmatpush1.xpose.msra.mxu0 0.0
    %1952 = vmatprep.subr.mxu0 0.0
    %1953 = vmatpush1.xpose.msra.mxu0 0.0
    %1954 = vmatprep.subr.mxu0 0.0
    %1955 = vmatpush1.xpose.msra.mxu0 0.0
    %1956 = vmatprep.subr.mxu0 0.0
    %1957 = vmatpush1.xpose.msra.mxu0 0.0
    %1958 = vmatprep.subr.mxu0 0.0
    %1959 = vmatpush1.xpose.msra.mxu0 0.0
    %1960 = vmatprep.subr.mxu0 0.0
    %1961 = vmatpush1.xpose.msra.mxu0 0.0
    %1962 = vmatprep.subr.mxu0 0.0
    %1963 = vmatpush1.xpose.msra.mxu0 0.0
    %1964 = vmatprep.subr.mxu0 0.0
    %1965 = vmatpush1.xpose.msra.mxu0 0.0
    %1966 = vmatprep.subr.mxu0 0.0
    %1967 = vmatpush1.xpose.msra.mxu0 0.0
    %1968 = vmatprep.subr.mxu0 0.0
    %1969 = vmatpush1.xpose.msra.mxu0 0.0
    %1970 = vmatprep.subr.mxu0 0.0
    %1971 = vmatpush1.xpose.msra.mxu0 0.0
    %1972 = vmatprep.subr.mxu0 0.0
    %1973 = vmatpush1.xpose.msra.mxu0 %v1837
    %1974 = vmatprep.subr.mxu0 0.0
    %1975 = vmatpush1.xpose.msra.mxu0 %v1834
    %1976 = vmatprep.subr.mxu0 0.0
    %1977 = vmatpush1.xpose.msra.mxu0 %v1831
    %1978 = vmatprep.subr.mxu0 0.0
    %1979 = vmatpush1.xpose.msra.mxu0 %v1828
    %1980 = vmatprep.subr.mxu0 0.0
    %1981 = vmatpush2.xpose.msra.mxu0 0.0
    %1982 = vmatprep.subr.mxu0 0.0
    %1983 = vmatpush2.xpose.msra.mxu0 0.0
    %1984 = vmatprep.subr.mxu0 0.0
    %1985 = vmatpush2.xpose.msra.mxu0 0.0
    %1986 = vmatprep.subr.mxu0 0.0
    %1987 = vmatpush2.xpose.msra.mxu0 0.0
    %1988 = vmatprep.subr.mxu0 0.0
    %1989 = vmatpush2.xpose.msra.mxu0 0.0
    %1990 = vmatprep.subr.mxu0 0.0
    %1991 = vmatpush2.xpose.msra.mxu0 0.0
    %1992 = vmatprep.subr.mxu0 0.0
    %1993 = vmatpush2.xpose.msra.mxu0 0.0
    %1994 = vmatprep.subr.mxu0 0.0
    %1995 = vmatpush2.xpose.msra.mxu0 0.0
    %1996 = vmatprep.subr.mxu0 0.0
    %1997 = vmatpush2.xpose.msra.mxu0 0.0
    %1998 = vmatprep.subr.mxu0 0.0
    %1999 = vmatpush2.xpose.msra.mxu0 0.0
    %2000 = vmatprep.subr.mxu0 0.0
    %2001 = vmatpush2.xpose.msra.mxu0 0.0
    %2002 = vmatprep.subr.mxu0 0.0
    %2003 = vmatpush2.xpose.msra.mxu0 0.0
    %2004 = vmatprep.subr.mxu0 0.0
    %2005 = vmatpush2.xpose.msra.mxu0 0.0
    %2006 = vmatprep.subr.mxu0 0.0
    %2007 = vmatpush2.xpose.msra.mxu0 0.0
    %2008 = vmatprep.subr.mxu0 0.0
    %2009 = vmatpush2.xpose.msra.mxu0 0.0
    %2010 = vmatprep.subr.mxu0 0.0
    %2011 = vmatpush2.xpose.msra.mxu0 0.0
    %2012 = vmatprep.mubr.f32.mxu0 0.0
    %2013 = vmatmul.mubr.f32.gmra.mxu0 %v1943
    %v2014 = vpop.f32.mrf.mxu0
    %v2015 = vadd.f32 0.0, %v2014
    %v2016 = vpop.f32.mrf.mxu0
    %2017 = vmatprep.mubr.f32.mxu0 0.0
    %2018 = vmatmul.mubr.f32.gmra.mxu0 %v1946
    %v2019 = vpop.f32.mrf.mxu0
    %v2020 = vadd.f32 0.0, %v2019
    %v2021 = vpop.f32.mrf.mxu0
    %2022 = vdwg.mxu0
    %v2023 = vmul.f32 %v2015, 0.35355338
    %v2024 = vmul.f32 %v2020, 0.35355338
    %v2025 = vadd.f32 %v2023, %v1543
    %v2026 = vadd.f32 %v2024, %v1544
    %v2027 = vsel %vm51, %v2025, -inf
    %2028 = vmax.xlane.f32.xlu0 %v2027
    %v2029 = vpop.xlane.xlu0 %2028
    %v2030 = vsel %vm51, %v2026, -inf
    %2031 = vmax.xlane.f32.xlu0 %v2030
    %v2032 = vpop.xlane.xlu0 %2031
    %v2033 = vsub.f32 %v2025, %v2029
    %v2034 = vsub.f32 %v2026, %v2032
    %v2035 = vmul.f32 %v2033, 1.442695
    %v2036 = vpow.pop %v2035
    %v2037 = vmul.f32 %v2034, 1.442695
    %v2038 = vpow.pop %v2037
    %v2039 = vsel %vm51, %v2036, 0.0
    %2040 = vadd.xlane.f32.xlu0 %v2039
    %v2041 = vpop.xlane.xlu0 %2040
    %v2042 = vsel %vm51, %v2038, 0.0
    %2043 = vadd.xlane.f32.xlu0 %v2042
    %v2044 = vpop.xlane.xlu0 %2043
    %v2045 = vrcp.pop %v2041
    %v2046 = vmul.f32 %v2036, %v2045
    %v2047 = vrcp.pop %v2044
    %v2048 = vmul.f32 %v2038, %v2047
    %2053 = vrot.lane.b32.xlu0 %v1801, 96
    %v2054 = vpop.permute.xlu0 %2053
    %2055 = vrot.lane.b32.xlu0 %v1806, 96
    %v2056 = vpop.permute.xlu0 %2055
    %2057 = vrot.lane.b32.xlu0 %v1811, 96
    %v2058 = vpop.permute.xlu0 %2057
    %2059 = vrot.lane.b32.xlu0 %v1816, 96
    %v2060 = vpop.permute.xlu0 %2059
    %v2066 = vsel %vm51, %v2046, 0
    %v2069 = vsel %vm51, %v2048, 0
    %2071 = vmatprep.subr.mxu0 0.0
    %2072 = vmatpush1.msra.mxu0 0.0
    %2073 = vmatprep.subr.mxu0 0.0
    %2074 = vmatpush1.msra.mxu0 0.0
    %2075 = vmatprep.subr.mxu0 0.0
    %2076 = vmatpush1.msra.mxu0 0.0
    %2077 = vmatprep.subr.mxu0 0.0
    %2078 = vmatpush1.msra.mxu0 0.0
    %2079 = vmatprep.subr.mxu0 0.0
    %2080 = vmatpush1.msra.mxu0 0.0
    %2081 = vmatprep.subr.mxu0 0.0
    %2082 = vmatpush1.msra.mxu0 0.0
    %2083 = vmatprep.subr.mxu0 0.0
    %2084 = vmatpush1.msra.mxu0 0.0
    %2085 = vmatprep.subr.mxu0 0.0
    %2086 = vmatpush1.msra.mxu0 0.0
    %2087 = vmatprep.subr.mxu0 0.0
    %2088 = vmatpush1.msra.mxu0 0.0
    %2089 = vmatprep.subr.mxu0 0.0
    %2090 = vmatpush1.msra.mxu0 0.0
    %2091 = vmatprep.subr.mxu0 0.0
    %2092 = vmatpush1.msra.mxu0 0.0
    %2093 = vmatprep.subr.mxu0 0.0
    %2094 = vmatpush1.msra.mxu0 0.0
    %2095 = vmatprep.subr.mxu0 0.0
    %2096 = vmatpush1.msra.mxu0 %v2060
    %2097 = vmatprep.subr.mxu0 0.0
    %2098 = vmatpush1.msra.mxu0 %v2058
    %2099 = vmatprep.subr.mxu0 0.0
    %2100 = vmatpush1.msra.mxu0 %v2056
    %2101 = vmatprep.subr.mxu0 0.0
    %2102 = vmatpush1.msra.mxu0 %v2054
    %2103 = vmatprep.subr.mxu0 0.0
    %2104 = vmatpush2.msra.mxu0 0.0
    %2105 = vmatprep.subr.mxu0 0.0
    %2106 = vmatpush2.msra.mxu0 0.0
    %2107 = vmatprep.subr.mxu0 0.0
    %2108 = vmatpush2.msra.mxu0 0.0
    %2109 = vmatprep.subr.mxu0 0.0
    %2110 = vmatpush2.msra.mxu0 0.0
    %2111 = vmatprep.subr.mxu0 0.0
    %2112 = vmatpush2.msra.mxu0 0.0
    %2113 = vmatprep.subr.mxu0 0.0
    %2114 = vmatpush2.msra.mxu0 0.0
    %2115 = vmatprep.subr.mxu0 0.0
    %2116 = vmatpush2.msra.mxu0 0.0
    %2117 = vmatprep.subr.mxu0 0.0
    %2118 = vmatpush2.msra.mxu0 0.0
    %2119 = vmatprep.subr.mxu0 0.0
    %2120 = vmatpush2.msra.mxu0 0.0
    %2121 = vmatprep.subr.mxu0 0.0
    %2122 = vmatpush2.msra.mxu0 0.0
    %2123 = vmatprep.subr.mxu0 0.0
    %2124 = vmatpush2.msra.mxu0 0.0
    %2125 = vmatprep.subr.mxu0 0.0
    %2126 = vmatpush2.msra.mxu0 0.0
    %2127 = vmatprep.subr.mxu0 0.0
    %2128 = vmatpush2.msra.mxu0 0.0
    %2129 = vmatprep.subr.mxu0 0.0
    %2130 = vmatpush2.msra.mxu0 0.0
    %2131 = vmatprep.subr.mxu0 0.0
    %2132 = vmatpush2.msra.mxu0 0.0
    %2133 = vmatprep.subr.mxu0 0.0
    %2134 = vmatpush2.msra.mxu0 0.0
    %2135 = vmatprep.mubr.f32.mxu0 0.0
    %2136 = vmatmul.mubr.f32.gmra.mxu0 %v2066
    %v2137 = vpop.f32.mrf.mxu0
    %v2138 = vadd.f32 0.0, %v2137
    %v2139 = vpop.f32.mrf.mxu0
    %2140 = vmatprep.mubr.f32.mxu0 0.0
    %2141 = vmatmul.mubr.f32.gmra.mxu0 %v2069
    %v2142 = vpop.f32.mrf.mxu0
    %v2143 = vadd.f32 0.0, %v2142
    %v2144 = vpop.f32.mrf.mxu0
    %2145 = vdwg.mxu0
    %v2147 = vsel %vm51, %v1937, 0
    %v2150 = vsel %vm51, %v1939, 0
    %2152 = vmatprep.subr.mxu0 0.0
    %2153 = vmatpush1.msra.mxu0 0.0
    %2154 = vmatprep.subr.mxu0 0.0
    %2155 = vmatpush1.msra.mxu0 0.0
    %2156 = vmatprep.subr.mxu0 0.0
    %2157 = vmatpush1.msra.mxu0 0.0
    %2158 = vmatprep.subr.mxu0 0.0
    %2159 = vmatpush1.msra.mxu0 0.0
    %2160 = vmatprep.subr.mxu0 0.0
    %2161 = vmatpush1.msra.mxu0 0.0
    %2162 = vmatprep.subr.mxu0 0.0
    %2163 = vmatpush1.msra.mxu0 0.0
    %2164 = vmatprep.subr.mxu0 0.0
    %2165 = vmatpush1.msra.mxu0 0.0
    %2166 = vmatprep.subr.mxu0 0.0
    %2167 = vmatpush1.msra.mxu0 0.0
    %2168 = vmatprep.subr.mxu0 0.0
    %2169 = vmatpush1.msra.mxu0 0.0
    %2170 = vmatprep.subr.mxu0 0.0
    %2171 = vmatpush1.msra.mxu0 0.0
    %2172 = vmatprep.subr.mxu0 0.0
    %2173 = vmatpush1.msra.mxu0 0.0
    %2174 = vmatprep.subr.mxu0 0.0
    %2175 = vmatpush1.msra.mxu0 0.0
    %2176 = vmatprep.subr.mxu0 0.0
    %2177 = vmatpush1.msra.mxu0 %v1816
    %2178 = vmatprep.subr.mxu0 0.0
    %2179 = vmatpush1.msra.mxu0 %v1811
    %2180 = vmatprep.subr.mxu0 0.0
    %2181 = vmatpush1.msra.mxu0 %v1806
    %2182 = vmatprep.subr.mxu0 0.0
    %2183 = vmatpush1.msra.mxu0 %v1801
    %2184 = vmatprep.subr.mxu0 0.0
    %2185 = vmatpush2.msra.mxu0 0.0
    %2186 = vmatprep.subr.mxu0 0.0
    %2187 = vmatpush2.msra.mxu0 0.0
    %2188 = vmatprep.subr.mxu0 0.0
    %2189 = vmatpush2.msra.mxu0 0.0
    %2190 = vmatprep.subr.mxu0 0.0
    %2191 = vmatpush2.msra.mxu0 0.0
    %2192 = vmatprep.subr.mxu0 0.0
    %2193 = vmatpush2.msra.mxu0 0.0
    %2194 = vmatprep.subr.mxu0 0.0
    %2195 = vmatpush2.msra.mxu0 0.0
    %2196 = vmatprep.subr.mxu0 0.0
    %2197 = vmatpush2.msra.mxu0 0.0
    %2198 = vmatprep.subr.mxu0 0.0
    %2199 = vmatpush2.msra.mxu0 0.0
    %2200 = vmatprep.subr.mxu0 0.0
    %2201 = vmatpush2.msra.mxu0 0.0
    %2202 = vmatprep.subr.mxu0 0.0
    %2203 = vmatpush2.msra.mxu0 0.0
    %2204 = vmatprep.subr.mxu0 0.0
    %2205 = vmatpush2.msra.mxu0 0.0
    %2206 = vmatprep.subr.mxu0 0.0
    %2207 = vmatpush2.msra.mxu0 0.0
    %2208 = vmatprep.subr.mxu0 0.0
    %2209 = vmatpush2.msra.mxu0 0.0
    %2210 = vmatprep.subr.mxu0 0.0
    %2211 = vmatpush2.msra.mxu0 0.0
    %2212 = vmatprep.subr.mxu0 0.0
    %2213 = vmatpush2.msra.mxu0 0.0
    %2214 = vmatprep.subr.mxu0 0.0
    %2215 = vmatpush2.msra.mxu0 0.0
    %2216 = vmatprep.mubr.f32.mxu0 0.0
    %2217 = vmatmul.mubr.f32.gmra.mxu0 %v2147
    %v2218 = vpop.f32.mrf.mxu0
    %v2219 = vadd.f32 %v2138, %v2218
    %v2220 = vpop.f32.mrf.mxu0
    %2221 = vmatprep.mubr.f32.mxu0 0.0
    %2222 = vmatmul.mubr.f32.gmra.mxu0 %v2150
    %v2223 = vpop.f32.mrf.mxu0
    %v2224 = vadd.f32 %v2143, %v2223
    %v2225 = vpop.f32.mrf.mxu0
    %2226 = vdwg.mxu0
    %v2227 = vmul.f32 %v1637, %v132
    %v2228 = vmul.f32 %v1642, %v132
    %v2230 = vsel %vm51, %v2227, 0
    %v2233 = vsel %vm51, %v2228, 0
    %2235 = vmatprep.subr.mxu0 0.0
    %2236 = vmatpush1.xpose.msra.mxu0 0.0
    %2237 = vmatprep.subr.mxu0 0.0
    %2238 = vmatpush1.xpose.msra.mxu0 0.0
    %2239 = vmatprep.subr.mxu0 0.0
    %2240 = vmatpush1.xpose.msra.mxu0 0.0
    %2241 = vmatprep.subr.mxu0 0.0
    %2242 = vmatpush1.xpose.msra.mxu0 0.0
    %2243 = vmatprep.subr.mxu0 0.0
    %2244 = vmatpush1.xpose.msra.mxu0 0.0
    %2245 = vmatprep.subr.mxu0 0.0
    %2246 = vmatpush1.xpose.msra.mxu0 0.0
    %2247 = vmatprep.subr.mxu0 0.0
    %2248 = vmatpush1.xpose.msra.mxu0 0.0
    %2249 = vmatprep.subr.mxu0 0.0
    %2250 = vmatpush1.xpose.msra.mxu0 0.0
    %2251 = vmatprep.subr.mxu0 0.0
    %2252 = vmatpush1.xpose.msra.mxu0 0.0
    %2253 = vmatprep.subr.mxu0 0.0
    %2254 = vmatpush1.xpose.msra.mxu0 0.0
    %2255 = vmatprep.subr.mxu0 0.0
    %2256 = vmatpush1.xpose.msra.mxu0 0.0
    %2257 = vmatprep.subr.mxu0 0.0
    %2258 = vmatpush1.xpose.msra.mxu0 0.0
    %2259 = vmatprep.subr.mxu0 0.0
    %2260 = vmatpush1.xpose.msra.mxu0 %v1837
    %2261 = vmatprep.subr.mxu0 0.0
    %2262 = vmatpush1.xpose.msra.mxu0 %v1834
    %2263 = vmatprep.subr.mxu0 0.0
    %2264 = vmatpush1.xpose.msra.mxu0 %v1831
    %2265 = vmatprep.subr.mxu0 0.0
    %2266 = vmatpush1.xpose.msra.mxu0 %v1828
    %2267 = vmatprep.subr.mxu0 0.0
    %2268 = vmatpush2.xpose.msra.mxu0 0.0
    %2269 = vmatprep.subr.mxu0 0.0
    %2270 = vmatpush2.xpose.msra.mxu0 0.0
    %2271 = vmatprep.subr.mxu0 0.0
    %2272 = vmatpush2.xpose.msra.mxu0 0.0
    %2273 = vmatprep.subr.mxu0 0.0
    %2274 = vmatpush2.xpose.msra.mxu0 0.0
    %2275 = vmatprep.subr.mxu0 0.0
    %2276 = vmatpush2.xpose.msra.mxu0 0.0
    %2277 = vmatprep.subr.mxu0 0.0
    %2278 = vmatpush2.xpose.msra.mxu0 0.0
    %2279 = vmatprep.subr.mxu0 0.0
    %2280 = vmatpush2.xpose.msra.mxu0 0.0
    %2281 = vmatprep.subr.mxu0 0.0
    %2282 = vmatpush2.xpose.msra.mxu0 0.0
    %2283 = vmatprep.subr.mxu0 0.0
    %2284 = vmatpush2.xpose.msra.mxu0 0.0
    %2285 = vmatprep.subr.mxu0 0.0
    %2286 = vmatpush2.xpose.msra.mxu0 0.0
    %2287 = vmatprep.subr.mxu0 0.0
    %2288 = vmatpush2.xpose.msra.mxu0 0.0
    %2289 = vmatprep.subr.mxu0 0.0
    %2290 = vmatpush2.xpose.msra.mxu0 0.0
    %2291 = vmatprep.subr.mxu0 0.0
    %2292 = vmatpush2.xpose.msra.mxu0 0.0
    %2293 = vmatprep.subr.mxu0 0.0
    %2294 = vmatpush2.xpose.msra.mxu0 0.0
    %2295 = vmatprep.subr.mxu0 0.0
    %2296 = vmatpush2.xpose.msra.mxu0 0.0
    %2297 = vmatprep.subr.mxu0 0.0
    %2298 = vmatpush2.xpose.msra.mxu0 0.0
    %2299 = vmatprep.mubr.f32.mxu0 0.0
    %2300 = vmatmul.mubr.f32.gmra.mxu0 %v2230
    %v2301 = vpop.f32.mrf.mxu0
    %v2302 = vadd.f32 0.0, %v2301
    %v2303 = vpop.f32.mrf.mxu0
    %2304 = vmatprep.mubr.f32.mxu0 0.0
    %2305 = vmatmul.mubr.f32.gmra.mxu0 %v2233
    %v2306 = vpop.f32.mrf.mxu0
    %v2307 = vadd.f32 0.0, %v2306
    %v2308 = vpop.f32.mrf.mxu0
    %2309 = vdwg.mxu0
    %v2310 = vmul.f32 %v2302, 0.35355338
    %v2311 = vmul.f32 %v2307, 0.35355338
    %v2312 = vadd.f32 %v2310, %v1543
    %v2313 = vadd.f32 %v2311, %v1544
    %v2314 = vsel %vm51, %v2312, -inf
    %2315 = vmax.xlane.f32.xlu0 %v2314
    %v2316 = vpop.xlane.xlu0 %2315
    %v2317 = vsel %vm51, %v2313, -inf
    %2318 = vmax.xlane.f32.xlu0 %v2317
    %v2319 = vpop.xlane.xlu0 %2318
    %v2320 = vsub.f32 %v2312, %v2316
    %v2321 = vsub.f32 %v2313, %v2319
    %v2322 = vmul.f32 %v2320, 1.442695
    %v2323 = vpow.pop %v2322
    %v2324 = vmul.f32 %v2321, 1.442695
    %v2325 = vpow.pop %v2324
    %v2326 = vsel %vm51, %v2323, 0.0
    %2327 = vadd.xlane.f32.xlu0 %v2326
    %v2328 = vpop.xlane.xlu0 %2327
    %v2329 = vsel %vm51, %v2325, 0.0
    %2330 = vadd.xlane.f32.xlu0 %v2329
    %v2331 = vpop.xlane.xlu0 %2330
    %v2332 = vrcp.pop %v2328
    %v2333 = vmul.f32 %v2323, %v2332
    %v2334 = vrcp.pop %v2331
    %v2335 = vmul.f32 %v2325, %v2334
    %2336 = vrot.lane.b32.xlu0 %v1801, 64
    %v2337 = vpop.permute.xlu0 %2336
    %2338 = vrot.lane.b32.xlu0 %v1806, 64
    %v2339 = vpop.permute.xlu0 %2338
    %2340 = vrot.lane.b32.xlu0 %v1811, 64
    %v2341 = vpop.permute.xlu0 %2340
    %2342 = vrot.lane.b32.xlu0 %v1816, 64
    %v2343 = vpop.permute.xlu0 %2342
    %v2349 = vsel %vm51, %v2333, 0
    %v2352 = vsel %vm51, %v2335, 0
    %2354 = vmatprep.subr.mxu0 0.0
    %2355 = vmatpush1.msra.mxu0 0.0
    %2356 = vmatprep.subr.mxu0 0.0
    %2357 = vmatpush1.msra.mxu0 0.0
    %2358 = vmatprep.subr.mxu0 0.0
    %2359 = vmatpush1.msra.mxu0 0.0
    %2360 = vmatprep.subr.mxu0 0.0
    %2361 = vmatpush1.msra.mxu0 0.0
    %2362 = vmatprep.subr.mxu0 0.0
    %2363 = vmatpush1.msra.mxu0 0.0
    %2364 = vmatprep.subr.mxu0 0.0
    %2365 = vmatpush1.msra.mxu0 0.0
    %2366 = vmatprep.subr.mxu0 0.0
    %2367 = vmatpush1.msra.mxu0 0.0
    %2368 = vmatprep.subr.mxu0 0.0
    %2369 = vmatpush1.msra.mxu0 0.0
    %2370 = vmatprep.subr.mxu0 0.0
    %2371 = vmatpush1.msra.mxu0 0.0
    %2372 = vmatprep.subr.mxu0 0.0
    %2373 = vmatpush1.msra.mxu0 0.0
    %2374 = vmatprep.subr.mxu0 0.0
    %2375 = vmatpush1.msra.mxu0 0.0
    %2376 = vmatprep.subr.mxu0 0.0
    %2377 = vmatpush1.msra.mxu0 0.0
    %2378 = vmatprep.subr.mxu0 0.0
    %2379 = vmatpush1.msra.mxu0 %v2343
    %2380 = vmatprep.subr.mxu0 0.0
    %2381 = vmatpush1.msra.mxu0 %v2341
    %2382 = vmatprep.subr.mxu0 0.0
    %2383 = vmatpush1.msra.mxu0 %v2339
    %2384 = vmatprep.subr.mxu0 0.0
    %2385 = vmatpush1.msra.mxu0 %v2337
    %2386 = vmatprep.subr.mxu0 0.0
    %2387 = vmatpush2.msra.mxu0 0.0
    %2388 = vmatprep.subr.mxu0 0.0
    %2389 = vmatpush2.msra.mxu0 0.0
    %2390 = vmatprep.subr.mxu0 0.0
    %2391 = vmatpush2.msra.mxu0 0.0
    %2392 = vmatprep.subr.mxu0 0.0
    %2393 = vmatpush2.msra.mxu0 0.0
    %2394 = vmatprep.subr.mxu0 0.0
    %2395 = vmatpush2.msra.mxu0 0.0
    %2396 = vmatprep.subr.mxu0 0.0
    %2397 = vmatpush2.msra.mxu0 0.0
    %2398 = vmatprep.subr.mxu0 0.0
    %2399 = vmatpush2.msra.mxu0 0.0
    %2400 = vmatprep.subr.mxu0 0.0
    %2401 = vmatpush2.msra.mxu0 0.0
    %2402 = vmatprep.subr.mxu0 0.0
    %2403 = vmatpush2.msra.mxu0 0.0
    %2404 = vmatprep.subr.mxu0 0.0
    %2405 = vmatpush2.msra.mxu0 0.0
    %2406 = vmatprep.subr.mxu0 0.0
    %2407 = vmatpush2.msra.mxu0 0.0
    %2408 = vmatprep.subr.mxu0 0.0
    %2409 = vmatpush2.msra.mxu0 0.0
    %2410 = vmatprep.subr.mxu0 0.0
    %2411 = vmatpush2.msra.mxu0 0.0
    %2412 = vmatprep.subr.mxu0 0.0
    %2413 = vmatpush2.msra.mxu0 0.0
    %2414 = vmatprep.subr.mxu0 0.0
    %2415 = vmatpush2.msra.mxu0 0.0
    %2416 = vmatprep.subr.mxu0 0.0
    %2417 = vmatpush2.msra.mxu0 0.0
    %2418 = vmatprep.mubr.f32.mxu0 0.0
    %2419 = vmatmul.mubr.f32.gmra.mxu0 %v2349
    %v2420 = vpop.f32.mrf.mxu0
    %v2421 = vadd.f32 0.0, %v2420
    %v2422 = vpop.f32.mrf.mxu0
    %2423 = vmatprep.mubr.f32.mxu0 0.0
    %2424 = vmatmul.mubr.f32.gmra.mxu0 %v2352
    %v2425 = vpop.f32.mrf.mxu0
    %v2426 = vadd.f32 0.0, %v2425
    %v2427 = vpop.f32.mrf.mxu0
    %2428 = vdwg.mxu0
    %v2429 = vadd.f32 %v2219, %v2421
    %v2430 = vadd.f32 %v2224, %v2426
    %v2431 = vmul.f32 %v1637, %v135
    %v2432 = vmul.f32 %v1642, %v135
    %v2434 = vsel %vm51, %v2431, 0
    %v2437 = vsel %vm51, %v2432, 0
    %2439 = vmatprep.subr.mxu0 0.0
    %2440 = vmatpush1.xpose.msra.mxu0 0.0
    %2441 = vmatprep.subr.mxu0 0.0
    %2442 = vmatpush1.xpose.msra.mxu0 0.0
    %2443 = vmatprep.subr.mxu0 0.0
    %2444 = vmatpush1.xpose.msra.mxu0 0.0
    %2445 = vmatprep.subr.mxu0 0.0
    %2446 = vmatpush1.xpose.msra.mxu0 0.0
    %2447 = vmatprep.subr.mxu0 0.0
    %2448 = vmatpush1.xpose.msra.mxu0 0.0
    %2449 = vmatprep.subr.mxu0 0.0
    %2450 = vmatpush1.xpose.msra.mxu0 0.0
    %2451 = vmatprep.subr.mxu0 0.0
    %2452 = vmatpush1.xpose.msra.mxu0 0.0
    %2453 = vmatprep.subr.mxu0 0.0
    %2454 = vmatpush1.xpose.msra.mxu0 0.0
    %2455 = vmatprep.subr.mxu0 0.0
    %2456 = vmatpush1.xpose.msra.mxu0 0.0
    %2457 = vmatprep.subr.mxu0 0.0
    %2458 = vmatpush1.xpose.msra.mxu0 0.0
    %2459 = vmatprep.subr.mxu0 0.0
    %2460 = vmatpush1.xpose.msra.mxu0 0.0
    %2461 = vmatprep.subr.mxu0 0.0
    %2462 = vmatpush1.xpose.msra.mxu0 0.0
    %2463 = vmatprep.subr.mxu0 0.0
    %2464 = vmatpush1.xpose.msra.mxu0 %v1837
    %2465 = vmatprep.subr.mxu0 0.0
    %2466 = vmatpush1.xpose.msra.mxu0 %v1834
    %2467 = vmatprep.subr.mxu0 0.0
    %2468 = vmatpush1.xpose.msra.mxu0 %v1831
    %2469 = vmatprep.subr.mxu0 0.0
    %2470 = vmatpush1.xpose.msra.mxu0 %v1828
    %2471 = vmatprep.subr.mxu0 0.0
    %2472 = vmatpush2.xpose.msra.mxu0 0.0
    %2473 = vmatprep.subr.mxu0 0.0
    %2474 = vmatpush2.xpose.msra.mxu0 0.0
    %2475 = vmatprep.subr.mxu0 0.0
    %2476 = vmatpush2.xpose.msra.mxu0 0.0
    %2477 = vmatprep.subr.mxu0 0.0
    %2478 = vmatpush2.xpose.msra.mxu0 0.0
    %2479 = vmatprep.subr.mxu0 0.0
    %2480 = vmatpush2.xpose.msra.mxu0 0.0
    %2481 = vmatprep.subr.mxu0 0.0
    %2482 = vmatpush2.xpose.msra.mxu0 0.0
    %2483 = vmatprep.subr.mxu0 0.0
    %2484 = vmatpush2.xpose.msra.mxu0 0.0
    %2485 = vmatprep.subr.mxu0 0.0
    %2486 = vmatpush2.xpose.msra.mxu0 0.0
    %2487 = vmatprep.subr.mxu0 0.0
    %2488 = vmatpush2.xpose.msra.mxu0 0.0
    %2489 = vmatprep.subr.mxu0 0.0
    %2490 = vmatpush2.xpose.msra.mxu0 0.0
    %2491 = vmatprep.subr.mxu0 0.0
    %2492 = vmatpush2.xpose.msra.mxu0 0.0
    %2493 = vmatprep.subr.mxu0 0.0
    %2494 = vmatpush2.xpose.msra.mxu0 0.0
    %2495 = vmatprep.subr.mxu0 0.0
    %2496 = vmatpush2.xpose.msra.mxu0 0.0
    %2497 = vmatprep.subr.mxu0 0.0
    %2498 = vmatpush2.xpose.msra.mxu0 0.0
    %2499 = vmatprep.subr.mxu0 0.0
    %2500 = vmatpush2.xpose.msra.mxu0 0.0
    %2501 = vmatprep.subr.mxu0 0.0
    %2502 = vmatpush2.xpose.msra.mxu0 0.0
    %2503 = vmatprep.mubr.f32.mxu0 0.0
    %2504 = vmatmul.mubr.f32.gmra.mxu0 %v2434
    %v2505 = vpop.f32.mrf.mxu0
    %v2506 = vadd.f32 0.0, %v2505
    %v2507 = vpop.f32.mrf.mxu0
    %2508 = vmatprep.mubr.f32.mxu0 0.0
    %2509 = vmatmul.mubr.f32.gmra.mxu0 %v2437
    %v2510 = vpop.f32.mrf.mxu0
    %v2511 = vadd.f32 0.0, %v2510
    %v2512 = vpop.f32.mrf.mxu0
    %2513 = vdwg.mxu0
    %v2514 = vmul.f32 %v2506, 0.35355338
    %v2515 = vmul.f32 %v2511, 0.35355338
    %v2516 = vadd.f32 %v2514, %v1543
    %v2517 = vadd.f32 %v2515, %v1544
    %v2518 = vsel %vm51, %v2516, -inf
    %2519 = vmax.xlane.f32.xlu0 %v2518
    %v2520 = vpop.xlane.xlu0 %2519
    %v2521 = vsel %vm51, %v2517, -inf
    %2522 = vmax.xlane.f32.xlu0 %v2521
    %v2523 = vpop.xlane.xlu0 %2522
    %v2524 = vsub.f32 %v2516, %v2520
    %v2525 = vsub.f32 %v2517, %v2523
    %v2526 = vmul.f32 %v2524, 1.442695
    %v2527 = vpow.pop %v2526
    %v2528 = vmul.f32 %v2525, 1.442695
    %v2529 = vpow.pop %v2528
    %v2530 = vsel %vm51, %v2527, 0.0
    %2531 = vadd.xlane.f32.xlu0 %v2530
    %v2532 = vpop.xlane.xlu0 %2531
    %v2533 = vsel %vm51, %v2529, 0.0
    %2534 = vadd.xlane.f32.xlu0 %v2533
    %v2535 = vpop.xlane.xlu0 %2534
    %v2536 = vrcp.pop %v2532
    %v2537 = vmul.f32 %v2527, %v2536
    %v2538 = vrcp.pop %v2535
    %v2539 = vmul.f32 %v2529, %v2538
    %2540 = vrot.lane.b32.xlu0 %v1801, 32
    %v2541 = vpop.permute.xlu0 %2540
    %2542 = vrot.lane.b32.xlu0 %v1806, 32
    %v2543 = vpop.permute.xlu0 %2542
    %2544 = vrot.lane.b32.xlu0 %v1811, 32
    %v2545 = vpop.permute.xlu0 %2544
    %2546 = vrot.lane.b32.xlu0 %v1816, 32
    %v2547 = vpop.permute.xlu0 %2546
    %v2553 = vsel %vm51, %v2537, 0
    %v2556 = vsel %vm51, %v2539, 0
    %2558 = vmatprep.subr.mxu0 0.0
    %2559 = vmatpush1.msra.mxu0 0.0
    %2560 = vmatprep.subr.mxu0 0.0
    %2561 = vmatpush1.msra.mxu0 0.0
    %2562 = vmatprep.subr.mxu0 0.0
    %2563 = vmatpush1.msra.mxu0 0.0
    %2564 = vmatprep.subr.mxu0 0.0
    %2565 = vmatpush1.msra.mxu0 0.0
    %2566 = vmatprep.subr.mxu0 0.0
    %2567 = vmatpush1.msra.mxu0 0.0
    %2568 = vmatprep.subr.mxu0 0.0
    %2569 = vmatpush1.msra.mxu0 0.0
    %2570 = vmatprep.subr.mxu0 0.0
    %2571 = vmatpush1.msra.mxu0 0.0
    %2572 = vmatprep.subr.mxu0 0.0
    %2573 = vmatpush1.msra.mxu0 0.0
    %2574 = vmatprep.subr.mxu0 0.0
    %2575 = vmatpush1.msra.mxu0 0.0
    %2576 = vmatprep.subr.mxu0 0.0
    %2577 = vmatpush1.msra.mxu0 0.0
    %2578 = vmatprep.subr.mxu0 0.0
    %2579 = vmatpush1.msra.mxu0 0.0
    %2580 = vmatprep.subr.mxu0 0.0
    %2581 = vmatpush1.msra.mxu0 0.0
    %2582 = vmatprep.subr.mxu0 0.0
    %2583 = vmatpush1.msra.mxu0 %v2547
    %2584 = vmatprep.subr.mxu0 0.0
    %2585 = vmatpush1.msra.mxu0 %v2545
    %2586 = vmatprep.subr.mxu0 0.0
    %2587 = vmatpush1.msra.mxu0 %v2543
    %2588 = vmatprep.subr.mxu0 0.0
    %2589 = vmatpush1.msra.mxu0 %v2541
    %2590 = vmatprep.subr.mxu0 0.0
    %2591 = vmatpush2.msra.mxu0 0.0
    %2592 = vmatprep.subr.mxu0 0.0
    %2593 = vmatpush2.msra.mxu0 0.0
    %2594 = vmatprep.subr.mxu0 0.0
    %2595 = vmatpush2.msra.mxu0 0.0
    %2596 = vmatprep.subr.mxu0 0.0
    %2597 = vmatpush2.msra.mxu0 0.0
    %2598 = vmatprep.subr.mxu0 0.0
    %2599 = vmatpush2.msra.mxu0 0.0
    %2600 = vmatprep.subr.mxu0 0.0
    %2601 = vmatpush2.msra.mxu0 0.0
    %2602 = vmatprep.subr.mxu0 0.0
    %2603 = vmatpush2.msra.mxu0 0.0
    %2604 = vmatprep.subr.mxu0 0.0
    %2605 = vmatpush2.msra.mxu0 0.0
    %2606 = vmatprep.subr.mxu0 0.0
    %2607 = vmatpush2.msra.mxu0 0.0
    %2608 = vmatprep.subr.mxu0 0.0
    %2609 = vmatpush2.msra.mxu0 0.0
    %2610 = vmatprep.subr.mxu0 0.0
    %2611 = vmatpush2.msra.mxu0 0.0
    %2612 = vmatprep.subr.mxu0 0.0
    %2613 = vmatpush2.msra.mxu0 0.0
    %2614 = vmatprep.subr.mxu0 0.0
    %2615 = vmatpush2.msra.mxu0 0.0
    %2616 = vmatprep.subr.mxu0 0.0
    %2617 = vmatpush2.msra.mxu0 0.0
    %2618 = vmatprep.subr.mxu0 0.0
    %2619 = vmatpush2.msra.mxu0 0.0
    %2620 = vmatprep.subr.mxu0 0.0
    %2621 = vmatpush2.msra.mxu0 0.0
    %2622 = vmatprep.mubr.f32.mxu0 0.0
    %2623 = vmatmul.mubr.f32.gmra.mxu0 %v2553
    %v2624 = vpop.f32.mrf.mxu0
    %v2625 = vadd.f32 0.0, %v2624
    %v2626 = vpop.f32.mrf.mxu0
    %2627 = vmatprep.mubr.f32.mxu0 0.0
    %2628 = vmatmul.mubr.f32.gmra.mxu0 %v2556
    %v2629 = vpop.f32.mrf.mxu0
    %v2630 = vadd.f32 0.0, %v2629
    %v2631 = vpop.f32.mrf.mxu0
    %2632 = vdwg.mxu0
    %v2633 = vadd.f32 %v2429, %v2625
    %v2634 = vadd.f32 %v2430, %v2630
    %v2635 = vlaneseq
    %v2636 = vshrl.u32 %v2635, 7
    %v2637 = vsub.s32 0, %v2636
    %v2638 = vrot.slane %v1559, %v2637
    %v2639 = vadd.f32 %v2633, %v2638
    %v2640 = vadd.f32 %v2634, %v2638
    %v2641 = vadd.f32 %v1537, %v2639
    %v2642 = vadd.f32 %v1538, %v2640
    %v2643 = vld [vmem:[#allocation4 + $0x40] sm:$0x1]
    %v2644 = vld [vmem:[#allocation4 + $0x48] sm:$0x1]
    %v2645 = vsel %vm51, %v2641, 0.0
    %2646 = vadd.xlane.f32.xlu0 %v2645
    %v2647 = vpop.xlane.xlu0 %2646
    %v2648 = vsel %vm51, %v2642, 0.0
    %2649 = vadd.xlane.f32.xlu0 %v2648
    %v2650 = vpop.xlane.xlu0 %2649
    %v2651 = vmul.f32 %v2647, %v64
    %v2652 = vmul.f32 %v2650, %v64
    %v2653 = vsub.f32 %v2641, %v2651
    %v2654 = vsub.f32 %v2642, %v2652
    %v2655 = vmul.f32 %v2653, %v2653
    %v2656 = vmul.f32 %v2654, %v2654
    %v2657 = vsel %vm51, %v2655, 0.0
    %2658 = vadd.xlane.f32.xlu0 %v2657
    %v2659 = vpop.xlane.xlu0 %2658
    %v2660 = vsel %vm51, %v2656, 0.0
    %2661 = vadd.xlane.f32.xlu0 %v2660
    %v2662 = vpop.xlane.xlu0 %2661
    %v2663 = vmul.f32 %v2659, %v64
    %v2664 = vmul.f32 %v2662, %v64
    %v2665 = vadd.f32 %v2663, 1e-05
    %v2666 = vadd.f32 %v2664, 1e-05
    %v2667 = vrsqrt.pop %v2665
    %v2668 = vrsqrt.pop %v2666
    %v2669 = vmul.f32 %v2653, %v2667
    %v2670 = vmul.f32 %v2654, %v2668
    %v2671 = vlaneseq
    %v2672 = vshrl.u32 %v2671, 7
    %v2673 = vsub.s32 0, %v2672
    %v2674 = vrot.slane %v2643, %v2673
    %v2675 = vmul.f32 %v2669, %v2674
    %v2676 = vmul.f32 %v2670, %v2674
    %v2677 = vlaneseq
    %v2678 = vshrl.u32 %v2677, 7
    %v2679 = vsub.s32 0, %v2678
    %v2680 = vrot.slane %v2644, %v2679
    %v2681 = vadd.f32 %v2675, %v2680
    %v2682 = vadd.f32 %v2676, %v2680
    %vm2683 = vcmp.eq.s32.totalorder %v141, %v123
    %vm2684 = vcmp.eq.s32.totalorder %v142, %v123
    %vm2685 = vcmp.eq.s32.totalorder %v143, %v123
    %vm2686 = vcmp.eq.s32.totalorder %v144, %v123
    %v2687 = vsel %vm2683, 0.0, -1e+30
    %v2688 = vsel %vm2684, 0.0, -1e+30
    %v2689 = vsel %vm2685, 0.0, -1e+30
    %v2690 = vsel %vm2686, 0.0, -1e+30
    %v2691 = vld [vmem:[#allocation2 + $0xc0] sm:$0xff]
    %v2692 = vld [vmem:[#allocation2 + $0xc8] sm:$0xff]
    %v2693 = vld [vmem:[#allocation2 + $0xd0] sm:$0xff]
    %v2694 = vld [vmem:[#allocation2 + $0xd8] sm:$0xff]
    %v2695 = vld [vmem:[#allocation4 + $0x50] sm:$0x1]
    %v2696 = vld [vmem:[#allocation2 + $0xe0] sm:$0xff]
    %v2697 = vld [vmem:[#allocation2 + $0xe8] sm:$0xff]
    %v2698 = vld [vmem:[#allocation2 + $0xf0] sm:$0xff]
    %v2699 = vld [vmem:[#allocation2 + $0xf8] sm:$0xff]
    %v2700 = vld [vmem:[#allocation4 + $0x58] sm:$0x1]
    %v2701 = vld [vmem:[#allocation2 + $0x100] sm:$0xff]
    %v2702 = vld [vmem:[#allocation2 + $0x108] sm:$0xff]
    %v2703 = vld [vmem:[#allocation2 + $0x110] sm:$0xff]
    %v2704 = vld [vmem:[#allocation2 + $0x118] sm:$0xff]
    %v2705 = vld [vmem:[#allocation4 + $0x60] sm:$0x1]
    %v2706 = vlaneseq
    %v2707 = vshrl.u32 %v2706, 7
    %v2708 = vsub.s32 0, %v2707
    %v2709 = vrot.slane %v2695, %v2708
    %2710 = vmatprep.subr.mxu0 0.0
    %2711 = vmatpush1.msra.mxu0 0.0
    %2712 = vmatprep.subr.mxu0 0.0
    %2713 = vmatpush1.msra.mxu0 0.0
    %2714 = vmatprep.subr.mxu0 0.0
    %2715 = vmatpush1.msra.mxu0 0.0
    %2716 = vmatprep.subr.mxu0 0.0
    %2717 = vmatpush1.msra.mxu0 0.0
    %2718 = vmatprep.subr.mxu0 0.0
    %2719 = vmatpush1.msra.mxu0 0.0
    %2720 = vmatprep.subr.mxu0 0.0
    %2721 = vmatpush1.msra.mxu0 0.0
    %2722 = vmatprep.subr.mxu0 0.0
    %2723 = vmatpush1.msra.mxu0 0.0
    %2724 = vmatprep.subr.mxu0 0.0
    %2725 = vmatpush1.msra.mxu0 0.0
    %2726 = vmatprep.subr.mxu0 0.0
    %2727 = vmatpush1.msra.mxu0 0.0
    %2728 = vmatprep.subr.mxu0 0.0
    %2729 = vmatpush1.msra.mxu0 0.0
    %2730 = vmatprep.subr.mxu0 0.0
    %2731 = vmatpush1.msra.mxu0 0.0
    %2732 = vmatprep.subr.mxu0 0.0
    %2733 = vmatpush1.msra.mxu0 0.0
    %2734 = vmatprep.subr.mxu0 0.0
    %2735 = vmatpush1.msra.mxu0 %v2694
    %2736 = vmatprep.subr.mxu0 0.0
    %2737 = vmatpush1.msra.mxu0 %v2693
    %2738 = vmatprep.subr.mxu0 0.0
    %2739 = vmatpush1.msra.mxu0 %v2692
    %2740 = vmatprep.subr.mxu0 0.0
    %2741 = vmatpush1.msra.mxu0 %v2691
    %2742 = vmatprep.subr.mxu0 0.0
    %2743 = vmatpush2.msra.mxu0 0.0
    %2744 = vmatprep.subr.mxu0 0.0
    %2745 = vmatpush2.msra.mxu0 0.0
    %2746 = vmatprep.subr.mxu0 0.0
    %2747 = vmatpush2.msra.mxu0 0.0
    %2748 = vmatprep.subr.mxu0 0.0
    %2749 = vmatpush2.msra.mxu0 0.0
    %2750 = vmatprep.subr.mxu0 0.0
    %2751 = vmatpush2.msra.mxu0 0.0
    %2752 = vmatprep.subr.mxu0 0.0
    %2753 = vmatpush2.msra.mxu0 0.0
    %2754 = vmatprep.subr.mxu0 0.0
    %2755 = vmatpush2.msra.mxu0 0.0
    %2756 = vmatprep.subr.mxu0 0.0
    %2757 = vmatpush2.msra.mxu0 0.0
    %2758 = vmatprep.subr.mxu0 0.0
    %2759 = vmatpush2.msra.mxu0 0.0
    %2760 = vmatprep.subr.mxu0 0.0
    %2761 = vmatpush2.msra.mxu0 0.0
    %2762 = vmatprep.subr.mxu0 0.0
    %2763 = vmatpush2.msra.mxu0 0.0
    %2764 = vmatprep.subr.mxu0 0.0
    %2765 = vmatpush2.msra.mxu0 0.0
    %2766 = vmatprep.subr.mxu0 0.0
    %2767 = vmatpush2.msra.mxu0 0.0
    %2768 = vmatprep.subr.mxu0 0.0
    %2769 = vmatpush2.msra.mxu0 0.0
    %2770 = vmatprep.subr.mxu0 0.0
    %2771 = vmatpush2.msra.mxu0 0.0
    %2772 = vmatprep.subr.mxu0 0.0
    %2773 = vmatpush2.msra.mxu0 0.0
    %2774 = vmatprep.mubr.f32.mxu0 0.0
    %2775 = vmatmul.mubr.f32.gmra.mxu0 %v199
    %v2776 = vpop.f32.mrf.mxu0
    %v2777 = vadd.f32 %v2709, %v2776
    %v2778 = vpop.f32.mrf.mxu0
    %2779 = vmatprep.mubr.f32.mxu0 0.0
    %2780 = vmatmul.mubr.f32.gmra.mxu0 %v202
    %v2781 = vpop.f32.mrf.mxu0
    %v2782 = vadd.f32 %v2709, %v2781
    %v2783 = vpop.f32.mrf.mxu0
    %2784 = vmatprep.mubr.f32.mxu0 0.0
    %2785 = vmatmul.mubr.f32.gmra.mxu0 %v205
    %v2786 = vpop.f32.mrf.mxu0
    %v2787 = vadd.f32 %v2709, %v2786
    %v2788 = vpop.f32.mrf.mxu0
    %2789 = vmatprep.mubr.f32.mxu0 0.0
    %2790 = vmatmul.mubr.f32.gmra.mxu0 %v208
    %v2791 = vpop.f32.mrf.mxu0
    %v2792 = vadd.f32 %v2709, %v2791
    %v2793 = vpop.f32.mrf.mxu0
    %2794 = vdwg.mxu0
    %v2795 = vlaneseq
    %v2796 = vshrl.u32 %v2795, 7
    %v2797 = vsub.s32 0, %v2796
    %v2798 = vrot.slane %v2700, %v2797
    %v2800 = vsel %vm51, %v2681, 0
    %v2803 = vsel %vm51, %v2682, 0
    %2805 = vmatprep.subr.mxu0 0.0
    %2806 = vmatpush1.msra.mxu0 0.0
    %2807 = vmatprep.subr.mxu0 0.0
    %2808 = vmatpush1.msra.mxu0 0.0
    %2809 = vmatprep.subr.mxu0 0.0
    %2810 = vmatpush1.msra.mxu0 0.0
    %2811 = vmatprep.subr.mxu0 0.0
    %2812 = vmatpush1.msra.mxu0 0.0
    %2813 = vmatprep.subr.mxu0 0.0
    %2814 = vmatpush1.msra.mxu0 0.0
    %2815 = vmatprep.subr.mxu0 0.0
    %2816 = vmatpush1.msra.mxu0 0.0
    %2817 = vmatprep.subr.mxu0 0.0
    %2818 = vmatpush1.msra.mxu0 0.0
    %2819 = vmatprep.subr.mxu0 0.0
    %2820 = vmatpush1.msra.mxu0 0.0
    %2821 = vmatprep.subr.mxu0 0.0
    %2822 = vmatpush1.msra.mxu0 0.0
    %2823 = vmatprep.subr.mxu0 0.0
    %2824 = vmatpush1.msra.mxu0 0.0
    %2825 = vmatprep.subr.mxu0 0.0
    %2826 = vmatpush1.msra.mxu0 0.0
    %2827 = vmatprep.subr.mxu0 0.0
    %2828 = vmatpush1.msra.mxu0 0.0
    %2829 = vmatprep.subr.mxu0 0.0
    %2830 = vmatpush1.msra.mxu0 %v2699
    %2831 = vmatprep.subr.mxu0 0.0
    %2832 = vmatpush1.msra.mxu0 %v2698
    %2833 = vmatprep.subr.mxu0 0.0
    %2834 = vmatpush1.msra.mxu0 %v2697
    %2835 = vmatprep.subr.mxu0 0.0
    %2836 = vmatpush1.msra.mxu0 %v2696
    %2837 = vmatprep.subr.mxu0 0.0
    %2838 = vmatpush2.msra.mxu0 0.0
    %2839 = vmatprep.subr.mxu0 0.0
    %2840 = vmatpush2.msra.mxu0 0.0
    %2841 = vmatprep.subr.mxu0 0.0
    %2842 = vmatpush2.msra.mxu0 0.0
    %2843 = vmatprep.subr.mxu0 0.0
    %2844 = vmatpush2.msra.mxu0 0.0
    %2845 = vmatprep.subr.mxu0 0.0
    %2846 = vmatpush2.msra.mxu0 0.0
    %2847 = vmatprep.subr.mxu0 0.0
    %2848 = vmatpush2.msra.mxu0 0.0
    %2849 = vmatprep.subr.mxu0 0.0
    %2850 = vmatpush2.msra.mxu0 0.0
    %2851 = vmatprep.subr.mxu0 0.0
    %2852 = vmatpush2.msra.mxu0 0.0
    %2853 = vmatprep.subr.mxu0 0.0
    %2854 = vmatpush2.msra.mxu0 0.0
    %2855 = vmatprep.subr.mxu0 0.0
    %2856 = vmatpush2.msra.mxu0 0.0
    %2857 = vmatprep.subr.mxu0 0.0
    %2858 = vmatpush2.msra.mxu0 0.0
    %2859 = vmatprep.subr.mxu0 0.0
    %2860 = vmatpush2.msra.mxu0 0.0
    %2861 = vmatprep.subr.mxu0 0.0
    %2862 = vmatpush2.msra.mxu0 0.0
    %2863 = vmatprep.subr.mxu0 0.0
    %2864 = vmatpush2.msra.mxu0 0.0
    %2865 = vmatprep.subr.mxu0 0.0
    %2866 = vmatpush2.msra.mxu0 0.0
    %2867 = vmatprep.subr.mxu0 0.0
    %2868 = vmatpush2.msra.mxu0 0.0
    %2869 = vmatprep.mubr.f32.mxu0 0.0
    %2870 = vmatmul.mubr.f32.gmra.mxu0 %v2800
    %v2871 = vpop.f32.mrf.mxu0
    %v2872 = vadd.f32 %v2798, %v2871
    %v2873 = vpop.f32.mrf.mxu0
    %2874 = vmatprep.mubr.f32.mxu0 0.0
    %2875 = vmatmul.mubr.f32.gmra.mxu0 %v2803
    %v2876 = vpop.f32.mrf.mxu0
    %v2877 = vadd.f32 %v2798, %v2876
    %v2878 = vpop.f32.mrf.mxu0
    %2879 = vdwg.mxu0
    %2880 = vmatprep.subr.mxu0 0.0
    %2881 = vmatpush1.msra.mxu0 0.0
    %2882 = vmatprep.subr.mxu0 0.0
    %2883 = vmatpush1.msra.mxu0 0.0
    %2884 = vmatprep.subr.mxu0 0.0
    %2885 = vmatpush1.msra.mxu0 0.0
    %2886 = vmatprep.subr.mxu0 0.0
    %2887 = vmatpush1.msra.mxu0 0.0
    %2888 = vmatprep.subr.mxu0 0.0
    %2889 = vmatpush1.msra.mxu0 0.0
    %2890 = vmatprep.subr.mxu0 0.0
    %2891 = vmatpush1.msra.mxu0 0.0
    %2892 = vmatprep.subr.mxu0 0.0
    %2893 = vmatpush1.msra.mxu0 0.0
    %2894 = vmatprep.subr.mxu0 0.0
    %2895 = vmatpush1.msra.mxu0 0.0
    %2896 = vmatprep.subr.mxu0 0.0
    %2897 = vmatpush1.msra.mxu0 0.0
    %2898 = vmatprep.subr.mxu0 0.0
    %2899 = vmatpush1.msra.mxu0 0.0
    %2900 = vmatprep.subr.mxu0 0.0
    %2901 = vmatpush1.msra.mxu0 0.0
    %2902 = vmatprep.subr.mxu0 0.0
    %2903 = vmatpush1.msra.mxu0 0.0
    %2904 = vmatprep.subr.mxu0 0.0
    %2905 = vmatpush1.msra.mxu0 %v2704
    %2906 = vmatprep.subr.mxu0 0.0
    %2907 = vmatpush1.msra.mxu0 %v2703
    %2908 = vmatprep.subr.mxu0 0.0
    %2909 = vmatpush1.msra.mxu0 %v2702
    %2910 = vmatprep.subr.mxu0 0.0
    %2911 = vmatpush1.msra.mxu0 %v2701
    %2912 = vmatprep.subr.mxu0 0.0
    %2913 = vmatpush2.msra.mxu0 0.0
    %2914 = vmatprep.subr.mxu0 0.0
    %2915 = vmatpush2.msra.mxu0 0.0
    %2916 = vmatprep.subr.mxu0 0.0
    %2917 = vmatpush2.msra.mxu0 0.0
    %2918 = vmatprep.subr.mxu0 0.0
    %2919 = vmatpush2.msra.mxu0 0.0
    %2920 = vmatprep.subr.mxu0 0.0
    %2921 = vmatpush2.msra.mxu0 0.0
    %2922 = vmatprep.subr.mxu0 0.0
    %2923 = vmatpush2.msra.mxu0 0.0
    %2924 = vmatprep.subr.mxu0 0.0
    %2925 = vmatpush2.msra.mxu0 0.0
    %2926 = vmatprep.subr.mxu0 0.0
    %2927 = vmatpush2.msra.mxu0 0.0
    %2928 = vmatprep.subr.mxu0 0.0
    %2929 = vmatpush2.msra.mxu0 0.0
    %2930 = vmatprep.subr.mxu0 0.0
    %2931 = vmatpush2.msra.mxu0 0.0
    %2932 = vmatprep.subr.mxu0 0.0
    %2933 = vmatpush2.msra.mxu0 0.0
    %2934 = vmatprep.subr.mxu0 0.0
    %2935 = vmatpush2.msra.mxu0 0.0
    %2936 = vmatprep.subr.mxu0 0.0
    %2937 = vmatpush2.msra.mxu0 0.0
    %2938 = vmatprep.subr.mxu0 0.0
    %2939 = vmatpush2.msra.mxu0 0.0
    %2940 = vmatprep.subr.mxu0 0.0
    %2941 = vmatpush2.msra.mxu0 0.0
    %2942 = vmatprep.subr.mxu0 0.0
    %2943 = vmatpush2.msra.mxu0 0.0
    %2944 = vmatprep.mubr.f32.mxu0 0.0
    %2945 = vmatmul.mubr.f32.gmra.mxu0 %v2800
    %v2946 = vpop.f32.mrf.mxu0
    %v2947 = vadd.f32 0.0, %v2946
    %v2948 = vpop.f32.mrf.mxu0
    %2949 = vmatprep.mubr.f32.mxu0 0.0
    %2950 = vmatmul.mubr.f32.gmra.mxu0 %v2803
    %v2951 = vpop.f32.mrf.mxu0
    %v2952 = vadd.f32 0.0, %v2951
    %v2953 = vpop.f32.mrf.mxu0
    %2954 = vdwg.mxu0
    %v2955 = vmul.f32 %v2777, %v126
    %v2956 = vmul.f32 %v2782, %v126
    %v2957 = vmul.f32 %v2787, %v126
    %v2958 = vmul.f32 %v2792, %v126
    %v2960 = vsel %vm51, %v2955, 0
    %v2963 = vsel %vm51, %v2956, 0
    %v2966 = vsel %vm51, %v2957, 0
    %v2969 = vsel %vm51, %v2958, 0
    %v2972 = vsel %vm51, %v2872, 0
    %v2975 = vsel %vm51, %v2877, 0
    %2977 = vmatprep.subr.mxu0 0.0
    %2978 = vmatpush1.xpose.msra.mxu0 0.0
    %2979 = vmatprep.subr.mxu0 0.0
    %2980 = vmatpush1.xpose.msra.mxu0 0.0
    %2981 = vmatprep.subr.mxu0 0.0
    %2982 = vmatpush1.xpose.msra.mxu0 0.0
    %2983 = vmatprep.subr.mxu0 0.0
    %2984 = vmatpush1.xpose.msra.mxu0 0.0
    %2985 = vmatprep.subr.mxu0 0.0
    %2986 = vmatpush1.xpose.msra.mxu0 0.0
    %2987 = vmatprep.subr.mxu0 0.0
    %2988 = vmatpush1.xpose.msra.mxu0 0.0
    %2989 = vmatprep.subr.mxu0 0.0
    %2990 = vmatpush1.xpose.msra.mxu0 0.0
    %2991 = vmatprep.subr.mxu0 0.0
    %2992 = vmatpush1.xpose.msra.mxu0 0.0
    %2993 = vmatprep.subr.mxu0 0.0
    %2994 = vmatpush1.xpose.msra.mxu0 0.0
    %2995 = vmatprep.subr.mxu0 0.0
    %2996 = vmatpush1.xpose.msra.mxu0 0.0
    %2997 = vmatprep.subr.mxu0 0.0
    %2998 = vmatpush1.xpose.msra.mxu0 0.0
    %2999 = vmatprep.subr.mxu0 0.0
    %3000 = vmatpush1.xpose.msra.mxu0 0.0
    %3001 = vmatprep.subr.mxu0 0.0
    %3002 = vmatpush1.xpose.msra.mxu0 0.0
    %3003 = vmatprep.subr.mxu0 0.0
    %3004 = vmatpush1.xpose.msra.mxu0 0.0
    %3005 = vmatprep.subr.mxu0 0.0
    %3006 = vmatpush1.xpose.msra.mxu0 %v2975
    %3007 = vmatprep.subr.mxu0 0.0
    %3008 = vmatpush1.xpose.msra.mxu0 %v2972
    %3009 = vmatprep.subr.mxu0 0.0
    %3010 = vmatpush2.xpose.msra.mxu0 0.0
    %3011 = vmatprep.subr.mxu0 0.0
    %3012 = vmatpush2.xpose.msra.mxu0 0.0
    %3013 = vmatprep.subr.mxu0 0.0
    %3014 = vmatpush2.xpose.msra.mxu0 0.0
    %3015 = vmatprep.subr.mxu0 0.0
    %3016 = vmatpush2.xpose.msra.mxu0 0.0
    %3017 = vmatprep.subr.mxu0 0.0
    %3018 = vmatpush2.xpose.msra.mxu0 0.0
    %3019 = vmatprep.subr.mxu0 0.0
    %3020 = vmatpush2.xpose.msra.mxu0 0.0
    %3021 = vmatprep.subr.mxu0 0.0
    %3022 = vmatpush2.xpose.msra.mxu0 0.0
    %3023 = vmatprep.subr.mxu0 0.0
    %3024 = vmatpush2.xpose.msra.mxu0 0.0
    %3025 = vmatprep.subr.mxu0 0.0
    %3026 = vmatpush2.xpose.msra.mxu0 0.0
    %3027 = vmatprep.subr.mxu0 0.0
    %3028 = vmatpush2.xpose.msra.mxu0 0.0
    %3029 = vmatprep.subr.mxu0 0.0
    %3030 = vmatpush2.xpose.msra.mxu0 0.0
    %3031 = vmatprep.subr.mxu0 0.0
    %3032 = vmatpush2.xpose.msra.mxu0 0.0
    %3033 = vmatprep.subr.mxu0 0.0
    %3034 = vmatpush2.xpose.msra.mxu0 0.0
    %3035 = vmatprep.subr.mxu0 0.0
    %3036 = vmatpush2.xpose.msra.mxu0 0.0
    %3037 = vmatprep.subr.mxu0 0.0
    %3038 = vmatpush2.xpose.msra.mxu0 0.0
    %3039 = vmatprep.subr.mxu0 0.0
    %3040 = vmatpush2.xpose.msra.mxu0 0.0
    %3041 = vmatprep.mubr.f32.mxu0 0.0
    %3042 = vmatmul.mubr.f32.gmra.mxu0 %v2960
    %v3043 = vpop.f32.mrf.mxu0
    %v3044 = vadd.f32 0.0, %v3043
    %v3045 = vpop.f32.mrf.mxu0
    %3046 = vmatprep.mubr.f32.mxu0 0.0
    %3047 = vmatmul.mubr.f32.gmra.mxu0 %v2963
    %v3048 = vpop.f32.mrf.mxu0
    %v3049 = vadd.f32 0.0, %v3048
    %v3050 = vpop.f32.mrf.mxu0
    %3051 = vmatprep.mubr.f32.mxu0 0.0
    %3052 = vmatmul.mubr.f32.gmra.mxu0 %v2966
    %v3053 = vpop.f32.mrf.mxu0
    %v3054 = vadd.f32 0.0, %v3053
    %v3055 = vpop.f32.mrf.mxu0
    %3056 = vmatprep.mubr.f32.mxu0 0.0
    %3057 = vmatmul.mubr.f32.gmra.mxu0 %v2969
    %v3058 = vpop.f32.mrf.mxu0
    %v3059 = vadd.f32 0.0, %v3058
    %v3060 = vpop.f32.mrf.mxu0
    %3061 = vdwg.mxu0
    %v3062 = vmul.f32 %v3044, 0.35355338
    %v3063 = vmul.f32 %v3049, 0.35355338
    %v3064 = vmul.f32 %v3054, 0.35355338
    %v3065 = vmul.f32 %v3059, 0.35355338
    %v3066 = vadd.f32 %v3062, %v2687
    %v3067 = vadd.f32 %v3063, %v2688
    %v3068 = vadd.f32 %v3064, %v2689
    %v3069 = vadd.f32 %v3065, %v2690
    %vm3070 = vcmask 130048
    %v3071 = vsel %vm3070, %v3066, -inf
    %3072 = vmax.xlane.f32.xlu0 %v3071
    %v3073 = vpop.xlane.xlu0 %3072
    %v3074 = vsel %vm3070, %v3067, -inf
    %3075 = vmax.xlane.f32.xlu0 %v3074
    %v3076 = vpop.xlane.xlu0 %3075
    %v3077 = vsel %vm3070, %v3068, -inf
    %3078 = vmax.xlane.f32.xlu0 %v3077
    %v3079 = vpop.xlane.xlu0 %3078
    %v3080 = vsel %vm3070, %v3069, -inf
    %3081 = vmax.xlane.f32.xlu0 %v3080
    %v3082 = vpop.xlane.xlu0 %3081
    %v3083 = vsub.f32 %v3066, %v3073
    %v3084 = vsub.f32 %v3067, %v3076
    %v3085 = vsub.f32 %v3068, %v3079
    %v3086 = vsub.f32 %v3069, %v3082
    %v3087 = vmul.f32 %v3083, 1.442695
    %v3088 = vpow.pop %v3087
    %v3089 = vmul.f32 %v3084, 1.442695
    %v3090 = vpow.pop %v3089
    %v3091 = vmul.f32 %v3085, 1.442695
    %v3092 = vpow.pop %v3091
    %v3093 = vmul.f32 %v3086, 1.442695
    %v3094 = vpow.pop %v3093
    %v3095 = vsel %vm3070, %v3088, 0.0
    %3096 = vadd.xlane.f32.xlu0 %v3095
    %v3097 = vpop.xlane.xlu0 %3096
    %v3098 = vsel %vm3070, %v3090, 0.0
    %3099 = vadd.xlane.f32.xlu0 %v3098
    %v3100 = vpop.xlane.xlu0 %3099
    %v3101 = vsel %vm3070, %v3092, 0.0
    %3102 = vadd.xlane.f32.xlu0 %v3101
    %v3103 = vpop.xlane.xlu0 %3102
    %v3104 = vsel %vm3070, %v3094, 0.0
    %3105 = vadd.xlane.f32.xlu0 %v3104
    %v3106 = vpop.xlane.xlu0 %3105
    %v3107 = vrcp.pop %v3097
    %v3108 = vmul.f32 %v3088, %v3107
    %v3109 = vrcp.pop %v3100
    %v3110 = vmul.f32 %v3090, %v3109
    %v3111 = vrcp.pop %v3103
    %v3112 = vmul.f32 %v3092, %v3111
    %v3113 = vrcp.pop %v3106
    %v3114 = vmul.f32 %v3094, %v3113
    %v3115 = vmul.f32 %v2777, %v129
    %v3116 = vmul.f32 %v2782, %v129
    %v3117 = vmul.f32 %v2787, %v129
    %v3118 = vmul.f32 %v2792, %v129
    %v3120 = vsel %vm51, %v3115, 0
    %v3123 = vsel %vm51, %v3116, 0
    %v3126 = vsel %vm51, %v3117, 0
    %v3129 = vsel %vm51, %v3118, 0
    %3131 = vmatprep.subr.mxu0 0.0
    %3132 = vmatpush1.xpose.msra.mxu0 0.0
    %3133 = vmatprep.subr.mxu0 0.0
    %3134 = vmatpush1.xpose.msra.mxu0 0.0
    %3135 = vmatprep.subr.mxu0 0.0
    %3136 = vmatpush1.xpose.msra.mxu0 0.0
    %3137 = vmatprep.subr.mxu0 0.0
    %3138 = vmatpush1.xpose.msra.mxu0 0.0
    %3139 = vmatprep.subr.mxu0 0.0
    %3140 = vmatpush1.xpose.msra.mxu0 0.0
    %3141 = vmatprep.subr.mxu0 0.0
    %3142 = vmatpush1.xpose.msra.mxu0 0.0
    %3143 = vmatprep.subr.mxu0 0.0
    %3144 = vmatpush1.xpose.msra.mxu0 0.0
    %3145 = vmatprep.subr.mxu0 0.0
    %3146 = vmatpush1.xpose.msra.mxu0 0.0
    %3147 = vmatprep.subr.mxu0 0.0
    %3148 = vmatpush1.xpose.msra.mxu0 0.0
    %3149 = vmatprep.subr.mxu0 0.0
    %3150 = vmatpush1.xpose.msra.mxu0 0.0
    %3151 = vmatprep.subr.mxu0 0.0
    %3152 = vmatpush1.xpose.msra.mxu0 0.0
    %3153 = vmatprep.subr.mxu0 0.0
    %3154 = vmatpush1.xpose.msra.mxu0 0.0
    %3155 = vmatprep.subr.mxu0 0.0
    %3156 = vmatpush1.xpose.msra.mxu0 0.0
    %3157 = vmatprep.subr.mxu0 0.0
    %3158 = vmatpush1.xpose.msra.mxu0 0.0
    %3159 = vmatprep.subr.mxu0 0.0
    %3160 = vmatpush1.xpose.msra.mxu0 %v2975
    %3161 = vmatprep.subr.mxu0 0.0
    %3162 = vmatpush1.xpose.msra.mxu0 %v2972
    %3163 = vmatprep.subr.mxu0 0.0
    %3164 = vmatpush2.xpose.msra.mxu0 0.0
    %3165 = vmatprep.subr.mxu0 0.0
    %3166 = vmatpush2.xpose.msra.mxu0 0.0
    %3167 = vmatprep.subr.mxu0 0.0
    %3168 = vmatpush2.xpose.msra.mxu0 0.0
    %3169 = vmatprep.subr.mxu0 0.0
    %3170 = vmatpush2.xpose.msra.mxu0 0.0
    %3171 = vmatprep.subr.mxu0 0.0
    %3172 = vmatpush2.xpose.msra.mxu0 0.0
    %3173 = vmatprep.subr.mxu0 0.0
    %3174 = vmatpush2.xpose.msra.mxu0 0.0
    %3175 = vmatprep.subr.mxu0 0.0
    %3176 = vmatpush2.xpose.msra.mxu0 0.0
    %3177 = vmatprep.subr.mxu0 0.0
    %3178 = vmatpush2.xpose.msra.mxu0 0.0
    %3179 = vmatprep.subr.mxu0 0.0
    %3180 = vmatpush2.xpose.msra.mxu0 0.0
    %3181 = vmatprep.subr.mxu0 0.0
    %3182 = vmatpush2.xpose.msra.mxu0 0.0
    %3183 = vmatprep.subr.mxu0 0.0
    %3184 = vmatpush2.xpose.msra.mxu0 0.0
    %3185 = vmatprep.subr.mxu0 0.0
    %3186 = vmatpush2.xpose.msra.mxu0 0.0
    %3187 = vmatprep.subr.mxu0 0.0
    %3188 = vmatpush2.xpose.msra.mxu0 0.0
    %3189 = vmatprep.subr.mxu0 0.0
    %3190 = vmatpush2.xpose.msra.mxu0 0.0
    %3191 = vmatprep.subr.mxu0 0.0
    %3192 = vmatpush2.xpose.msra.mxu0 0.0
    %3193 = vmatprep.subr.mxu0 0.0
    %3194 = vmatpush2.xpose.msra.mxu0 0.0
    %3195 = vmatprep.mubr.f32.mxu0 0.0
    %3196 = vmatmul.mubr.f32.gmra.mxu0 %v3120
    %v3197 = vpop.f32.mrf.mxu0
    %v3198 = vadd.f32 0.0, %v3197
    %v3199 = vpop.f32.mrf.mxu0
    %3200 = vmatprep.mubr.f32.mxu0 0.0
    %3201 = vmatmul.mubr.f32.gmra.mxu0 %v3123
    %v3202 = vpop.f32.mrf.mxu0
    %v3203 = vadd.f32 0.0, %v3202
    %v3204 = vpop.f32.mrf.mxu0
    %3205 = vmatprep.mubr.f32.mxu0 0.0
    %3206 = vmatmul.mubr.f32.gmra.mxu0 %v3126
    %v3207 = vpop.f32.mrf.mxu0
    %v3208 = vadd.f32 0.0, %v3207
    %v3209 = vpop.f32.mrf.mxu0
    %3210 = vmatprep.mubr.f32.mxu0 0.0
    %3211 = vmatmul.mubr.f32.gmra.mxu0 %v3129
    %v3212 = vpop.f32.mrf.mxu0
    %v3213 = vadd.f32 0.0, %v3212
    %v3214 = vpop.f32.mrf.mxu0
    %3215 = vdwg.mxu0
    %v3216 = vmul.f32 %v3198, 0.35355338
    %v3217 = vmul.f32 %v3203, 0.35355338
    %v3218 = vmul.f32 %v3208, 0.35355338
    %v3219 = vmul.f32 %v3213, 0.35355338
    %v3220 = vadd.f32 %v3216, %v2687
    %v3221 = vadd.f32 %v3217, %v2688
    %v3222 = vadd.f32 %v3218, %v2689
    %v3223 = vadd.f32 %v3219, %v2690
    %v3224 = vsel %vm3070, %v3220, -inf
    %3225 = vmax.xlane.f32.xlu0 %v3224
    %v3226 = vpop.xlane.xlu0 %3225
    %v3227 = vsel %vm3070, %v3221, -inf
    %3228 = vmax.xlane.f32.xlu0 %v3227
    %v3229 = vpop.xlane.xlu0 %3228
    %v3230 = vsel %vm3070, %v3222, -inf
    %3231 = vmax.xlane.f32.xlu0 %v3230
    %v3232 = vpop.xlane.xlu0 %3231
    %v3233 = vsel %vm3070, %v3223, -inf
    %3234 = vmax.xlane.f32.xlu0 %v3233
    %v3235 = vpop.xlane.xlu0 %3234
    %v3236 = vsub.f32 %v3220, %v3226
    %v3237 = vsub.f32 %v3221, %v3229
    %v3238 = vsub.f32 %v3222, %v3232
    %v3239 = vsub.f32 %v3223, %v3235
    %v3240 = vmul.f32 %v3236, 1.442695
    %v3241 = vpow.pop %v3240
    %v3242 = vmul.f32 %v3237, 1.442695
    %v3243 = vpow.pop %v3242
    %v3244 = vmul.f32 %v3238, 1.442695
    %v3245 = vpow.pop %v3244
    %v3246 = vmul.f32 %v3239, 1.442695
    %v3247 = vpow.pop %v3246
    %v3248 = vsel %vm3070, %v3241, 0.0
    %3249 = vadd.xlane.f32.xlu0 %v3248
    %v3250 = vpop.xlane.xlu0 %3249
    %v3251 = vsel %vm3070, %v3243, 0.0
    %3252 = vadd.xlane.f32.xlu0 %v3251
    %v3253 = vpop.xlane.xlu0 %3252
    %v3254 = vsel %vm3070, %v3245, 0.0
    %3255 = vadd.xlane.f32.xlu0 %v3254
    %v3256 = vpop.xlane.xlu0 %3255
    %v3257 = vsel %vm3070, %v3247, 0.0
    %3258 = vadd.xlane.f32.xlu0 %v3257
    %v3259 = vpop.xlane.xlu0 %3258
    %v3260 = vrcp.pop %v3250
    %v3261 = vmul.f32 %v3241, %v3260
    %v3262 = vrcp.pop %v3253
    %v3263 = vmul.f32 %v3243, %v3262
    %v3264 = vrcp.pop %v3256
    %v3265 = vmul.f32 %v3245, %v3264
    %v3266 = vrcp.pop %v3259
    %v3267 = vmul.f32 %v3247, %v3266
    %3270 = vrot.lane.b32.xlu0 %v2947, 96
    %v3271 = vpop.permute.xlu0 %3270
    %3272 = vrot.lane.b32.xlu0 %v2952, 96
    %v3273 = vpop.permute.xlu0 %3272
    %v3277 = vsel %vm3070, %v3261, 0
    %v3280 = vsel %vm3070, %v3263, 0
    %v3283 = vsel %vm3070, %v3265, 0
    %v3286 = vsel %vm3070, %v3267, 0
    %3288 = vmatprep.subr.mxu0 0.0
    %3289 = vmatpush1.msra.mxu0 0.0
    %3290 = vmatprep.subr.mxu0 0.0
    %3291 = vmatpush1.msra.mxu0 0.0
    %3292 = vmatprep.subr.mxu0 0.0
    %3293 = vmatpush1.msra.mxu0 0.0
    %3294 = vmatprep.subr.mxu0 0.0
    %3295 = vmatpush1.msra.mxu0 0.0
    %3296 = vmatprep.subr.mxu0 0.0
    %3297 = vmatpush1.msra.mxu0 0.0
    %3298 = vmatprep.subr.mxu0 0.0
    %3299 = vmatpush1.msra.mxu0 0.0
    %3300 = vmatprep.subr.mxu0 0.0
    %3301 = vmatpush1.msra.mxu0 0.0
    %3302 = vmatprep.subr.mxu0 0.0
    %3303 = vmatpush1.msra.mxu0 0.0
    %3304 = vmatprep.subr.mxu0 0.0
    %3305 = vmatpush1.msra.mxu0 0.0
    %3306 = vmatprep.subr.mxu0 0.0
    %3307 = vmatpush1.msra.mxu0 0.0
    %3308 = vmatprep.subr.mxu0 0.0
    %3309 = vmatpush1.msra.mxu0 0.0
    %3310 = vmatprep.subr.mxu0 0.0
    %3311 = vmatpush1.msra.mxu0 0.0
    %3312 = vmatprep.subr.mxu0 0.0
    %3313 = vmatpush1.msra.mxu0 0.0
    %3314 = vmatprep.subr.mxu0 0.0
    %3315 = vmatpush1.msra.mxu0 0.0
    %3316 = vmatprep.subr.mxu0 0.0
    %3317 = vmatpush1.msra.mxu0 %v3273
    %3318 = vmatprep.subr.mxu0 0.0
    %3319 = vmatpush1.msra.mxu0 %v3271
    %3320 = vmatprep.subr.mxu0 0.0
    %3321 = vmatpush2.msra.mxu0 0.0
    %3322 = vmatprep.subr.mxu0 0.0
    %3323 = vmatpush2.msra.mxu0 0.0
    %3324 = vmatprep.subr.mxu0 0.0
    %3325 = vmatpush2.msra.mxu0 0.0
    %3326 = vmatprep.subr.mxu0 0.0
    %3327 = vmatpush2.msra.mxu0 0.0
    %3328 = vmatprep.subr.mxu0 0.0
    %3329 = vmatpush2.msra.mxu0 0.0
    %3330 = vmatprep.subr.mxu0 0.0
    %3331 = vmatpush2.msra.mxu0 0.0
    %3332 = vmatprep.subr.mxu0 0.0
    %3333 = vmatpush2.msra.mxu0 0.0
    %3334 = vmatprep.subr.mxu0 0.0
    %3335 = vmatpush2.msra.mxu0 0.0
    %3336 = vmatprep.subr.mxu0 0.0
    %3337 = vmatpush2.msra.mxu0 0.0
    %3338 = vmatprep.subr.mxu0 0.0
    %3339 = vmatpush2.msra.mxu0 0.0
    %3340 = vmatprep.subr.mxu0 0.0
    %3341 = vmatpush2.msra.mxu0 0.0
    %3342 = vmatprep.subr.mxu0 0.0
    %3343 = vmatpush2.msra.mxu0 0.0
    %3344 = vmatprep.subr.mxu0 0.0
    %3345 = vmatpush2.msra.mxu0 0.0
    %3346 = vmatprep.subr.mxu0 0.0
    %3347 = vmatpush2.msra.mxu0 0.0
    %3348 = vmatprep.subr.mxu0 0.0
    %3349 = vmatpush2.msra.mxu0 0.0
    %3350 = vmatprep.subr.mxu0 0.0
    %3351 = vmatpush2.msra.mxu0 0.0
    %3352 = vmatprep.mubr.f32.mxu0 0.0
    %3353 = vmatmul.mubr.f32.gmra.mxu0 %v3277
    %v3354 = vpop.f32.mrf.mxu0
    %v3355 = vadd.f32 0.0, %v3354
    %v3356 = vpop.f32.mrf.mxu0
    %3357 = vmatprep.mubr.f32.mxu0 0.0
    %3358 = vmatmul.mubr.f32.gmra.mxu0 %v3280
    %v3359 = vpop.f32.mrf.mxu0
    %v3360 = vadd.f32 0.0, %v3359
    %v3361 = vpop.f32.mrf.mxu0
    %3362 = vmatprep.mubr.f32.mxu0 0.0
    %3363 = vmatmul.mubr.f32.gmra.mxu0 %v3283
    %v3364 = vpop.f32.mrf.mxu0
    %v3365 = vadd.f32 0.0, %v3364
    %v3366 = vpop.f32.mrf.mxu0
    %3367 = vmatprep.mubr.f32.mxu0 0.0
    %3368 = vmatmul.mubr.f32.gmra.mxu0 %v3286
    %v3369 = vpop.f32.mrf.mxu0
    %v3370 = vadd.f32 0.0, %v3369
    %v3371 = vpop.f32.mrf.mxu0
    %3372 = vdwg.mxu0
    %v3374 = vsel %vm3070, %v3108, 0
    %v3377 = vsel %vm3070, %v3110, 0
    %v3380 = vsel %vm3070, %v3112, 0
    %v3383 = vsel %vm3070, %v3114, 0
    %3385 = vmatprep.subr.mxu0 0.0
    %3386 = vmatpush1.msra.mxu0 0.0
    %3387 = vmatprep.subr.mxu0 0.0
    %3388 = vmatpush1.msra.mxu0 0.0
    %3389 = vmatprep.subr.mxu0 0.0
    %3390 = vmatpush1.msra.mxu0 0.0
    %3391 = vmatprep.subr.mxu0 0.0
    %3392 = vmatpush1.msra.mxu0 0.0
    %3393 = vmatprep.subr.mxu0 0.0
    %3394 = vmatpush1.msra.mxu0 0.0
    %3395 = vmatprep.subr.mxu0 0.0
    %3396 = vmatpush1.msra.mxu0 0.0
    %3397 = vmatprep.subr.mxu0 0.0
    %3398 = vmatpush1.msra.mxu0 0.0
    %3399 = vmatprep.subr.mxu0 0.0
    %3400 = vmatpush1.msra.mxu0 0.0
    %3401 = vmatprep.subr.mxu0 0.0
    %3402 = vmatpush1.msra.mxu0 0.0
    %3403 = vmatprep.subr.mxu0 0.0
    %3404 = vmatpush1.msra.mxu0 0.0
    %3405 = vmatprep.subr.mxu0 0.0
    %3406 = vmatpush1.msra.mxu0 0.0
    %3407 = vmatprep.subr.mxu0 0.0
    %3408 = vmatpush1.msra.mxu0 0.0
    %3409 = vmatprep.subr.mxu0 0.0
    %3410 = vmatpush1.msra.mxu0 0.0
    %3411 = vmatprep.subr.mxu0 0.0
    %3412 = vmatpush1.msra.mxu0 0.0
    %3413 = vmatprep.subr.mxu0 0.0
    %3414 = vmatpush1.msra.mxu0 %v2952
    %3415 = vmatprep.subr.mxu0 0.0
    %3416 = vmatpush1.msra.mxu0 %v2947
    %3417 = vmatprep.subr.mxu0 0.0
    %3418 = vmatpush2.msra.mxu0 0.0
    %3419 = vmatprep.subr.mxu0 0.0
    %3420 = vmatpush2.msra.mxu0 0.0
    %3421 = vmatprep.subr.mxu0 0.0
    %3422 = vmatpush2.msra.mxu0 0.0
    %3423 = vmatprep.subr.mxu0 0.0
    %3424 = vmatpush2.msra.mxu0 0.0
    %3425 = vmatprep.subr.mxu0 0.0
    %3426 = vmatpush2.msra.mxu0 0.0
    %3427 = vmatprep.subr.mxu0 0.0
    %3428 = vmatpush2.msra.mxu0 0.0
    %3429 = vmatprep.subr.mxu0 0.0
    %3430 = vmatpush2.msra.mxu0 0.0
    %3431 = vmatprep.subr.mxu0 0.0
    %3432 = vmatpush2.msra.mxu0 0.0
    %3433 = vmatprep.subr.mxu0 0.0
    %3434 = vmatpush2.msra.mxu0 0.0
    %3435 = vmatprep.subr.mxu0 0.0
    %3436 = vmatpush2.msra.mxu0 0.0
    %3437 = vmatprep.subr.mxu0 0.0
    %3438 = vmatpush2.msra.mxu0 0.0
    %3439 = vmatprep.subr.mxu0 0.0
    %3440 = vmatpush2.msra.mxu0 0.0
    %3441 = vmatprep.subr.mxu0 0.0
    %3442 = vmatpush2.msra.mxu0 0.0
    %3443 = vmatprep.subr.mxu0 0.0
    %3444 = vmatpush2.msra.mxu0 0.0
    %3445 = vmatprep.subr.mxu0 0.0
    %3446 = vmatpush2.msra.mxu0 0.0
    %3447 = vmatprep.subr.mxu0 0.0
    %3448 = vmatpush2.msra.mxu0 0.0
    %3449 = vmatprep.mubr.f32.mxu0 0.0
    %3450 = vmatmul.mubr.f32.gmra.mxu0 %v3374
    %v3451 = vpop.f32.mrf.mxu0
    %v3452 = vadd.f32 %v3355, %v3451
    %v3453 = vpop.f32.mrf.mxu0
    %3454 = vmatprep.mubr.f32.mxu0 0.0
    %3455 = vmatmul.mubr.f32.gmra.mxu0 %v3377
    %v3456 = vpop.f32.mrf.mxu0
    %v3457 = vadd.f32 %v3360, %v3456
    %v3458 = vpop.f32.mrf.mxu0
    %3459 = vmatprep.mubr.f32.mxu0 0.0
    %3460 = vmatmul.mubr.f32.gmra.mxu0 %v3380
    %v3461 = vpop.f32.mrf.mxu0
    %v3462 = vadd.f32 %v3365, %v3461
    %v3463 = vpop.f32.mrf.mxu0
    %3464 = vmatprep.mubr.f32.mxu0 0.0
    %3465 = vmatmul.mubr.f32.gmra.mxu0 %v3383
    %v3466 = vpop.f32.mrf.mxu0
    %v3467 = vadd.f32 %v3370, %v3466
    %v3468 = vpop.f32.mrf.mxu0
    %3469 = vdwg.mxu0
    %v3470 = vmul.f32 %v2777, %v132
    %v3471 = vmul.f32 %v2782, %v132
    %v3472 = vmul.f32 %v2787, %v132
    %v3473 = vmul.f32 %v2792, %v132
    %v3475 = vsel %vm51, %v3470, 0
    %v3478 = vsel %vm51, %v3471, 0
    %v3481 = vsel %vm51, %v3472, 0
    %v3484 = vsel %vm51, %v3473, 0
    %3486 = vmatprep.subr.mxu0 0.0
    %3487 = vmatpush1.xpose.msra.mxu0 0.0
    %3488 = vmatprep.subr.mxu0 0.0
    %3489 = vmatpush1.xpose.msra.mxu0 0.0
    %3490 = vmatprep.subr.mxu0 0.0
    %3491 = vmatpush1.xpose.msra.mxu0 0.0
    %3492 = vmatprep.subr.mxu0 0.0
    %3493 = vmatpush1.xpose.msra.mxu0 0.0
    %3494 = vmatprep.subr.mxu0 0.0
    %3495 = vmatpush1.xpose.msra.mxu0 0.0
    %3496 = vmatprep.subr.mxu0 0.0
    %3497 = vmatpush1.xpose.msra.mxu0 0.0
    %3498 = vmatprep.subr.mxu0 0.0
    %3499 = vmatpush1.xpose.msra.mxu0 0.0
    %3500 = vmatprep.subr.mxu0 0.0
    %3501 = vmatpush1.xpose.msra.mxu0 0.0
    %3502 = vmatprep.subr.mxu0 0.0
    %3503 = vmatpush1.xpose.msra.mxu0 0.0
    %3504 = vmatprep.subr.mxu0 0.0
    %3505 = vmatpush1.xpose.msra.mxu0 0.0
    %3506 = vmatprep.subr.mxu0 0.0
    %3507 = vmatpush1.xpose.msra.mxu0 0.0
    %3508 = vmatprep.subr.mxu0 0.0
    %3509 = vmatpush1.xpose.msra.mxu0 0.0
    %3510 = vmatprep.subr.mxu0 0.0
    %3511 = vmatpush1.xpose.msra.mxu0 0.0
    %3512 = vmatprep.subr.mxu0 0.0
    %3513 = vmatpush1.xpose.msra.mxu0 0.0
    %3514 = vmatprep.subr.mxu0 0.0
    %3515 = vmatpush1.xpose.msra.mxu0 %v2975
    %3516 = vmatprep.subr.mxu0 0.0
    %3517 = vmatpush1.xpose.msra.mxu0 %v2972
    %3518 = vmatprep.subr.mxu0 0.0
    %3519 = vmatpush2.xpose.msra.mxu0 0.0
    %3520 = vmatprep.subr.mxu0 0.0
    %3521 = vmatpush2.xpose.msra.mxu0 0.0
    %3522 = vmatprep.subr.mxu0 0.0
    %3523 = vmatpush2.xpose.msra.mxu0 0.0
    %3524 = vmatprep.subr.mxu0 0.0
    %3525 = vmatpush2.xpose.msra.mxu0 0.0
    %3526 = vmatprep.subr.mxu0 0.0
    %3527 = vmatpush2.xpose.msra.mxu0 0.0
    %3528 = vmatprep.subr.mxu0 0.0
    %3529 = vmatpush2.xpose.msra.mxu0 0.0
    %3530 = vmatprep.subr.mxu0 0.0
    %3531 = vmatpush2.xpose.msra.mxu0 0.0
    %3532 = vmatprep.subr.mxu0 0.0
    %3533 = vmatpush2.xpose.msra.mxu0 0.0
    %3534 = vmatprep.subr.mxu0 0.0
    %3535 = vmatpush2.xpose.msra.mxu0 0.0
    %3536 = vmatprep.subr.mxu0 0.0
    %3537 = vmatpush2.xpose.msra.mxu0 0.0
    %3538 = vmatprep.subr.mxu0 0.0
    %3539 = vmatpush2.xpose.msra.mxu0 0.0
    %3540 = vmatprep.subr.mxu0 0.0
    %3541 = vmatpush2.xpose.msra.mxu0 0.0
    %3542 = vmatprep.subr.mxu0 0.0
    %3543 = vmatpush2.xpose.msra.mxu0 0.0
    %3544 = vmatprep.subr.mxu0 0.0
    %3545 = vmatpush2.xpose.msra.mxu0 0.0
    %3546 = vmatprep.subr.mxu0 0.0
    %3547 = vmatpush2.xpose.msra.mxu0 0.0
    %3548 = vmatprep.subr.mxu0 0.0
    %3549 = vmatpush2.xpose.msra.mxu0 0.0
    %3550 = vmatprep.mubr.f32.mxu0 0.0
    %3551 = vmatmul.mubr.f32.gmra.mxu0 %v3475
    %v3552 = vpop.f32.mrf.mxu0
    %v3553 = vadd.f32 0.0, %v3552
    %v3554 = vpop.f32.mrf.mxu0
    %3555 = vmatprep.mubr.f32.mxu0 0.0
    %3556 = vmatmul.mubr.f32.gmra.mxu0 %v3478
    %v3557 = vpop.f32.mrf.mxu0
    %v3558 = vadd.f32 0.0, %v3557
    %v3559 = vpop.f32.mrf.mxu0
    %3560 = vmatprep.mubr.f32.mxu0 0.0
    %3561 = vmatmul.mubr.f32.gmra.mxu0 %v3481
    %v3562 = vpop.f32.mrf.mxu0
    %v3563 = vadd.f32 0.0, %v3562
    %v3564 = vpop.f32.mrf.mxu0
    %3565 = vmatprep.mubr.f32.mxu0 0.0
    %3566 = vmatmul.mubr.f32.gmra.mxu0 %v3484
    %v3567 = vpop.f32.mrf.mxu0
    %v3568 = vadd.f32 0.0, %v3567
    %v3569 = vpop.f32.mrf.mxu0
    %3570 = vdwg.mxu0
    %v3571 = vmul.f32 %v3553, 0.35355338
    %v3572 = vmul.f32 %v3558, 0.35355338
    %v3573 = vmul.f32 %v3563, 0.35355338
    %v3574 = vmul.f32 %v3568, 0.35355338
    %v3575 = vadd.f32 %v3571, %v2687
    %v3576 = vadd.f32 %v3572, %v2688
    %v3577 = vadd.f32 %v3573, %v2689
    %v3578 = vadd.f32 %v3574, %v2690
    %v3579 = vsel %vm3070, %v3575, -inf
    %3580 = vmax.xlane.f32.xlu0 %v3579
    %v3581 = vpop.xlane.xlu0 %3580
    %v3582 = vsel %vm3070, %v3576, -inf
    %3583 = vmax.xlane.f32.xlu0 %v3582
    %v3584 = vpop.xlane.xlu0 %3583
    %v3585 = vsel %vm3070, %v3577, -inf
    %3586 = vmax.xlane.f32.xlu0 %v3585
    %v3587 = vpop.xlane.xlu0 %3586
    %v3588 = vsel %vm3070, %v3578, -inf
    %3589 = vmax.xlane.f32.xlu0 %v3588
    %v3590 = vpop.xlane.xlu0 %3589
    %v3591 = vsub.f32 %v3575, %v3581
    %v3592 = vsub.f32 %v3576, %v3584
    %v3593 = vsub.f32 %v3577, %v3587
    %v3594 = vsub.f32 %v3578, %v3590
    %v3595 = vmul.f32 %v3591, 1.442695
    %v3596 = vpow.pop %v3595
    %v3597 = vmul.f32 %v3592, 1.442695
    %v3598 = vpow.pop %v3597
    %v3599 = vmul.f32 %v3593, 1.442695
    %v3600 = vpow.pop %v3599
    %v3601 = vmul.f32 %v3594, 1.442695
    %v3602 = vpow.pop %v3601
    %v3603 = vsel %vm3070, %v3596, 0.0
    %3604 = vadd.xlane.f32.xlu0 %v3603
    %v3605 = vpop.xlane.xlu0 %3604
    %v3606 = vsel %vm3070, %v3598, 0.0
    %3607 = vadd.xlane.f32.xlu0 %v3606
    %v3608 = vpop.xlane.xlu0 %3607
    %v3609 = vsel %vm3070, %v3600, 0.0
    %3610 = vadd.xlane.f32.xlu0 %v3609
    %v3611 = vpop.xlane.xlu0 %3610
    %v3612 = vsel %vm3070, %v3602, 0.0
    %3613 = vadd.xlane.f32.xlu0 %v3612
    %v3614 = vpop.xlane.xlu0 %3613
    %v3615 = vrcp.pop %v3605
    %v3616 = vmul.f32 %v3596, %v3615
    %v3617 = vrcp.pop %v3608
    %v3618 = vmul.f32 %v3598, %v3617
    %v3619 = vrcp.pop %v3611
    %v3620 = vmul.f32 %v3600, %v3619
    %v3621 = vrcp.pop %v3614
    %v3622 = vmul.f32 %v3602, %v3621
    %3623 = vrot.lane.b32.xlu0 %v2947, 64
    %v3624 = vpop.permute.xlu0 %3623
    %3625 = vrot.lane.b32.xlu0 %v2952, 64
    %v3626 = vpop.permute.xlu0 %3625
    %v3630 = vsel %vm3070, %v3616, 0
    %v3633 = vsel %vm3070, %v3618, 0
    %v3636 = vsel %vm3070, %v3620, 0
    %v3639 = vsel %vm3070, %v3622, 0
    %3641 = vmatprep.subr.mxu0 0.0
    %3642 = vmatpush1.msra.mxu0 0.0
    %3643 = vmatprep.subr.mxu0 0.0
    %3644 = vmatpush1.msra.mxu0 0.0
    %3645 = vmatprep.subr.mxu0 0.0
    %3646 = vmatpush1.msra.mxu0 0.0
    %3647 = vmatprep.subr.mxu0 0.0
    %3648 = vmatpush1.msra.mxu0 0.0
    %3649 = vmatprep.subr.mxu0 0.0
    %3650 = vmatpush1.msra.mxu0 0.0
    %3651 = vmatprep.subr.mxu0 0.0
    %3652 = vmatpush1.msra.mxu0 0.0
    %3653 = vmatprep.subr.mxu0 0.0
    %3654 = vmatpush1.msra.mxu0 0.0
    %3655 = vmatprep.subr.mxu0 0.0
    %3656 = vmatpush1.msra.mxu0 0.0
    %3657 = vmatprep.subr.mxu0 0.0
    %3658 = vmatpush1.msra.mxu0 0.0
    %3659 = vmatprep.subr.mxu0 0.0
    %3660 = vmatpush1.msra.mxu0 0.0
    %3661 = vmatprep.subr.mxu0 0.0
    %3662 = vmatpush1.msra.mxu0 0.0
    %3663 = vmatprep.subr.mxu0 0.0
    %3664 = vmatpush1.msra.mxu0 0.0
    %3665 = vmatprep.subr.mxu0 0.0
    %3666 = vmatpush1.msra.mxu0 0.0
    %3667 = vmatprep.subr.mxu0 0.0
    %3668 = vmatpush1.msra.mxu0 0.0
    %3669 = vmatprep.subr.mxu0 0.0
    %3670 = vmatpush1.msra.mxu0 %v3626
    %3671 = vmatprep.subr.mxu0 0.0
    %3672 = vmatpush1.msra.mxu0 %v3624
    %3673 = vmatprep.subr.mxu0 0.0
    %3674 = vmatpush2.msra.mxu0 0.0
    %3675 = vmatprep.subr.mxu0 0.0
    %3676 = vmatpush2.msra.mxu0 0.0
    %3677 = vmatprep.subr.mxu0 0.0
    %3678 = vmatpush2.msra.mxu0 0.0
    %3679 = vmatprep.subr.mxu0 0.0
    %3680 = vmatpush2.msra.mxu0 0.0
    %3681 = vmatprep.subr.mxu0 0.0
    %3682 = vmatpush2.msra.mxu0 0.0
    %3683 = vmatprep.subr.mxu0 0.0
    %3684 = vmatpush2.msra.mxu0 0.0
    %3685 = vmatprep.subr.mxu0 0.0
    %3686 = vmatpush2.msra.mxu0 0.0
    %3687 = vmatprep.subr.mxu0 0.0
    %3688 = vmatpush2.msra.mxu0 0.0
    %3689 = vmatprep.subr.mxu0 0.0
    %3690 = vmatpush2.msra.mxu0 0.0
    %3691 = vmatprep.subr.mxu0 0.0
    %3692 = vmatpush2.msra.mxu0 0.0
    %3693 = vmatprep.subr.mxu0 0.0
    %3694 = vmatpush2.msra.mxu0 0.0
    %3695 = vmatprep.subr.mxu0 0.0
    %3696 = vmatpush2.msra.mxu0 0.0
    %3697 = vmatprep.subr.mxu0 0.0
    %3698 = vmatpush2.msra.mxu0 0.0
    %3699 = vmatprep.subr.mxu0 0.0
    %3700 = vmatpush2.msra.mxu0 0.0
    %3701 = vmatprep.subr.mxu0 0.0
    %3702 = vmatpush2.msra.mxu0 0.0
    %3703 = vmatprep.subr.mxu0 0.0
    %3704 = vmatpush2.msra.mxu0 0.0
    %3705 = vmatprep.mubr.f32.mxu0 0.0
    %3706 = vmatmul.mubr.f32.gmra.mxu0 %v3630
    %v3707 = vpop.f32.mrf.mxu0
    %v3708 = vadd.f32 0.0, %v3707
    %v3709 = vpop.f32.mrf.mxu0
    %3710 = vmatprep.mubr.f32.mxu0 0.0
    %3711 = vmatmul.mubr.f32.gmra.mxu0 %v3633
    %v3712 = vpop.f32.mrf.mxu0
    %v3713 = vadd.f32 0.0, %v3712
    %v3714 = vpop.f32.mrf.mxu0
    %3715 = vmatprep.mubr.f32.mxu0 0.0
    %3716 = vmatmul.mubr.f32.gmra.mxu0 %v3636
    %v3717 = vpop.f32.mrf.mxu0
    %v3718 = vadd.f32 0.0, %v3717
    %v3719 = vpop.f32.mrf.mxu0
    %3720 = vmatprep.mubr.f32.mxu0 0.0
    %3721 = vmatmul.mubr.f32.gmra.mxu0 %v3639
    %v3722 = vpop.f32.mrf.mxu0
    %v3723 = vadd.f32 0.0, %v3722
    %v3724 = vpop.f32.mrf.mxu0
    %3725 = vdwg.mxu0
    %v3726 = vadd.f32 %v3452, %v3708
    %v3727 = vadd.f32 %v3457, %v3713
    %v3728 = vadd.f32 %v3462, %v3718
    %v3729 = vadd.f32 %v3467, %v3723
    %v3730 = vmul.f32 %v2777, %v135
    %v3731 = vmul.f32 %v2782, %v135
    %v3732 = vmul.f32 %v2787, %v135
    %v3733 = vmul.f32 %v2792, %v135
    %v3735 = vsel %vm51, %v3730, 0
    %v3738 = vsel %vm51, %v3731, 0
    %v3741 = vsel %vm51, %v3732, 0
    %v3744 = vsel %vm51, %v3733, 0
    %3746 = vmatprep.subr.mxu0 0.0
    %3747 = vmatpush1.xpose.msra.mxu0 0.0
    %3748 = vmatprep.subr.mxu0 0.0
    %3749 = vmatpush1.xpose.msra.mxu0 0.0
    %3750 = vmatprep.subr.mxu0 0.0
    %3751 = vmatpush1.xpose.msra.mxu0 0.0
    %3752 = vmatprep.subr.mxu0 0.0
    %3753 = vmatpush1.xpose.msra.mxu0 0.0
    %3754 = vmatprep.subr.mxu0 0.0
    %3755 = vmatpush1.xpose.msra.mxu0 0.0
    %3756 = vmatprep.subr.mxu0 0.0
    %3757 = vmatpush1.xpose.msra.mxu0 0.0
    %3758 = vmatprep.subr.mxu0 0.0
    %3759 = vmatpush1.xpose.msra.mxu0 0.0
    %3760 = vmatprep.subr.mxu0 0.0
    %3761 = vmatpush1.xpose.msra.mxu0 0.0
    %3762 = vmatprep.subr.mxu0 0.0
    %3763 = vmatpush1.xpose.msra.mxu0 0.0
    %3764 = vmatprep.subr.mxu0 0.0
    %3765 = vmatpush1.xpose.msra.mxu0 0.0
    %3766 = vmatprep.subr.mxu0 0.0
    %3767 = vmatpush1.xpose.msra.mxu0 0.0
    %3768 = vmatprep.subr.mxu0 0.0
    %3769 = vmatpush1.xpose.msra.mxu0 0.0
    %3770 = vmatprep.subr.mxu0 0.0
    %3771 = vmatpush1.xpose.msra.mxu0 0.0
    %3772 = vmatprep.subr.mxu0 0.0
    %3773 = vmatpush1.xpose.msra.mxu0 0.0
    %3774 = vmatprep.subr.mxu0 0.0
    %3775 = vmatpush1.xpose.msra.mxu0 %v2975
    %3776 = vmatprep.subr.mxu0 0.0
    %3777 = vmatpush1.xpose.msra.mxu0 %v2972
    %3778 = vmatprep.subr.mxu0 0.0
    %3779 = vmatpush2.xpose.msra.mxu0 0.0
    %3780 = vmatprep.subr.mxu0 0.0
    %3781 = vmatpush2.xpose.msra.mxu0 0.0
    %3782 = vmatprep.subr.mxu0 0.0
    %3783 = vmatpush2.xpose.msra.mxu0 0.0
    %3784 = vmatprep.subr.mxu0 0.0
    %3785 = vmatpush2.xpose.msra.mxu0 0.0
    %3786 = vmatprep.subr.mxu0 0.0
    %3787 = vmatpush2.xpose.msra.mxu0 0.0
    %3788 = vmatprep.subr.mxu0 0.0
    %3789 = vmatpush2.xpose.msra.mxu0 0.0
    %3790 = vmatprep.subr.mxu0 0.0
    %3791 = vmatpush2.xpose.msra.mxu0 0.0
    %3792 = vmatprep.subr.mxu0 0.0
    %3793 = vmatpush2.xpose.msra.mxu0 0.0
    %3794 = vmatprep.subr.mxu0 0.0
    %3795 = vmatpush2.xpose.msra.mxu0 0.0
    %3796 = vmatprep.subr.mxu0 0.0
    %3797 = vmatpush2.xpose.msra.mxu0 0.0
    %3798 = vmatprep.subr.mxu0 0.0
    %3799 = vmatpush2.xpose.msra.mxu0 0.0
    %3800 = vmatprep.subr.mxu0 0.0
    %3801 = vmatpush2.xpose.msra.mxu0 0.0
    %3802 = vmatprep.subr.mxu0 0.0
    %3803 = vmatpush2.xpose.msra.mxu0 0.0
    %3804 = vmatprep.subr.mxu0 0.0
    %3805 = vmatpush2.xpose.msra.mxu0 0.0
    %3806 = vmatprep.subr.mxu0 0.0
    %3807 = vmatpush2.xpose.msra.mxu0 0.0
    %3808 = vmatprep.subr.mxu0 0.0
    %3809 = vmatpush2.xpose.msra.mxu0 0.0
    %3810 = vmatprep.mubr.f32.mxu0 0.0
    %3811 = vmatmul.mubr.f32.gmra.mxu0 %v3735
    %v3812 = vpop.f32.mrf.mxu0
    %v3813 = vadd.f32 0.0, %v3812
    %v3814 = vpop.f32.mrf.mxu0
    %3815 = vmatprep.mubr.f32.mxu0 0.0
    %3816 = vmatmul.mubr.f32.gmra.mxu0 %v3738
    %v3817 = vpop.f32.mrf.mxu0
    %v3818 = vadd.f32 0.0, %v3817
    %v3819 = vpop.f32.mrf.mxu0
    %3820 = vmatprep.mubr.f32.mxu0 0.0
    %3821 = vmatmul.mubr.f32.gmra.mxu0 %v3741
    %v3822 = vpop.f32.mrf.mxu0
    %v3823 = vadd.f32 0.0, %v3822
    %v3824 = vpop.f32.mrf.mxu0
    %3825 = vmatprep.mubr.f32.mxu0 0.0
    %3826 = vmatmul.mubr.f32.gmra.mxu0 %v3744
    %v3827 = vpop.f32.mrf.mxu0
    %v3828 = vadd.f32 0.0, %v3827
    %v3829 = vpop.f32.mrf.mxu0
    %3830 = vdwg.mxu0
    %v3831 = vmul.f32 %v3813, 0.35355338
    %v3832 = vmul.f32 %v3818, 0.35355338
    %v3833 = vmul.f32 %v3823, 0.35355338
    %v3834 = vmul.f32 %v3828, 0.35355338
    %v3835 = vadd.f32 %v3831, %v2687
    %v3836 = vadd.f32 %v3832, %v2688
    %v3837 = vadd.f32 %v3833, %v2689
    %v3838 = vadd.f32 %v3834, %v2690
    %v3839 = vsel %vm3070, %v3835, -inf
    %3840 = vmax.xlane.f32.xlu0 %v3839
    %v3841 = vpop.xlane.xlu0 %3840
    %v3842 = vsel %vm3070, %v3836, -inf
    %3843 = vmax.xlane.f32.xlu0 %v3842
    %v3844 = vpop.xlane.xlu0 %3843
    %v3845 = vsel %vm3070, %v3837, -inf
    %3846 = vmax.xlane.f32.xlu0 %v3845
    %v3847 = vpop.xlane.xlu0 %3846
    %v3848 = vsel %vm3070, %v3838, -inf
    %3849 = vmax.xlane.f32.xlu0 %v3848
    %v3850 = vpop.xlane.xlu0 %3849
    %v3851 = vsub.f32 %v3835, %v3841
    %v3852 = vsub.f32 %v3836, %v3844
    %v3853 = vsub.f32 %v3837, %v3847
    %v3854 = vsub.f32 %v3838, %v3850
    %v3855 = vmul.f32 %v3851, 1.442695
    %v3856 = vpow.pop %v3855
    %v3857 = vmul.f32 %v3852, 1.442695
    %v3858 = vpow.pop %v3857
    %v3859 = vmul.f32 %v3853, 1.442695
    %v3860 = vpow.pop %v3859
    %v3861 = vmul.f32 %v3854, 1.442695
    %v3862 = vpow.pop %v3861
    %v3863 = vsel %vm3070, %v3856, 0.0
    %3864 = vadd.xlane.f32.xlu0 %v3863
    %v3865 = vpop.xlane.xlu0 %3864
    %v3866 = vsel %vm3070, %v3858, 0.0
    %3867 = vadd.xlane.f32.xlu0 %v3866
    %v3868 = vpop.xlane.xlu0 %3867
    %v3869 = vsel %vm3070, %v3860, 0.0
    %3870 = vadd.xlane.f32.xlu0 %v3869
    %v3871 = vpop.xlane.xlu0 %3870
    %v3872 = vsel %vm3070, %v3862, 0.0
    %3873 = vadd.xlane.f32.xlu0 %v3872
    %v3874 = vpop.xlane.xlu0 %3873
    %v3875 = vrcp.pop %v3865
    %v3876 = vmul.f32 %v3856, %v3875
    %v3877 = vrcp.pop %v3868
    %v3878 = vmul.f32 %v3858, %v3877
    %v3879 = vrcp.pop %v3871
    %v3880 = vmul.f32 %v3860, %v3879
    %v3881 = vrcp.pop %v3874
    %v3882 = vmul.f32 %v3862, %v3881
    %3883 = vrot.lane.b32.xlu0 %v2947, 32
    %v3884 = vpop.permute.xlu0 %3883
    %3885 = vrot.lane.b32.xlu0 %v2952, 32
    %v3886 = vpop.permute.xlu0 %3885
    %v3890 = vsel %vm3070, %v3876, 0
    %v3893 = vsel %vm3070, %v3878, 0
    %v3896 = vsel %vm3070, %v3880, 0
    %v3899 = vsel %vm3070, %v3882, 0
    %3901 = vmatprep.subr.mxu0 0.0
    %3902 = vmatpush1.msra.mxu0 0.0
    %3903 = vmatprep.subr.mxu0 0.0
    %3904 = vmatpush1.msra.mxu0 0.0
    %3905 = vmatprep.subr.mxu0 0.0
    %3906 = vmatpush1.msra.mxu0 0.0
    %3907 = vmatprep.subr.mxu0 0.0
    %3908 = vmatpush1.msra.mxu0 0.0
    %3909 = vmatprep.subr.mxu0 0.0
    %3910 = vmatpush1.msra.mxu0 0.0
    %3911 = vmatprep.subr.mxu0 0.0
    %3912 = vmatpush1.msra.mxu0 0.0
    %3913 = vmatprep.subr.mxu0 0.0
    %3914 = vmatpush1.msra.mxu0 0.0
    %3915 = vmatprep.subr.mxu0 0.0
    %3916 = vmatpush1.msra.mxu0 0.0
    %3917 = vmatprep.subr.mxu0 0.0
    %3918 = vmatpush1.msra.mxu0 0.0
    %3919 = vmatprep.subr.mxu0 0.0
    %3920 = vmatpush1.msra.mxu0 0.0
    %3921 = vmatprep.subr.mxu0 0.0
    %3922 = vmatpush1.msra.mxu0 0.0
    %3923 = vmatprep.subr.mxu0 0.0
    %3924 = vmatpush1.msra.mxu0 0.0
    %3925 = vmatprep.subr.mxu0 0.0
    %3926 = vmatpush1.msra.mxu0 0.0
    %3927 = vmatprep.subr.mxu0 0.0
    %3928 = vmatpush1.msra.mxu0 0.0
    %3929 = vmatprep.subr.mxu0 0.0
    %3930 = vmatpush1.msra.mxu0 %v3886
    %3931 = vmatprep.subr.mxu0 0.0
    %3932 = vmatpush1.msra.mxu0 %v3884
    %3933 = vmatprep.subr.mxu0 0.0
    %3934 = vmatpush2.msra.mxu0 0.0
    %3935 = vmatprep.subr.mxu0 0.0
    %3936 = vmatpush2.msra.mxu0 0.0
    %3937 = vmatprep.subr.mxu0 0.0
    %3938 = vmatpush2.msra.mxu0 0.0
    %3939 = vmatprep.subr.mxu0 0.0
    %3940 = vmatpush2.msra.mxu0 0.0
    %3941 = vmatprep.subr.mxu0 0.0
    %3942 = vmatpush2.msra.mxu0 0.0
    %3943 = vmatprep.subr.mxu0 0.0
    %3944 = vmatpush2.msra.mxu0 0.0
    %3945 = vmatprep.subr.mxu0 0.0
    %3946 = vmatpush2.msra.mxu0 0.0
    %3947 = vmatprep.subr.mxu0 0.0
    %3948 = vmatpush2.msra.mxu0 0.0
    %3949 = vmatprep.subr.mxu0 0.0
    %3950 = vmatpush2.msra.mxu0 0.0
    %3951 = vmatprep.subr.mxu0 0.0
    %3952 = vmatpush2.msra.mxu0 0.0
    %3953 = vmatprep.subr.mxu0 0.0
    %3954 = vmatpush2.msra.mxu0 0.0
    %3955 = vmatprep.subr.mxu0 0.0
    %3956 = vmatpush2.msra.mxu0 0.0
    %3957 = vmatprep.subr.mxu0 0.0
    %3958 = vmatpush2.msra.mxu0 0.0
    %3959 = vmatprep.subr.mxu0 0.0
    %3960 = vmatpush2.msra.mxu0 0.0
    %3961 = vmatprep.subr.mxu0 0.0
    %3962 = vmatpush2.msra.mxu0 0.0
    %3963 = vmatprep.subr.mxu0 0.0
    %3964 = vmatpush2.msra.mxu0 0.0
    %3965 = vmatprep.mubr.f32.mxu0 0.0
    %3966 = vmatmul.mubr.f32.gmra.mxu0 %v3890
    %v3967 = vpop.f32.mrf.mxu0
    %v3968 = vadd.f32 0.0, %v3967
    %v3969 = vpop.f32.mrf.mxu0
    %3970 = vmatprep.mubr.f32.mxu0 0.0
    %3971 = vmatmul.mubr.f32.gmra.mxu0 %v3893
    %v3972 = vpop.f32.mrf.mxu0
    %v3973 = vadd.f32 0.0, %v3972
    %v3974 = vpop.f32.mrf.mxu0
    %3975 = vmatprep.mubr.f32.mxu0 0.0
    %3976 = vmatmul.mubr.f32.gmra.mxu0 %v3896
    %v3977 = vpop.f32.mrf.mxu0
    %v3978 = vadd.f32 0.0, %v3977
    %v3979 = vpop.f32.mrf.mxu0
    %3980 = vmatprep.mubr.f32.mxu0 0.0
    %3981 = vmatmul.mubr.f32.gmra.mxu0 %v3899
    %v3982 = vpop.f32.mrf.mxu0
    %v3983 = vadd.f32 0.0, %v3982
    %v3984 = vpop.f32.mrf.mxu0
    %3985 = vdwg.mxu0
    %v3986 = vadd.f32 %v3726, %v3968
    %v3987 = vadd.f32 %v3727, %v3973
    %v3988 = vadd.f32 %v3728, %v3978
    %v3989 = vadd.f32 %v3729, %v3983
    %v3990 = vlaneseq
    %v3991 = vshrl.u32 %v3990, 7
    %v3992 = vsub.s32 0, %v3991
    %v3993 = vrot.slane %v2705, %v3992
    %v3994 = vadd.f32 %v3986, %v3993
    %v3995 = vadd.f32 %v3987, %v3993
    %v3996 = vadd.f32 %v3988, %v3993
    %v3997 = vadd.f32 %v3989, %v3993
    %v3998 = vld [vmem:[#allocation2 + $0x140] sm:$0xff]
    %v3999 = vld [vmem:[#allocation2 + $0x148] sm:$0xff]
    %v4000 = vld [vmem:[#allocation2 + $0x150] sm:$0xff]
    %v4001 = vld [vmem:[#allocation2 + $0x158] sm:$0xff]
    %v4002 = vld [vmem:[#allocation4 + $0x70] sm:$0x1]
    %v4003 = vld [vmem:[#allocation2 + $0x120] sm:$0xff]
    %v4004 = vld [vmem:[#allocation2 + $0x128] sm:$0xff]
    %v4005 = vld [vmem:[#allocation2 + $0x130] sm:$0xff]
    %v4006 = vld [vmem:[#allocation2 + $0x138] sm:$0xff]
    %v4007 = vld [vmem:[#allocation4 + $0x68] sm:$0x1]
    %v4008 = vlaneseq
    %v4009 = vshrl.u32 %v4008, 7
    %v4010 = vsub.s32 0, %v4009
    %v4011 = vrot.slane %v4007, %v4010
    %4012 = vmatprep.subr.mxu0 0.0
    %4013 = vmatpush1.msra.mxu0 0.0
    %4014 = vmatprep.subr.mxu0 0.0
    %4015 = vmatpush1.msra.mxu0 0.0
    %4016 = vmatprep.subr.mxu0 0.0
    %4017 = vmatpush1.msra.mxu0 0.0
    %4018 = vmatprep.subr.mxu0 0.0
    %4019 = vmatpush1.msra.mxu0 0.0
    %4020 = vmatprep.subr.mxu0 0.0
    %4021 = vmatpush1.msra.mxu0 0.0
    %4022 = vmatprep.subr.mxu0 0.0
    %4023 = vmatpush1.msra.mxu0 0.0
    %4024 = vmatprep.subr.mxu0 0.0
    %4025 = vmatpush1.msra.mxu0 0.0
    %4026 = vmatprep.subr.mxu0 0.0
    %4027 = vmatpush1.msra.mxu0 0.0
    %4028 = vmatprep.subr.mxu0 0.0
    %4029 = vmatpush1.msra.mxu0 0.0
    %4030 = vmatprep.subr.mxu0 0.0
    %4031 = vmatpush1.msra.mxu0 0.0
    %4032 = vmatprep.subr.mxu0 0.0
    %4033 = vmatpush1.msra.mxu0 0.0
    %4034 = vmatprep.subr.mxu0 0.0
    %4035 = vmatpush1.msra.mxu0 0.0
    %4036 = vmatprep.subr.mxu0 0.0
    %4037 = vmatpush1.msra.mxu0 %v4006
    %4038 = vmatprep.subr.mxu0 0.0
    %4039 = vmatpush1.msra.mxu0 %v4005
    %4040 = vmatprep.subr.mxu0 0.0
    %4041 = vmatpush1.msra.mxu0 %v4004
    %4042 = vmatprep.subr.mxu0 0.0
    %4043 = vmatpush1.msra.mxu0 %v4003
    %4044 = vmatprep.subr.mxu0 0.0
    %4045 = vmatpush2.msra.mxu0 0.0
    %4046 = vmatprep.subr.mxu0 0.0
    %4047 = vmatpush2.msra.mxu0 0.0
    %4048 = vmatprep.subr.mxu0 0.0
    %4049 = vmatpush2.msra.mxu0 0.0
    %4050 = vmatprep.subr.mxu0 0.0
    %4051 = vmatpush2.msra.mxu0 0.0
    %4052 = vmatprep.subr.mxu0 0.0
    %4053 = vmatpush2.msra.mxu0 0.0
    %4054 = vmatprep.subr.mxu0 0.0
    %4055 = vmatpush2.msra.mxu0 0.0
    %4056 = vmatprep.subr.mxu0 0.0
    %4057 = vmatpush2.msra.mxu0 0.0
    %4058 = vmatprep.subr.mxu0 0.0
    %4059 = vmatpush2.msra.mxu0 0.0
    %4060 = vmatprep.subr.mxu0 0.0
    %4061 = vmatpush2.msra.mxu0 0.0
    %4062 = vmatprep.subr.mxu0 0.0
    %4063 = vmatpush2.msra.mxu0 0.0
    %4064 = vmatprep.subr.mxu0 0.0
    %4065 = vmatpush2.msra.mxu0 0.0
    %4066 = vmatprep.subr.mxu0 0.0
    %4067 = vmatpush2.msra.mxu0 0.0
    %4068 = vmatprep.subr.mxu0 0.0
    %4069 = vmatpush2.msra.mxu0 0.0
    %4070 = vmatprep.subr.mxu0 0.0
    %4071 = vmatpush2.msra.mxu0 0.0
    %4072 = vmatprep.subr.mxu0 0.0
    %4073 = vmatpush2.msra.mxu0 0.0
    %4074 = vmatprep.subr.mxu0 0.0
    %4075 = vmatpush2.msra.mxu0 0.0
    %4076 = vmatprep.mubr.f32.mxu0 0.0
    %4077 = vmatmul.mubr.f32.gmra.mxu0 %v199
    %v4078 = vpop.f32.mrf.mxu0
    %v4079 = vadd.f32 %v4011, %v4078
    %v4080 = vpop.f32.mrf.mxu0
    %4081 = vmatprep.mubr.f32.mxu0 0.0
    %4082 = vmatmul.mubr.f32.gmra.mxu0 %v202
    %v4083 = vpop.f32.mrf.mxu0
    %v4084 = vadd.f32 %v4011, %v4083
    %v4085 = vpop.f32.mrf.mxu0
    %4086 = vmatprep.mubr.f32.mxu0 0.0
    %4087 = vmatmul.mubr.f32.gmra.mxu0 %v205
    %v4088 = vpop.f32.mrf.mxu0
    %v4089 = vadd.f32 %v4011, %v4088
    %v4090 = vpop.f32.mrf.mxu0
    %4091 = vmatprep.mubr.f32.mxu0 0.0
    %4092 = vmatmul.mubr.f32.gmra.mxu0 %v208
    %v4093 = vpop.f32.mrf.mxu0
    %v4094 = vadd.f32 %v4011, %v4093
    %v4095 = vpop.f32.mrf.mxu0
    %4096 = vdwg.mxu0
    %v4098 = vsel %vm51, 0.0, 0
    %4100 = vmatprep.subr.mxu0 0.0
    %4101 = vmatpush1.msra.mxu0 0.0
    %4102 = vmatprep.subr.mxu0 0.0
    %4103 = vmatpush1.msra.mxu0 0.0
    %4104 = vmatprep.subr.mxu0 0.0
    %4105 = vmatpush1.msra.mxu0 0.0
    %4106 = vmatprep.subr.mxu0 0.0
    %4107 = vmatpush1.msra.mxu0 0.0
    %4108 = vmatprep.subr.mxu0 0.0
    %4109 = vmatpush1.msra.mxu0 0.0
    %4110 = vmatprep.subr.mxu0 0.0
    %4111 = vmatpush1.msra.mxu0 0.0
    %4112 = vmatprep.subr.mxu0 0.0
    %4113 = vmatpush1.msra.mxu0 0.0
    %4114 = vmatprep.subr.mxu0 0.0
    %4115 = vmatpush1.msra.mxu0 0.0
    %4116 = vmatprep.subr.mxu0 0.0
    %4117 = vmatpush1.msra.mxu0 0.0
    %4118 = vmatprep.subr.mxu0 0.0
    %4119 = vmatpush1.msra.mxu0 0.0
    %4120 = vmatprep.subr.mxu0 0.0
    %4121 = vmatpush1.msra.mxu0 0.0
    %4122 = vmatprep.subr.mxu0 0.0
    %4123 = vmatpush1.msra.mxu0 0.0
    %4124 = vmatprep.subr.mxu0 0.0
    %4125 = vmatpush1.msra.mxu0 %v4001
    %4126 = vmatprep.subr.mxu0 0.0
    %4127 = vmatpush1.msra.mxu0 %v4000
    %4128 = vmatprep.subr.mxu0 0.0
    %4129 = vmatpush1.msra.mxu0 %v3999
    %4130 = vmatprep.subr.mxu0 0.0
    %4131 = vmatpush1.msra.mxu0 %v3998
    %4132 = vmatprep.subr.mxu0 0.0
    %4133 = vmatpush2.msra.mxu0 0.0
    %4134 = vmatprep.subr.mxu0 0.0
    %4135 = vmatpush2.msra.mxu0 0.0
    %4136 = vmatprep.subr.mxu0 0.0
    %4137 = vmatpush2.msra.mxu0 0.0
    %4138 = vmatprep.subr.mxu0 0.0
    %4139 = vmatpush2.msra.mxu0 0.0
    %4140 = vmatprep.subr.mxu0 0.0
    %4141 = vmatpush2.msra.mxu0 0.0
    %4142 = vmatprep.subr.mxu0 0.0
    %4143 = vmatpush2.msra.mxu0 0.0
    %4144 = vmatprep.subr.mxu0 0.0
    %4145 = vmatpush2.msra.mxu0 0.0
    %4146 = vmatprep.subr.mxu0 0.0
    %4147 = vmatpush2.msra.mxu0 0.0
    %4148 = vmatprep.subr.mxu0 0.0
    %4149 = vmatpush2.msra.mxu0 0.0
    %4150 = vmatprep.subr.mxu0 0.0
    %4151 = vmatpush2.msra.mxu0 0.0
    %4152 = vmatprep.subr.mxu0 0.0
    %4153 = vmatpush2.msra.mxu0 0.0
    %4154 = vmatprep.subr.mxu0 0.0
    %4155 = vmatpush2.msra.mxu0 0.0
    %4156 = vmatprep.subr.mxu0 0.0
    %4157 = vmatpush2.msra.mxu0 0.0
    %4158 = vmatprep.subr.mxu0 0.0
    %4159 = vmatpush2.msra.mxu0 0.0
    %4160 = vmatprep.subr.mxu0 0.0
    %4161 = vmatpush2.msra.mxu0 0.0
    %4162 = vmatprep.subr.mxu0 0.0
    %4163 = vmatpush2.msra.mxu0 0.0
    %4164 = vmatprep.mubr.f32.mxu0 0.0
    %4165 = vmatmul.mubr.f32.gmra.mxu0 %v4098
    %v4166 = vpop.f32.mrf.mxu0
    %v4167 = vadd.f32 0.0, %v4166
    %v4168 = vpop.f32.mrf.mxu0
    %4169 = vdwg.mxu0
    %v4170 = vadd.f32 %v4079, %v4167
    %v4171 = vxor.u32 %v4170, 2147483648
    %v4172 = vmul.f32 %v4171, 1.442695
    %v4173 = vpow.pop %v4172
    %v4174 = vadd.f32 %v4173, 1.0
    %v4175 = vrcp.pop %v4174
    %v4176 = vmul.f32 1.0, %v4175
    %v4177 = vlaneseq
    %v4178 = vshrl.u32 %v4177, 7
    %v4179 = vsub.s32 0, %v4178
    %v4180 = vrot.slane %v4002, %v4179
    %4182 = vrot.lane.b32.xlu0 %v4180, 64
    %v4183 = vpop.permute.xlu0 %4182
    %v4185 = vadd.f32 %v4167, %v4183
    %4187 = vrot.lane.b32.xlu0 %v4185, 64
    %v4188 = vpop.permute.xlu0 %4187
    %v4190 = vmul.f32 %v4176, %v4188
    %4192 = vrot.lane.b32.xlu0 %v4190, 64
    %v4193 = vpop.permute.xlu0 %4192
    %v4195 = vadd.f32 %v4079, %v4193
    %v4196 = vtanh.pop %v4195
    %v4197 = vsub.f32 1.0, %v4176
    %4199 = vrot.lane.b32.xlu0 %v4196, 96
    %v4200 = vpop.permute.xlu0 %4199
    %v4202 = vmul.f32 %v4197, %v4200
    %v4203 = vmul.f32 %v4176, 0.0
    %v4204 = vadd.f32 %v4202, %v4203
    %4206 = vrot.lane.b32.xlu0 %v4204, 96
    %v4207 = vpop.permute.xlu0 %4206
    %v4208 = vsel %vm51, %v4207, 0
    %4210 = vmatprep.subr.mxu0 0.0
    %4211 = vmatpush1.msra.mxu0 0.0
    %4212 = vmatprep.subr.mxu0 0.0
    %4213 = vmatpush1.msra.mxu0 0.0
    %4214 = vmatprep.subr.mxu0 0.0
    %4215 = vmatpush1.msra.mxu0 0.0
    %4216 = vmatprep.subr.mxu0 0.0
    %4217 = vmatpush1.msra.mxu0 0.0
    %4218 = vmatprep.subr.mxu0 0.0
    %4219 = vmatpush1.msra.mxu0 0.0
    %4220 = vmatprep.subr.mxu0 0.0
    %4221 = vmatpush1.msra.mxu0 0.0
    %4222 = vmatprep.subr.mxu0 0.0
    %4223 = vmatpush1.msra.mxu0 0.0
    %4224 = vmatprep.subr.mxu0 0.0
    %4225 = vmatpush1.msra.mxu0 0.0
    %4226 = vmatprep.subr.mxu0 0.0
    %4227 = vmatpush1.msra.mxu0 0.0
    %4228 = vmatprep.subr.mxu0 0.0
    %4229 = vmatpush1.msra.mxu0 0.0
    %4230 = vmatprep.subr.mxu0 0.0
    %4231 = vmatpush1.msra.mxu0 0.0
    %4232 = vmatprep.subr.mxu0 0.0
    %4233 = vmatpush1.msra.mxu0 0.0
    %4234 = vmatprep.subr.mxu0 0.0
    %4235 = vmatpush1.msra.mxu0 %v4001
    %4236 = vmatprep.subr.mxu0 0.0
    %4237 = vmatpush1.msra.mxu0 %v4000
    %4238 = vmatprep.subr.mxu0 0.0
    %4239 = vmatpush1.msra.mxu0 %v3999
    %4240 = vmatprep.subr.mxu0 0.0
    %4241 = vmatpush1.msra.mxu0 %v3998
    %4242 = vmatprep.subr.mxu0 0.0
    %4243 = vmatpush2.msra.mxu0 0.0
    %4244 = vmatprep.subr.mxu0 0.0
    %4245 = vmatpush2.msra.mxu0 0.0
    %4246 = vmatprep.subr.mxu0 0.0
    %4247 = vmatpush2.msra.mxu0 0.0
    %4248 = vmatprep.subr.mxu0 0.0
    %4249 = vmatpush2.msra.mxu0 0.0
    %4250 = vmatprep.subr.mxu0 0.0
    %4251 = vmatpush2.msra.mxu0 0.0
    %4252 = vmatprep.subr.mxu0 0.0
    %4253 = vmatpush2.msra.mxu0 0.0
    %4254 = vmatprep.subr.mxu0 0.0
    %4255 = vmatpush2.msra.mxu0 0.0
    %4256 = vmatprep.subr.mxu0 0.0
    %4257 = vmatpush2.msra.mxu0 0.0
    %4258 = vmatprep.subr.mxu0 0.0
    %4259 = vmatpush2.msra.mxu0 0.0
    %4260 = vmatprep.subr.mxu0 0.0
    %4261 = vmatpush2.msra.mxu0 0.0
    %4262 = vmatprep.subr.mxu0 0.0
    %4263 = vmatpush2.msra.mxu0 0.0
    %4264 = vmatprep.subr.mxu0 0.0
    %4265 = vmatpush2.msra.mxu0 0.0
    %4266 = vmatprep.subr.mxu0 0.0
    %4267 = vmatpush2.msra.mxu0 0.0
    %4268 = vmatprep.subr.mxu0 0.0
    %4269 = vmatpush2.msra.mxu0 0.0
    %4270 = vmatprep.subr.mxu0 0.0
    %4271 = vmatpush2.msra.mxu0 0.0
    %4272 = vmatprep.subr.mxu0 0.0
    %4273 = vmatpush2.msra.mxu0 0.0
    %4274 = vmatprep.mubr.f32.mxu0 0.0
    %4275 = vmatmul.mubr.f32.gmra.mxu0 %v4208
    %v4276 = vpop.f32.mrf.mxu0
    %v4277 = vadd.f32 0.0, %v4276
    %v4278 = vpop.f32.mrf.mxu0
    %4279 = vdwg.mxu0
    %v4281 = vrot.slane %v4277, 6
    %v4283 = vadd.f32 %v4079, %v4281
    %v4284 = vxor.u32 %v4283, 2147483648
    %v4285 = vmul.f32 %v4284, 1.442695
    %v4286 = vpow.pop %v4285
    %v4287 = vadd.f32 %v4286, 1.0
    %v4288 = vrcp.pop %v4287
    %v4289 = vmul.f32 1.0, %v4288
    %v4290 = vadd.f32 %v4277, %v4183
    %v4292 = vrot.slane %v4290, 6
    %4293 = vrot.lane.b32.xlu0 %v4292, 64
    %v4294 = vpop.permute.xlu0 %4293
    %v4296 = vmul.f32 %v4289, %v4294
    %4298 = vrot.lane.b32.xlu0 %v4296, 64
    %v4299 = vpop.permute.xlu0 %4298
    %v4301 = vadd.f32 %v4079, %v4299
    %v4302 = vtanh.pop %v4301
    %v4303 = vsub.f32 1.0, %v4289
    %4305 = vrot.lane.b32.xlu0 %v4302, 96
    %v4306 = vpop.permute.xlu0 %4305
    %v4308 = vmul.f32 %v4303, %v4306
    %v4309 = vrot.slane %v4204, 6
    %v4311 = vmul.f32 %v4289, %v4309
    %v4312 = vadd.f32 %v4308, %v4311
    %v4314 = vrot.slane %v4312, 2
    %4315 = vrot.lane.b32.xlu0 %v4314, 96
    %v4316 = vpop.permute.xlu0 %4315
    %v4317 = vsel %vm51, %v4316, 0
    %4319 = vmatprep.subr.mxu0 0.0
    %4320 = vmatpush1.msra.mxu0 0.0
    %4321 = vmatprep.subr.mxu0 0.0
    %4322 = vmatpush1.msra.mxu0 0.0
    %4323 = vmatprep.subr.mxu0 0.0
    %4324 = vmatpush1.msra.mxu0 0.0
    %4325 = vmatprep.subr.mxu0 0.0
    %4326 = vmatpush1.msra.mxu0 0.0
    %4327 = vmatprep.subr.mxu0 0.0
    %4328 = vmatpush1.msra.mxu0 0.0
    %4329 = vmatprep.subr.mxu0 0.0
    %4330 = vmatpush1.msra.mxu0 0.0
    %4331 = vmatprep.subr.mxu0 0.0
    %4332 = vmatpush1.msra.mxu0 0.0
    %4333 = vmatprep.subr.mxu0 0.0
    %4334 = vmatpush1.msra.mxu0 0.0
    %4335 = vmatprep.subr.mxu0 0.0
    %4336 = vmatpush1.msra.mxu0 0.0
    %4337 = vmatprep.subr.mxu0 0.0
    %4338 = vmatpush1.msra.mxu0 0.0
    %4339 = vmatprep.subr.mxu0 0.0
    %4340 = vmatpush1.msra.mxu0 0.0
    %4341 = vmatprep.subr.mxu0 0.0
    %4342 = vmatpush1.msra.mxu0 0.0
    %4343 = vmatprep.subr.mxu0 0.0
    %4344 = vmatpush1.msra.mxu0 %v4001
    %4345 = vmatprep.subr.mxu0 0.0
    %4346 = vmatpush1.msra.mxu0 %v4000
    %4347 = vmatprep.subr.mxu0 0.0
    %4348 = vmatpush1.msra.mxu0 %v3999
    %4349 = vmatprep.subr.mxu0 0.0
    %4350 = vmatpush1.msra.mxu0 %v3998
    %4351 = vmatprep.subr.mxu0 0.0
    %4352 = vmatpush2.msra.mxu0 0.0
    %4353 = vmatprep.subr.mxu0 0.0
    %4354 = vmatpush2.msra.mxu0 0.0
    %4355 = vmatprep.subr.mxu0 0.0
    %4356 = vmatpush2.msra.mxu0 0.0
    %4357 = vmatprep.subr.mxu0 0.0
    %4358 = vmatpush2.msra.mxu0 0.0
    %4359 = vmatprep.subr.mxu0 0.0
    %4360 = vmatpush2.msra.mxu0 0.0
    %4361 = vmatprep.subr.mxu0 0.0
    %4362 = vmatpush2.msra.mxu0 0.0
    %4363 = vmatprep.subr.mxu0 0.0
    %4364 = vmatpush2.msra.mxu0 0.0
    %4365 = vmatprep.subr.mxu0 0.0
    %4366 = vmatpush2.msra.mxu0 0.0
    %4367 = vmatprep.subr.mxu0 0.0
    %4368 = vmatpush2.msra.mxu0 0.0
    %4369 = vmatprep.subr.mxu0 0.0
    %4370 = vmatpush2.msra.mxu0 0.0
    %4371 = vmatprep.subr.mxu0 0.0
    %4372 = vmatpush2.msra.mxu0 0.0
    %4373 = vmatprep.subr.mxu0 0.0
    %4374 = vmatpush2.msra.mxu0 0.0
    %4375 = vmatprep.subr.mxu0 0.0
    %4376 = vmatpush2.msra.mxu0 0.0
    %4377 = vmatprep.subr.mxu0 0.0
    %4378 = vmatpush2.msra.mxu0 0.0
    %4379 = vmatprep.subr.mxu0 0.0
    %4380 = vmatpush2.msra.mxu0 0.0
    %4381 = vmatprep.subr.mxu0 0.0
    %4382 = vmatpush2.msra.mxu0 0.0
    %4383 = vmatprep.mubr.f32.mxu0 0.0
    %4384 = vmatmul.mubr.f32.gmra.mxu0 %v4317
    %v4385 = vpop.f32.mrf.mxu0
    %v4386 = vadd.f32 0.0, %v4385
    %v4387 = vpop.f32.mrf.mxu0
    %4388 = vdwg.mxu0
    %v4390 = vrot.slane %v4386, 4
    %v4392 = vadd.f32 %v4079, %v4390
    %v4393 = vxor.u32 %v4392, 2147483648
    %v4394 = vmul.f32 %v4393, 1.442695
    %v4395 = vpow.pop %v4394
    %v4396 = vadd.f32 %v4395, 1.0
    %v4397 = vrcp.pop %v4396
    %v4398 = vmul.f32 1.0, %v4397
    %v4399 = vadd.f32 %v4386, %v4183
    %v4401 = vrot.slane %v4399, 4
    %4402 = vrot.lane.b32.xlu0 %v4401, 64
    %v4403 = vpop.permute.xlu0 %4402
    %v4405 = vmul.f32 %v4398, %v4403
    %4407 = vrot.lane.b32.xlu0 %v4405, 64
    %v4408 = vpop.permute.xlu0 %4407
    %v4410 = vadd.f32 %v4079, %v4408
    %v4411 = vtanh.pop %v4410
    %v4412 = vsub.f32 1.0, %v4398
    %4414 = vrot.lane.b32.xlu0 %v4411, 96
    %v4415 = vpop.permute.xlu0 %4414
    %v4417 = vmul.f32 %v4412, %v4415
    %v4418 = vrot.slane %v4312, 6
    %v4420 = vmul.f32 %v4398, %v4418
    %v4421 = vadd.f32 %v4417, %v4420
    %v4423 = vrot.slane %v4421, 4
    %4424 = vrot.lane.b32.xlu0 %v4423, 96
    %v4425 = vpop.permute.xlu0 %4424
    %v4426 = vsel %vm51, %v4425, 0
    %4428 = vmatprep.subr.mxu0 0.0
    %4429 = vmatpush1.msra.mxu0 0.0
    %4430 = vmatprep.subr.mxu0 0.0
    %4431 = vmatpush1.msra.mxu0 0.0
    %4432 = vmatprep.subr.mxu0 0.0
    %4433 = vmatpush1.msra.mxu0 0.0
    %4434 = vmatprep.subr.mxu0 0.0
    %4435 = vmatpush1.msra.mxu0 0.0
    %4436 = vmatprep.subr.mxu0 0.0
    %4437 = vmatpush1.msra.mxu0 0.0
    %4438 = vmatprep.subr.mxu0 0.0
    %4439 = vmatpush1.msra.mxu0 0.0
    %4440 = vmatprep.subr.mxu0 0.0
    %4441 = vmatpush1.msra.mxu0 0.0
    %4442 = vmatprep.subr.mxu0 0.0
    %4443 = vmatpush1.msra.mxu0 0.0
    %4444 = vmatprep.subr.mxu0 0.0
    %4445 = vmatpush1.msra.mxu0 0.0
    %4446 = vmatprep.subr.mxu0 0.0
    %4447 = vmatpush1.msra.mxu0 0.0
    %4448 = vmatprep.subr.mxu0 0.0
    %4449 = vmatpush1.msra.mxu0 0.0
    %4450 = vmatprep.subr.mxu0 0.0
    %4451 = vmatpush1.msra.mxu0 0.0
    %4452 = vmatprep.subr.mxu0 0.0
    %4453 = vmatpush1.msra.mxu0 %v4001
    %4454 = vmatprep.subr.mxu0 0.0
    %4455 = vmatpush1.msra.mxu0 %v4000
    %4456 = vmatprep.subr.mxu0 0.0
    %4457 = vmatpush1.msra.mxu0 %v3999
    %4458 = vmatprep.subr.mxu0 0.0
    %4459 = vmatpush1.msra.mxu0 %v3998
    %4460 = vmatprep.subr.mxu0 0.0
    %4461 = vmatpush2.msra.mxu0 0.0
    %4462 = vmatprep.subr.mxu0 0.0
    %4463 = vmatpush2.msra.mxu0 0.0
    %4464 = vmatprep.subr.mxu0 0.0
    %4465 = vmatpush2.msra.mxu0 0.0
    %4466 = vmatprep.subr.mxu0 0.0
    %4467 = vmatpush2.msra.mxu0 0.0
    %4468 = vmatprep.subr.mxu0 0.0
    %4469 = vmatpush2.msra.mxu0 0.0
    %4470 = vmatprep.subr.mxu0 0.0
    %4471 = vmatpush2.msra.mxu0 0.0
    %4472 = vmatprep.subr.mxu0 0.0
    %4473 = vmatpush2.msra.mxu0 0.0
    %4474 = vmatprep.subr.mxu0 0.0
    %4475 = vmatpush2.msra.mxu0 0.0
    %4476 = vmatprep.subr.mxu0 0.0
    %4477 = vmatpush2.msra.mxu0 0.0
    %4478 = vmatprep.subr.mxu0 0.0
    %4479 = vmatpush2.msra.mxu0 0.0
    %4480 = vmatprep.subr.mxu0 0.0
    %4481 = vmatpush2.msra.mxu0 0.0
    %4482 = vmatprep.subr.mxu0 0.0
    %4483 = vmatpush2.msra.mxu0 0.0
    %4484 = vmatprep.subr.mxu0 0.0
    %4485 = vmatpush2.msra.mxu0 0.0
    %4486 = vmatprep.subr.mxu0 0.0
    %4487 = vmatpush2.msra.mxu0 0.0
    %4488 = vmatprep.subr.mxu0 0.0
    %4489 = vmatpush2.msra.mxu0 0.0
    %4490 = vmatprep.subr.mxu0 0.0
    %4491 = vmatpush2.msra.mxu0 0.0
    %4492 = vmatprep.mubr.f32.mxu0 0.0
    %4493 = vmatmul.mubr.f32.gmra.mxu0 %v4426
    %v4494 = vpop.f32.mrf.mxu0
    %v4495 = vadd.f32 0.0, %v4494
    %v4496 = vpop.f32.mrf.mxu0
    %4497 = vdwg.mxu0
    %v4499 = vrot.slane %v4495, 2
    %v4501 = vadd.f32 %v4079, %v4499
    %v4502 = vxor.u32 %v4501, 2147483648
    %v4503 = vmul.f32 %v4502, 1.442695
    %v4504 = vpow.pop %v4503
    %v4505 = vadd.f32 %v4504, 1.0
    %v4506 = vrcp.pop %v4505
    %v4507 = vmul.f32 1.0, %v4506
    %v4508 = vadd.f32 %v4495, %v4183
    %v4510 = vrot.slane %v4508, 2
    %4511 = vrot.lane.b32.xlu0 %v4510, 64
    %v4512 = vpop.permute.xlu0 %4511
    %v4514 = vmul.f32 %v4507, %v4512
    %4516 = vrot.lane.b32.xlu0 %v4514, 64
    %v4517 = vpop.permute.xlu0 %4516
    %v4519 = vadd.f32 %v4079, %v4517
    %v4520 = vtanh.pop %v4519
    %v4521 = vsub.f32 1.0, %v4507
    %4523 = vrot.lane.b32.xlu0 %v4520, 96
    %v4524 = vpop.permute.xlu0 %4523
    %v4526 = vmul.f32 %v4521, %v4524
    %v4527 = vrot.slane %v4421, 6
    %v4529 = vmul.f32 %v4507, %v4527
    %v4530 = vadd.f32 %v4526, %v4529
    %v4532 = vrot.slane %v4530, 6
    %4533 = vrot.lane.b32.xlu0 %v4532, 96
    %v4534 = vpop.permute.xlu0 %4533
    %v4535 = vsel %vm51, %v4534, 0
    %4537 = vmatprep.subr.mxu0 0.0
    %4538 = vmatpush1.msra.mxu0 0.0
    %4539 = vmatprep.subr.mxu0 0.0
    %4540 = vmatpush1.msra.mxu0 0.0
    %4541 = vmatprep.subr.mxu0 0.0
    %4542 = vmatpush1.msra.mxu0 0.0
    %4543 = vmatprep.subr.mxu0 0.0
    %4544 = vmatpush1.msra.mxu0 0.0
    %4545 = vmatprep.subr.mxu0 0.0
    %4546 = vmatpush1.msra.mxu0 0.0
    %4547 = vmatprep.subr.mxu0 0.0
    %4548 = vmatpush1.msra.mxu0 0.0
    %4549 = vmatprep.subr.mxu0 0.0
    %4550 = vmatpush1.msra.mxu0 0.0
    %4551 = vmatprep.subr.mxu0 0.0
    %4552 = vmatpush1.msra.mxu0 0.0
    %4553 = vmatprep.subr.mxu0 0.0
    %4554 = vmatpush1.msra.mxu0 0.0
    %4555 = vmatprep.subr.mxu0 0.0
    %4556 = vmatpush1.msra.mxu0 0.0
    %4557 = vmatprep.subr.mxu0 0.0
    %4558 = vmatpush1.msra.mxu0 0.0
    %4559 = vmatprep.subr.mxu0 0.0
    %4560 = vmatpush1.msra.mxu0 0.0
    %4561 = vmatprep.subr.mxu0 0.0
    %4562 = vmatpush1.msra.mxu0 %v4001
    %4563 = vmatprep.subr.mxu0 0.0
    %4564 = vmatpush1.msra.mxu0 %v4000
    %4565 = vmatprep.subr.mxu0 0.0
    %4566 = vmatpush1.msra.mxu0 %v3999
    %4567 = vmatprep.subr.mxu0 0.0
    %4568 = vmatpush1.msra.mxu0 %v3998
    %4569 = vmatprep.subr.mxu0 0.0
    %4570 = vmatpush2.msra.mxu0 0.0
    %4571 = vmatprep.subr.mxu0 0.0
    %4572 = vmatpush2.msra.mxu0 0.0
    %4573 = vmatprep.subr.mxu0 0.0
    %4574 = vmatpush2.msra.mxu0 0.0
    %4575 = vmatprep.subr.mxu0 0.0
    %4576 = vmatpush2.msra.mxu0 0.0
    %4577 = vmatprep.subr.mxu0 0.0
    %4578 = vmatpush2.msra.mxu0 0.0
    %4579 = vmatprep.subr.mxu0 0.0
    %4580 = vmatpush2.msra.mxu0 0.0
    %4581 = vmatprep.subr.mxu0 0.0
    %4582 = vmatpush2.msra.mxu0 0.0
    %4583 = vmatprep.subr.mxu0 0.0
    %4584 = vmatpush2.msra.mxu0 0.0
    %4585 = vmatprep.subr.mxu0 0.0
    %4586 = vmatpush2.msra.mxu0 0.0
    %4587 = vmatprep.subr.mxu0 0.0
    %4588 = vmatpush2.msra.mxu0 0.0
    %4589 = vmatprep.subr.mxu0 0.0
    %4590 = vmatpush2.msra.mxu0 0.0
    %4591 = vmatprep.subr.mxu0 0.0
    %4592 = vmatpush2.msra.mxu0 0.0
    %4593 = vmatprep.subr.mxu0 0.0
    %4594 = vmatpush2.msra.mxu0 0.0
    %4595 = vmatprep.subr.mxu0 0.0
    %4596 = vmatpush2.msra.mxu0 0.0
    %4597 = vmatprep.subr.mxu0 0.0
    %4598 = vmatpush2.msra.mxu0 0.0
    %4599 = vmatprep.subr.mxu0 0.0
    %4600 = vmatpush2.msra.mxu0 0.0
    %4601 = vmatprep.mubr.f32.mxu0 0.0
    %4602 = vmatmul.mubr.f32.gmra.mxu0 %v4535
    %v4603 = vpop.f32.mrf.mxu0
    %v4604 = vadd.f32 0.0, %v4603
    %v4605 = vpop.f32.mrf.mxu0
    %4606 = vdwg.mxu0
    %v4607 = vadd.f32 %v4084, %v4604
    %v4608 = vxor.u32 %v4607, 2147483648
    %v4609 = vmul.f32 %v4608, 1.442695
    %v4610 = vpow.pop %v4609
    %v4611 = vadd.f32 %v4610, 1.0
    %v4612 = vrcp.pop %v4611
    %v4613 = vmul.f32 1.0, %v4612
    %v4614 = vadd.f32 %v4604, %v4183
    %4616 = vrot.lane.b32.xlu0 %v4614, 64
    %v4617 = vpop.permute.xlu0 %4616
    %v4619 = vmul.f32 %v4613, %v4617
    %4621 = vrot.lane.b32.xlu0 %v4619, 64
    %v4622 = vpop.permute.xlu0 %4621
    %v4624 = vadd.f32 %v4084, %v4622
    %v4625 = vtanh.pop %v4624
    %v4626 = vsub.f32 1.0, %v4613
    %4628 = vrot.lane.b32.xlu0 %v4625, 96
    %v4629 = vpop.permute.xlu0 %4628
    %v4631 = vmul.f32 %v4626, %v4629
    %v4633 = vmul.f32 %v4613, %v4532
    %v4634 = vadd.f32 %v4631, %v4633
    %4636 = vrot.lane.b32.xlu0 %v4634, 96
    %v4637 = vpop.permute.xlu0 %4636
    %v4638 = vsel %vm51, %v4637, 0
    %4640 = vmatprep.subr.mxu0 0.0
    %4641 = vmatpush1.msra.mxu0 0.0
    %4642 = vmatprep.subr.mxu0 0.0
    %4643 = vmatpush1.msra.mxu0 0.0
    %4644 = vmatprep.subr.mxu0 0.0
    %4645 = vmatpush1.msra.mxu0 0.0
    %4646 = vmatprep.subr.mxu0 0.0
    %4647 = vmatpush1.msra.mxu0 0.0
    %4648 = vmatprep.subr.mxu0 0.0
    %4649 = vmatpush1.msra.mxu0 0.0
    %4650 = vmatprep.subr.mxu0 0.0
    %4651 = vmatpush1.msra.mxu0 0.0
    %4652 = vmatprep.subr.mxu0 0.0
    %4653 = vmatpush1.msra.mxu0 0.0
    %4654 = vmatprep.subr.mxu0 0.0
    %4655 = vmatpush1.msra.mxu0 0.0
    %4656 = vmatprep.subr.mxu0 0.0
    %4657 = vmatpush1.msra.mxu0 0.0
    %4658 = vmatprep.subr.mxu0 0.0
    %4659 = vmatpush1.msra.mxu0 0.0
    %4660 = vmatprep.subr.mxu0 0.0
    %4661 = vmatpush1.msra.mxu0 0.0
    %4662 = vmatprep.subr.mxu0 0.0
    %4663 = vmatpush1.msra.mxu0 0.0
    %4664 = vmatprep.subr.mxu0 0.0
    %4665 = vmatpush1.msra.mxu0 %v4001
    %4666 = vmatprep.subr.mxu0 0.0
    %4667 = vmatpush1.msra.mxu0 %v4000
    %4668 = vmatprep.subr.mxu0 0.0
    %4669 = vmatpush1.msra.mxu0 %v3999
    %4670 = vmatprep.subr.mxu0 0.0
    %4671 = vmatpush1.msra.mxu0 %v3998
    %4672 = vmatprep.subr.mxu0 0.0
    %4673 = vmatpush2.msra.mxu0 0.0
    %4674 = vmatprep.subr.mxu0 0.0
    %4675 = vmatpush2.msra.mxu0 0.0
    %4676 = vmatprep.subr.mxu0 0.0
    %4677 = vmatpush2.msra.mxu0 0.0
    %4678 = vmatprep.subr.mxu0 0.0
    %4679 = vmatpush2.msra.mxu0 0.0
    %4680 = vmatprep.subr.mxu0 0.0
    %4681 = vmatpush2.msra.mxu0 0.0
    %4682 = vmatprep.subr.mxu0 0.0
    %4683 = vmatpush2.msra.mxu0 0.0
    %4684 = vmatprep.subr.mxu0 0.0
    %4685 = vmatpush2.msra.mxu0 0.0
    %4686 = vmatprep.subr.mxu0 0.0
    %4687 = vmatpush2.msra.mxu0 0.0
    %4688 = vmatprep.subr.mxu0 0.0
    %4689 = vmatpush2.msra.mxu0 0.0
    %4690 = vmatprep.subr.mxu0 0.0
    %4691 = vmatpush2.msra.mxu0 0.0
    %4692 = vmatprep.subr.mxu0 0.0
    %4693 = vmatpush2.msra.mxu0 0.0
    %4694 = vmatprep.subr.mxu0 0.0
    %4695 = vmatpush2.msra.mxu0 0.0
    %4696 = vmatprep.subr.mxu0 0.0
    %4697 = vmatpush2.msra.mxu0 0.0
    %4698 = vmatprep.subr.mxu0 0.0
    %4699 = vmatpush2.msra.mxu0 0.0
    %4700 = vmatprep.subr.mxu0 0.0
    %4701 = vmatpush2.msra.mxu0 0.0
    %4702 = vmatprep.subr.mxu0 0.0
    %4703 = vmatpush2.msra.mxu0 0.0
    %4704 = vmatprep.mubr.f32.mxu0 0.0
    %4705 = vmatmul.mubr.f32.gmra.mxu0 %v4638
    %v4706 = vpop.f32.mrf.mxu0
    %v4707 = vadd.f32 0.0, %v4706
    %v4708 = vpop.f32.mrf.mxu0
    %4709 = vdwg.mxu0
    %v4711 = vrot.slane %v4707, 6
    %v4713 = vadd.f32 %v4084, %v4711
    %v4714 = vxor.u32 %v4713, 2147483648
    %v4715 = vmul.f32 %v4714, 1.442695
    %v4716 = vpow.pop %v4715
    %v4717 = vadd.f32 %v4716, 1.0
    %v4718 = vrcp.pop %v4717
    %v4719 = vmul.f32 1.0, %v4718
    %v4720 = vadd.f32 %v4707, %v4183
    %v4722 = vrot.slane %v4720, 6
    %4723 = vrot.lane.b32.xlu0 %v4722, 64
    %v4724 = vpop.permute.xlu0 %4723
    %v4726 = vmul.f32 %v4719, %v4724
    %4728 = vrot.lane.b32.xlu0 %v4726, 64
    %v4729 = vpop.permute.xlu0 %4728
    %v4731 = vadd.f32 %v4084, %v4729
    %v4732 = vtanh.pop %v4731
    %v4733 = vsub.f32 1.0, %v4719
    %4735 = vrot.lane.b32.xlu0 %v4732, 96
    %v4736 = vpop.permute.xlu0 %4735
    %v4738 = vmul.f32 %v4733, %v4736
    %v4739 = vrot.slane %v4634, 6
    %v4741 = vmul.f32 %v4719, %v4739
    %v4742 = vadd.f32 %v4738, %v4741
    %v4744 = vrot.slane %v4742, 2
    %4745 = vrot.lane.b32.xlu0 %v4744, 96
    %v4746 = vpop.permute.xlu0 %4745
    %v4747 = vsel %vm51, %v4746, 0
    %4749 = vmatprep.subr.mxu0 0.0
    %4750 = vmatpush1.msra.mxu0 0.0
    %4751 = vmatprep.subr.mxu0 0.0
    %4752 = vmatpush1.msra.mxu0 0.0
    %4753 = vmatprep.subr.mxu0 0.0
    %4754 = vmatpush1.msra.mxu0 0.0
    %4755 = vmatprep.subr.mxu0 0.0
    %4756 = vmatpush1.msra.mxu0 0.0
    %4757 = vmatprep.subr.mxu0 0.0
    %4758 = vmatpush1.msra.mxu0 0.0
    %4759 = vmatprep.subr.mxu0 0.0
    %4760 = vmatpush1.msra.mxu0 0.0
    %4761 = vmatprep.subr.mxu0 0.0
    %4762 = vmatpush1.msra.mxu0 0.0
    %4763 = vmatprep.subr.mxu0 0.0
    %4764 = vmatpush1.msra.mxu0 0.0
    %4765 = vmatprep.subr.mxu0 0.0
    %4766 = vmatpush1.msra.mxu0 0.0
    %4767 = vmatprep.subr.mxu0 0.0
    %4768 = vmatpush1.msra.mxu0 0.0
    %4769 = vmatprep.subr.mxu0 0.0
    %4770 = vmatpush1.msra.mxu0 0.0
    %4771 = vmatprep.subr.mxu0 0.0
    %4772 = vmatpush1.msra.mxu0 0.0
    %4773 = vmatprep.subr.mxu0 0.0
    %4774 = vmatpush1.msra.mxu0 %v4001
    %4775 = vmatprep.subr.mxu0 0.0
    %4776 = vmatpush1.msra.mxu0 %v4000
    %4777 = vmatprep.subr.mxu0 0.0
    %4778 = vmatpush1.msra.mxu0 %v3999
    %4779 = vmatprep.subr.mxu0 0.0
    %4780 = vmatpush1.msra.mxu0 %v3998
    %4781 = vmatprep.subr.mxu0 0.0
    %4782 = vmatpush2.msra.mxu0 0.0
    %4783 = vmatprep.subr.mxu0 0.0
    %4784 = vmatpush2.msra.mxu0 0.0
    %4785 = vmatprep.subr.mxu0 0.0
    %4786 = vmatpush2.msra.mxu0 0.0
    %4787 = vmatprep.subr.mxu0 0.0
    %4788 = vmatpush2.msra.mxu0 0.0
    %4789 = vmatprep.subr.mxu0 0.0
    %4790 = vmatpush2.msra.mxu0 0.0
    %4791 = vmatprep.subr.mxu0 0.0
    %4792 = vmatpush2.msra.mxu0 0.0
    %4793 = vmatprep.subr.mxu0 0.0
    %4794 = vmatpush2.msra.mxu0 0.0
    %4795 = vmatprep.subr.mxu0 0.0
    %4796 = vmatpush2.msra.mxu0 0.0
    %4797 = vmatprep.subr.mxu0 0.0
    %4798 = vmatpush2.msra.mxu0 0.0
    %4799 = vmatprep.subr.mxu0 0.0
    %4800 = vmatpush2.msra.mxu0 0.0
    %4801 = vmatprep.subr.mxu0 0.0
    %4802 = vmatpush2.msra.mxu0 0.0
    %4803 = vmatprep.subr.mxu0 0.0
    %4804 = vmatpush2.msra.mxu0 0.0
    %4805 = vmatprep.subr.mxu0 0.0
    %4806 = vmatpush2.msra.mxu0 0.0
    %4807 = vmatprep.subr.mxu0 0.0
    %4808 = vmatpush2.msra.mxu0 0.0
    %4809 = vmatprep.subr.mxu0 0.0
    %4810 = vmatpush2.msra.mxu0 0.0
    %4811 = vmatprep.subr.mxu0 0.0
    %4812 = vmatpush2.msra.mxu0 0.0
    %4813 = vmatprep.mubr.f32.mxu0 0.0
    %4814 = vmatmul.mubr.f32.gmra.mxu0 %v4747
    %v4815 = vpop.f32.mrf.mxu0
    %v4816 = vadd.f32 0.0, %v4815
    %v4817 = vpop.f32.mrf.mxu0
    %4818 = vdwg.mxu0
    %v4820 = vrot.slane %v4816, 4
    %v4822 = vadd.f32 %v4084, %v4820
    %v4823 = vxor.u32 %v4822, 2147483648
    %v4824 = vmul.f32 %v4823, 1.442695
    %v4825 = vpow.pop %v4824
    %v4826 = vadd.f32 %v4825, 1.0
    %v4827 = vrcp.pop %v4826
    %v4828 = vmul.f32 1.0, %v4827
    %v4829 = vadd.f32 %v4816, %v4183
    %v4831 = vrot.slane %v4829, 4
    %4832 = vrot.lane.b32.xlu0 %v4831, 64
    %v4833 = vpop.permute.xlu0 %4832
    %v4835 = vmul.f32 %v4828, %v4833
    %4837 = vrot.lane.b32.xlu0 %v4835, 64
    %v4838 = vpop.permute.xlu0 %4837
    %v4840 = vadd.f32 %v4084, %v4838
    %v4841 = vtanh.pop %v4840
    %v4842 = vsub.f32 1.0, %v4828
    %4844 = vrot.lane.b32.xlu0 %v4841, 96
    %v4845 = vpop.permute.xlu0 %4844
    %v4847 = vmul.f32 %v4842, %v4845
    %v4848 = vrot.slane %v4742, 6
    %v4850 = vmul.f32 %v4828, %v4848
    %v4851 = vadd.f32 %v4847, %v4850
    %v4853 = vrot.slane %v4851, 4
    %4854 = vrot.lane.b32.xlu0 %v4853, 96
    %v4855 = vpop.permute.xlu0 %4854
    %v4856 = vsel %vm51, %v4855, 0
    %4858 = vmatprep.subr.mxu0 0.0
    %4859 = vmatpush1.msra.mxu0 0.0
    %4860 = vmatprep.subr.mxu0 0.0
    %4861 = vmatpush1.msra.mxu0 0.0
    %4862 = vmatprep.subr.mxu0 0.0
    %4863 = vmatpush1.msra.mxu0 0.0
    %4864 = vmatprep.subr.mxu0 0.0
    %4865 = vmatpush1.msra.mxu0 0.0
    %4866 = vmatprep.subr.mxu0 0.0
    %4867 = vmatpush1.msra.mxu0 0.0
    %4868 = vmatprep.subr.mxu0 0.0
    %4869 = vmatpush1.msra.mxu0 0.0
    %4870 = vmatprep.subr.mxu0 0.0
    %4871 = vmatpush1.msra.mxu0 0.0
    %4872 = vmatprep.subr.mxu0 0.0
    %4873 = vmatpush1.msra.mxu0 0.0
    %4874 = vmatprep.subr.mxu0 0.0
    %4875 = vmatpush1.msra.mxu0 0.0
    %4876 = vmatprep.subr.mxu0 0.0
    %4877 = vmatpush1.msra.mxu0 0.0
    %4878 = vmatprep.subr.mxu0 0.0
    %4879 = vmatpush1.msra.mxu0 0.0
    %4880 = vmatprep.subr.mxu0 0.0
    %4881 = vmatpush1.msra.mxu0 0.0
    %4882 = vmatprep.subr.mxu0 0.0
    %4883 = vmatpush1.msra.mxu0 %v4001
    %4884 = vmatprep.subr.mxu0 0.0
    %4885 = vmatpush1.msra.mxu0 %v4000
    %4886 = vmatprep.subr.mxu0 0.0
    %4887 = vmatpush1.msra.mxu0 %v3999
    %4888 = vmatprep.subr.mxu0 0.0
    %4889 = vmatpush1.msra.mxu0 %v3998
    %4890 = vmatprep.subr.mxu0 0.0
    %4891 = vmatpush2.msra.mxu0 0.0
    %4892 = vmatprep.subr.mxu0 0.0
    %4893 = vmatpush2.msra.mxu0 0.0
    %4894 = vmatprep.subr.mxu0 0.0
    %4895 = vmatpush2.msra.mxu0 0.0
    %4896 = vmatprep.subr.mxu0 0.0
    %4897 = vmatpush2.msra.mxu0 0.0
    %4898 = vmatprep.subr.mxu0 0.0
    %4899 = vmatpush2.msra.mxu0 0.0
    %4900 = vmatprep.subr.mxu0 0.0
    %4901 = vmatpush2.msra.mxu0 0.0
    %4902 = vmatprep.subr.mxu0 0.0
    %4903 = vmatpush2.msra.mxu0 0.0
    %4904 = vmatprep.subr.mxu0 0.0
    %4905 = vmatpush2.msra.mxu0 0.0
    %4906 = vmatprep.subr.mxu0 0.0
    %4907 = vmatpush2.msra.mxu0 0.0
    %4908 = vmatprep.subr.mxu0 0.0
    %4909 = vmatpush2.msra.mxu0 0.0
    %4910 = vmatprep.subr.mxu0 0.0
    %4911 = vmatpush2.msra.mxu0 0.0
    %4912 = vmatprep.subr.mxu0 0.0
    %4913 = vmatpush2.msra.mxu0 0.0
    %4914 = vmatprep.subr.mxu0 0.0
    %4915 = vmatpush2.msra.mxu0 0.0
    %4916 = vmatprep.subr.mxu0 0.0
    %4917 = vmatpush2.msra.mxu0 0.0
    %4918 = vmatprep.subr.mxu0 0.0
    %4919 = vmatpush2.msra.mxu0 0.0
    %4920 = vmatprep.subr.mxu0 0.0
    %4921 = vmatpush2.msra.mxu0 0.0
    %4922 = vmatprep.mubr.f32.mxu0 0.0
    %4923 = vmatmul.mubr.f32.gmra.mxu0 %v4856
    %v4924 = vpop.f32.mrf.mxu0
    %v4925 = vadd.f32 0.0, %v4924
    %v4926 = vpop.f32.mrf.mxu0
    %4927 = vdwg.mxu0
    %v4929 = vrot.slane %v4925, 2
    %v4931 = vadd.f32 %v4084, %v4929
    %v4932 = vxor.u32 %v4931, 2147483648
    %v4933 = vmul.f32 %v4932, 1.442695
    %v4934 = vpow.pop %v4933
    %v4935 = vadd.f32 %v4934, 1.0
    %v4936 = vrcp.pop %v4935
    %v4937 = vmul.f32 1.0, %v4936
    %v4938 = vadd.f32 %v4925, %v4183
    %v4940 = vrot.slane %v4938, 2
    %4941 = vrot.lane.b32.xlu0 %v4940, 64
    %v4942 = vpop.permute.xlu0 %4941
    %v4944 = vmul.f32 %v4937, %v4942
    %4946 = vrot.lane.b32.xlu0 %v4944, 64
    %v4947 = vpop.permute.xlu0 %4946
    %v4949 = vadd.f32 %v4084, %v4947
    %v4950 = vtanh.pop %v4949
    %v4951 = vsub.f32 1.0, %v4937
    %4953 = vrot.lane.b32.xlu0 %v4950, 96
    %v4954 = vpop.permute.xlu0 %4953
    %v4956 = vmul.f32 %v4951, %v4954
    %v4957 = vrot.slane %v4851, 6
    %v4959 = vmul.f32 %v4937, %v4957
    %v4960 = vadd.f32 %v4956, %v4959
    %v4962 = vrot.slane %v4960, 6
    %4963 = vrot.lane.b32.xlu0 %v4962, 96
    %v4964 = vpop.permute.xlu0 %4963
    %v4965 = vsel %vm51, %v4964, 0
    %4967 = vmatprep.subr.mxu0 0.0
    %4968 = vmatpush1.msra.mxu0 0.0
    %4969 = vmatprep.subr.mxu0 0.0
    %4970 = vmatpush1.msra.mxu0 0.0
    %4971 = vmatprep.subr.mxu0 0.0
    %4972 = vmatpush1.msra.mxu0 0.0
    %4973 = vmatprep.subr.mxu0 0.0
    %4974 = vmatpush1.msra.mxu0 0.0
    %4975 = vmatprep.subr.mxu0 0.0
    %4976 = vmatpush1.msra.mxu0 0.0
    %4977 = vmatprep.subr.mxu0 0.0
    %4978 = vmatpush1.msra.mxu0 0.0
    %4979 = vmatprep.subr.mxu0 0.0
    %4980 = vmatpush1.msra.mxu0 0.0
    %4981 = vmatprep.subr.mxu0 0.0
    %4982 = vmatpush1.msra.mxu0 0.0
    %4983 = vmatprep.subr.mxu0 0.0
    %4984 = vmatpush1.msra.mxu0 0.0
    %4985 = vmatprep.subr.mxu0 0.0
    %4986 = vmatpush1.msra.mxu0 0.0
    %4987 = vmatprep.subr.mxu0 0.0
    %4988 = vmatpush1.msra.mxu0 0.0
    %4989 = vmatprep.subr.mxu0 0.0
    %4990 = vmatpush1.msra.mxu0 0.0
    %4991 = vmatprep.subr.mxu0 0.0
    %4992 = vmatpush1.msra.mxu0 %v4001
    %4993 = vmatprep.subr.mxu0 0.0
    %4994 = vmatpush1.msra.mxu0 %v4000
    %4995 = vmatprep.subr.mxu0 0.0
    %4996 = vmatpush1.msra.mxu0 %v3999
    %4997 = vmatprep.subr.mxu0 0.0
    %4998 = vmatpush1.msra.mxu0 %v3998
    %4999 = vmatprep.subr.mxu0 0.0
    %5000 = vmatpush2.msra.mxu0 0.0
    %5001 = vmatprep.subr.mxu0 0.0
    %5002 = vmatpush2.msra.mxu0 0.0
    %5003 = vmatprep.subr.mxu0 0.0
    %5004 = vmatpush2.msra.mxu0 0.0
    %5005 = vmatprep.subr.mxu0 0.0
    %5006 = vmatpush2.msra.mxu0 0.0
    %5007 = vmatprep.subr.mxu0 0.0
    %5008 = vmatpush2.msra.mxu0 0.0
    %5009 = vmatprep.subr.mxu0 0.0
    %5010 = vmatpush2.msra.mxu0 0.0
    %5011 = vmatprep.subr.mxu0 0.0
    %5012 = vmatpush2.msra.mxu0 0.0
    %5013 = vmatprep.subr.mxu0 0.0
    %5014 = vmatpush2.msra.mxu0 0.0
    %5015 = vmatprep.subr.mxu0 0.0
    %5016 = vmatpush2.msra.mxu0 0.0
    %5017 = vmatprep.subr.mxu0 0.0
    %5018 = vmatpush2.msra.mxu0 0.0
    %5019 = vmatprep.subr.mxu0 0.0
    %5020 = vmatpush2.msra.mxu0 0.0
    %5021 = vmatprep.subr.mxu0 0.0
    %5022 = vmatpush2.msra.mxu0 0.0
    %5023 = vmatprep.subr.mxu0 0.0
    %5024 = vmatpush2.msra.mxu0 0.0
    %5025 = vmatprep.subr.mxu0 0.0
    %5026 = vmatpush2.msra.mxu0 0.0
    %5027 = vmatprep.subr.mxu0 0.0
    %5028 = vmatpush2.msra.mxu0 0.0
    %5029 = vmatprep.subr.mxu0 0.0
    %5030 = vmatpush2.msra.mxu0 0.0
    %5031 = vmatprep.mubr.f32.mxu0 0.0
    %5032 = vmatmul.mubr.f32.gmra.mxu0 %v4965
    %v5033 = vpop.f32.mrf.mxu0
    %v5034 = vadd.f32 0.0, %v5033
    %v5035 = vpop.f32.mrf.mxu0
    %5036 = vdwg.mxu0
    %v5037 = vadd.f32 %v4089, %v5034
    %v5038 = vxor.u32 %v5037, 2147483648
    %v5039 = vmul.f32 %v5038, 1.442695
    %v5040 = vpow.pop %v5039
    %v5041 = vadd.f32 %v5040, 1.0
    %v5042 = vrcp.pop %v5041
    %v5043 = vmul.f32 1.0, %v5042
    %v5044 = vadd.f32 %v5034, %v4183
    %5046 = vrot.lane.b32.xlu0 %v5044, 64
    %v5047 = vpop.permute.xlu0 %5046
    %v5049 = vmul.f32 %v5043, %v5047
    %5051 = vrot.lane.b32.xlu0 %v5049, 64
    %v5052 = vpop.permute.xlu0 %5051
    %v5054 = vadd.f32 %v4089, %v5052
    %v5055 = vtanh.pop %v5054
    %v5056 = vsub.f32 1.0, %v5043
    %5058 = vrot.lane.b32.xlu0 %v5055, 96
    %v5059 = vpop.permute.xlu0 %5058
    %v5061 = vmul.f32 %v5056, %v5059
    %v5063 = vmul.f32 %v5043, %v4962
    %v5064 = vadd.f32 %v5061, %v5063
    %5066 = vrot.lane.b32.xlu0 %v5064, 96
    %v5067 = vpop.permute.xlu0 %5066
    %v5068 = vsel %vm51, %v5067, 0
    %5070 = vmatprep.subr.mxu0 0.0
    %5071 = vmatpush1.msra.mxu0 0.0
    %5072 = vmatprep.subr.mxu0 0.0
    %5073 = vmatpush1.msra.mxu0 0.0
    %5074 = vmatprep.subr.mxu0 0.0
    %5075 = vmatpush1.msra.mxu0 0.0
    %5076 = vmatprep.subr.mxu0 0.0
    %5077 = vmatpush1.msra.mxu0 0.0
    %5078 = vmatprep.subr.mxu0 0.0
    %5079 = vmatpush1.msra.mxu0 0.0
    %5080 = vmatprep.subr.mxu0 0.0
    %5081 = vmatpush1.msra.mxu0 0.0
    %5082 = vmatprep.subr.mxu0 0.0
    %5083 = vmatpush1.msra.mxu0 0.0
    %5084 = vmatprep.subr.mxu0 0.0
    %5085 = vmatpush1.msra.mxu0 0.0
    %5086 = vmatprep.subr.mxu0 0.0
    %5087 = vmatpush1.msra.mxu0 0.0
    %5088 = vmatprep.subr.mxu0 0.0
    %5089 = vmatpush1.msra.mxu0 0.0
    %5090 = vmatprep.subr.mxu0 0.0
    %5091 = vmatpush1.msra.mxu0 0.0
    %5092 = vmatprep.subr.mxu0 0.0
    %5093 = vmatpush1.msra.mxu0 0.0
    %5094 = vmatprep.subr.mxu0 0.0
    %5095 = vmatpush1.msra.mxu0 %v4001
    %5096 = vmatprep.subr.mxu0 0.0
    %5097 = vmatpush1.msra.mxu0 %v4000
    %5098 = vmatprep.subr.mxu0 0.0
    %5099 = vmatpush1.msra.mxu0 %v3999
    %5100 = vmatprep.subr.mxu0 0.0
    %5101 = vmatpush1.msra.mxu0 %v3998
    %5102 = vmatprep.subr.mxu0 0.0
    %5103 = vmatpush2.msra.mxu0 0.0
    %5104 = vmatprep.subr.mxu0 0.0
    %5105 = vmatpush2.msra.mxu0 0.0
    %5106 = vmatprep.subr.mxu0 0.0
    %5107 = vmatpush2.msra.mxu0 0.0
    %5108 = vmatprep.subr.mxu0 0.0
    %5109 = vmatpush2.msra.mxu0 0.0
    %5110 = vmatprep.subr.mxu0 0.0
    %5111 = vmatpush2.msra.mxu0 0.0
    %5112 = vmatprep.subr.mxu0 0.0
    %5113 = vmatpush2.msra.mxu0 0.0
    %5114 = vmatprep.subr.mxu0 0.0
    %5115 = vmatpush2.msra.mxu0 0.0
    %5116 = vmatprep.subr.mxu0 0.0
    %5117 = vmatpush2.msra.mxu0 0.0
    %5118 = vmatprep.subr.mxu0 0.0
    %5119 = vmatpush2.msra.mxu0 0.0
    %5120 = vmatprep.subr.mxu0 0.0
    %5121 = vmatpush2.msra.mxu0 0.0
    %5122 = vmatprep.subr.mxu0 0.0
    %5123 = vmatpush2.msra.mxu0 0.0
    %5124 = vmatprep.subr.mxu0 0.0
    %5125 = vmatpush2.msra.mxu0 0.0
    %5126 = vmatprep.subr.mxu0 0.0
    %5127 = vmatpush2.msra.mxu0 0.0
    %5128 = vmatprep.subr.mxu0 0.0
    %5129 = vmatpush2.msra.mxu0 0.0
    %5130 = vmatprep.subr.mxu0 0.0
    %5131 = vmatpush2.msra.mxu0 0.0
    %5132 = vmatprep.subr.mxu0 0.0
    %5133 = vmatpush2.msra.mxu0 0.0
    %5134 = vmatprep.mubr.f32.mxu0 0.0
    %5135 = vmatmul.mubr.f32.gmra.mxu0 %v5068
    %v5136 = vpop.f32.mrf.mxu0
    %v5137 = vadd.f32 0.0, %v5136
    %v5138 = vpop.f32.mrf.mxu0
    %5139 = vdwg.mxu0
    %v5141 = vrot.slane %v5137, 6
    %v5143 = vadd.f32 %v4089, %v5141
    %v5144 = vxor.u32 %v5143, 2147483648
    %v5145 = vmul.f32 %v5144, 1.442695
    %v5146 = vpow.pop %v5145
    %v5147 = vadd.f32 %v5146, 1.0
    %v5148 = vrcp.pop %v5147
    %v5149 = vmul.f32 1.0, %v5148
    %v5150 = vadd.f32 %v5137, %v4183
    %v5152 = vrot.slane %v5150, 6
    %5153 = vrot.lane.b32.xlu0 %v5152, 64
    %v5154 = vpop.permute.xlu0 %5153
    %v5156 = vmul.f32 %v5149, %v5154
    %5158 = vrot.lane.b32.xlu0 %v5156, 64
    %v5159 = vpop.permute.xlu0 %5158
    %v5161 = vadd.f32 %v4089, %v5159
    %v5162 = vtanh.pop %v5161
    %v5163 = vsub.f32 1.0, %v5149
    %5165 = vrot.lane.b32.xlu0 %v5162, 96
    %v5166 = vpop.permute.xlu0 %5165
    %v5168 = vmul.f32 %v5163, %v5166
    %v5169 = vrot.slane %v5064, 6
    %v5171 = vmul.f32 %v5149, %v5169
    %v5172 = vadd.f32 %v5168, %v5171
    %v5174 = vrot.slane %v5172, 2
    %5175 = vrot.lane.b32.xlu0 %v5174, 96
    %v5176 = vpop.permute.xlu0 %5175
    %v5177 = vsel %vm51, %v5176, 0
    %5179 = vmatprep.subr.mxu0 0.0
    %5180 = vmatpush1.msra.mxu0 0.0
    %5181 = vmatprep.subr.mxu0 0.0
    %5182 = vmatpush1.msra.mxu0 0.0
    %5183 = vmatprep.subr.mxu0 0.0
    %5184 = vmatpush1.msra.mxu0 0.0
    %5185 = vmatprep.subr.mxu0 0.0
    %5186 = vmatpush1.msra.mxu0 0.0
    %5187 = vmatprep.subr.mxu0 0.0
    %5188 = vmatpush1.msra.mxu0 0.0
    %5189 = vmatprep.subr.mxu0 0.0
    %5190 = vmatpush1.msra.mxu0 0.0
    %5191 = vmatprep.subr.mxu0 0.0
    %5192 = vmatpush1.msra.mxu0 0.0
    %5193 = vmatprep.subr.mxu0 0.0
    %5194 = vmatpush1.msra.mxu0 0.0
    %5195 = vmatprep.subr.mxu0 0.0
    %5196 = vmatpush1.msra.mxu0 0.0
    %5197 = vmatprep.subr.mxu0 0.0
    %5198 = vmatpush1.msra.mxu0 0.0
    %5199 = vmatprep.subr.mxu0 0.0
    %5200 = vmatpush1.msra.mxu0 0.0
    %5201 = vmatprep.subr.mxu0 0.0
    %5202 = vmatpush1.msra.mxu0 0.0
    %5203 = vmatprep.subr.mxu0 0.0
    %5204 = vmatpush1.msra.mxu0 %v4001
    %5205 = vmatprep.subr.mxu0 0.0
    %5206 = vmatpush1.msra.mxu0 %v4000
    %5207 = vmatprep.subr.mxu0 0.0
    %5208 = vmatpush1.msra.mxu0 %v3999
    %5209 = vmatprep.subr.mxu0 0.0
    %5210 = vmatpush1.msra.mxu0 %v3998
    %5211 = vmatprep.subr.mxu0 0.0
    %5212 = vmatpush2.msra.mxu0 0.0
    %5213 = vmatprep.subr.mxu0 0.0
    %5214 = vmatpush2.msra.mxu0 0.0
    %5215 = vmatprep.subr.mxu0 0.0
    %5216 = vmatpush2.msra.mxu0 0.0
    %5217 = vmatprep.subr.mxu0 0.0
    %5218 = vmatpush2.msra.mxu0 0.0
    %5219 = vmatprep.subr.mxu0 0.0
    %5220 = vmatpush2.msra.mxu0 0.0
    %5221 = vmatprep.subr.mxu0 0.0
    %5222 = vmatpush2.msra.mxu0 0.0
    %5223 = vmatprep.subr.mxu0 0.0
    %5224 = vmatpush2.msra.mxu0 0.0
    %5225 = vmatprep.subr.mxu0 0.0
    %5226 = vmatpush2.msra.mxu0 0.0
    %5227 = vmatprep.subr.mxu0 0.0
    %5228 = vmatpush2.msra.mxu0 0.0
    %5229 = vmatprep.subr.mxu0 0.0
    %5230 = vmatpush2.msra.mxu0 0.0
    %5231 = vmatprep.subr.mxu0 0.0
    %5232 = vmatpush2.msra.mxu0 0.0
    %5233 = vmatprep.subr.mxu0 0.0
    %5234 = vmatpush2.msra.mxu0 0.0
    %5235 = vmatprep.subr.mxu0 0.0
    %5236 = vmatpush2.msra.mxu0 0.0
    %5237 = vmatprep.subr.mxu0 0.0
    %5238 = vmatpush2.msra.mxu0 0.0
    %5239 = vmatprep.subr.mxu0 0.0
    %5240 = vmatpush2.msra.mxu0 0.0
    %5241 = vmatprep.subr.mxu0 0.0
    %5242 = vmatpush2.msra.mxu0 0.0
    %5243 = vmatprep.mubr.f32.mxu0 0.0
    %5244 = vmatmul.mubr.f32.gmra.mxu0 %v5177
    %v5245 = vpop.f32.mrf.mxu0
    %v5246 = vadd.f32 0.0, %v5245
    %v5247 = vpop.f32.mrf.mxu0
    %5248 = vdwg.mxu0
    %v5250 = vrot.slane %v5246, 4
    %v5252 = vadd.f32 %v4089, %v5250
    %v5253 = vxor.u32 %v5252, 2147483648
    %v5254 = vmul.f32 %v5253, 1.442695
    %v5255 = vpow.pop %v5254
    %v5256 = vadd.f32 %v5255, 1.0
    %v5257 = vrcp.pop %v5256
    %v5258 = vmul.f32 1.0, %v5257
    %v5259 = vadd.f32 %v5246, %v4183
    %v5261 = vrot.slane %v5259, 4
    %5262 = vrot.lane.b32.xlu0 %v5261, 64
    %v5263 = vpop.permute.xlu0 %5262
    %v5265 = vmul.f32 %v5258, %v5263
    %5267 = vrot.lane.b32.xlu0 %v5265, 64
    %v5268 = vpop.permute.xlu0 %5267
    %v5270 = vadd.f32 %v4089, %v5268
    %v5271 = vtanh.pop %v5270
    %v5272 = vsub.f32 1.0, %v5258
    %5274 = vrot.lane.b32.xlu0 %v5271, 96
    %v5275 = vpop.permute.xlu0 %5274
    %v5277 = vmul.f32 %v5272, %v5275
    %v5278 = vrot.slane %v5172, 6
    %v5280 = vmul.f32 %v5258, %v5278
    %v5281 = vadd.f32 %v5277, %v5280
    %v5283 = vrot.slane %v5281, 4
    %5284 = vrot.lane.b32.xlu0 %v5283, 96
    %v5285 = vpop.permute.xlu0 %5284
    %v5286 = vsel %vm51, %v5285, 0
    %5288 = vmatprep.subr.mxu0 0.0
    %5289 = vmatpush1.msra.mxu0 0.0
    %5290 = vmatprep.subr.mxu0 0.0
    %5291 = vmatpush1.msra.mxu0 0.0
    %5292 = vmatprep.subr.mxu0 0.0
    %5293 = vmatpush1.msra.mxu0 0.0
    %5294 = vmatprep.subr.mxu0 0.0
    %5295 = vmatpush1.msra.mxu0 0.0
    %5296 = vmatprep.subr.mxu0 0.0
    %5297 = vmatpush1.msra.mxu0 0.0
    %5298 = vmatprep.subr.mxu0 0.0
    %5299 = vmatpush1.msra.mxu0 0.0
    %5300 = vmatprep.subr.mxu0 0.0
    %5301 = vmatpush1.msra.mxu0 0.0
    %5302 = vmatprep.subr.mxu0 0.0
    %5303 = vmatpush1.msra.mxu0 0.0
    %5304 = vmatprep.subr.mxu0 0.0
    %5305 = vmatpush1.msra.mxu0 0.0
    %5306 = vmatprep.subr.mxu0 0.0
    %5307 = vmatpush1.msra.mxu0 0.0
    %5308 = vmatprep.subr.mxu0 0.0
    %5309 = vmatpush1.msra.mxu0 0.0
    %5310 = vmatprep.subr.mxu0 0.0
    %5311 = vmatpush1.msra.mxu0 0.0
    %5312 = vmatprep.subr.mxu0 0.0
    %5313 = vmatpush1.msra.mxu0 %v4001
    %5314 = vmatprep.subr.mxu0 0.0
    %5315 = vmatpush1.msra.mxu0 %v4000
    %5316 = vmatprep.subr.mxu0 0.0
    %5317 = vmatpush1.msra.mxu0 %v3999
    %5318 = vmatprep.subr.mxu0 0.0
    %5319 = vmatpush1.msra.mxu0 %v3998
    %5320 = vmatprep.subr.mxu0 0.0
    %5321 = vmatpush2.msra.mxu0 0.0
    %5322 = vmatprep.subr.mxu0 0.0
    %5323 = vmatpush2.msra.mxu0 0.0
    %5324 = vmatprep.subr.mxu0 0.0
    %5325 = vmatpush2.msra.mxu0 0.0
    %5326 = vmatprep.subr.mxu0 0.0
    %5327 = vmatpush2.msra.mxu0 0.0
    %5328 = vmatprep.subr.mxu0 0.0
    %5329 = vmatpush2.msra.mxu0 0.0
    %5330 = vmatprep.subr.mxu0 0.0
    %5331 = vmatpush2.msra.mxu0 0.0
    %5332 = vmatprep.subr.mxu0 0.0
    %5333 = vmatpush2.msra.mxu0 0.0
    %5334 = vmatprep.subr.mxu0 0.0
    %5335 = vmatpush2.msra.mxu0 0.0
    %5336 = vmatprep.subr.mxu0 0.0
    %5337 = vmatpush2.msra.mxu0 0.0
    %5338 = vmatprep.subr.mxu0 0.0
    %5339 = vmatpush2.msra.mxu0 0.0
    %5340 = vmatprep.subr.mxu0 0.0
    %5341 = vmatpush2.msra.mxu0 0.0
    %5342 = vmatprep.subr.mxu0 0.0
    %5343 = vmatpush2.msra.mxu0 0.0
    %5344 = vmatprep.subr.mxu0 0.0
    %5345 = vmatpush2.msra.mxu0 0.0
    %5346 = vmatprep.subr.mxu0 0.0
    %5347 = vmatpush2.msra.mxu0 0.0
    %5348 = vmatprep.subr.mxu0 0.0
    %5349 = vmatpush2.msra.mxu0 0.0
    %5350 = vmatprep.subr.mxu0 0.0
    %5351 = vmatpush2.msra.mxu0 0.0
    %5352 = vmatprep.mubr.f32.mxu0 0.0
    %5353 = vmatmul.mubr.f32.gmra.mxu0 %v5286
    %v5354 = vpop.f32.mrf.mxu0
    %v5355 = vadd.f32 0.0, %v5354
    %v5356 = vpop.f32.mrf.mxu0
    %5357 = vdwg.mxu0
    %v5359 = vrot.slane %v5355, 2
    %v5361 = vadd.f32 %v4089, %v5359
    %v5362 = vxor.u32 %v5361, 2147483648
    %v5363 = vmul.f32 %v5362, 1.442695
    %v5364 = vpow.pop %v5363
    %v5365 = vadd.f32 %v5364, 1.0
    %v5366 = vrcp.pop %v5365
    %v5367 = vmul.f32 1.0, %v5366
    %v5368 = vadd.f32 %v5355, %v4183
    %v5370 = vrot.slane %v5368, 2
    %5371 = vrot.lane.b32.xlu0 %v5370, 64
    %v5372 = vpop.permute.xlu0 %5371
    %v5374 = vmul.f32 %v5367, %v5372
    %5376 = vrot.lane.b32.xlu0 %v5374, 64
    %v5377 = vpop.permute.xlu0 %5376
    %v5379 = vadd.f32 %v4089, %v5377
    %v5380 = vtanh.pop %v5379
    %v5381 = vsub.f32 1.0, %v5367
    %5383 = vrot.lane.b32.xlu0 %v5380, 96
    %v5384 = vpop.permute.xlu0 %5383
    %v5386 = vmul.f32 %v5381, %v5384
    %v5387 = vrot.slane %v5281, 6
    %v5389 = vmul.f32 %v5367, %v5387
    %v5390 = vadd.f32 %v5386, %v5389
    %v5392 = vrot.slane %v5390, 6
    %5393 = vrot.lane.b32.xlu0 %v5392, 96
    %v5394 = vpop.permute.xlu0 %5393
    %v5395 = vsel %vm51, %v5394, 0
    %5397 = vmatprep.subr.mxu0 0.0
    %5398 = vmatpush1.msra.mxu0 0.0
    %5399 = vmatprep.subr.mxu0 0.0
    %5400 = vmatpush1.msra.mxu0 0.0
    %5401 = vmatprep.subr.mxu0 0.0
    %5402 = vmatpush1.msra.mxu0 0.0
    %5403 = vmatprep.subr.mxu0 0.0
    %5404 = vmatpush1.msra.mxu0 0.0
    %5405 = vmatprep.subr.mxu0 0.0
    %5406 = vmatpush1.msra.mxu0 0.0
    %5407 = vmatprep.subr.mxu0 0.0
    %5408 = vmatpush1.msra.mxu0 0.0
    %5409 = vmatprep.subr.mxu0 0.0
    %5410 = vmatpush1.msra.mxu0 0.0
    %5411 = vmatprep.subr.mxu0 0.0
    %5412 = vmatpush1.msra.mxu0 0.0
    %5413 = vmatprep.subr.mxu0 0.0
    %5414 = vmatpush1.msra.mxu0 0.0
    %5415 = vmatprep.subr.mxu0 0.0
    %5416 = vmatpush1.msra.mxu0 0.0
    %5417 = vmatprep.subr.mxu0 0.0
    %5418 = vmatpush1.msra.mxu0 0.0
    %5419 = vmatprep.subr.mxu0 0.0
    %5420 = vmatpush1.msra.mxu0 0.0
    %5421 = vmatprep.subr.mxu0 0.0
    %5422 = vmatpush1.msra.mxu0 %v4001
    %5423 = vmatprep.subr.mxu0 0.0
    %5424 = vmatpush1.msra.mxu0 %v4000
    %5425 = vmatprep.subr.mxu0 0.0
    %5426 = vmatpush1.msra.mxu0 %v3999
    %5427 = vmatprep.subr.mxu0 0.0
    %5428 = vmatpush1.msra.mxu0 %v3998
    %5429 = vmatprep.subr.mxu0 0.0
    %5430 = vmatpush2.msra.mxu0 0.0
    %5431 = vmatprep.subr.mxu0 0.0
    %5432 = vmatpush2.msra.mxu0 0.0
    %5433 = vmatprep.subr.mxu0 0.0
    %5434 = vmatpush2.msra.mxu0 0.0
    %5435 = vmatprep.subr.mxu0 0.0
    %5436 = vmatpush2.msra.mxu0 0.0
    %5437 = vmatprep.subr.mxu0 0.0
    %5438 = vmatpush2.msra.mxu0 0.0
    %5439 = vmatprep.subr.mxu0 0.0
    %5440 = vmatpush2.msra.mxu0 0.0
    %5441 = vmatprep.subr.mxu0 0.0
    %5442 = vmatpush2.msra.mxu0 0.0
    %5443 = vmatprep.subr.mxu0 0.0
    %5444 = vmatpush2.msra.mxu0 0.0
    %5445 = vmatprep.subr.mxu0 0.0
    %5446 = vmatpush2.msra.mxu0 0.0
    %5447 = vmatprep.subr.mxu0 0.0
    %5448 = vmatpush2.msra.mxu0 0.0
    %5449 = vmatprep.subr.mxu0 0.0
    %5450 = vmatpush2.msra.mxu0 0.0
    %5451 = vmatprep.subr.mxu0 0.0
    %5452 = vmatpush2.msra.mxu0 0.0
    %5453 = vmatprep.subr.mxu0 0.0
    %5454 = vmatpush2.msra.mxu0 0.0
    %5455 = vmatprep.subr.mxu0 0.0
    %5456 = vmatpush2.msra.mxu0 0.0
    %5457 = vmatprep.subr.mxu0 0.0
    %5458 = vmatpush2.msra.mxu0 0.0
    %5459 = vmatprep.subr.mxu0 0.0
    %5460 = vmatpush2.msra.mxu0 0.0
    %5461 = vmatprep.mubr.f32.mxu0 0.0
    %5462 = vmatmul.mubr.f32.gmra.mxu0 %v5395
    %v5463 = vpop.f32.mrf.mxu0
    %v5464 = vadd.f32 0.0, %v5463
    %v5465 = vpop.f32.mrf.mxu0
    %5466 = vdwg.mxu0
    %v5467 = vadd.f32 %v4094, %v5464
    %v5468 = vxor.u32 %v5467, 2147483648
    %v5469 = vmul.f32 %v5468, 1.442695
    %v5470 = vpow.pop %v5469
    %v5471 = vadd.f32 %v5470, 1.0
    %v5472 = vrcp.pop %v5471
    %v5473 = vmul.f32 1.0, %v5472
    %v5474 = vadd.f32 %v5464, %v4183
    %5476 = vrot.lane.b32.xlu0 %v5474, 64
    %v5477 = vpop.permute.xlu0 %5476
    %v5479 = vmul.f32 %v5473, %v5477
    %5481 = vrot.lane.b32.xlu0 %v5479, 64
    %v5482 = vpop.permute.xlu0 %5481
    %v5484 = vadd.f32 %v4094, %v5482
    %v5485 = vtanh.pop %v5484
    %v5486 = vsub.f32 1.0, %v5473
    %5488 = vrot.lane.b32.xlu0 %v5485, 96
    %v5489 = vpop.permute.xlu0 %5488
    %v5491 = vmul.f32 %v5486, %v5489
    %v5493 = vmul.f32 %v5473, %v5392
    %v5494 = vadd.f32 %v5491, %v5493
    %5496 = vrot.lane.b32.xlu0 %v5494, 96
    %v5497 = vpop.permute.xlu0 %5496
    %v5498 = vsel %vm51, %v5497, 0
    %5500 = vmatprep.subr.mxu0 0.0
    %5501 = vmatpush1.msra.mxu0 0.0
    %5502 = vmatprep.subr.mxu0 0.0
    %5503 = vmatpush1.msra.mxu0 0.0
    %5504 = vmatprep.subr.mxu0 0.0
    %5505 = vmatpush1.msra.mxu0 0.0
    %5506 = vmatprep.subr.mxu0 0.0
    %5507 = vmatpush1.msra.mxu0 0.0
    %5508 = vmatprep.subr.mxu0 0.0
    %5509 = vmatpush1.msra.mxu0 0.0
    %5510 = vmatprep.subr.mxu0 0.0
    %5511 = vmatpush1.msra.mxu0 0.0
    %5512 = vmatprep.subr.mxu0 0.0
    %5513 = vmatpush1.msra.mxu0 0.0
    %5514 = vmatprep.subr.mxu0 0.0
    %5515 = vmatpush1.msra.mxu0 0.0
    %5516 = vmatprep.subr.mxu0 0.0
    %5517 = vmatpush1.msra.mxu0 0.0
    %5518 = vmatprep.subr.mxu0 0.0
    %5519 = vmatpush1.msra.mxu0 0.0
    %5520 = vmatprep.subr.mxu0 0.0
    %5521 = vmatpush1.msra.mxu0 0.0
    %5522 = vmatprep.subr.mxu0 0.0
    %5523 = vmatpush1.msra.mxu0 0.0
    %5524 = vmatprep.subr.mxu0 0.0
    %5525 = vmatpush1.msra.mxu0 %v4001
    %5526 = vmatprep.subr.mxu0 0.0
    %5527 = vmatpush1.msra.mxu0 %v4000
    %5528 = vmatprep.subr.mxu0 0.0
    %5529 = vmatpush1.msra.mxu0 %v3999
    %5530 = vmatprep.subr.mxu0 0.0
    %5531 = vmatpush1.msra.mxu0 %v3998
    %5532 = vmatprep.subr.mxu0 0.0
    %5533 = vmatpush2.msra.mxu0 0.0
    %5534 = vmatprep.subr.mxu0 0.0
    %5535 = vmatpush2.msra.mxu0 0.0
    %5536 = vmatprep.subr.mxu0 0.0
    %5537 = vmatpush2.msra.mxu0 0.0
    %5538 = vmatprep.subr.mxu0 0.0
    %5539 = vmatpush2.msra.mxu0 0.0
    %5540 = vmatprep.subr.mxu0 0.0
    %5541 = vmatpush2.msra.mxu0 0.0
    %5542 = vmatprep.subr.mxu0 0.0
    %5543 = vmatpush2.msra.mxu0 0.0
    %5544 = vmatprep.subr.mxu0 0.0
    %5545 = vmatpush2.msra.mxu0 0.0
    %5546 = vmatprep.subr.mxu0 0.0
    %5547 = vmatpush2.msra.mxu0 0.0
    %5548 = vmatprep.subr.mxu0 0.0
    %5549 = vmatpush2.msra.mxu0 0.0
    %5550 = vmatprep.subr.mxu0 0.0
    %5551 = vmatpush2.msra.mxu0 0.0
    %5552 = vmatprep.subr.mxu0 0.0
    %5553 = vmatpush2.msra.mxu0 0.0
    %5554 = vmatprep.subr.mxu0 0.0
    %5555 = vmatpush2.msra.mxu0 0.0
    %5556 = vmatprep.subr.mxu0 0.0
    %5557 = vmatpush2.msra.mxu0 0.0
    %5558 = vmatprep.subr.mxu0 0.0
    %5559 = vmatpush2.msra.mxu0 0.0
    %5560 = vmatprep.subr.mxu0 0.0
    %5561 = vmatpush2.msra.mxu0 0.0
    %5562 = vmatprep.subr.mxu0 0.0
    %5563 = vmatpush2.msra.mxu0 0.0
    %5564 = vmatprep.mubr.f32.mxu0 0.0
    %5565 = vmatmul.mubr.f32.gmra.mxu0 %v5498
    %v5566 = vpop.f32.mrf.mxu0
    %v5567 = vadd.f32 0.0, %v5566
    %v5568 = vpop.f32.mrf.mxu0
    %5569 = vdwg.mxu0
    %v5571 = vrot.slane %v5567, 6
    %v5573 = vadd.f32 %v4094, %v5571
    %v5574 = vxor.u32 %v5573, 2147483648
    %v5575 = vmul.f32 %v5574, 1.442695
    %v5576 = vpow.pop %v5575
    %v5577 = vadd.f32 %v5576, 1.0
    %v5578 = vrcp.pop %v5577
    %v5579 = vmul.f32 1.0, %v5578
    %v5580 = vadd.f32 %v5567, %v4183
    %v5582 = vrot.slane %v5580, 6
    %5583 = vrot.lane.b32.xlu0 %v5582, 64
    %v5584 = vpop.permute.xlu0 %5583
    %v5586 = vmul.f32 %v5579, %v5584
    %5588 = vrot.lane.b32.xlu0 %v5586, 64
    %v5589 = vpop.permute.xlu0 %5588
    %v5591 = vadd.f32 %v4094, %v5589
    %v5592 = vtanh.pop %v5591
    %v5593 = vsub.f32 1.0, %v5579
    %5595 = vrot.lane.b32.xlu0 %v5592, 96
    %v5596 = vpop.permute.xlu0 %5595
    %v5598 = vmul.f32 %v5593, %v5596
    %v5599 = vrot.slane %v5494, 6
    %v5601 = vmul.f32 %v5579, %v5599
    %v5602 = vadd.f32 %v5598, %v5601
    %v5604 = vrot.slane %v5602, 2
    %5605 = vrot.lane.b32.xlu0 %v5604, 96
    %v5606 = vpop.permute.xlu0 %5605
    %v5607 = vsel %vm51, %v5606, 0
    %5609 = vmatprep.subr.mxu0 0.0
    %5610 = vmatpush1.msra.mxu0 0.0
    %5611 = vmatprep.subr.mxu0 0.0
    %5612 = vmatpush1.msra.mxu0 0.0
    %5613 = vmatprep.subr.mxu0 0.0
    %5614 = vmatpush1.msra.mxu0 0.0
    %5615 = vmatprep.subr.mxu0 0.0
    %5616 = vmatpush1.msra.mxu0 0.0
    %5617 = vmatprep.subr.mxu0 0.0
    %5618 = vmatpush1.msra.mxu0 0.0
    %5619 = vmatprep.subr.mxu0 0.0
    %5620 = vmatpush1.msra.mxu0 0.0
    %5621 = vmatprep.subr.mxu0 0.0
    %5622 = vmatpush1.msra.mxu0 0.0
    %5623 = vmatprep.subr.mxu0 0.0
    %5624 = vmatpush1.msra.mxu0 0.0
    %5625 = vmatprep.subr.mxu0 0.0
    %5626 = vmatpush1.msra.mxu0 0.0
    %5627 = vmatprep.subr.mxu0 0.0
    %5628 = vmatpush1.msra.mxu0 0.0
    %5629 = vmatprep.subr.mxu0 0.0
    %5630 = vmatpush1.msra.mxu0 0.0
    %5631 = vmatprep.subr.mxu0 0.0
    %5632 = vmatpush1.msra.mxu0 0.0
    %5633 = vmatprep.subr.mxu0 0.0
    %5634 = vmatpush1.msra.mxu0 %v4001
    %5635 = vmatprep.subr.mxu0 0.0
    %5636 = vmatpush1.msra.mxu0 %v4000
    %5637 = vmatprep.subr.mxu0 0.0
    %5638 = vmatpush1.msra.mxu0 %v3999
    %5639 = vmatprep.subr.mxu0 0.0
    %5640 = vmatpush1.msra.mxu0 %v3998
    %5641 = vmatprep.subr.mxu0 0.0
    %5642 = vmatpush2.msra.mxu0 0.0
    %5643 = vmatprep.subr.mxu0 0.0
    %5644 = vmatpush2.msra.mxu0 0.0
    %5645 = vmatprep.subr.mxu0 0.0
    %5646 = vmatpush2.msra.mxu0 0.0
    %5647 = vmatprep.subr.mxu0 0.0
    %5648 = vmatpush2.msra.mxu0 0.0
    %5649 = vmatprep.subr.mxu0 0.0
    %5650 = vmatpush2.msra.mxu0 0.0
    %5651 = vmatprep.subr.mxu0 0.0
    %5652 = vmatpush2.msra.mxu0 0.0
    %5653 = vmatprep.subr.mxu0 0.0
    %5654 = vmatpush2.msra.mxu0 0.0
    %5655 = vmatprep.subr.mxu0 0.0
    %5656 = vmatpush2.msra.mxu0 0.0
    %5657 = vmatprep.subr.mxu0 0.0
    %5658 = vmatpush2.msra.mxu0 0.0
    %5659 = vmatprep.subr.mxu0 0.0
    %5660 = vmatpush2.msra.mxu0 0.0
    %5661 = vmatprep.subr.mxu0 0.0
    %5662 = vmatpush2.msra.mxu0 0.0
    %5663 = vmatprep.subr.mxu0 0.0
    %5664 = vmatpush2.msra.mxu0 0.0
    %5665 = vmatprep.subr.mxu0 0.0
    %5666 = vmatpush2.msra.mxu0 0.0
    %5667 = vmatprep.subr.mxu0 0.0
    %5668 = vmatpush2.msra.mxu0 0.0
    %5669 = vmatprep.subr.mxu0 0.0
    %5670 = vmatpush2.msra.mxu0 0.0
    %5671 = vmatprep.subr.mxu0 0.0
    %5672 = vmatpush2.msra.mxu0 0.0
    %5673 = vmatprep.mubr.f32.mxu0 0.0
    %5674 = vmatmul.mubr.f32.gmra.mxu0 %v5607
    %v5675 = vpop.f32.mrf.mxu0
    %v5676 = vadd.f32 0.0, %v5675
    %v5677 = vpop.f32.mrf.mxu0
    %5678 = vdwg.mxu0
    %v5680 = vrot.slane %v5676, 4
    %v5682 = vadd.f32 %v4094, %v5680
    %v5683 = vxor.u32 %v5682, 2147483648
    %v5684 = vmul.f32 %v5683, 1.442695
    %v5685 = vpow.pop %v5684
    %v5686 = vadd.f32 %v5685, 1.0
    %v5687 = vrcp.pop %v5686
    %v5688 = vmul.f32 1.0, %v5687
    %v5689 = vadd.f32 %v5676, %v4183
    %v5691 = vrot.slane %v5689, 4
    %5692 = vrot.lane.b32.xlu0 %v5691, 64
    %v5693 = vpop.permute.xlu0 %5692
    %v5695 = vmul.f32 %v5688, %v5693
    %5697 = vrot.lane.b32.xlu0 %v5695, 64
    %v5698 = vpop.permute.xlu0 %5697
    %v5700 = vadd.f32 %v4094, %v5698
    %v5701 = vtanh.pop %v5700
    %v5702 = vsub.f32 1.0, %v5688
    %5704 = vrot.lane.b32.xlu0 %v5701, 96
    %v5705 = vpop.permute.xlu0 %5704
    %v5707 = vmul.f32 %v5702, %v5705
    %v5708 = vrot.slane %v5602, 6
    %v5710 = vmul.f32 %v5688, %v5708
    %v5711 = vadd.f32 %v5707, %v5710
    %v5713 = vrot.slane %v5711, 4
    %5714 = vrot.lane.b32.xlu0 %v5713, 96
    %v5715 = vpop.permute.xlu0 %5714
    %v5716 = vsel %vm51, %v5715, 0
    %5718 = vmatprep.subr.mxu0 0.0
    %5719 = vmatpush1.msra.mxu0 0.0
    %5720 = vmatprep.subr.mxu0 0.0
    %5721 = vmatpush1.msra.mxu0 0.0
    %5722 = vmatprep.subr.mxu0 0.0
    %5723 = vmatpush1.msra.mxu0 0.0
    %5724 = vmatprep.subr.mxu0 0.0
    %5725 = vmatpush1.msra.mxu0 0.0
    %5726 = vmatprep.subr.mxu0 0.0
    %5727 = vmatpush1.msra.mxu0 0.0
    %5728 = vmatprep.subr.mxu0 0.0
    %5729 = vmatpush1.msra.mxu0 0.0
    %5730 = vmatprep.subr.mxu0 0.0
    %5731 = vmatpush1.msra.mxu0 0.0
    %5732 = vmatprep.subr.mxu0 0.0
    %5733 = vmatpush1.msra.mxu0 0.0
    %5734 = vmatprep.subr.mxu0 0.0
    %5735 = vmatpush1.msra.mxu0 0.0
    %5736 = vmatprep.subr.mxu0 0.0
    %5737 = vmatpush1.msra.mxu0 0.0
    %5738 = vmatprep.subr.mxu0 0.0
    %5739 = vmatpush1.msra.mxu0 0.0
    %5740 = vmatprep.subr.mxu0 0.0
    %5741 = vmatpush1.msra.mxu0 0.0
    %5742 = vmatprep.subr.mxu0 0.0
    %5743 = vmatpush1.msra.mxu0 %v4001
    %5744 = vmatprep.subr.mxu0 0.0
    %5745 = vmatpush1.msra.mxu0 %v4000
    %5746 = vmatprep.subr.mxu0 0.0
    %5747 = vmatpush1.msra.mxu0 %v3999
    %5748 = vmatprep.subr.mxu0 0.0
    %5749 = vmatpush1.msra.mxu0 %v3998
    %5750 = vmatprep.subr.mxu0 0.0
    %5751 = vmatpush2.msra.mxu0 0.0
    %5752 = vmatprep.subr.mxu0 0.0
    %5753 = vmatpush2.msra.mxu0 0.0
    %5754 = vmatprep.subr.mxu0 0.0
    %5755 = vmatpush2.msra.mxu0 0.0
    %5756 = vmatprep.subr.mxu0 0.0
    %5757 = vmatpush2.msra.mxu0 0.0
    %5758 = vmatprep.subr.mxu0 0.0
    %5759 = vmatpush2.msra.mxu0 0.0
    %5760 = vmatprep.subr.mxu0 0.0
    %5761 = vmatpush2.msra.mxu0 0.0
    %5762 = vmatprep.subr.mxu0 0.0
    %5763 = vmatpush2.msra.mxu0 0.0
    %5764 = vmatprep.subr.mxu0 0.0
    %5765 = vmatpush2.msra.mxu0 0.0
    %5766 = vmatprep.subr.mxu0 0.0
    %5767 = vmatpush2.msra.mxu0 0.0
    %5768 = vmatprep.subr.mxu0 0.0
    %5769 = vmatpush2.msra.mxu0 0.0
    %5770 = vmatprep.subr.mxu0 0.0
    %5771 = vmatpush2.msra.mxu0 0.0
    %5772 = vmatprep.subr.mxu0 0.0
    %5773 = vmatpush2.msra.mxu0 0.0
    %5774 = vmatprep.subr.mxu0 0.0
    %5775 = vmatpush2.msra.mxu0 0.0
    %5776 = vmatprep.subr.mxu0 0.0
    %5777 = vmatpush2.msra.mxu0 0.0
    %5778 = vmatprep.subr.mxu0 0.0
    %5779 = vmatpush2.msra.mxu0 0.0
    %5780 = vmatprep.subr.mxu0 0.0
    %5781 = vmatpush2.msra.mxu0 0.0
    %5782 = vmatprep.mubr.f32.mxu0 0.0
    %5783 = vmatmul.mubr.f32.gmra.mxu0 %v5716
    %v5784 = vpop.f32.mrf.mxu0
    %v5785 = vadd.f32 0.0, %v5784
    %v5786 = vpop.f32.mrf.mxu0
    %5787 = vdwg.mxu0
    %v5789 = vrot.slane %v5785, 2
    %v5791 = vadd.f32 %v4094, %v5789
    %v5792 = vxor.u32 %v5791, 2147483648
    %v5793 = vmul.f32 %v5792, 1.442695
    %v5794 = vpow.pop %v5793
    %v5795 = vadd.f32 %v5794, 1.0
    %v5796 = vrcp.pop %v5795
    %v5797 = vmul.f32 1.0, %v5796
    %v5798 = vadd.f32 %v5785, %v4183
    %v5800 = vrot.slane %v5798, 2
    %5801 = vrot.lane.b32.xlu0 %v5800, 64
    %v5802 = vpop.permute.xlu0 %5801
    %v5804 = vmul.f32 %v5797, %v5802
    %5806 = vrot.lane.b32.xlu0 %v5804, 64
    %v5807 = vpop.permute.xlu0 %5806
    %v5809 = vadd.f32 %v4094, %v5807
    %v5810 = vtanh.pop %v5809
    %v5811 = vsub.f32 1.0, %v5797
    %5813 = vrot.lane.b32.xlu0 %v5810, 96
    %v5814 = vpop.permute.xlu0 %5813
    %v5816 = vmul.f32 %v5811, %v5814
    %v5817 = vrot.slane %v5711, 6
    %v5819 = vmul.f32 %v5797, %v5817
    %v5820 = vadd.f32 %v5816, %v5819
    %vm5821 = vcmask 1041408
    %v5822 = vsel %vm5821, %v4204, %v4312
    %vm5823 = vcmask 1043456
    %v5824 = vsel %vm5823, %v5822, %v4421
    %vm5825 = vcmask 1045504
    %v5826 = vsel %vm5825, %v5824, %v4530
    %v5827 = vsel %vm5821, %v4634, %v4742
    %v5828 = vsel %vm5823, %v5827, %v4851
    %v5829 = vsel %vm5825, %v5828, %v4960
    %v5830 = vsel %vm5821, %v5064, %v5172
    %v5831 = vsel %vm5823, %v5830, %v5281
    %v5832 = vsel %vm5825, %v5831, %v5390
    %v5833 = vsel %vm5821, %v5494, %v5602
    %v5834 = vsel %vm5823, %v5833, %v5711
    %v5835 = vsel %vm5825, %v5834, %v5820
    %v5836 = vld [vmem:[#allocation2 + $0x160] sm:$0xff]
    %v5837 = vld [vmem:[#allocation2 + $0x168] sm:$0xff]
    %v5838 = vld [vmem:[#allocation2 + $0x170] sm:$0xff]
    %v5839 = vld [vmem:[#allocation2 + $0x178] sm:$0xff]
    %v5840 = vld [vmem:[#allocation4 + $0x78] sm:$0x1]
    %v5841 = vlaneseq
    %v5842 = vshrl.u32 %v5841, 7
    %v5843 = vsub.s32 0, %v5842
    %v5844 = vrot.slane %v5840, %v5843
    %5845 = vmatprep.subr.mxu0 0.0
    %5846 = vmatpush1.msra.mxu0 0.0
    %5847 = vmatprep.subr.mxu0 0.0
    %5848 = vmatpush1.msra.mxu0 0.0
    %5849 = vmatprep.subr.mxu0 0.0
    %5850 = vmatpush1.msra.mxu0 0.0
    %5851 = vmatprep.subr.mxu0 0.0
    %5852 = vmatpush1.msra.mxu0 0.0
    %5853 = vmatprep.subr.mxu0 0.0
    %5854 = vmatpush1.msra.mxu0 0.0
    %5855 = vmatprep.subr.mxu0 0.0
    %5856 = vmatpush1.msra.mxu0 0.0
    %5857 = vmatprep.subr.mxu0 0.0
    %5858 = vmatpush1.msra.mxu0 0.0
    %5859 = vmatprep.subr.mxu0 0.0
    %5860 = vmatpush1.msra.mxu0 0.0
    %5861 = vmatprep.subr.mxu0 0.0
    %5862 = vmatpush1.msra.mxu0 0.0
    %5863 = vmatprep.subr.mxu0 0.0
    %5864 = vmatpush1.msra.mxu0 0.0
    %5865 = vmatprep.subr.mxu0 0.0
    %5866 = vmatpush1.msra.mxu0 0.0
    %5867 = vmatprep.subr.mxu0 0.0
    %5868 = vmatpush1.msra.mxu0 0.0
    %5869 = vmatprep.subr.mxu0 0.0
    %5870 = vmatpush1.msra.mxu0 %v5839
    %5871 = vmatprep.subr.mxu0 0.0
    %5872 = vmatpush1.msra.mxu0 %v5838
    %5873 = vmatprep.subr.mxu0 0.0
    %5874 = vmatpush1.msra.mxu0 %v5837
    %5875 = vmatprep.subr.mxu0 0.0
    %5876 = vmatpush1.msra.mxu0 %v5836
    %5877 = vmatprep.subr.mxu0 0.0
    %5878 = vmatpush2.msra.mxu0 0.0
    %5879 = vmatprep.subr.mxu0 0.0
    %5880 = vmatpush2.msra.mxu0 0.0
    %5881 = vmatprep.subr.mxu0 0.0
    %5882 = vmatpush2.msra.mxu0 0.0
    %5883 = vmatprep.subr.mxu0 0.0
    %5884 = vmatpush2.msra.mxu0 0.0
    %5885 = vmatprep.subr.mxu0 0.0
    %5886 = vmatpush2.msra.mxu0 0.0
    %5887 = vmatprep.subr.mxu0 0.0
    %5888 = vmatpush2.msra.mxu0 0.0
    %5889 = vmatprep.subr.mxu0 0.0
    %5890 = vmatpush2.msra.mxu0 0.0
    %5891 = vmatprep.subr.mxu0 0.0
    %5892 = vmatpush2.msra.mxu0 0.0
    %5893 = vmatprep.subr.mxu0 0.0
    %5894 = vmatpush2.msra.mxu0 0.0
    %5895 = vmatprep.subr.mxu0 0.0
    %5896 = vmatpush2.msra.mxu0 0.0
    %5897 = vmatprep.subr.mxu0 0.0
    %5898 = vmatpush2.msra.mxu0 0.0
    %5899 = vmatprep.subr.mxu0 0.0
    %5900 = vmatpush2.msra.mxu0 0.0
    %5901 = vmatprep.subr.mxu0 0.0
    %5902 = vmatpush2.msra.mxu0 0.0
    %5903 = vmatprep.subr.mxu0 0.0
    %5904 = vmatpush2.msra.mxu0 0.0
    %5905 = vmatprep.subr.mxu0 0.0
    %5906 = vmatpush2.msra.mxu0 0.0
    %5907 = vmatprep.subr.mxu0 0.0
    %5908 = vmatpush2.msra.mxu0 0.0
    %5909 = vmatprep.mubr.f32.mxu0 0.0
    %5910 = vmatmul.mubr.f32.gmra.mxu0 %v199
    %v5911 = vpop.f32.mrf.mxu0
    %v5912 = vadd.f32 %v5844, %v5911
    %v5913 = vpop.f32.mrf.mxu0
    %5914 = vmatprep.mubr.f32.mxu0 0.0
    %5915 = vmatmul.mubr.f32.gmra.mxu0 %v202
    %v5916 = vpop.f32.mrf.mxu0
    %v5917 = vadd.f32 %v5844, %v5916
    %v5918 = vpop.f32.mrf.mxu0
    %5919 = vmatprep.mubr.f32.mxu0 0.0
    %5920 = vmatmul.mubr.f32.gmra.mxu0 %v205
    %v5921 = vpop.f32.mrf.mxu0
    %v5922 = vadd.f32 %v5844, %v5921
    %v5923 = vpop.f32.mrf.mxu0
    %5924 = vmatprep.mubr.f32.mxu0 0.0
    %5925 = vmatmul.mubr.f32.gmra.mxu0 %v208
    %v5926 = vpop.f32.mrf.mxu0
    %v5927 = vadd.f32 %v5844, %v5926
    %v5928 = vpop.f32.mrf.mxu0
    %5929 = vdwg.mxu0
    %v5930 = vmul.f32 %v5912, %v5912
    %v5931 = vmul.f32 %v5917, %v5917
    %v5932 = vmul.f32 %v5922, %v5922
    %v5933 = vmul.f32 %v5927, %v5927
    %v5934 = vmul.f32 %v5912, %v5930
    %v5935 = vmul.f32 %v5917, %v5931
    %v5936 = vmul.f32 %v5922, %v5932
    %v5937 = vmul.f32 %v5927, %v5933
    %v5938 = vmul.f32 %v5934, 0.044715
    %v5939 = vmul.f32 %v5935, 0.044715
    %v5940 = vmul.f32 %v5936, 0.044715
    %v5941 = vmul.f32 %v5937, 0.044715
    %v5942 = vadd.f32 %v5912, %v5938
    %v5943 = vadd.f32 %v5917, %v5939
    %v5944 = vadd.f32 %v5922, %v5940
    %v5945 = vadd.f32 %v5927, %v5941
    %v5946 = vmul.f32 %v5942, 0.7978846
    %v5947 = vmul.f32 %v5943, 0.7978846
    %v5948 = vmul.f32 %v5944, 0.7978846
    %v5949 = vmul.f32 %v5945, 0.7978846
    %v5950 = vtanh.pop %v5946
    %v5951 = vtanh.pop %v5947
    %v5952 = vtanh.pop %v5948
    %v5953 = vtanh.pop %v5949
    %v5954 = vadd.f32 %v5950, 1.0
    %v5955 = vadd.f32 %v5951, 1.0
    %v5956 = vadd.f32 %v5952, 1.0
    %v5957 = vadd.f32 %v5953, 1.0
    %v5958 = vmul.f32 %v5954, 0.5
    %v5959 = vmul.f32 %v5955, 0.5
    %v5960 = vmul.f32 %v5956, 0.5
    %v5961 = vmul.f32 %v5957, 0.5
    %v5962 = vmul.f32 %v5912, %v5958
    %v5963 = vmul.f32 %v5917, %v5959
    %v5964 = vmul.f32 %v5922, %v5960
    %v5965 = vmul.f32 %v5927, %v5961
    %v5966 = vld [vmem:[#allocation2 + $0x180] sm:$0xff]
    %v5967 = vld [vmem:[#allocation2 + $0x188] sm:$0xff]
    %v5968 = vld [vmem:[#allocation4 + $0x80] sm:$0x1]
    %v5969 = vlaneseq
    %v5970 = vshrl.u32 %v5969, 7
    %v5971 = vsub.s32 0, %v5970
    %v5972 = vrot.slane %v5968, %v5971
    %v5974 = vsel %vm3070, %v5962, 0
    %v5977 = vsel %vm3070, %v5963, 0
    %v5980 = vsel %vm3070, %v5964, 0
    %v5983 = vsel %vm3070, %v5965, 0
    %5985 = vmatprep.subr.mxu0 0.0
    %5986 = vmatpush1.msra.mxu0 0.0
    %5987 = vmatprep.subr.mxu0 0.0
    %5988 = vmatpush1.msra.mxu0 0.0
    %5989 = vmatprep.subr.mxu0 0.0
    %5990 = vmatpush1.msra.mxu0 0.0
    %5991 = vmatprep.subr.mxu0 0.0
    %5992 = vmatpush1.msra.mxu0 0.0
    %5993 = vmatprep.subr.mxu0 0.0
    %5994 = vmatpush1.msra.mxu0 0.0
    %5995 = vmatprep.subr.mxu0 0.0
    %5996 = vmatpush1.msra.mxu0 0.0
    %5997 = vmatprep.subr.mxu0 0.0
    %5998 = vmatpush1.msra.mxu0 0.0
    %5999 = vmatprep.subr.mxu0 0.0
    %6000 = vmatpush1.msra.mxu0 0.0
    %6001 = vmatprep.subr.mxu0 0.0
    %6002 = vmatpush1.msra.mxu0 0.0
    %6003 = vmatprep.subr.mxu0 0.0
    %6004 = vmatpush1.msra.mxu0 0.0
    %6005 = vmatprep.subr.mxu0 0.0
    %6006 = vmatpush1.msra.mxu0 0.0
    %6007 = vmatprep.subr.mxu0 0.0
    %6008 = vmatpush1.msra.mxu0 0.0
    %6009 = vmatprep.subr.mxu0 0.0
    %6010 = vmatpush1.msra.mxu0 0.0
    %6011 = vmatprep.subr.mxu0 0.0
    %6012 = vmatpush1.msra.mxu0 0.0
    %6013 = vmatprep.subr.mxu0 0.0
    %6014 = vmatpush1.msra.mxu0 %v5967
    %6015 = vmatprep.subr.mxu0 0.0
    %6016 = vmatpush1.msra.mxu0 %v5966
    %6017 = vmatprep.subr.mxu0 0.0
    %6018 = vmatpush2.msra.mxu0 0.0
    %6019 = vmatprep.subr.mxu0 0.0
    %6020 = vmatpush2.msra.mxu0 0.0
    %6021 = vmatprep.subr.mxu0 0.0
    %6022 = vmatpush2.msra.mxu0 0.0
    %6023 = vmatprep.subr.mxu0 0.0
    %6024 = vmatpush2.msra.mxu0 0.0
    %6025 = vmatprep.subr.mxu0 0.0
    %6026 = vmatpush2.msra.mxu0 0.0
    %6027 = vmatprep.subr.mxu0 0.0
    %6028 = vmatpush2.msra.mxu0 0.0
    %6029 = vmatprep.subr.mxu0 0.0
    %6030 = vmatpush2.msra.mxu0 0.0
    %6031 = vmatprep.subr.mxu0 0.0
    %6032 = vmatpush2.msra.mxu0 0.0
    %6033 = vmatprep.subr.mxu0 0.0
    %6034 = vmatpush2.msra.mxu0 0.0
    %6035 = vmatprep.subr.mxu0 0.0
    %6036 = vmatpush2.msra.mxu0 0.0
    %6037 = vmatprep.subr.mxu0 0.0
    %6038 = vmatpush2.msra.mxu0 0.0
    %6039 = vmatprep.subr.mxu0 0.0
    %6040 = vmatpush2.msra.mxu0 0.0
    %6041 = vmatprep.subr.mxu0 0.0
    %6042 = vmatpush2.msra.mxu0 0.0
    %6043 = vmatprep.subr.mxu0 0.0
    %6044 = vmatpush2.msra.mxu0 0.0
    %6045 = vmatprep.subr.mxu0 0.0
    %6046 = vmatpush2.msra.mxu0 0.0
    %6047 = vmatprep.subr.mxu0 0.0
    %6048 = vmatpush2.msra.mxu0 0.0
    %6049 = vmatprep.mubr.f32.mxu0 0.0
    %6050 = vmatmul.mubr.f32.gmra.mxu0 %v5974
    %v6051 = vpop.f32.mrf.mxu0
    %v6052 = vadd.f32 %v5972, %v6051
    %v6053 = vpop.f32.mrf.mxu0
    %6054 = vmatprep.mubr.f32.mxu0 0.0
    %6055 = vmatmul.mubr.f32.gmra.mxu0 %v5977
    %v6056 = vpop.f32.mrf.mxu0
    %v6057 = vadd.f32 %v5972, %v6056
    %v6058 = vpop.f32.mrf.mxu0
    %6059 = vmatprep.mubr.f32.mxu0 0.0
    %6060 = vmatmul.mubr.f32.gmra.mxu0 %v5980
    %v6061 = vpop.f32.mrf.mxu0
    %v6062 = vadd.f32 %v5972, %v6061
    %v6063 = vpop.f32.mrf.mxu0
    %6064 = vmatprep.mubr.f32.mxu0 0.0
    %6065 = vmatmul.mubr.f32.gmra.mxu0 %v5983
    %v6066 = vpop.f32.mrf.mxu0
    %v6067 = vadd.f32 %v5972, %v6066
    %v6068 = vpop.f32.mrf.mxu0
    %6069 = vdwg.mxu0
    %vm6070 = vcmask 23552
    %v6071 = vsel %vm6070, %v6052, -inf
    %6072 = vmax.xlane.f32.xlu0 %v6071
    %v6073 = vpop.xlane.xlu0 %6072
    %v6074 = vsel %vm6070, %v6057, -inf
    %6075 = vmax.xlane.f32.xlu0 %v6074
    %v6076 = vpop.xlane.xlu0 %6075
    %v6077 = vsel %vm6070, %v6062, -inf
    %6078 = vmax.xlane.f32.xlu0 %v6077
    %v6079 = vpop.xlane.xlu0 %6078
    %v6080 = vsel %vm6070, %v6067, -inf
    %6081 = vmax.xlane.f32.xlu0 %v6080
    %v6082 = vpop.xlane.xlu0 %6081
    %v6083 = vsub.f32 %v6052, %v6073
    %v6084 = vsub.f32 %v6057, %v6076
    %v6085 = vsub.f32 %v6062, %v6079
    %v6086 = vsub.f32 %v6067, %v6082
    %v6087 = vmul.f32 %v6083, 1.442695
    %v6088 = vpow.pop %v6087
    %v6089 = vmul.f32 %v6084, 1.442695
    %v6090 = vpow.pop %v6089
    %v6091 = vmul.f32 %v6085, 1.442695
    %v6092 = vpow.pop %v6091
    %v6093 = vmul.f32 %v6086, 1.442695
    %v6094 = vpow.pop %v6093
    %v6095 = vsel %vm6070, %v6088, 0.0
    %6096 = vadd.xlane.f32.xlu0 %v6095
    %v6097 = vpop.xlane.xlu0 %6096
    %v6098 = vsel %vm6070, %v6090, 0.0
    %6099 = vadd.xlane.f32.xlu0 %v6098
    %v6100 = vpop.xlane.xlu0 %6099
    %v6101 = vsel %vm6070, %v6092, 0.0
    %6102 = vadd.xlane.f32.xlu0 %v6101
    %v6103 = vpop.xlane.xlu0 %6102
    %v6104 = vsel %vm6070, %v6094, 0.0
    %6105 = vadd.xlane.f32.xlu0 %v6104
    %v6106 = vpop.xlane.xlu0 %6105
    %v6107 = vrcp.pop %v6097
    %v6108 = vmul.f32 %v6088, %v6107
    %v6109 = vrcp.pop %v6100
    %v6110 = vmul.f32 %v6090, %v6109
    %v6111 = vrcp.pop %v6103
    %v6112 = vmul.f32 %v6092, %v6111
    %v6113 = vrcp.pop %v6106
    %v6114 = vmul.f32 %v6094, %v6113
    %6116 = vset.pattern.permute.xlu0 0
    %6117 = vperm.xlu0 %6116, %v6108
    %v6118 = vpop.permute.xlu0 %6117
    %6121 = vset.pattern.permute.xlu0 0
    %6122 = vperm.xlu0 %6121, %v6110
    %v6123 = vpop.permute.xlu0 %6122
    %6126 = vset.pattern.permute.xlu0 0
    %6127 = vperm.xlu0 %6126, %v6112
    %v6128 = vpop.permute.xlu0 %6127
    %6131 = vset.pattern.permute.xlu0 0
    %6132 = vperm.xlu0 %6131, %v6114
    %v6133 = vpop.permute.xlu0 %6132
    %v6135 = vmul.f32 %v6118, %v1533
    %v6136 = vmul.f32 %v6123, %v1534
    %v6137 = vmul.f32 %v6128, %v1535
    %v6138 = vmul.f32 %v6133, %v1536
    %6139 = vset.pattern.permute.xlu0 1
    %6140 = vperm.xlu0 %6139, %v6108
    %v6141 = vpop.permute.xlu0 %6140
    %6143 = vset.pattern.permute.xlu0 1
    %6144 = vperm.xlu0 %6143, %v6110
    %v6145 = vpop.permute.xlu0 %6144
    %6147 = vset.pattern.permute.xlu0 1
    %6148 = vperm.xlu0 %6147, %v6112
    %v6149 = vpop.permute.xlu0 %6148
    %6151 = vset.pattern.permute.xlu0 1
    %6152 = vperm.xlu0 %6151, %v6114
    %v6153 = vpop.permute.xlu0 %6152
    %v6155 = vmul.f32 %v6141, %v3994
    %v6156 = vmul.f32 %v6145, %v3995
    %v6157 = vmul.f32 %v6149, %v3996
    %v6158 = vmul.f32 %v6153, %v3997
    %v6159 = vadd.f32 %v6135, %v6155
    %v6160 = vadd.f32 %v6136, %v6156
    %v6161 = vadd.f32 %v6137, %v6157
    %v6162 = vadd.f32 %v6138, %v6158
    %6163 = vset.pattern.permute.xlu0 2
    %6164 = vperm.xlu0 %6163, %v6108
    %v6165 = vpop.permute.xlu0 %6164
    %6167 = vset.pattern.permute.xlu0 2
    %6168 = vperm.xlu0 %6167, %v6110
    %v6169 = vpop.permute.xlu0 %6168
    %6171 = vset.pattern.permute.xlu0 2
    %6172 = vperm.xlu0 %6171, %v6112
    %v6173 = vpop.permute.xlu0 %6172
    %6175 = vset.pattern.permute.xlu0 2
    %6176 = vperm.xlu0 %6175, %v6114
    %v6177 = vpop.permute.xlu0 %6176
    %v6179 = vmul.f32 %v6165, %v5826
    %v6180 = vmul.f32 %v6169, %v5829
    %v6181 = vmul.f32 %v6173, %v5832
    %v6182 = vmul.f32 %v6177, %v5835
    %6187 = vrot.lane.b32.xlu0 %v6179, 96
    %v6188 = vpop.permute.xlu0 %6187
    %6189 = vrot.lane.b32.xlu0 %v6180, 96
    %v6190 = vpop.permute.xlu0 %6189
    %6191 = vrot.lane.b32.xlu0 %v6181, 96
    %v6192 = vpop.permute.xlu0 %6191
    %6193 = vrot.lane.b32.xlu0 %v6182, 96
    %v6194 = vpop.permute.xlu0 %6193
    %v6199 = vadd.f32 %v6159, %v6188
    %v6200 = vadd.f32 %v6160, %v6190
    %v6201 = vadd.f32 %v6161, %v6192
    %v6202 = vadd.f32 %v6162, %v6194
    %v6203 = vadd.f32 %v45, %v6199
    %v6204 = vadd.f32 %v46, %v6200
    %v6205 = vadd.f32 %v47, %v6201
    %v6206 = vadd.f32 %v48, %v6202
    %v6207 = vld [vmem:[#allocation4 + $0x88] sm:$0x1]
    %v6208 = vld [vmem:[#allocation4 + $0x90] sm:$0x1]
    %v6209 = vsel %vm51, %v6203, 0.0
    %6210 = vadd.xlane.f32.xlu0 %v6209
    %v6211 = vpop.xlane.xlu0 %6210
    %v6212 = vsel %vm51, %v6204, 0.0
    %6213 = vadd.xlane.f32.xlu0 %v6212
    %v6214 = vpop.xlane.xlu0 %6213
    %v6215 = vsel %vm51, %v6205, 0.0
    %6216 = vadd.xlane.f32.xlu0 %v6215
    %v6217 = vpop.xlane.xlu0 %6216
    %v6218 = vsel %vm51, %v6206, 0.0
    %6219 = vadd.xlane.f32.xlu0 %v6218
    %v6220 = vpop.xlane.xlu0 %6219
    %v6221 = vmul.f32 %v6211, %v64
    %v6222 = vmul.f32 %v6214, %v64
    %v6223 = vmul.f32 %v6217, %v64
    %v6224 = vmul.f32 %v6220, %v64
    %v6225 = vsub.f32 %v6203, %v6221
    %v6226 = vsub.f32 %v6204, %v6222
    %v6227 = vsub.f32 %v6205, %v6223
    %v6228 = vsub.f32 %v6206, %v6224
    %v6229 = vmul.f32 %v6225, %v6225
    %v6230 = vmul.f32 %v6226, %v6226
    %v6231 = vmul.f32 %v6227, %v6227
    %v6232 = vmul.f32 %v6228, %v6228
    %v6233 = vsel %vm51, %v6229, 0.0
    %6234 = vadd.xlane.f32.xlu0 %v6233
    %v6235 = vpop.xlane.xlu0 %6234
    %v6236 = vsel %vm51, %v6230, 0.0
    %6237 = vadd.xlane.f32.xlu0 %v6236
    %v6238 = vpop.xlane.xlu0 %6237
    %v6239 = vsel %vm51, %v6231, 0.0
    %6240 = vadd.xlane.f32.xlu0 %v6239
    %v6241 = vpop.xlane.xlu0 %6240
    %v6242 = vsel %vm51, %v6232, 0.0
    %6243 = vadd.xlane.f32.xlu0 %v6242
    %v6244 = vpop.xlane.xlu0 %6243
    %v6245 = vmul.f32 %v6235, %v64
    %v6246 = vmul.f32 %v6238, %v64
    %v6247 = vmul.f32 %v6241, %v64
    %v6248 = vmul.f32 %v6244, %v64
    %v6249 = vadd.f32 %v6245, 1e-05
    %v6250 = vadd.f32 %v6246, 1e-05
    %v6251 = vadd.f32 %v6247, 1e-05
    %v6252 = vadd.f32 %v6248, 1e-05
    %v6253 = vrsqrt.pop %v6249
    %v6254 = vrsqrt.pop %v6250
    %v6255 = vrsqrt.pop %v6251
    %v6256 = vrsqrt.pop %v6252
    %v6257 = vmul.f32 %v6225, %v6253
    %v6258 = vmul.f32 %v6226, %v6254
    %v6259 = vmul.f32 %v6227, %v6255
    %v6260 = vmul.f32 %v6228, %v6256
    %v6261 = vlaneseq
    %v6262 = vshrl.u32 %v6261, 7
    %v6263 = vsub.s32 0, %v6262
    %v6264 = vrot.slane %v6207, %v6263
    %v6265 = vmul.f32 %v6257, %v6264
    %v6266 = vmul.f32 %v6258, %v6264
    %v6267 = vmul.f32 %v6259, %v6264
    %v6268 = vmul.f32 %v6260, %v6264
    %v6269 = vlaneseq
    %v6270 = vshrl.u32 %v6269, 7
    %v6271 = vsub.s32 0, %v6270
    %v6272 = vrot.slane %v6208, %v6271
    %v6273 = vadd.f32 %v6265, %v6272
    %v6274 = vadd.f32 %v6266, %v6272
    %v6275 = vadd.f32 %v6267, %v6272
    %v6276 = vadd.f32 %v6268, %v6272
    %v6277 = vld [vmem:[#allocation2 + $0x190] sm:$0xff]
    %v6278 = vld [vmem:[#allocation2 + $0x198] sm:$0xff]
    %v6279 = vld [vmem:[#allocation2 + $0x1a0] sm:$0xff]
    %v6280 = vld [vmem:[#allocation2 + $0x1a8] sm:$0xff]
    %v6281 = vld [vmem:[#allocation4 + $0x98] sm:$0x1]
    %v6282 = vlaneseq
    %v6283 = vshrl.u32 %v6282, 7
    %v6284 = vsub.s32 0, %v6283
    %v6285 = vrot.slane %v6281, %v6284
    %v6287 = vsel %vm51, %v6273, 0
    %v6290 = vsel %vm51, %v6274, 0
    %v6293 = vsel %vm51, %v6275, 0
    %v6296 = vsel %vm51, %v6276, 0
    %6298 = vmatprep.subr.mxu0 0.0
    %6299 = vmatpush1.msra.mxu0 0.0
    %6300 = vmatprep.subr.mxu0 0.0
    %6301 = vmatpush1.msra.mxu0 0.0
    %6302 = vmatprep.subr.mxu0 0.0
    %6303 = vmatpush1.msra.mxu0 0.0
    %6304 = vmatprep.subr.mxu0 0.0
    %6305 = vmatpush1.msra.mxu0 0.0
    %6306 = vmatprep.subr.mxu0 0.0
    %6307 = vmatpush1.msra.mxu0 0.0
    %6308 = vmatprep.subr.mxu0 0.0
    %6309 = vmatpush1.msra.mxu0 0.0
    %6310 = vmatprep.subr.mxu0 0.0
    %6311 = vmatpush1.msra.mxu0 0.0
    %6312 = vmatprep.subr.mxu0 0.0
    %6313 = vmatpush1.msra.mxu0 0.0
    %6314 = vmatprep.subr.mxu0 0.0
    %6315 = vmatpush1.msra.mxu0 0.0
    %6316 = vmatprep.subr.mxu0 0.0
    %6317 = vmatpush1.msra.mxu0 0.0
    %6318 = vmatprep.subr.mxu0 0.0
    %6319 = vmatpush1.msra.mxu0 0.0
    %6320 = vmatprep.subr.mxu0 0.0
    %6321 = vmatpush1.msra.mxu0 0.0
    %6322 = vmatprep.subr.mxu0 0.0
    %6323 = vmatpush1.msra.mxu0 %v6280
    %6324 = vmatprep.subr.mxu0 0.0
    %6325 = vmatpush1.msra.mxu0 %v6279
    %6326 = vmatprep.subr.mxu0 0.0
    %6327 = vmatpush1.msra.mxu0 %v6278
    %6328 = vmatprep.subr.mxu0 0.0
    %6329 = vmatpush1.msra.mxu0 %v6277
    %6330 = vmatprep.subr.mxu0 0.0
    %6331 = vmatpush2.msra.mxu0 0.0
    %6332 = vmatprep.subr.mxu0 0.0
    %6333 = vmatpush2.msra.mxu0 0.0
    %6334 = vmatprep.subr.mxu0 0.0
    %6335 = vmatpush2.msra.mxu0 0.0
    %6336 = vmatprep.subr.mxu0 0.0
    %6337 = vmatpush2.msra.mxu0 0.0
    %6338 = vmatprep.subr.mxu0 0.0
    %6339 = vmatpush2.msra.mxu0 0.0
    %6340 = vmatprep.subr.mxu0 0.0
    %6341 = vmatpush2.msra.mxu0 0.0
    %6342 = vmatprep.subr.mxu0 0.0
    %6343 = vmatpush2.msra.mxu0 0.0
    %6344 = vmatprep.subr.mxu0 0.0
    %6345 = vmatpush2.msra.mxu0 0.0
    %6346 = vmatprep.subr.mxu0 0.0
    %6347 = vmatpush2.msra.mxu0 0.0
    %6348 = vmatprep.subr.mxu0 0.0
    %6349 = vmatpush2.msra.mxu0 0.0
    %6350 = vmatprep.subr.mxu0 0.0
    %6351 = vmatpush2.msra.mxu0 0.0
    %6352 = vmatprep.subr.mxu0 0.0
    %6353 = vmatpush2.msra.mxu0 0.0
    %6354 = vmatprep.subr.mxu0 0.0
    %6355 = vmatpush2.msra.mxu0 0.0
    %6356 = vmatprep.subr.mxu0 0.0
    %6357 = vmatpush2.msra.mxu0 0.0
    %6358 = vmatprep.subr.mxu0 0.0
    %6359 = vmatpush2.msra.mxu0 0.0
    %6360 = vmatprep.subr.mxu0 0.0
    %6361 = vmatpush2.msra.mxu0 0.0
    %6362 = vmatprep.mubr.f32.mxu0 0.0
    %6363 = vmatmul.mubr.f32.gmra.mxu0 %v6287
    %v6364 = vpop.f32.mrf.mxu0
    %v6365 = vadd.f32 %v6285, %v6364
    %v6366 = vpop.f32.mrf.mxu0
    %6367 = vmatprep.mubr.f32.mxu0 0.0
    %6368 = vmatmul.mubr.f32.gmra.mxu0 %v6290
    %v6369 = vpop.f32.mrf.mxu0
    %v6370 = vadd.f32 %v6285, %v6369
    %v6371 = vpop.f32.mrf.mxu0
    %6372 = vmatprep.mubr.f32.mxu0 0.0
    %6373 = vmatmul.mubr.f32.gmra.mxu0 %v6293
    %v6374 = vpop.f32.mrf.mxu0
    %v6375 = vadd.f32 %v6285, %v6374
    %v6376 = vpop.f32.mrf.mxu0
    %6377 = vmatprep.mubr.f32.mxu0 0.0
    %6378 = vmatmul.mubr.f32.gmra.mxu0 %v6296
    %v6379 = vpop.f32.mrf.mxu0
    %v6380 = vadd.f32 %v6285, %v6379
    %v6381 = vpop.f32.mrf.mxu0
    %6382 = vdwg.mxu0
    %v6383 = vmul.f32 %v6365, %v6365
    %v6384 = vmul.f32 %v6370, %v6370
    %v6385 = vmul.f32 %v6375, %v6375
    %v6386 = vmul.f32 %v6380, %v6380
    %v6387 = vmul.f32 %v6365, %v6383
    %v6388 = vmul.f32 %v6370, %v6384
    %v6389 = vmul.f32 %v6375, %v6385
    %v6390 = vmul.f32 %v6380, %v6386
    %v6391 = vmul.f32 %v6387, 0.044715
    %v6392 = vmul.f32 %v6388, 0.044715
    %v6393 = vmul.f32 %v6389, 0.044715
    %v6394 = vmul.f32 %v6390, 0.044715
    %v6395 = vadd.f32 %v6365, %v6391
    %v6396 = vadd.f32 %v6370, %v6392
    %v6397 = vadd.f32 %v6375, %v6393
    %v6398 = vadd.f32 %v6380, %v6394
    %v6399 = vmul.f32 %v6395, 0.7978846
    %v6400 = vmul.f32 %v6396, 0.7978846
    %v6401 = vmul.f32 %v6397, 0.7978846
    %v6402 = vmul.f32 %v6398, 0.7978846
    %v6403 = vtanh.pop %v6399
    %v6404 = vtanh.pop %v6400
    %v6405 = vtanh.pop %v6401
    %v6406 = vtanh.pop %v6402
    %v6407 = vadd.f32 %v6403, 1.0
    %v6408 = vadd.f32 %v6404, 1.0
    %v6409 = vadd.f32 %v6405, 1.0
    %v6410 = vadd.f32 %v6406, 1.0
    %v6411 = vmul.f32 %v6407, 0.5
    %v6412 = vmul.f32 %v6408, 0.5
    %v6413 = vmul.f32 %v6409, 0.5
    %v6414 = vmul.f32 %v6410, 0.5
    %v6415 = vmul.f32 %v6365, %v6411
    %v6416 = vmul.f32 %v6370, %v6412
    %v6417 = vmul.f32 %v6375, %v6413
    %v6418 = vmul.f32 %v6380, %v6414
    %v6419 = vld [vmem:[#allocation2 + $0x1b0] sm:$0xff]
    %v6420 = vld [vmem:[#allocation2 + $0x1b8] sm:$0xff]
    %v6421 = vld [vmem:[#allocation2 + $0x1c0] sm:$0xff]
    %v6422 = vld [vmem:[#allocation2 + $0x1c8] sm:$0xff]
    %v6423 = vld [vmem:[#allocation2 + $0x1d0] sm:$0xff]
    %v6424 = vld [vmem:[#allocation2 + $0x1d8] sm:$0xff]
    %v6425 = vld [vmem:[#allocation2 + $0x1e0] sm:$0xff]
    %v6426 = vld [vmem:[#allocation2 + $0x1e8] sm:$0xff]
    %v6427 = vld [vmem:[#allocation4 + $0xa0] sm:$0x1]
    %v6428 = vlaneseq
    %v6429 = vshrl.u32 %v6428, 7
    %v6430 = vsub.s32 0, %v6429
    %v6431 = vrot.slane %v6427, %v6430
    %vm6432 = vcmask 523264
    %v6434 = vsel %vm6432, %v6415, 0
    %v6437 = vsel %vm6432, %v6416, 0
    %v6440 = vsel %vm6432, %v6417, 0
    %v6443 = vsel %vm6432, %v6418, 0
    %6445 = vmatprep.subr.mxu0 0.0
    %6446 = vmatpush1.msra.mxu0 0.0
    %6447 = vmatprep.subr.mxu0 0.0
    %6448 = vmatpush1.msra.mxu0 0.0
    %6449 = vmatprep.subr.mxu0 0.0
    %6450 = vmatpush1.msra.mxu0 0.0
    %6451 = vmatprep.subr.mxu0 0.0
    %6452 = vmatpush1.msra.mxu0 0.0
    %6453 = vmatprep.subr.mxu0 0.0
    %6454 = vmatpush1.msra.mxu0 0.0
    %6455 = vmatprep.subr.mxu0 0.0
    %6456 = vmatpush1.msra.mxu0 0.0
    %6457 = vmatprep.subr.mxu0 0.0
    %6458 = vmatpush1.msra.mxu0 0.0
    %6459 = vmatprep.subr.mxu0 0.0
    %6460 = vmatpush1.msra.mxu0 0.0
    %6461 = vmatprep.subr.mxu0 0.0
    %6462 = vmatpush1.msra.mxu0 %v6426
    %6463 = vmatprep.subr.mxu0 0.0
    %6464 = vmatpush1.msra.mxu0 %v6425
    %6465 = vmatprep.subr.mxu0 0.0
    %6466 = vmatpush1.msra.mxu0 %v6424
    %6467 = vmatprep.subr.mxu0 0.0
    %6468 = vmatpush1.msra.mxu0 %v6423
    %6469 = vmatprep.subr.mxu0 0.0
    %6470 = vmatpush1.msra.mxu0 %v6422
    %6471 = vmatprep.subr.mxu0 0.0
    %6472 = vmatpush1.msra.mxu0 %v6421
    %6473 = vmatprep.subr.mxu0 0.0
    %6474 = vmatpush1.msra.mxu0 %v6420
    %6475 = vmatprep.subr.mxu0 0.0
    %6476 = vmatpush1.msra.mxu0 %v6419
    %6477 = vmatprep.subr.mxu0 0.0
    %6478 = vmatpush2.msra.mxu0 0.0
    %6479 = vmatprep.subr.mxu0 0.0
    %6480 = vmatpush2.msra.mxu0 0.0
    %6481 = vmatprep.subr.mxu0 0.0
    %6482 = vmatpush2.msra.mxu0 0.0
    %6483 = vmatprep.subr.mxu0 0.0
    %6484 = vmatpush2.msra.mxu0 0.0
    %6485 = vmatprep.subr.mxu0 0.0
    %6486 = vmatpush2.msra.mxu0 0.0
    %6487 = vmatprep.subr.mxu0 0.0
    %6488 = vmatpush2.msra.mxu0 0.0
    %6489 = vmatprep.subr.mxu0 0.0
    %6490 = vmatpush2.msra.mxu0 0.0
    %6491 = vmatprep.subr.mxu0 0.0
    %6492 = vmatpush2.msra.mxu0 0.0
    %6493 = vmatprep.subr.mxu0 0.0
    %6494 = vmatpush2.msra.mxu0 0.0
    %6495 = vmatprep.subr.mxu0 0.0
    %6496 = vmatpush2.msra.mxu0 0.0
    %6497 = vmatprep.subr.mxu0 0.0
    %6498 = vmatpush2.msra.mxu0 0.0
    %6499 = vmatprep.subr.mxu0 0.0
    %6500 = vmatpush2.msra.mxu0 0.0
    %6501 = vmatprep.subr.mxu0 0.0
    %6502 = vmatpush2.msra.mxu0 0.0
    %6503 = vmatprep.subr.mxu0 0.0
    %6504 = vmatpush2.msra.mxu0 0.0
    %6505 = vmatprep.subr.mxu0 0.0
    %6506 = vmatpush2.msra.mxu0 0.0
    %6507 = vmatprep.subr.mxu0 0.0
    %6508 = vmatpush2.msra.mxu0 0.0
    %6509 = vmatprep.mubr.f32.mxu0 0.0
    %6510 = vmatmul.mubr.f32.gmra.mxu0 %v6434
    %v6511 = vpop.f32.mrf.mxu0
    %v6512 = vadd.f32 %v6431, %v6511
    %v6513 = vpop.f32.mrf.mxu0
    %6514 = vmatprep.mubr.f32.mxu0 0.0
    %6515 = vmatmul.mubr.f32.gmra.mxu0 %v6437
    %v6516 = vpop.f32.mrf.mxu0
    %v6517 = vadd.f32 %v6431, %v6516
    %v6518 = vpop.f32.mrf.mxu0
    %6519 = vmatprep.mubr.f32.mxu0 0.0
    %6520 = vmatmul.mubr.f32.gmra.mxu0 %v6440
    %v6521 = vpop.f32.mrf.mxu0
    %v6522 = vadd.f32 %v6431, %v6521
    %v6523 = vpop.f32.mrf.mxu0
    %6524 = vmatprep.mubr.f32.mxu0 0.0
    %6525 = vmatmul.mubr.f32.gmra.mxu0 %v6443
    %v6526 = vpop.f32.mrf.mxu0
    %v6527 = vadd.f32 %v6431, %v6526
    %v6528 = vpop.f32.mrf.mxu0
    %6529 = vdwg.mxu0
    %v6530 = vadd.f32 %v6203, %v6512
    %v6531 = vadd.f32 %v6204, %v6517
    %v6532 = vadd.f32 %v6205, %v6522
    %v6533 = vadd.f32 %v6206, %v6527
    %6534 = vst.msk [vmem:[%s4] sm:$0xff] %vm51, %v6530
    %6535 = vst.msk [vmem:[%s4 + $0x8] sm:$0xff] %vm51, %v6531
    %6536 = vst.msk [vmem:[%s4 + $0x10] sm:$0xff] %vm51, %v6532
    %6537 = vst.msk [vmem:[%s4 + $0x18] sm:$0xff] %vm51, %v6533
    // Predicated region
    $region26: #{mga_layer_forward.1} parent=1 // pred_check
      _
    $region27: #{mga_layer_forward.1} parent=1 // pred_check_branch
      %6539 = sbr.rel (0) target = $region29
    $region28: #{mga_layer_forward.1} parent=1 // pred_region
      _
    $region29: #{mga_layer_forward.1} parent=1 // pred_fallthru
      _
    // Predicated region
    $region30: #{mga_layer_forward.1} parent=1 // pred_check
      _
    $region31: #{mga_layer_forward.1} parent=1 // pred_check_branch
      %6541 = sbr.rel (0) target = $region33
    $region32: #{mga_layer_forward.1} parent=1 // pred_region
      _
    $region33: #{mga_layer_forward.1} parent=1 // pred_fallthru
      _
    %6542 = vsyncpa [#allocation3], 1
    %6543 = vsyncpa [#allocation5], 1

</llo_original>
